<compile_context>
chip_gen: v6e
topology: v6e:2x2x1
jax: 0.10.0
libtpu: 0.0.40
codegen_flags: <defaults>
</compile_context>

<pallas_src>
import functools

import jax
import jax.numpy as jnp
from jax.experimental import pallas as pl
from jax.experimental.pallas import tpu as pltpu


def convdqn_kernel(x_ref, w1_ref, b1_ref, w2_ref, b2_ref,
                   wf1_ref, bf1_ref, wf2_ref, bf2_ref, out_ref, *, w_real):
    TB, W, _ = x_ref.shape                  # W here is the padded window (mult of 8)
    cdt = w1_ref.dtype                      # MXU operand dtype (bf16 or f32)

    x = x_ref[...]                          # (TB, W, Cin)

    # Per-sample time-index masks, built once and shared by both conv layers.
    t_idx = jax.lax.broadcasted_iota(jnp.int32, (TB, W, 1), 1)
    is_first = t_idx == 0
    is_last = t_idx == (W - 1)

    def conv_relu(v, w_ref_, b_ref_):
        # Shift along the time (sublane) axis of the (TB, W, C) block -> shifts are
        # per-sample, so kernel taps never cross batch-row boundaries.
        prev = jnp.where(is_first, 0.0, pltpu.roll(v, shift=1, axis=1))
        nxt = jnp.where(is_last, 0.0, pltpu.roll(v, shift=W - 1, axis=1))
        col = jnp.concatenate([prev, v, nxt], axis=-1)          # (TB, W, 3C) im2col
        col2 = col.reshape(TB * W, col.shape[-1]).astype(cdt)   # fold batch into M
        y = jnp.dot(col2, w_ref_[...], preferred_element_type=jnp.float32)
        y = jnp.maximum(y + b_ref_[...], 0.0)                   # bias + ReLU in f32
        return y.reshape(TB, W, -1)

    h1 = conv_relu(x, w1_ref, b1_ref)       # (TB, W, 32)
    if w_real != W:
        # Zero the padded timesteps so conv2's taps at the real sequence boundary
        # see exactly the zeros PyTorch's padding=1 would provide.
        h1 = jnp.where(t_idx < w_real, h1, 0.0)
    h2 = conv_relu(h1, w2_ref, b2_ref)      # (TB, W, 64)

    # fc1 (fused): build (TB, W*64) on the lane axis and do one K=W*64 matmul.
    # Column index t*64+c matches the (t, c)-ordering baked into wf1_ref by the
    # wrapper (which also absorbs PyTorch's channel-major flatten). Padded
    # timesteps hit all-zero rows of wf1_ref, so they contribute nothing.
    flat = jnp.concatenate([h2[:, t, :] for t in range(W)], axis=-1)   # (TB, W*64)
    f1 = jnp.dot(flat.astype(cdt), wf1_ref[...],
                 preferred_element_type=jnp.float32)
    f1 = jnp.maximum(f1 + bf1_ref[...], 0.0)                    # (TB, 128) f32

    # fc2 (transposed): (o_pad, 128) . (TB, 128)^T -> (o_pad, TB).  Stored as a
    # small sublane x lane-dense block, so the HBM writeback is o_pad*TB*4 bytes
    # instead of 128 padded f32 lanes per sample.
    out_t = jax.lax.dot_general(
        wf2_ref[...], f1.astype(cdt),
        dimension_numbers=(((1,), (1,)), ((), ())),
        preferred_element_type=jnp.float32)
    out_ref[...] = out_t + bf2_ref[...]


def _round_up(a, m):
    return ((a + m - 1) // m) * m


def convdqn_forward(x, params, *, block_b=1024, compute_dtype=jnp.bfloat16):
    """x: (B, W, C_in); params: PyTorch-convention ConvDQN weights.

    compute_dtype affects only the MXU operands (accumulation, bias, ReLU stay
    f32). bf16 is the production default (v6e/v7x MXUs are bf16-native); pass
    jnp.float32 for a numerically tight path.
    """
    w1, b1, w2, b2, wf1, bf1, wf2, bf2 = params
    B, W, Cin = x.shape
    out_dim, hidden = wf2.shape                                  # (out_dim, 128)

    # Time axis padded to a multiple of 8 so the (TB,W,C)<->(TB*W,C) collapses in
    # the kernel stay layout-free.
    W_pad = _round_up(W, 8)

    # Batch tile: multiple of 128 (lane axis of the transposed output block),
    # capped at block_b, and capped so there are >=2 grid steps when B allows it
    # (keeps both v7x TensorCores busy; the "parallel" grid axis shards them).
    n_blk = max(1, pl.cdiv(B, 128))
    tb_blocks = min(max(block_b // 128, 1), n_blk)
    if n_blk >= 2:
        tb_blocks = min(tb_blocks, pl.cdiv(n_blk, 2))
    TB = tb_blocks * 128
    B_pad = _round_up(B, TB)

    # Output rows padded to a multiple of 8 sublanes (>= 8).
    o_pad = max(8, _round_up(out_dim, 8))

    # --- Re-arrange PyTorch-convention weights for the kernel layout (glue only) ---
    # Conv weights -> im2col matrices (row index = k*Cin_layer + in_channel).
    w1k = jnp.transpose(w1, (2, 1, 0)).reshape(3 * Cin, 32).astype(compute_dtype)
    w2k = jnp.transpose(w2, (2, 1, 0)).reshape(3 * 32, 64).astype(compute_dtype)
    # fc1 weight -> (W, 64, 128): (t, c) ordering matches PyTorch's channel-major
    # flatten; zero-pad the time axis and flatten to (W_pad*64, 128) for the fused
    # single-matmul fc1.
    wf1r = jnp.transpose(wf1.reshape(hidden, 64, W), (2, 1, 0))
    if W_pad != W:
        wf1r = jnp.pad(wf1r, ((0, W_pad - W), (0, 0), (0, 0)))
    wf1r = wf1r.reshape(W_pad * 64, hidden).astype(compute_dtype)
    # fc2 weight/bias, zero-padded to o_pad rows (transposed-output form).
    wf2t = jnp.zeros((o_pad, hidden), jnp.float32).at[:out_dim, :].set(wf2)
    wf2t = wf2t.astype(compute_dtype)
    bf2p = jnp.zeros((o_pad, 1), jnp.float32).at[:out_dim, 0].set(bf2)
    # Biases stay f32 (added after the f32-accumulated matmuls).
    b1r = b1.reshape(1, 32).astype(jnp.float32)
    b2r = b2.reshape(1, 64).astype(jnp.float32)
    bf1r = bf1.reshape(1, hidden).astype(jnp.float32)

    # Input: cast to the MXU operand dtype in the wrapper (halves input DMA for
    # bf16) and zero-pad time / batch.
    xp = x.astype(compute_dtype)
    if W_pad != W:
        xp = jnp.pad(xp, ((0, 0), (0, W_pad - W), (0, 0)))
    if B_pad != B:
        xp = jnp.pad(xp, ((0, B_pad - B), (0, 0), (0, 0)))

    out = pl.pallas_call(
        functools.partial(convdqn_kernel, w_real=W),
        out_shape=jax.ShapeDtypeStruct((o_pad, B_pad), jnp.float32),
        grid=(B_pad // TB,),
        in_specs=[
            pl.BlockSpec((TB, W_pad, Cin), lambda b: (b, 0, 0)),
            # Constant index maps -> weights stay resident in VMEM across steps.
            pl.BlockSpec(w1k.shape, lambda b: (0, 0)),
            pl.BlockSpec(b1r.shape, lambda b: (0, 0)),
            pl.BlockSpec(w2k.shape, lambda b: (0, 0)),
            pl.BlockSpec(b2r.shape, lambda b: (0, 0)),
            pl.BlockSpec(wf1r.shape, lambda b: (0, 0)),
            pl.BlockSpec(bf1r.shape, lambda b: (0, 0)),
            pl.BlockSpec(wf2t.shape, lambda b: (0, 0)),
            pl.BlockSpec(bf2p.shape, lambda b: (0, 0)),
        ],
        out_specs=pl.BlockSpec((o_pad, TB), lambda b: (0, b)),
        compiler_params=pltpu.CompilerParams(
            dimension_semantics=("parallel",),
            # ~20 MiB working set at TB=1024 f32; 48 MiB leaves headroom, clears
            # v5e's 16 MiB / v6e-v7x's 32 MiB scoped defaults, and stays below
            # v7x's 64 MiB physical VMEM.
            vmem_limit_bytes=48 * 1024 * 1024,
        ),
    )(xp, w1k, b1r, w2k, b2r, wf1r, bf1r, wf2t, bf2p)

    return jnp.transpose(out[:out_dim, :B])


def reference_forward(x, params):
    """Pure-JAX reference mirroring PyTorch semantics exactly."""
    w1, b1, w2, b2, wf1, bf1, wf2, bf2 = params

    def conv1d(v_ncw, w, b):  # v: (B, Ci, W), w: (Co, Ci, 3)
        vp = jnp.pad(v_ncw, ((0, 0), (0, 0), (1, 1)))
        Wlen = v_ncw.shape[2]
        cols = jnp.stack([vp[:, :, k:k + Wlen] for k in range(3)], axis=-1)
        return jnp.einsum('oik,biwk->bow', w, cols) + b[None, :, None]

    xc = jnp.transpose(x, (0, 2, 1))                  # permute(0, 2, 1)
    h1 = jax.nn.relu(conv1d(xc, w1, b1))              # (B, 32, W)
    h2 = jax.nn.relu(conv1d(h1, w2, b2))              # (B, 64, W)
    flat = h2.reshape(h2.shape[0], -1)                # channel-major flatten
    f1 = jax.nn.relu(flat @ wf1.T + bf1)
    return f1 @ wf2.T + bf2


if __name__ == "__main__":
    def make_params(key, cin, window, out_dim, hidden=128):
        ks = jax.random.split(key, 8)
        return (
            jax.random.normal(ks[0], (32, cin, 3), jnp.float32) * 0.1,      # conv1.w
            jax.random.normal(ks[1], (32,), jnp.float32) * 0.1,             # conv1.b
            jax.random.normal(ks[2], (64, 32, 3), jnp.float32) * 0.1,       # conv2.w
            jax.random.normal(ks[3], (64,), jnp.float32) * 0.1,             # conv2.b
            jax.random.normal(ks[4], (hidden, 64 * window), jnp.float32) * 0.05,  # fc1.w
            jax.random.normal(ks[5], (hidden,), jnp.float32) * 0.05,        # fc1.b
            jax.random.normal(ks[6], (out_dim, hidden), jnp.float32) * 0.05,  # fc2.w
            jax.random.normal(ks[7], (out_dim,), jnp.float32) * 0.05,       # fc2.b
        )

    key = jax.random.PRNGKey(0)
    kp, kx1, kx2, kp2, kx3 = jax.random.split(key, 5)

    W, Cin, out_dim = 8, 4, 3
    params = make_params(kp, Cin, W, out_dim)

    # 1) Small batch, strict f32 path (TB=128, single grid step).
    x = jax.random.normal(kx1, (2, W, Cin), jnp.float32)
    out = jax.block_until_ready(convdqn_forward(x, params, compute_dtype=jnp.float32))
    ref = reference_forward(x, params)
    assert out.shape == (2, out_dim)
    assert jnp.allclose(out, ref, atol=1e-3, rtol=1e-3)

    # 2) Larger, non-multiple batch, f32 (TB=256, 2 grid steps, batch padding).
    xb = jax.random.normal(kx2, (300, W, Cin), jnp.float32)
    outb = jax.block_until_ready(convdqn_forward(xb, params, compute_dtype=jnp.float32))
    refb = reference_forward(xb, params)
    assert outb.shape == (300, out_dim)
    assert jnp.allclose(outb, refb, atol=1e-3, rtol=1e-3)

    # 3) Production default (bf16 MXU operands, f32 accumulate) - looser tolerance.
    outb16 = jax.block_until_ready(convdqn_forward(xb, params))
    assert outb16.shape == (300, out_dim)
    assert jnp.allclose(outb16, refb, atol=5e-2, rtol=5e-2)

    # 4) Window not a multiple of 8 -> wrapper zero-pads the time axis.
    W2 = 6
    params2 = make_params(kp2, Cin, W2, out_dim)
    x2 = jax.random.normal(kx3, (4, W2, Cin), jnp.float32)
    out2 = jax.block_until_ready(convdqn_forward(x2, params2, compute_dtype=jnp.float32))
    ref2 = reference_forward(x2, params2)
    assert out2.shape == (4, out_dim)
    assert jnp.allclose(out2, ref2, atol=1e-3, rtol=1e-3)

    print("KERNEL_OK")
</pallas_src>

<mosaic_0001>
module attributes {stable_mosaic.version = 11 : i64} {
  func.func @convdqn_kernel(%arg0: i32, %arg1: memref<128x8x4xf32, #tpu.memory_space<vmem>>, %arg2: memref<12x32xf32, #tpu.memory_space<vmem>>, %arg3: memref<1x32xf32, #tpu.memory_space<vmem>>, %arg4: memref<96x64xf32, #tpu.memory_space<vmem>>, %arg5: memref<1x64xf32, #tpu.memory_space<vmem>>, %arg6: memref<512x128xf32, #tpu.memory_space<vmem>>, %arg7: memref<1x128xf32, #tpu.memory_space<vmem>>, %arg8: memref<8x128xf32, #tpu.memory_space<vmem>>, %arg9: memref<8x1xf32, #tpu.memory_space<vmem>>, %arg10: memref<8x128xf32, #tpu.memory_space<vmem>>) attributes {dimension_semantics = [#tpu.dimension_semantics<parallel>], iteration_bounds = array<i64: 1>, scalar_prefetch = 0 : i64, scratch_operands = 0 : i64, tpu.core_type = #tpu.core_type<tc>, window_params = [{transform_indices = @transform_0, window_bounds = array<i64: 128, 8, 4>}, {pipeline_mode = #tpu.pipeline_mode<synchronous>, transform_indices = @transform_1, window_bounds = array<i64: 12, 32>}, {pipeline_mode = #tpu.pipeline_mode<synchronous>, transform_indices = @transform_2, window_bounds = array<i64: 1, 32>}, {pipeline_mode = #tpu.pipeline_mode<synchronous>, transform_indices = @transform_3, window_bounds = array<i64: 96, 64>}, {pipeline_mode = #tpu.pipeline_mode<synchronous>, transform_indices = @transform_4, window_bounds = array<i64: 1, 64>}, {pipeline_mode = #tpu.pipeline_mode<synchronous>, transform_indices = @transform_5, window_bounds = array<i64: 512, 128>}, {pipeline_mode = #tpu.pipeline_mode<synchronous>, transform_indices = @transform_6, window_bounds = array<i64: 1, 128>}, {pipeline_mode = #tpu.pipeline_mode<synchronous>, transform_indices = @transform_7, window_bounds = array<i64: 8, 128>}, {pipeline_mode = #tpu.pipeline_mode<synchronous>, transform_indices = @transform_8, window_bounds = array<i64: 8, 1>}, {transform_indices = @transform_9, window_bounds = array<i64: 8, 128>}]} {
    %c0 = arith.constant 0 : index
    %c0_0 = arith.constant 0 : index
    %c0_1 = arith.constant 0 : index
    %0 = vector.load %arg1[%c0, %c0_0, %c0_1] : memref<128x8x4xf32, #tpu.memory_space<vmem>>, vector<128x8x4xf32>
    %1 = tpu.iota {dimensions = array<i32: 1>} : vector<128x8x1xi32>
    %c0_i32 = arith.constant 0 : i32
    %2 = vector.broadcast %c0_i32 : i32 to vector<128x8x1xi32>
    %3 = arith.cmpi eq, %1, %2 : vector<128x8x1xi32>
    %c7_i32 = arith.constant 7 : i32
    %4 = vector.broadcast %c7_i32 : i32 to vector<128x8x1xi32>
    %5 = arith.cmpi eq, %1, %4 : vector<128x8x1xi32>
    %c1_i32 = arith.constant 1 : i32
    %6 = tpu.dynamic_rotate %0 by %c1_i32 dim 1 : vector<128x8x4xf32>, i32 -> vector<128x8x4xf32>
    %cst = arith.constant 0.000000e+00 : f32
    %7 = vector.shape_cast %3 : vector<128x8x1xi1> to vector<128x8x1xi1>
    %8 = vector.broadcast %7 : vector<128x8x1xi1> to vector<128x8x4xi1>
    %9 = vector.broadcast %cst : f32 to vector<128x8x4xf32>
    %10 = arith.select %8, %9, %6 : vector<128x8x4xi1>, vector<128x8x4xf32>
    %c7_i32_2 = arith.constant 7 : i32
    %11 = tpu.dynamic_rotate %0 by %c7_i32_2 dim 1 : vector<128x8x4xf32>, i32 -> vector<128x8x4xf32>
    %cst_3 = arith.constant 0.000000e+00 : f32
    %12 = vector.shape_cast %5 : vector<128x8x1xi1> to vector<128x8x1xi1>
    %13 = vector.broadcast %12 : vector<128x8x1xi1> to vector<128x8x4xi1>
    %14 = vector.broadcast %cst_3 : f32 to vector<128x8x4xf32>
    %15 = arith.select %13, %14, %11 : vector<128x8x4xi1>, vector<128x8x4xf32>
    %16 = tpu.concatenate %10, %0, %15 in 2 : vector<128x8x4xf32>, vector<128x8x4xf32>, vector<128x8x4xf32> -> vector<128x8x12xf32>
    %17 = vector.shape_cast %16 : vector<128x8x12xf32> to vector<1024x12xf32>
    %c0_4 = arith.constant 0 : index
    %c0_5 = arith.constant 0 : index
    %18 = vector.load %arg2[%c0_4, %c0_5] : memref<12x32xf32, #tpu.memory_space<vmem>>, vector<12x32xf32>
    %cst_6 = arith.constant dense<0.000000e+00> : vector<1024x32xf32>
    %19 = tpu.matmul %17, %18, %cst_6 {dimension_numbers = #tpu.dot_dimension_numbers<[1], [0], [0], [1], [0, 0, 1, 1], [], []>} : vector<1024x12xf32>, vector<12x32xf32>, vector<1024x32xf32> -> vector<1024x32xf32>
    %c0_7 = arith.constant 0 : index
    %c0_8 = arith.constant 0 : index
    %20 = vector.load %arg3[%c0_7, %c0_8] : memref<1x32xf32, #tpu.memory_space<vmem>>, vector<1x32xf32>
    %21 = vector.broadcast %20 : vector<1x32xf32> to vector<1024x32xf32>
    %22 = arith.addf %19, %21 : vector<1024x32xf32>
    %cst_9 = arith.constant 0.000000e+00 : f32
    %23 = vector.broadcast %cst_9 : f32 to vector<1024x32xf32>
    %24 = arith.maximumf %22, %23 : vector<1024x32xf32>
    %25 = vector.shape_cast %24 : vector<1024x32xf32> to vector<128x8x32xf32>
    %c1_i32_10 = arith.constant 1 : i32
    %26 = tpu.dynamic_rotate %25 by %c1_i32_10 dim 1 : vector<128x8x32xf32>, i32 -> vector<128x8x32xf32>
    %cst_11 = arith.constant 0.000000e+00 : f32
    %27 = vector.shape_cast %3 : vector<128x8x1xi1> to vector<128x8x1xi1>
    %28 = vector.broadcast %27 : vector<128x8x1xi1> to vector<128x8x32xi1>
    %29 = vector.broadcast %cst_11 : f32 to vector<128x8x32xf32>
    %30 = arith.select %28, %29, %26 : vector<128x8x32xi1>, vector<128x8x32xf32>
    %c7_i32_12 = arith.constant 7 : i32
    %31 = tpu.dynamic_rotate %25 by %c7_i32_12 dim 1 : vector<128x8x32xf32>, i32 -> vector<128x8x32xf32>
    %cst_13 = arith.constant 0.000000e+00 : f32
    %32 = vector.shape_cast %5 : vector<128x8x1xi1> to vector<128x8x1xi1>
    %33 = vector.broadcast %32 : vector<128x8x1xi1> to vector<128x8x32xi1>
    %34 = vector.broadcast %cst_13 : f32 to vector<128x8x32xf32>
    %35 = arith.select %33, %34, %31 : vector<128x8x32xi1>, vector<128x8x32xf32>
    %36 = tpu.concatenate %30, %25, %35 in 2 : vector<128x8x32xf32>, vector<128x8x32xf32>, vector<128x8x32xf32> -> vector<128x8x96xf32>
    %37 = vector.shape_cast %36 : vector<128x8x96xf32> to vector<1024x96xf32>
    %c0_14 = arith.constant 0 : index
    %c0_15 = arith.constant 0 : index
    %38 = vector.load %arg4[%c0_14, %c0_15] : memref<96x64xf32, #tpu.memory_space<vmem>>, vector<96x64xf32>
    %cst_16 = arith.constant dense<0.000000e+00> : vector<1024x64xf32>
    %39 = tpu.matmul %37, %38, %cst_16 {dimension_numbers = #tpu.dot_dimension_numbers<[1], [0], [0], [1], [0, 0, 1, 1], [], []>} : vector<1024x96xf32>, vector<96x64xf32>, vector<1024x64xf32> -> vector<1024x64xf32>
    %c0_17 = arith.constant 0 : index
    %c0_18 = arith.constant 0 : index
    %40 = vector.load %arg5[%c0_17, %c0_18] : memref<1x64xf32, #tpu.memory_space<vmem>>, vector<1x64xf32>
    %41 = vector.broadcast %40 : vector<1x64xf32> to vector<1024x64xf32>
    %42 = arith.addf %39, %41 : vector<1024x64xf32>
    %cst_19 = arith.constant 0.000000e+00 : f32
    %43 = vector.broadcast %cst_19 : f32 to vector<1024x64xf32>
    %44 = arith.maximumf %42, %43 : vector<1024x64xf32>
    %45 = vector.shape_cast %44 : vector<1024x64xf32> to vector<128x8x64xf32>
    %46 = vector.extract_strided_slice %45 {offsets = [0, 0, 0], sizes = [128, 1, 64], strides = [1, 1, 1]} : vector<128x8x64xf32> to vector<128x1x64xf32>
    %47 = vector.shape_cast %46 : vector<128x1x64xf32> to vector<128x64xf32>
    %48 = vector.extract_strided_slice %45 {offsets = [0, 1, 0], sizes = [128, 1, 64], strides = [1, 1, 1]} : vector<128x8x64xf32> to vector<128x1x64xf32>
    %49 = vector.shape_cast %48 : vector<128x1x64xf32> to vector<128x64xf32>
    %50 = vector.extract_strided_slice %45 {offsets = [0, 2, 0], sizes = [128, 1, 64], strides = [1, 1, 1]} : vector<128x8x64xf32> to vector<128x1x64xf32>
    %51 = vector.shape_cast %50 : vector<128x1x64xf32> to vector<128x64xf32>
    %52 = vector.extract_strided_slice %45 {offsets = [0, 3, 0], sizes = [128, 1, 64], strides = [1, 1, 1]} : vector<128x8x64xf32> to vector<128x1x64xf32>
    %53 = vector.shape_cast %52 : vector<128x1x64xf32> to vector<128x64xf32>
    %54 = vector.extract_strided_slice %45 {offsets = [0, 4, 0], sizes = [128, 1, 64], strides = [1, 1, 1]} : vector<128x8x64xf32> to vector<128x1x64xf32>
    %55 = vector.shape_cast %54 : vector<128x1x64xf32> to vector<128x64xf32>
    %56 = vector.extract_strided_slice %45 {offsets = [0, 5, 0], sizes = [128, 1, 64], strides = [1, 1, 1]} : vector<128x8x64xf32> to vector<128x1x64xf32>
    %57 = vector.shape_cast %56 : vector<128x1x64xf32> to vector<128x64xf32>
    %58 = vector.extract_strided_slice %45 {offsets = [0, 6, 0], sizes = [128, 1, 64], strides = [1, 1, 1]} : vector<128x8x64xf32> to vector<128x1x64xf32>
    %59 = vector.shape_cast %58 : vector<128x1x64xf32> to vector<128x64xf32>
    %60 = vector.extract_strided_slice %45 {offsets = [0, 7, 0], sizes = [128, 1, 64], strides = [1, 1, 1]} : vector<128x8x64xf32> to vector<128x1x64xf32>
    %61 = vector.shape_cast %60 : vector<128x1x64xf32> to vector<128x64xf32>
    %62 = tpu.concatenate %47, %49, %51, %53, %55, %57, %59, %61 in 1 : vector<128x64xf32>, vector<128x64xf32>, vector<128x64xf32>, vector<128x64xf32>, vector<128x64xf32>, vector<128x64xf32>, vector<128x64xf32>, vector<128x64xf32> -> vector<128x512xf32>
    %c0_20 = arith.constant 0 : index
    %c0_21 = arith.constant 0 : index
    %63 = vector.load %arg6[%c0_20, %c0_21] : memref<512x128xf32, #tpu.memory_space<vmem>>, vector<512x128xf32>
    %cst_22 = arith.constant dense<0.000000e+00> : vector<128x128xf32>
    %64 = tpu.matmul %62, %63, %cst_22 {dimension_numbers = #tpu.dot_dimension_numbers<[1], [0], [0], [1], [0, 0, 1, 1], [], []>} : vector<128x512xf32>, vector<512x128xf32>, vector<128x128xf32> -> vector<128x128xf32>
    %c0_23 = arith.constant 0 : index
    %c0_24 = arith.constant 0 : index
    %65 = vector.load %arg7[%c0_23, %c0_24] : memref<1x128xf32, #tpu.memory_space<vmem>>, vector<1x128xf32>
    %66 = vector.broadcast %65 : vector<1x128xf32> to vector<128x128xf32>
    %67 = arith.addf %64, %66 : vector<128x128xf32>
    %cst_25 = arith.constant 0.000000e+00 : f32
    %68 = vector.broadcast %cst_25 : f32 to vector<128x128xf32>
    %69 = arith.maximumf %67, %68 : vector<128x128xf32>
    %c0_26 = arith.constant 0 : index
    %c0_27 = arith.constant 0 : index
    %70 = vector.load %arg8[%c0_26, %c0_27] : memref<8x128xf32, #tpu.memory_space<vmem>>, vector<8x128xf32>
    %cst_28 = arith.constant dense<0.000000e+00> : vector<8x128xf32>
    %71 = tpu.matmul %70, %69, %cst_28 {dimension_numbers = #tpu.dot_dimension_numbers<[1], [1], [0], [0], [0, 0, 1, 0], [], []>} : vector<8x128xf32>, vector<128x128xf32>, vector<8x128xf32> -> vector<8x128xf32>
    %c0_29 = arith.constant 0 : index
    %c0_30 = arith.constant 0 : index
    %72 = vector.load %arg9[%c0_29, %c0_30] : memref<8x1xf32, #tpu.memory_space<vmem>>, vector<8x1xf32>
    %73 = vector.broadcast %72 : vector<8x1xf32> to vector<8x128xf32>
    %74 = arith.addf %71, %73 : vector<8x128xf32>
    %c0_31 = arith.constant 0 : index
    %c0_32 = arith.constant 0 : index
    %75 = vector.load %arg10[%c0_31, %c0_32] : memref<8x128xf32, #tpu.memory_space<vmem>>, vector<8x128xf32>
    tpu.vector_store %arg10[%c0_31, %c0_32], %74 {strides = array<i32>} : memref<8x128xf32, #tpu.memory_space<vmem>>, vector<8x128xf32>,
    return
  }
  func.func @transform_0(%arg0: i32) -> (i32, i32, i32) {
    %c0_i32 = arith.constant 0 : i32
    %c0_i32_0 = arith.constant 0 : i32
    %c0_i32_1 = arith.constant 0 : i32
    return %arg0, %c0_i32, %c0_i32_0 : i32, i32, i32
  }
  func.func @transform_1(%arg0: i32) -> (i32, i32) {
    %c0_i32 = arith.constant 0 : i32
    %c0_i32_0 = arith.constant 0 : i32
    %c0_i32_1 = arith.constant 0 : i32
    return %c0_i32, %c0_i32_0 : i32, i32
  }
  func.func @transform_2(%arg0: i32) -> (i32, i32) {
    %c0_i32 = arith.constant 0 : i32
    %c0_i32_0 = arith.constant 0 : i32
    %c0_i32_1 = arith.constant 0 : i32
    return %c0_i32, %c0_i32_0 : i32, i32
  }
  func.func @transform_3(%arg0: i32) -> (i32, i32) {
    %c0_i32 = arith.constant 0 : i32
    %c0_i32_0 = arith.constant 0 : i32
    %c0_i32_1 = arith.constant 0 : i32
    return %c0_i32, %c0_i32_0 : i32, i32
  }
  func.func @transform_4(%arg0: i32) -> (i32, i32) {
    %c0_i32 = arith.constant 0 : i32
    %c0_i32_0 = arith.constant 0 : i32
    %c0_i32_1 = arith.constant 0 : i32
    return %c0_i32, %c0_i32_0 : i32, i32
  }
  func.func @transform_5(%arg0: i32) -> (i32, i32) {
    %c0_i32 = arith.constant 0 : i32
    %c0_i32_0 = arith.constant 0 : i32
    %c0_i32_1 = arith.constant 0 : i32
    return %c0_i32, %c0_i32_0 : i32, i32
  }
  func.func @transform_6(%arg0: i32) -> (i32, i32) {
    %c0_i32 = arith.constant 0 : i32
    %c0_i32_0 = arith.constant 0 : i32
    %c0_i32_1 = arith.constant 0 : i32
    return %c0_i32, %c0_i32_0 : i32, i32
  }
  func.func @transform_7(%arg0: i32) -> (i32, i32) {
    %c0_i32 = arith.constant 0 : i32
    %c0_i32_0 = arith.constant 0 : i32
    %c0_i32_1 = arith.constant 0 : i32
    return %c0_i32, %c0_i32_0 : i32, i32
  }
  func.func @transform_8(%arg0: i32) -> (i32, i32) {
    %c0_i32 = arith.constant 0 : i32
    %c0_i32_0 = arith.constant 0 : i32
    %c0_i32_1 = arith.constant 0 : i32
    return %c0_i32, %c0_i32_0 : i32, i32
  }
  func.func @transform_9(%arg0: i32) -> (i32, i32) {
    %c0_i32 = arith.constant 0 : i32
    %c0_i32_0 = arith.constant 0 : i32
    return %c0_i32, %arg0 : i32, i32
  }
}

</mosaic_0001>

<llo_original>
// kernel: tpu_custom_call.1
$region0: #{tpu_custom_call.1}
  #allocation0 [shape = 'u32[]', space=smem, size = 0x4, offset = 0x4, fixed_abs, tag = 'smem constant byte address 0x4 - core index']
  #allocation1 [shape = 'u32[144,128]{1,0:T(1,128)}', space=vmem, size = 0x12000, scoped, tag = 'internal scratch']
  %s0 = inlined_call_operand.vmem [shape: f32[128,8,4], index: 0, kind: input, shape index: {}]
  %s1 = inlined_call_operand.vmem [shape: f32[12,32], index: 1, kind: input, shape index: {}]
  %s2 = inlined_call_operand.vmem [shape: f32[1,32], index: 2, kind: input, shape index: {}]
  %s3 = inlined_call_operand.vmem [shape: f32[96,64], index: 3, kind: input, shape index: {}]
  %s4 = inlined_call_operand.vmem [shape: f32[1,64], index: 4, kind: input, shape index: {}]
  %s5 = inlined_call_operand.vmem [shape: f32[512,128], index: 5, kind: input, shape index: {}]
  %s6 = inlined_call_operand.vmem [shape: f32[1,128], index: 6, kind: input, shape index: {}]
  %s7 = inlined_call_operand.vmem [shape: f32[8,128], index: 7, kind: input, shape index: {}]
  %s8 = inlined_call_operand.vmem [shape: f32[8,1], index: 8, kind: input, shape index: {}]
  %s9 = inlined_call_operand.hbm [shape: f32[8,128], index: 9, kind: output, shape index: {}]
  %s10 = sld [smem:[#allocation0]]
  $region46: #{tpu_custom_call.1} parent=0
    _
  %s12 = ssub.s32 1, %s10
  %s13 = scalar_select 0, %s12, %s10
  $region1: #{tpu_custom_call.1} parent=0
    #allocation2 [shape = 'u8[4096]{0}', space=vmem, size = 0x1000, scoped, tag = 'output window, operand 0, single buffered']
    #allocation3 [shape = 's32[1]{0}', space=sflag, size = 0x4, scoped, tag = 'scoped memory for tpu_custom_call.1']
    %14 = vsyncpa [#allocation3], 0
    // Predicated region
    $region2: #{tpu_custom_call.1} parent=1 // pred_check
      _
    $region3: #{tpu_custom_call.1} parent=1 // pred_check_branch
      %16 = sbr.rel (0) target = $region5
    $region4: #{tpu_custom_call.1} parent=1 // pred_region
      _
    $region5: #{tpu_custom_call.1} parent=1 // pred_fallthru
      _
    // Predicated region
    $region6: #{tpu_custom_call.1} parent=1 // pred_check
      _
    $region7: #{tpu_custom_call.1} parent=1 // pred_check_branch
      %18 = sbr.rel (0) target = $region9
    $region8: #{tpu_custom_call.1} parent=1 // pred_region
      _
    $region9: #{tpu_custom_call.1} parent=1 // pred_fallthru
      _
    // Predicated region
    $region10: #{tpu_custom_call.1} parent=1 // pred_check
      _
    $region11: #{tpu_custom_call.1} parent=1 // pred_check_branch
      %20 = sbr.rel (0) target = $region13
    $region12: #{tpu_custom_call.1} parent=1 // pred_region
      _
    $region13: #{tpu_custom_call.1} parent=1 // pred_fallthru
      _
    // Predicated region
    $region14: #{tpu_custom_call.1} parent=1 // pred_check
      _
    $region15: #{tpu_custom_call.1} parent=1 // pred_check_branch
      %22 = sbr.rel (0) target = $region17
    $region16: #{tpu_custom_call.1} parent=1 // pred_region
      _
    $region17: #{tpu_custom_call.1} parent=1 // pred_fallthru
      _
    // Predicated region
    $region18: #{tpu_custom_call.1} parent=1 // pred_check
      _
    $region19: #{tpu_custom_call.1} parent=1 // pred_check_branch
      %24 = sbr.rel (0) target = $region21
    $region20: #{tpu_custom_call.1} parent=1 // pred_region
      _
    $region21: #{tpu_custom_call.1} parent=1 // pred_fallthru
      _
    // Predicated region
    $region22: #{tpu_custom_call.1} parent=1 // pred_check
      _
    $region23: #{tpu_custom_call.1} parent=1 // pred_check_branch
      %26 = sbr.rel (0) target = $region25
    $region24: #{tpu_custom_call.1} parent=1 // pred_region
      _
    $region25: #{tpu_custom_call.1} parent=1 // pred_fallthru
      _
    // Predicated region
    $region26: #{tpu_custom_call.1} parent=1 // pred_check
      _
    $region27: #{tpu_custom_call.1} parent=1 // pred_check_branch
      %28 = sbr.rel (0) target = $region29
    $region28: #{tpu_custom_call.1} parent=1 // pred_region
      _
    $region29: #{tpu_custom_call.1} parent=1 // pred_fallthru
      _
    // Predicated region
    $region30: #{tpu_custom_call.1} parent=1 // pred_check
      _
    $region31: #{tpu_custom_call.1} parent=1 // pred_check_branch
      %30 = sbr.rel (0) target = $region33
    $region32: #{tpu_custom_call.1} parent=1 // pred_region
      _
    $region33: #{tpu_custom_call.1} parent=1 // pred_fallthru
      _
    // Predicated region
    $region34: #{tpu_custom_call.1} parent=1 // pred_check
      _
    $region35: #{tpu_custom_call.1} parent=1 // pred_check_branch
      %32 = sbr.rel (0) target = $region37
    $region36: #{tpu_custom_call.1} parent=1 // pred_region
      _
    $region37: #{tpu_custom_call.1} parent=1 // pred_fallthru
      _
    %v33 = vld [vmem:[%s0] sm:$0xff]
    %v34 = vld [vmem:[%s0 + $0x8] sm:$0xff]
    %v35 = vld [vmem:[%s0 + $0x10] sm:$0xff]
    %v36 = vld [vmem:[%s0 + $0x18] sm:$0xff]
    %v37 = vld [vmem:[%s0 + $0x20] sm:$0xff]
    %v38 = vld [vmem:[%s0 + $0x28] sm:$0xff]
    %v39 = vld [vmem:[%s0 + $0x30] sm:$0xff]
    %v40 = vld [vmem:[%s0 + $0x38] sm:$0xff]
    %v41 = vld [vmem:[%s0 + $0x40] sm:$0xff]
    %v42 = vld [vmem:[%s0 + $0x48] sm:$0xff]
    %v43 = vld [vmem:[%s0 + $0x50] sm:$0xff]
    %v44 = vld [vmem:[%s0 + $0x58] sm:$0xff]
    %v45 = vld [vmem:[%s0 + $0x60] sm:$0xff]
    %v46 = vld [vmem:[%s0 + $0x68] sm:$0xff]
    %v47 = vld [vmem:[%s0 + $0x70] sm:$0xff]
    %v48 = vld [vmem:[%s0 + $0x78] sm:$0xff]
    %v49 = vld [vmem:[%s0 + $0x80] sm:$0xff]
    %v50 = vld [vmem:[%s0 + $0x88] sm:$0xff]
    %v51 = vld [vmem:[%s0 + $0x90] sm:$0xff]
    %v52 = vld [vmem:[%s0 + $0x98] sm:$0xff]
    %v53 = vld [vmem:[%s0 + $0xa0] sm:$0xff]
    %v54 = vld [vmem:[%s0 + $0xa8] sm:$0xff]
    %v55 = vld [vmem:[%s0 + $0xb0] sm:$0xff]
    %v56 = vld [vmem:[%s0 + $0xb8] sm:$0xff]
    %v57 = vld [vmem:[%s0 + $0xc0] sm:$0xff]
    %v58 = vld [vmem:[%s0 + $0xc8] sm:$0xff]
    %v59 = vld [vmem:[%s0 + $0xd0] sm:$0xff]
    %v60 = vld [vmem:[%s0 + $0xd8] sm:$0xff]
    %v61 = vld [vmem:[%s0 + $0xe0] sm:$0xff]
    %v62 = vld [vmem:[%s0 + $0xe8] sm:$0xff]
    %v63 = vld [vmem:[%s0 + $0xf0] sm:$0xff]
    %v64 = vld [vmem:[%s0 + $0xf8] sm:$0xff]
    %v65 = vld [vmem:[%s0 + $0x100] sm:$0xff]
    %v66 = vld [vmem:[%s0 + $0x108] sm:$0xff]
    %v67 = vld [vmem:[%s0 + $0x110] sm:$0xff]
    %v68 = vld [vmem:[%s0 + $0x118] sm:$0xff]
    %v69 = vld [vmem:[%s0 + $0x120] sm:$0xff]
    %v70 = vld [vmem:[%s0 + $0x128] sm:$0xff]
    %v71 = vld [vmem:[%s0 + $0x130] sm:$0xff]
    %v72 = vld [vmem:[%s0 + $0x138] sm:$0xff]
    %v73 = vld [vmem:[%s0 + $0x140] sm:$0xff]
    %v74 = vld [vmem:[%s0 + $0x148] sm:$0xff]
    %v75 = vld [vmem:[%s0 + $0x150] sm:$0xff]
    %v76 = vld [vmem:[%s0 + $0x158] sm:$0xff]
    %v77 = vld [vmem:[%s0 + $0x160] sm:$0xff]
    %v78 = vld [vmem:[%s0 + $0x168] sm:$0xff]
    %v79 = vld [vmem:[%s0 + $0x170] sm:$0xff]
    %v80 = vld [vmem:[%s0 + $0x178] sm:$0xff]
    %v81 = vld [vmem:[%s0 + $0x180] sm:$0xff]
    %v82 = vld [vmem:[%s0 + $0x188] sm:$0xff]
    %v83 = vld [vmem:[%s0 + $0x190] sm:$0xff]
    %v84 = vld [vmem:[%s0 + $0x198] sm:$0xff]
    %v85 = vld [vmem:[%s0 + $0x1a0] sm:$0xff]
    %v86 = vld [vmem:[%s0 + $0x1a8] sm:$0xff]
    %v87 = vld [vmem:[%s0 + $0x1b0] sm:$0xff]
    %v88 = vld [vmem:[%s0 + $0x1b8] sm:$0xff]
    %v89 = vld [vmem:[%s0 + $0x1c0] sm:$0xff]
    %v90 = vld [vmem:[%s0 + $0x1c8] sm:$0xff]
    %v91 = vld [vmem:[%s0 + $0x1d0] sm:$0xff]
    %v92 = vld [vmem:[%s0 + $0x1d8] sm:$0xff]
    %v93 = vld [vmem:[%s0 + $0x1e0] sm:$0xff]
    %v94 = vld [vmem:[%s0 + $0x1e8] sm:$0xff]
    %v95 = vld [vmem:[%s0 + $0x1f0] sm:$0xff]
    %v96 = vld [vmem:[%s0 + $0x1f8] sm:$0xff]
    %v97 = vld [vmem:[%s0 + $0x200] sm:$0xff]
    %v98 = vld [vmem:[%s0 + $0x208] sm:$0xff]
    %v99 = vld [vmem:[%s0 + $0x210] sm:$0xff]
    %v100 = vld [vmem:[%s0 + $0x218] sm:$0xff]
    %v101 = vld [vmem:[%s0 + $0x220] sm:$0xff]
    %v102 = vld [vmem:[%s0 + $0x228] sm:$0xff]
    %v103 = vld [vmem:[%s0 + $0x230] sm:$0xff]
    %v104 = vld [vmem:[%s0 + $0x238] sm:$0xff]
    %v105 = vld [vmem:[%s0 + $0x240] sm:$0xff]
    %v106 = vld [vmem:[%s0 + $0x248] sm:$0xff]
    %v107 = vld [vmem:[%s0 + $0x250] sm:$0xff]
    %v108 = vld [vmem:[%s0 + $0x258] sm:$0xff]
    %v109 = vld [vmem:[%s0 + $0x260] sm:$0xff]
    %v110 = vld [vmem:[%s0 + $0x268] sm:$0xff]
    %v111 = vld [vmem:[%s0 + $0x270] sm:$0xff]
    %v112 = vld [vmem:[%s0 + $0x278] sm:$0xff]
    %v113 = vld [vmem:[%s0 + $0x280] sm:$0xff]
    %v114 = vld [vmem:[%s0 + $0x288] sm:$0xff]
    %v115 = vld [vmem:[%s0 + $0x290] sm:$0xff]
    %v116 = vld [vmem:[%s0 + $0x298] sm:$0xff]
    %v117 = vld [vmem:[%s0 + $0x2a0] sm:$0xff]
    %v118 = vld [vmem:[%s0 + $0x2a8] sm:$0xff]
    %v119 = vld [vmem:[%s0 + $0x2b0] sm:$0xff]
    %v120 = vld [vmem:[%s0 + $0x2b8] sm:$0xff]
    %v121 = vld [vmem:[%s0 + $0x2c0] sm:$0xff]
    %v122 = vld [vmem:[%s0 + $0x2c8] sm:$0xff]
    %v123 = vld [vmem:[%s0 + $0x2d0] sm:$0xff]
    %v124 = vld [vmem:[%s0 + $0x2d8] sm:$0xff]
    %v125 = vld [vmem:[%s0 + $0x2e0] sm:$0xff]
    %v126 = vld [vmem:[%s0 + $0x2e8] sm:$0xff]
    %v127 = vld [vmem:[%s0 + $0x2f0] sm:$0xff]
    %v128 = vld [vmem:[%s0 + $0x2f8] sm:$0xff]
    %v129 = vld [vmem:[%s0 + $0x300] sm:$0xff]
    %v130 = vld [vmem:[%s0 + $0x308] sm:$0xff]
    %v131 = vld [vmem:[%s0 + $0x310] sm:$0xff]
    %v132 = vld [vmem:[%s0 + $0x318] sm:$0xff]
    %v133 = vld [vmem:[%s0 + $0x320] sm:$0xff]
    %v134 = vld [vmem:[%s0 + $0x328] sm:$0xff]
    %v135 = vld [vmem:[%s0 + $0x330] sm:$0xff]
    %v136 = vld [vmem:[%s0 + $0x338] sm:$0xff]
    %v137 = vld [vmem:[%s0 + $0x340] sm:$0xff]
    %v138 = vld [vmem:[%s0 + $0x348] sm:$0xff]
    %v139 = vld [vmem:[%s0 + $0x350] sm:$0xff]
    %v140 = vld [vmem:[%s0 + $0x358] sm:$0xff]
    %v141 = vld [vmem:[%s0 + $0x360] sm:$0xff]
    %v142 = vld [vmem:[%s0 + $0x368] sm:$0xff]
    %v143 = vld [vmem:[%s0 + $0x370] sm:$0xff]
    %v144 = vld [vmem:[%s0 + $0x378] sm:$0xff]
    %v145 = vld [vmem:[%s0 + $0x380] sm:$0xff]
    %v146 = vld [vmem:[%s0 + $0x388] sm:$0xff]
    %v147 = vld [vmem:[%s0 + $0x390] sm:$0xff]
    %v148 = vld [vmem:[%s0 + $0x398] sm:$0xff]
    %v149 = vld [vmem:[%s0 + $0x3a0] sm:$0xff]
    %v150 = vld [vmem:[%s0 + $0x3a8] sm:$0xff]
    %v151 = vld [vmem:[%s0 + $0x3b0] sm:$0xff]
    %v152 = vld [vmem:[%s0 + $0x3b8] sm:$0xff]
    %v153 = vld [vmem:[%s0 + $0x3c0] sm:$0xff]
    %v154 = vld [vmem:[%s0 + $0x3c8] sm:$0xff]
    %v155 = vld [vmem:[%s0 + $0x3d0] sm:$0xff]
    %v156 = vld [vmem:[%s0 + $0x3d8] sm:$0xff]
    %v157 = vld [vmem:[%s0 + $0x3e0] sm:$0xff]
    %v158 = vld [vmem:[%s0 + $0x3e8] sm:$0xff]
    %v159 = vld [vmem:[%s0 + $0x3f0] sm:$0xff]
    %v160 = vld [vmem:[%s0 + $0x3f8] sm:$0xff]
    %v161 = vlaneseq
    %v162 = vshrl.u32 %v161, 7
    %vm163 = vcmp.eq.s32.totalorder %v162, 0
    %vm164 = vcmp.eq.s32.totalorder %v162, 7
    %v165 = vrot.slane %v33, 7
    %v166 = vrot.slane %v34, 7
    %v167 = vrot.slane %v35, 7
    %v168 = vrot.slane %v36, 7
    %v169 = vrot.slane %v37, 7
    %v170 = vrot.slane %v38, 7
    %v171 = vrot.slane %v39, 7
    %v172 = vrot.slane %v40, 7
    %v173 = vrot.slane %v41, 7
    %v174 = vrot.slane %v42, 7
    %v175 = vrot.slane %v43, 7
    %v176 = vrot.slane %v44, 7
    %v177 = vrot.slane %v45, 7
    %v178 = vrot.slane %v46, 7
    %v179 = vrot.slane %v47, 7
    %v180 = vrot.slane %v48, 7
    %v181 = vrot.slane %v49, 7
    %v182 = vrot.slane %v50, 7
    %v183 = vrot.slane %v51, 7
    %v184 = vrot.slane %v52, 7
    %v185 = vrot.slane %v53, 7
    %v186 = vrot.slane %v54, 7
    %v187 = vrot.slane %v55, 7
    %v188 = vrot.slane %v56, 7
    %v189 = vrot.slane %v57, 7
    %v190 = vrot.slane %v58, 7
    %v191 = vrot.slane %v59, 7
    %v192 = vrot.slane %v60, 7
    %v193 = vrot.slane %v61, 7
    %v194 = vrot.slane %v62, 7
    %v195 = vrot.slane %v63, 7
    %v196 = vrot.slane %v64, 7
    %v197 = vrot.slane %v65, 7
    %v198 = vrot.slane %v66, 7
    %v199 = vrot.slane %v67, 7
    %v200 = vrot.slane %v68, 7
    %v201 = vrot.slane %v69, 7
    %v202 = vrot.slane %v70, 7
    %v203 = vrot.slane %v71, 7
    %v204 = vrot.slane %v72, 7
    %v205 = vrot.slane %v73, 7
    %v206 = vrot.slane %v74, 7
    %v207 = vrot.slane %v75, 7
    %v208 = vrot.slane %v76, 7
    %v209 = vrot.slane %v77, 7
    %v210 = vrot.slane %v78, 7
    %v211 = vrot.slane %v79, 7
    %v212 = vrot.slane %v80, 7
    %v213 = vrot.slane %v81, 7
    %v214 = vrot.slane %v82, 7
    %v215 = vrot.slane %v83, 7
    %v216 = vrot.slane %v84, 7
    %v217 = vrot.slane %v85, 7
    %v218 = vrot.slane %v86, 7
    %v219 = vrot.slane %v87, 7
    %v220 = vrot.slane %v88, 7
    %v221 = vrot.slane %v89, 7
    %v222 = vrot.slane %v90, 7
    %v223 = vrot.slane %v91, 7
    %v224 = vrot.slane %v92, 7
    %v225 = vrot.slane %v93, 7
    %v226 = vrot.slane %v94, 7
    %v227 = vrot.slane %v95, 7
    %v228 = vrot.slane %v96, 7
    %v229 = vrot.slane %v97, 7
    %v230 = vrot.slane %v98, 7
    %v231 = vrot.slane %v99, 7
    %v232 = vrot.slane %v100, 7
    %v233 = vrot.slane %v101, 7
    %v234 = vrot.slane %v102, 7
    %v235 = vrot.slane %v103, 7
    %v236 = vrot.slane %v104, 7
    %v237 = vrot.slane %v105, 7
    %v238 = vrot.slane %v106, 7
    %v239 = vrot.slane %v107, 7
    %v240 = vrot.slane %v108, 7
    %v241 = vrot.slane %v109, 7
    %v242 = vrot.slane %v110, 7
    %v243 = vrot.slane %v111, 7
    %v244 = vrot.slane %v112, 7
    %v245 = vrot.slane %v113, 7
    %v246 = vrot.slane %v114, 7
    %v247 = vrot.slane %v115, 7
    %v248 = vrot.slane %v116, 7
    %v249 = vrot.slane %v117, 7
    %v250 = vrot.slane %v118, 7
    %v251 = vrot.slane %v119, 7
    %v252 = vrot.slane %v120, 7
    %v253 = vrot.slane %v121, 7
    %v254 = vrot.slane %v122, 7
    %v255 = vrot.slane %v123, 7
    %v256 = vrot.slane %v124, 7
    %v257 = vrot.slane %v125, 7
    %v258 = vrot.slane %v126, 7
    %v259 = vrot.slane %v127, 7
    %v260 = vrot.slane %v128, 7
    %v261 = vrot.slane %v129, 7
    %v262 = vrot.slane %v130, 7
    %v263 = vrot.slane %v131, 7
    %v264 = vrot.slane %v132, 7
    %v265 = vrot.slane %v133, 7
    %v266 = vrot.slane %v134, 7
    %v267 = vrot.slane %v135, 7
    %v268 = vrot.slane %v136, 7
    %v269 = vrot.slane %v137, 7
    %v270 = vrot.slane %v138, 7
    %v271 = vrot.slane %v139, 7
    %v272 = vrot.slane %v140, 7
    %v273 = vrot.slane %v141, 7
    %v274 = vrot.slane %v142, 7
    %v275 = vrot.slane %v143, 7
    %v276 = vrot.slane %v144, 7
    %v277 = vrot.slane %v145, 7
    %v278 = vrot.slane %v146, 7
    %v279 = vrot.slane %v147, 7
    %v280 = vrot.slane %v148, 7
    %v281 = vrot.slane %v149, 7
    %v282 = vrot.slane %v150, 7
    %v283 = vrot.slane %v151, 7
    %v284 = vrot.slane %v152, 7
    %v285 = vrot.slane %v153, 7
    %v286 = vrot.slane %v154, 7
    %v287 = vrot.slane %v155, 7
    %v288 = vrot.slane %v156, 7
    %v289 = vrot.slane %v157, 7
    %v290 = vrot.slane %v158, 7
    %v291 = vrot.slane %v159, 7
    %v292 = vrot.slane %v160, 7
    %v293 = vsel %vm163, 1, 0
    %vm294 = vcmp.eq.s32.totalorder %v293, 1
    %v295 = vsel %vm294, 0.0, %v165
    %v296 = vsel %vm294, 0.0, %v166
    %v297 = vsel %vm294, 0.0, %v167
    %v298 = vsel %vm294, 0.0, %v168
    %v299 = vsel %vm294, 0.0, %v169
    %v300 = vsel %vm294, 0.0, %v170
    %v301 = vsel %vm294, 0.0, %v171
    %v302 = vsel %vm294, 0.0, %v172
    %v303 = vsel %vm294, 0.0, %v173
    %v304 = vsel %vm294, 0.0, %v174
    %v305 = vsel %vm294, 0.0, %v175
    %v306 = vsel %vm294, 0.0, %v176
    %v307 = vsel %vm294, 0.0, %v177
    %v308 = vsel %vm294, 0.0, %v178
    %v309 = vsel %vm294, 0.0, %v179
    %v310 = vsel %vm294, 0.0, %v180
    %v311 = vsel %vm294, 0.0, %v181
    %v312 = vsel %vm294, 0.0, %v182
    %v313 = vsel %vm294, 0.0, %v183
    %v314 = vsel %vm294, 0.0, %v184
    %v315 = vsel %vm294, 0.0, %v185
    %v316 = vsel %vm294, 0.0, %v186
    %v317 = vsel %vm294, 0.0, %v187
    %v318 = vsel %vm294, 0.0, %v188
    %v319 = vsel %vm294, 0.0, %v189
    %v320 = vsel %vm294, 0.0, %v190
    %v321 = vsel %vm294, 0.0, %v191
    %v322 = vsel %vm294, 0.0, %v192
    %v323 = vsel %vm294, 0.0, %v193
    %v324 = vsel %vm294, 0.0, %v194
    %v325 = vsel %vm294, 0.0, %v195
    %v326 = vsel %vm294, 0.0, %v196
    %v327 = vsel %vm294, 0.0, %v197
    %v328 = vsel %vm294, 0.0, %v198
    %v329 = vsel %vm294, 0.0, %v199
    %v330 = vsel %vm294, 0.0, %v200
    %v331 = vsel %vm294, 0.0, %v201
    %v332 = vsel %vm294, 0.0, %v202
    %v333 = vsel %vm294, 0.0, %v203
    %v334 = vsel %vm294, 0.0, %v204
    %v335 = vsel %vm294, 0.0, %v205
    %v336 = vsel %vm294, 0.0, %v206
    %v337 = vsel %vm294, 0.0, %v207
    %v338 = vsel %vm294, 0.0, %v208
    %v339 = vsel %vm294, 0.0, %v209
    %v340 = vsel %vm294, 0.0, %v210
    %v341 = vsel %vm294, 0.0, %v211
    %v342 = vsel %vm294, 0.0, %v212
    %v343 = vsel %vm294, 0.0, %v213
    %v344 = vsel %vm294, 0.0, %v214
    %v345 = vsel %vm294, 0.0, %v215
    %v346 = vsel %vm294, 0.0, %v216
    %v347 = vsel %vm294, 0.0, %v217
    %v348 = vsel %vm294, 0.0, %v218
    %v349 = vsel %vm294, 0.0, %v219
    %v350 = vsel %vm294, 0.0, %v220
    %v351 = vsel %vm294, 0.0, %v221
    %v352 = vsel %vm294, 0.0, %v222
    %v353 = vsel %vm294, 0.0, %v223
    %v354 = vsel %vm294, 0.0, %v224
    %v355 = vsel %vm294, 0.0, %v225
    %v356 = vsel %vm294, 0.0, %v226
    %v357 = vsel %vm294, 0.0, %v227
    %v358 = vsel %vm294, 0.0, %v228
    %v359 = vsel %vm294, 0.0, %v229
    %v360 = vsel %vm294, 0.0, %v230
    %v361 = vsel %vm294, 0.0, %v231
    %v362 = vsel %vm294, 0.0, %v232
    %v363 = vsel %vm294, 0.0, %v233
    %v364 = vsel %vm294, 0.0, %v234
    %v365 = vsel %vm294, 0.0, %v235
    %v366 = vsel %vm294, 0.0, %v236
    %v367 = vsel %vm294, 0.0, %v237
    %v368 = vsel %vm294, 0.0, %v238
    %v369 = vsel %vm294, 0.0, %v239
    %v370 = vsel %vm294, 0.0, %v240
    %v371 = vsel %vm294, 0.0, %v241
    %v372 = vsel %vm294, 0.0, %v242
    %v373 = vsel %vm294, 0.0, %v243
    %v374 = vsel %vm294, 0.0, %v244
    %v375 = vsel %vm294, 0.0, %v245
    %v376 = vsel %vm294, 0.0, %v246
    %v377 = vsel %vm294, 0.0, %v247
    %v378 = vsel %vm294, 0.0, %v248
    %v379 = vsel %vm294, 0.0, %v249
    %v380 = vsel %vm294, 0.0, %v250
    %v381 = vsel %vm294, 0.0, %v251
    %v382 = vsel %vm294, 0.0, %v252
    %v383 = vsel %vm294, 0.0, %v253
    %v384 = vsel %vm294, 0.0, %v254
    %v385 = vsel %vm294, 0.0, %v255
    %v386 = vsel %vm294, 0.0, %v256
    %v387 = vsel %vm294, 0.0, %v257
    %v388 = vsel %vm294, 0.0, %v258
    %v389 = vsel %vm294, 0.0, %v259
    %v390 = vsel %vm294, 0.0, %v260
    %v391 = vsel %vm294, 0.0, %v261
    %v392 = vsel %vm294, 0.0, %v262
    %v393 = vsel %vm294, 0.0, %v263
    %v394 = vsel %vm294, 0.0, %v264
    %v395 = vsel %vm294, 0.0, %v265
    %v396 = vsel %vm294, 0.0, %v266
    %v397 = vsel %vm294, 0.0, %v267
    %v398 = vsel %vm294, 0.0, %v268
    %v399 = vsel %vm294, 0.0, %v269
    %v400 = vsel %vm294, 0.0, %v270
    %v401 = vsel %vm294, 0.0, %v271
    %v402 = vsel %vm294, 0.0, %v272
    %v403 = vsel %vm294, 0.0, %v273
    %v404 = vsel %vm294, 0.0, %v274
    %v405 = vsel %vm294, 0.0, %v275
    %v406 = vsel %vm294, 0.0, %v276
    %v407 = vsel %vm294, 0.0, %v277
    %v408 = vsel %vm294, 0.0, %v278
    %v409 = vsel %vm294, 0.0, %v279
    %v410 = vsel %vm294, 0.0, %v280
    %v411 = vsel %vm294, 0.0, %v281
    %v412 = vsel %vm294, 0.0, %v282
    %v413 = vsel %vm294, 0.0, %v283
    %v414 = vsel %vm294, 0.0, %v284
    %v415 = vsel %vm294, 0.0, %v285
    %v416 = vsel %vm294, 0.0, %v286
    %v417 = vsel %vm294, 0.0, %v287
    %v418 = vsel %vm294, 0.0, %v288
    %v419 = vsel %vm294, 0.0, %v289
    %v420 = vsel %vm294, 0.0, %v290
    %v421 = vsel %vm294, 0.0, %v291
    %v422 = vsel %vm294, 0.0, %v292
    %v423 = vrot.slane %v33, 1
    %v424 = vrot.slane %v34, 1
    %v425 = vrot.slane %v35, 1
    %v426 = vrot.slane %v36, 1
    %v427 = vrot.slane %v37, 1
    %v428 = vrot.slane %v38, 1
    %v429 = vrot.slane %v39, 1
    %v430 = vrot.slane %v40, 1
    %v431 = vrot.slane %v41, 1
    %v432 = vrot.slane %v42, 1
    %v433 = vrot.slane %v43, 1
    %v434 = vrot.slane %v44, 1
    %v435 = vrot.slane %v45, 1
    %v436 = vrot.slane %v46, 1
    %v437 = vrot.slane %v47, 1
    %v438 = vrot.slane %v48, 1
    %v439 = vrot.slane %v49, 1
    %v440 = vrot.slane %v50, 1
    %v441 = vrot.slane %v51, 1
    %v442 = vrot.slane %v52, 1
    %v443 = vrot.slane %v53, 1
    %v444 = vrot.slane %v54, 1
    %v445 = vrot.slane %v55, 1
    %v446 = vrot.slane %v56, 1
    %v447 = vrot.slane %v57, 1
    %v448 = vrot.slane %v58, 1
    %v449 = vrot.slane %v59, 1
    %v450 = vrot.slane %v60, 1
    %v451 = vrot.slane %v61, 1
    %v452 = vrot.slane %v62, 1
    %v453 = vrot.slane %v63, 1
    %v454 = vrot.slane %v64, 1
    %v455 = vrot.slane %v65, 1
    %v456 = vrot.slane %v66, 1
    %v457 = vrot.slane %v67, 1
    %v458 = vrot.slane %v68, 1
    %v459 = vrot.slane %v69, 1
    %v460 = vrot.slane %v70, 1
    %v461 = vrot.slane %v71, 1
    %v462 = vrot.slane %v72, 1
    %v463 = vrot.slane %v73, 1
    %v464 = vrot.slane %v74, 1
    %v465 = vrot.slane %v75, 1
    %v466 = vrot.slane %v76, 1
    %v467 = vrot.slane %v77, 1
    %v468 = vrot.slane %v78, 1
    %v469 = vrot.slane %v79, 1
    %v470 = vrot.slane %v80, 1
    %v471 = vrot.slane %v81, 1
    %v472 = vrot.slane %v82, 1
    %v473 = vrot.slane %v83, 1
    %v474 = vrot.slane %v84, 1
    %v475 = vrot.slane %v85, 1
    %v476 = vrot.slane %v86, 1
    %v477 = vrot.slane %v87, 1
    %v478 = vrot.slane %v88, 1
    %v479 = vrot.slane %v89, 1
    %v480 = vrot.slane %v90, 1
    %v481 = vrot.slane %v91, 1
    %v482 = vrot.slane %v92, 1
    %v483 = vrot.slane %v93, 1
    %v484 = vrot.slane %v94, 1
    %v485 = vrot.slane %v95, 1
    %v486 = vrot.slane %v96, 1
    %v487 = vrot.slane %v97, 1
    %v488 = vrot.slane %v98, 1
    %v489 = vrot.slane %v99, 1
    %v490 = vrot.slane %v100, 1
    %v491 = vrot.slane %v101, 1
    %v492 = vrot.slane %v102, 1
    %v493 = vrot.slane %v103, 1
    %v494 = vrot.slane %v104, 1
    %v495 = vrot.slane %v105, 1
    %v496 = vrot.slane %v106, 1
    %v497 = vrot.slane %v107, 1
    %v498 = vrot.slane %v108, 1
    %v499 = vrot.slane %v109, 1
    %v500 = vrot.slane %v110, 1
    %v501 = vrot.slane %v111, 1
    %v502 = vrot.slane %v112, 1
    %v503 = vrot.slane %v113, 1
    %v504 = vrot.slane %v114, 1
    %v505 = vrot.slane %v115, 1
    %v506 = vrot.slane %v116, 1
    %v507 = vrot.slane %v117, 1
    %v508 = vrot.slane %v118, 1
    %v509 = vrot.slane %v119, 1
    %v510 = vrot.slane %v120, 1
    %v511 = vrot.slane %v121, 1
    %v512 = vrot.slane %v122, 1
    %v513 = vrot.slane %v123, 1
    %v514 = vrot.slane %v124, 1
    %v515 = vrot.slane %v125, 1
    %v516 = vrot.slane %v126, 1
    %v517 = vrot.slane %v127, 1
    %v518 = vrot.slane %v128, 1
    %v519 = vrot.slane %v129, 1
    %v520 = vrot.slane %v130, 1
    %v521 = vrot.slane %v131, 1
    %v522 = vrot.slane %v132, 1
    %v523 = vrot.slane %v133, 1
    %v524 = vrot.slane %v134, 1
    %v525 = vrot.slane %v135, 1
    %v526 = vrot.slane %v136, 1
    %v527 = vrot.slane %v137, 1
    %v528 = vrot.slane %v138, 1
    %v529 = vrot.slane %v139, 1
    %v530 = vrot.slane %v140, 1
    %v531 = vrot.slane %v141, 1
    %v532 = vrot.slane %v142, 1
    %v533 = vrot.slane %v143, 1
    %v534 = vrot.slane %v144, 1
    %v535 = vrot.slane %v145, 1
    %v536 = vrot.slane %v146, 1
    %v537 = vrot.slane %v147, 1
    %v538 = vrot.slane %v148, 1
    %v539 = vrot.slane %v149, 1
    %v540 = vrot.slane %v150, 1
    %v541 = vrot.slane %v151, 1
    %v542 = vrot.slane %v152, 1
    %v543 = vrot.slane %v153, 1
    %v544 = vrot.slane %v154, 1
    %v545 = vrot.slane %v155, 1
    %v546 = vrot.slane %v156, 1
    %v547 = vrot.slane %v157, 1
    %v548 = vrot.slane %v158, 1
    %v549 = vrot.slane %v159, 1
    %v550 = vrot.slane %v160, 1
    %v551 = vsel %vm164, 1, 0
    %vm552 = vcmp.eq.s32.totalorder %v551, 1
    %v553 = vsel %vm552, 0.0, %v423
    %v554 = vsel %vm552, 0.0, %v424
    %v555 = vsel %vm552, 0.0, %v425
    %v556 = vsel %vm552, 0.0, %v426
    %v557 = vsel %vm552, 0.0, %v427
    %v558 = vsel %vm552, 0.0, %v428
    %v559 = vsel %vm552, 0.0, %v429
    %v560 = vsel %vm552, 0.0, %v430
    %v561 = vsel %vm552, 0.0, %v431
    %v562 = vsel %vm552, 0.0, %v432
    %v563 = vsel %vm552, 0.0, %v433
    %v564 = vsel %vm552, 0.0, %v434
    %v565 = vsel %vm552, 0.0, %v435
    %v566 = vsel %vm552, 0.0, %v436
    %v567 = vsel %vm552, 0.0, %v437
    %v568 = vsel %vm552, 0.0, %v438
    %v569 = vsel %vm552, 0.0, %v439
    %v570 = vsel %vm552, 0.0, %v440
    %v571 = vsel %vm552, 0.0, %v441
    %v572 = vsel %vm552, 0.0, %v442
    %v573 = vsel %vm552, 0.0, %v443
    %v574 = vsel %vm552, 0.0, %v444
    %v575 = vsel %vm552, 0.0, %v445
    %v576 = vsel %vm552, 0.0, %v446
    %v577 = vsel %vm552, 0.0, %v447
    %v578 = vsel %vm552, 0.0, %v448
    %v579 = vsel %vm552, 0.0, %v449
    %v580 = vsel %vm552, 0.0, %v450
    %v581 = vsel %vm552, 0.0, %v451
    %v582 = vsel %vm552, 0.0, %v452
    %v583 = vsel %vm552, 0.0, %v453
    %v584 = vsel %vm552, 0.0, %v454
    %v585 = vsel %vm552, 0.0, %v455
    %v586 = vsel %vm552, 0.0, %v456
    %v587 = vsel %vm552, 0.0, %v457
    %v588 = vsel %vm552, 0.0, %v458
    %v589 = vsel %vm552, 0.0, %v459
    %v590 = vsel %vm552, 0.0, %v460
    %v591 = vsel %vm552, 0.0, %v461
    %v592 = vsel %vm552, 0.0, %v462
    %v593 = vsel %vm552, 0.0, %v463
    %v594 = vsel %vm552, 0.0, %v464
    %v595 = vsel %vm552, 0.0, %v465
    %v596 = vsel %vm552, 0.0, %v466
    %v597 = vsel %vm552, 0.0, %v467
    %v598 = vsel %vm552, 0.0, %v468
    %v599 = vsel %vm552, 0.0, %v469
    %v600 = vsel %vm552, 0.0, %v470
    %v601 = vsel %vm552, 0.0, %v471
    %v602 = vsel %vm552, 0.0, %v472
    %v603 = vsel %vm552, 0.0, %v473
    %v604 = vsel %vm552, 0.0, %v474
    %v605 = vsel %vm552, 0.0, %v475
    %v606 = vsel %vm552, 0.0, %v476
    %v607 = vsel %vm552, 0.0, %v477
    %v608 = vsel %vm552, 0.0, %v478
    %v609 = vsel %vm552, 0.0, %v479
    %v610 = vsel %vm552, 0.0, %v480
    %v611 = vsel %vm552, 0.0, %v481
    %v612 = vsel %vm552, 0.0, %v482
    %v613 = vsel %vm552, 0.0, %v483
    %v614 = vsel %vm552, 0.0, %v484
    %v615 = vsel %vm552, 0.0, %v485
    %v616 = vsel %vm552, 0.0, %v486
    %v617 = vsel %vm552, 0.0, %v487
    %v618 = vsel %vm552, 0.0, %v488
    %v619 = vsel %vm552, 0.0, %v489
    %v620 = vsel %vm552, 0.0, %v490
    %v621 = vsel %vm552, 0.0, %v491
    %v622 = vsel %vm552, 0.0, %v492
    %v623 = vsel %vm552, 0.0, %v493
    %v624 = vsel %vm552, 0.0, %v494
    %v625 = vsel %vm552, 0.0, %v495
    %v626 = vsel %vm552, 0.0, %v496
    %v627 = vsel %vm552, 0.0, %v497
    %v628 = vsel %vm552, 0.0, %v498
    %v629 = vsel %vm552, 0.0, %v499
    %v630 = vsel %vm552, 0.0, %v500
    %v631 = vsel %vm552, 0.0, %v501
    %v632 = vsel %vm552, 0.0, %v502
    %v633 = vsel %vm552, 0.0, %v503
    %v634 = vsel %vm552, 0.0, %v504
    %v635 = vsel %vm552, 0.0, %v505
    %v636 = vsel %vm552, 0.0, %v506
    %v637 = vsel %vm552, 0.0, %v507
    %v638 = vsel %vm552, 0.0, %v508
    %v639 = vsel %vm552, 0.0, %v509
    %v640 = vsel %vm552, 0.0, %v510
    %v641 = vsel %vm552, 0.0, %v511
    %v642 = vsel %vm552, 0.0, %v512
    %v643 = vsel %vm552, 0.0, %v513
    %v644 = vsel %vm552, 0.0, %v514
    %v645 = vsel %vm552, 0.0, %v515
    %v646 = vsel %vm552, 0.0, %v516
    %v647 = vsel %vm552, 0.0, %v517
    %v648 = vsel %vm552, 0.0, %v518
    %v649 = vsel %vm552, 0.0, %v519
    %v650 = vsel %vm552, 0.0, %v520
    %v651 = vsel %vm552, 0.0, %v521
    %v652 = vsel %vm552, 0.0, %v522
    %v653 = vsel %vm552, 0.0, %v523
    %v654 = vsel %vm552, 0.0, %v524
    %v655 = vsel %vm552, 0.0, %v525
    %v656 = vsel %vm552, 0.0, %v526
    %v657 = vsel %vm552, 0.0, %v527
    %v658 = vsel %vm552, 0.0, %v528
    %v659 = vsel %vm552, 0.0, %v529
    %v660 = vsel %vm552, 0.0, %v530
    %v661 = vsel %vm552, 0.0, %v531
    %v662 = vsel %vm552, 0.0, %v532
    %v663 = vsel %vm552, 0.0, %v533
    %v664 = vsel %vm552, 0.0, %v534
    %v665 = vsel %vm552, 0.0, %v535
    %v666 = vsel %vm552, 0.0, %v536
    %v667 = vsel %vm552, 0.0, %v537
    %v668 = vsel %vm552, 0.0, %v538
    %v669 = vsel %vm552, 0.0, %v539
    %v670 = vsel %vm552, 0.0, %v540
    %v671 = vsel %vm552, 0.0, %v541
    %v672 = vsel %vm552, 0.0, %v542
    %v673 = vsel %vm552, 0.0, %v543
    %v674 = vsel %vm552, 0.0, %v544
    %v675 = vsel %vm552, 0.0, %v545
    %v676 = vsel %vm552, 0.0, %v546
    %v677 = vsel %vm552, 0.0, %v547
    %v678 = vsel %vm552, 0.0, %v548
    %v679 = vsel %vm552, 0.0, %v549
    %v680 = vsel %vm552, 0.0, %v550
    %809 = vrot.lane.b32.xlu0 %v33, 4
    %v810 = vpop.permute.xlu0 %809
    %811 = vrot.lane.b32.xlu0 %v34, 4
    %v812 = vpop.permute.xlu0 %811
    %813 = vrot.lane.b32.xlu0 %v35, 4
    %v814 = vpop.permute.xlu0 %813
    %815 = vrot.lane.b32.xlu0 %v36, 4
    %v816 = vpop.permute.xlu0 %815
    %817 = vrot.lane.b32.xlu0 %v37, 4
    %v818 = vpop.permute.xlu0 %817
    %819 = vrot.lane.b32.xlu0 %v38, 4
    %v820 = vpop.permute.xlu0 %819
    %821 = vrot.lane.b32.xlu0 %v39, 4
    %v822 = vpop.permute.xlu0 %821
    %823 = vrot.lane.b32.xlu0 %v40, 4
    %v824 = vpop.permute.xlu0 %823
    %825 = vrot.lane.b32.xlu0 %v41, 4
    %v826 = vpop.permute.xlu0 %825
    %827 = vrot.lane.b32.xlu0 %v42, 4
    %v828 = vpop.permute.xlu0 %827
    %829 = vrot.lane.b32.xlu0 %v43, 4
    %v830 = vpop.permute.xlu0 %829
    %831 = vrot.lane.b32.xlu0 %v44, 4
    %v832 = vpop.permute.xlu0 %831
    %833 = vrot.lane.b32.xlu0 %v45, 4
    %v834 = vpop.permute.xlu0 %833
    %835 = vrot.lane.b32.xlu0 %v46, 4
    %v836 = vpop.permute.xlu0 %835
    %837 = vrot.lane.b32.xlu0 %v47, 4
    %v838 = vpop.permute.xlu0 %837
    %839 = vrot.lane.b32.xlu0 %v48, 4
    %v840 = vpop.permute.xlu0 %839
    %841 = vrot.lane.b32.xlu0 %v49, 4
    %v842 = vpop.permute.xlu0 %841
    %843 = vrot.lane.b32.xlu0 %v50, 4
    %v844 = vpop.permute.xlu0 %843
    %845 = vrot.lane.b32.xlu0 %v51, 4
    %v846 = vpop.permute.xlu0 %845
    %847 = vrot.lane.b32.xlu0 %v52, 4
    %v848 = vpop.permute.xlu0 %847
    %849 = vrot.lane.b32.xlu0 %v53, 4
    %v850 = vpop.permute.xlu0 %849
    %851 = vrot.lane.b32.xlu0 %v54, 4
    %v852 = vpop.permute.xlu0 %851
    %853 = vrot.lane.b32.xlu0 %v55, 4
    %v854 = vpop.permute.xlu0 %853
    %855 = vrot.lane.b32.xlu0 %v56, 4
    %v856 = vpop.permute.xlu0 %855
    %857 = vrot.lane.b32.xlu0 %v57, 4
    %v858 = vpop.permute.xlu0 %857
    %859 = vrot.lane.b32.xlu0 %v58, 4
    %v860 = vpop.permute.xlu0 %859
    %861 = vrot.lane.b32.xlu0 %v59, 4
    %v862 = vpop.permute.xlu0 %861
    %863 = vrot.lane.b32.xlu0 %v60, 4
    %v864 = vpop.permute.xlu0 %863
    %865 = vrot.lane.b32.xlu0 %v61, 4
    %v866 = vpop.permute.xlu0 %865
    %867 = vrot.lane.b32.xlu0 %v62, 4
    %v868 = vpop.permute.xlu0 %867
    %869 = vrot.lane.b32.xlu0 %v63, 4
    %v870 = vpop.permute.xlu0 %869
    %871 = vrot.lane.b32.xlu0 %v64, 4
    %v872 = vpop.permute.xlu0 %871
    %873 = vrot.lane.b32.xlu0 %v65, 4
    %v874 = vpop.permute.xlu0 %873
    %875 = vrot.lane.b32.xlu0 %v66, 4
    %v876 = vpop.permute.xlu0 %875
    %877 = vrot.lane.b32.xlu0 %v67, 4
    %v878 = vpop.permute.xlu0 %877
    %879 = vrot.lane.b32.xlu0 %v68, 4
    %v880 = vpop.permute.xlu0 %879
    %881 = vrot.lane.b32.xlu0 %v69, 4
    %v882 = vpop.permute.xlu0 %881
    %883 = vrot.lane.b32.xlu0 %v70, 4
    %v884 = vpop.permute.xlu0 %883
    %885 = vrot.lane.b32.xlu0 %v71, 4
    %v886 = vpop.permute.xlu0 %885
    %887 = vrot.lane.b32.xlu0 %v72, 4
    %v888 = vpop.permute.xlu0 %887
    %889 = vrot.lane.b32.xlu0 %v73, 4
    %v890 = vpop.permute.xlu0 %889
    %891 = vrot.lane.b32.xlu0 %v74, 4
    %v892 = vpop.permute.xlu0 %891
    %893 = vrot.lane.b32.xlu0 %v75, 4
    %v894 = vpop.permute.xlu0 %893
    %895 = vrot.lane.b32.xlu0 %v76, 4
    %v896 = vpop.permute.xlu0 %895
    %897 = vrot.lane.b32.xlu0 %v77, 4
    %v898 = vpop.permute.xlu0 %897
    %899 = vrot.lane.b32.xlu0 %v78, 4
    %v900 = vpop.permute.xlu0 %899
    %901 = vrot.lane.b32.xlu0 %v79, 4
    %v902 = vpop.permute.xlu0 %901
    %903 = vrot.lane.b32.xlu0 %v80, 4
    %v904 = vpop.permute.xlu0 %903
    %905 = vrot.lane.b32.xlu0 %v81, 4
    %v906 = vpop.permute.xlu0 %905
    %907 = vrot.lane.b32.xlu0 %v82, 4
    %v908 = vpop.permute.xlu0 %907
    %909 = vrot.lane.b32.xlu0 %v83, 4
    %v910 = vpop.permute.xlu0 %909
    %911 = vrot.lane.b32.xlu0 %v84, 4
    %v912 = vpop.permute.xlu0 %911
    %913 = vrot.lane.b32.xlu0 %v85, 4
    %v914 = vpop.permute.xlu0 %913
    %915 = vrot.lane.b32.xlu0 %v86, 4
    %v916 = vpop.permute.xlu0 %915
    %917 = vrot.lane.b32.xlu0 %v87, 4
    %v918 = vpop.permute.xlu0 %917
    %919 = vrot.lane.b32.xlu0 %v88, 4
    %v920 = vpop.permute.xlu0 %919
    %921 = vrot.lane.b32.xlu0 %v89, 4
    %v922 = vpop.permute.xlu0 %921
    %923 = vrot.lane.b32.xlu0 %v90, 4
    %v924 = vpop.permute.xlu0 %923
    %925 = vrot.lane.b32.xlu0 %v91, 4
    %v926 = vpop.permute.xlu0 %925
    %927 = vrot.lane.b32.xlu0 %v92, 4
    %v928 = vpop.permute.xlu0 %927
    %929 = vrot.lane.b32.xlu0 %v93, 4
    %v930 = vpop.permute.xlu0 %929
    %931 = vrot.lane.b32.xlu0 %v94, 4
    %v932 = vpop.permute.xlu0 %931
    %933 = vrot.lane.b32.xlu0 %v95, 4
    %v934 = vpop.permute.xlu0 %933
    %935 = vrot.lane.b32.xlu0 %v96, 4
    %v936 = vpop.permute.xlu0 %935
    %937 = vrot.lane.b32.xlu0 %v97, 4
    %v938 = vpop.permute.xlu0 %937
    %939 = vrot.lane.b32.xlu0 %v98, 4
    %v940 = vpop.permute.xlu0 %939
    %941 = vrot.lane.b32.xlu0 %v99, 4
    %v942 = vpop.permute.xlu0 %941
    %943 = vrot.lane.b32.xlu0 %v100, 4
    %v944 = vpop.permute.xlu0 %943
    %945 = vrot.lane.b32.xlu0 %v101, 4
    %v946 = vpop.permute.xlu0 %945
    %947 = vrot.lane.b32.xlu0 %v102, 4
    %v948 = vpop.permute.xlu0 %947
    %949 = vrot.lane.b32.xlu0 %v103, 4
    %v950 = vpop.permute.xlu0 %949
    %951 = vrot.lane.b32.xlu0 %v104, 4
    %v952 = vpop.permute.xlu0 %951
    %953 = vrot.lane.b32.xlu0 %v105, 4
    %v954 = vpop.permute.xlu0 %953
    %955 = vrot.lane.b32.xlu0 %v106, 4
    %v956 = vpop.permute.xlu0 %955
    %957 = vrot.lane.b32.xlu0 %v107, 4
    %v958 = vpop.permute.xlu0 %957
    %959 = vrot.lane.b32.xlu0 %v108, 4
    %v960 = vpop.permute.xlu0 %959
    %961 = vrot.lane.b32.xlu0 %v109, 4
    %v962 = vpop.permute.xlu0 %961
    %963 = vrot.lane.b32.xlu0 %v110, 4
    %v964 = vpop.permute.xlu0 %963
    %965 = vrot.lane.b32.xlu0 %v111, 4
    %v966 = vpop.permute.xlu0 %965
    %967 = vrot.lane.b32.xlu0 %v112, 4
    %v968 = vpop.permute.xlu0 %967
    %969 = vrot.lane.b32.xlu0 %v113, 4
    %v970 = vpop.permute.xlu0 %969
    %971 = vrot.lane.b32.xlu0 %v114, 4
    %v972 = vpop.permute.xlu0 %971
    %973 = vrot.lane.b32.xlu0 %v115, 4
    %v974 = vpop.permute.xlu0 %973
    %975 = vrot.lane.b32.xlu0 %v116, 4
    %v976 = vpop.permute.xlu0 %975
    %977 = vrot.lane.b32.xlu0 %v117, 4
    %v978 = vpop.permute.xlu0 %977
    %979 = vrot.lane.b32.xlu0 %v118, 4
    %v980 = vpop.permute.xlu0 %979
    %981 = vrot.lane.b32.xlu0 %v119, 4
    %v982 = vpop.permute.xlu0 %981
    %983 = vrot.lane.b32.xlu0 %v120, 4
    %v984 = vpop.permute.xlu0 %983
    %985 = vrot.lane.b32.xlu0 %v121, 4
    %v986 = vpop.permute.xlu0 %985
    %987 = vrot.lane.b32.xlu0 %v122, 4
    %v988 = vpop.permute.xlu0 %987
    %989 = vrot.lane.b32.xlu0 %v123, 4
    %v990 = vpop.permute.xlu0 %989
    %991 = vrot.lane.b32.xlu0 %v124, 4
    %v992 = vpop.permute.xlu0 %991
    %993 = vrot.lane.b32.xlu0 %v125, 4
    %v994 = vpop.permute.xlu0 %993
    %995 = vrot.lane.b32.xlu0 %v126, 4
    %v996 = vpop.permute.xlu0 %995
    %997 = vrot.lane.b32.xlu0 %v127, 4
    %v998 = vpop.permute.xlu0 %997
    %999 = vrot.lane.b32.xlu0 %v128, 4
    %v1000 = vpop.permute.xlu0 %999
    %1001 = vrot.lane.b32.xlu0 %v129, 4
    %v1002 = vpop.permute.xlu0 %1001
    %1003 = vrot.lane.b32.xlu0 %v130, 4
    %v1004 = vpop.permute.xlu0 %1003
    %1005 = vrot.lane.b32.xlu0 %v131, 4
    %v1006 = vpop.permute.xlu0 %1005
    %1007 = vrot.lane.b32.xlu0 %v132, 4
    %v1008 = vpop.permute.xlu0 %1007
    %1009 = vrot.lane.b32.xlu0 %v133, 4
    %v1010 = vpop.permute.xlu0 %1009
    %1011 = vrot.lane.b32.xlu0 %v134, 4
    %v1012 = vpop.permute.xlu0 %1011
    %1013 = vrot.lane.b32.xlu0 %v135, 4
    %v1014 = vpop.permute.xlu0 %1013
    %1015 = vrot.lane.b32.xlu0 %v136, 4
    %v1016 = vpop.permute.xlu0 %1015
    %1017 = vrot.lane.b32.xlu0 %v137, 4
    %v1018 = vpop.permute.xlu0 %1017
    %1019 = vrot.lane.b32.xlu0 %v138, 4
    %v1020 = vpop.permute.xlu0 %1019
    %1021 = vrot.lane.b32.xlu0 %v139, 4
    %v1022 = vpop.permute.xlu0 %1021
    %1023 = vrot.lane.b32.xlu0 %v140, 4
    %v1024 = vpop.permute.xlu0 %1023
    %1025 = vrot.lane.b32.xlu0 %v141, 4
    %v1026 = vpop.permute.xlu0 %1025
    %1027 = vrot.lane.b32.xlu0 %v142, 4
    %v1028 = vpop.permute.xlu0 %1027
    %1029 = vrot.lane.b32.xlu0 %v143, 4
    %v1030 = vpop.permute.xlu0 %1029
    %1031 = vrot.lane.b32.xlu0 %v144, 4
    %v1032 = vpop.permute.xlu0 %1031
    %1033 = vrot.lane.b32.xlu0 %v145, 4
    %v1034 = vpop.permute.xlu0 %1033
    %1035 = vrot.lane.b32.xlu0 %v146, 4
    %v1036 = vpop.permute.xlu0 %1035
    %1037 = vrot.lane.b32.xlu0 %v147, 4
    %v1038 = vpop.permute.xlu0 %1037
    %1039 = vrot.lane.b32.xlu0 %v148, 4
    %v1040 = vpop.permute.xlu0 %1039
    %1041 = vrot.lane.b32.xlu0 %v149, 4
    %v1042 = vpop.permute.xlu0 %1041
    %1043 = vrot.lane.b32.xlu0 %v150, 4
    %v1044 = vpop.permute.xlu0 %1043
    %1045 = vrot.lane.b32.xlu0 %v151, 4
    %v1046 = vpop.permute.xlu0 %1045
    %1047 = vrot.lane.b32.xlu0 %v152, 4
    %v1048 = vpop.permute.xlu0 %1047
    %1049 = vrot.lane.b32.xlu0 %v153, 4
    %v1050 = vpop.permute.xlu0 %1049
    %1051 = vrot.lane.b32.xlu0 %v154, 4
    %v1052 = vpop.permute.xlu0 %1051
    %1053 = vrot.lane.b32.xlu0 %v155, 4
    %v1054 = vpop.permute.xlu0 %1053
    %1055 = vrot.lane.b32.xlu0 %v156, 4
    %v1056 = vpop.permute.xlu0 %1055
    %1057 = vrot.lane.b32.xlu0 %v157, 4
    %v1058 = vpop.permute.xlu0 %1057
    %1059 = vrot.lane.b32.xlu0 %v158, 4
    %v1060 = vpop.permute.xlu0 %1059
    %1061 = vrot.lane.b32.xlu0 %v159, 4
    %v1062 = vpop.permute.xlu0 %1061
    %1063 = vrot.lane.b32.xlu0 %v160, 4
    %v1064 = vpop.permute.xlu0 %1063
    %1321 = vrot.lane.b32.xlu0 %v553, 8
    %v1322 = vpop.permute.xlu0 %1321
    %1323 = vrot.lane.b32.xlu0 %v554, 8
    %v1324 = vpop.permute.xlu0 %1323
    %1325 = vrot.lane.b32.xlu0 %v555, 8
    %v1326 = vpop.permute.xlu0 %1325
    %1327 = vrot.lane.b32.xlu0 %v556, 8
    %v1328 = vpop.permute.xlu0 %1327
    %1329 = vrot.lane.b32.xlu0 %v557, 8
    %v1330 = vpop.permute.xlu0 %1329
    %1331 = vrot.lane.b32.xlu0 %v558, 8
    %v1332 = vpop.permute.xlu0 %1331
    %1333 = vrot.lane.b32.xlu0 %v559, 8
    %v1334 = vpop.permute.xlu0 %1333
    %1335 = vrot.lane.b32.xlu0 %v560, 8
    %v1336 = vpop.permute.xlu0 %1335
    %1337 = vrot.lane.b32.xlu0 %v561, 8
    %v1338 = vpop.permute.xlu0 %1337
    %1339 = vrot.lane.b32.xlu0 %v562, 8
    %v1340 = vpop.permute.xlu0 %1339
    %1341 = vrot.lane.b32.xlu0 %v563, 8
    %v1342 = vpop.permute.xlu0 %1341
    %1343 = vrot.lane.b32.xlu0 %v564, 8
    %v1344 = vpop.permute.xlu0 %1343
    %1345 = vrot.lane.b32.xlu0 %v565, 8
    %v1346 = vpop.permute.xlu0 %1345
    %1347 = vrot.lane.b32.xlu0 %v566, 8
    %v1348 = vpop.permute.xlu0 %1347
    %1349 = vrot.lane.b32.xlu0 %v567, 8
    %v1350 = vpop.permute.xlu0 %1349
    %1351 = vrot.lane.b32.xlu0 %v568, 8
    %v1352 = vpop.permute.xlu0 %1351
    %1353 = vrot.lane.b32.xlu0 %v569, 8
    %v1354 = vpop.permute.xlu0 %1353
    %1355 = vrot.lane.b32.xlu0 %v570, 8
    %v1356 = vpop.permute.xlu0 %1355
    %1357 = vrot.lane.b32.xlu0 %v571, 8
    %v1358 = vpop.permute.xlu0 %1357
    %1359 = vrot.lane.b32.xlu0 %v572, 8
    %v1360 = vpop.permute.xlu0 %1359
    %1361 = vrot.lane.b32.xlu0 %v573, 8
    %v1362 = vpop.permute.xlu0 %1361
    %1363 = vrot.lane.b32.xlu0 %v574, 8
    %v1364 = vpop.permute.xlu0 %1363
    %1365 = vrot.lane.b32.xlu0 %v575, 8
    %v1366 = vpop.permute.xlu0 %1365
    %1367 = vrot.lane.b32.xlu0 %v576, 8
    %v1368 = vpop.permute.xlu0 %1367
    %1369 = vrot.lane.b32.xlu0 %v577, 8
    %v1370 = vpop.permute.xlu0 %1369
    %1371 = vrot.lane.b32.xlu0 %v578, 8
    %v1372 = vpop.permute.xlu0 %1371
    %1373 = vrot.lane.b32.xlu0 %v579, 8
    %v1374 = vpop.permute.xlu0 %1373
    %1375 = vrot.lane.b32.xlu0 %v580, 8
    %v1376 = vpop.permute.xlu0 %1375
    %1377 = vrot.lane.b32.xlu0 %v581, 8
    %v1378 = vpop.permute.xlu0 %1377
    %1379 = vrot.lane.b32.xlu0 %v582, 8
    %v1380 = vpop.permute.xlu0 %1379
    %1381 = vrot.lane.b32.xlu0 %v583, 8
    %v1382 = vpop.permute.xlu0 %1381
    %1383 = vrot.lane.b32.xlu0 %v584, 8
    %v1384 = vpop.permute.xlu0 %1383
    %1385 = vrot.lane.b32.xlu0 %v585, 8
    %v1386 = vpop.permute.xlu0 %1385
    %1387 = vrot.lane.b32.xlu0 %v586, 8
    %v1388 = vpop.permute.xlu0 %1387
    %1389 = vrot.lane.b32.xlu0 %v587, 8
    %v1390 = vpop.permute.xlu0 %1389
    %1391 = vrot.lane.b32.xlu0 %v588, 8
    %v1392 = vpop.permute.xlu0 %1391
    %1393 = vrot.lane.b32.xlu0 %v589, 8
    %v1394 = vpop.permute.xlu0 %1393
    %1395 = vrot.lane.b32.xlu0 %v590, 8
    %v1396 = vpop.permute.xlu0 %1395
    %1397 = vrot.lane.b32.xlu0 %v591, 8
    %v1398 = vpop.permute.xlu0 %1397
    %1399 = vrot.lane.b32.xlu0 %v592, 8
    %v1400 = vpop.permute.xlu0 %1399
    %1401 = vrot.lane.b32.xlu0 %v593, 8
    %v1402 = vpop.permute.xlu0 %1401
    %1403 = vrot.lane.b32.xlu0 %v594, 8
    %v1404 = vpop.permute.xlu0 %1403
    %1405 = vrot.lane.b32.xlu0 %v595, 8
    %v1406 = vpop.permute.xlu0 %1405
    %1407 = vrot.lane.b32.xlu0 %v596, 8
    %v1408 = vpop.permute.xlu0 %1407
    %1409 = vrot.lane.b32.xlu0 %v597, 8
    %v1410 = vpop.permute.xlu0 %1409
    %1411 = vrot.lane.b32.xlu0 %v598, 8
    %v1412 = vpop.permute.xlu0 %1411
    %1413 = vrot.lane.b32.xlu0 %v599, 8
    %v1414 = vpop.permute.xlu0 %1413
    %1415 = vrot.lane.b32.xlu0 %v600, 8
    %v1416 = vpop.permute.xlu0 %1415
    %1417 = vrot.lane.b32.xlu0 %v601, 8
    %v1418 = vpop.permute.xlu0 %1417
    %1419 = vrot.lane.b32.xlu0 %v602, 8
    %v1420 = vpop.permute.xlu0 %1419
    %1421 = vrot.lane.b32.xlu0 %v603, 8
    %v1422 = vpop.permute.xlu0 %1421
    %1423 = vrot.lane.b32.xlu0 %v604, 8
    %v1424 = vpop.permute.xlu0 %1423
    %1425 = vrot.lane.b32.xlu0 %v605, 8
    %v1426 = vpop.permute.xlu0 %1425
    %1427 = vrot.lane.b32.xlu0 %v606, 8
    %v1428 = vpop.permute.xlu0 %1427
    %1429 = vrot.lane.b32.xlu0 %v607, 8
    %v1430 = vpop.permute.xlu0 %1429
    %1431 = vrot.lane.b32.xlu0 %v608, 8
    %v1432 = vpop.permute.xlu0 %1431
    %1433 = vrot.lane.b32.xlu0 %v609, 8
    %v1434 = vpop.permute.xlu0 %1433
    %1435 = vrot.lane.b32.xlu0 %v610, 8
    %v1436 = vpop.permute.xlu0 %1435
    %1437 = vrot.lane.b32.xlu0 %v611, 8
    %v1438 = vpop.permute.xlu0 %1437
    %1439 = vrot.lane.b32.xlu0 %v612, 8
    %v1440 = vpop.permute.xlu0 %1439
    %1441 = vrot.lane.b32.xlu0 %v613, 8
    %v1442 = vpop.permute.xlu0 %1441
    %1443 = vrot.lane.b32.xlu0 %v614, 8
    %v1444 = vpop.permute.xlu0 %1443
    %1445 = vrot.lane.b32.xlu0 %v615, 8
    %v1446 = vpop.permute.xlu0 %1445
    %1447 = vrot.lane.b32.xlu0 %v616, 8
    %v1448 = vpop.permute.xlu0 %1447
    %1449 = vrot.lane.b32.xlu0 %v617, 8
    %v1450 = vpop.permute.xlu0 %1449
    %1451 = vrot.lane.b32.xlu0 %v618, 8
    %v1452 = vpop.permute.xlu0 %1451
    %1453 = vrot.lane.b32.xlu0 %v619, 8
    %v1454 = vpop.permute.xlu0 %1453
    %1455 = vrot.lane.b32.xlu0 %v620, 8
    %v1456 = vpop.permute.xlu0 %1455
    %1457 = vrot.lane.b32.xlu0 %v621, 8
    %v1458 = vpop.permute.xlu0 %1457
    %1459 = vrot.lane.b32.xlu0 %v622, 8
    %v1460 = vpop.permute.xlu0 %1459
    %1461 = vrot.lane.b32.xlu0 %v623, 8
    %v1462 = vpop.permute.xlu0 %1461
    %1463 = vrot.lane.b32.xlu0 %v624, 8
    %v1464 = vpop.permute.xlu0 %1463
    %1465 = vrot.lane.b32.xlu0 %v625, 8
    %v1466 = vpop.permute.xlu0 %1465
    %1467 = vrot.lane.b32.xlu0 %v626, 8
    %v1468 = vpop.permute.xlu0 %1467
    %1469 = vrot.lane.b32.xlu0 %v627, 8
    %v1470 = vpop.permute.xlu0 %1469
    %1471 = vrot.lane.b32.xlu0 %v628, 8
    %v1472 = vpop.permute.xlu0 %1471
    %1473 = vrot.lane.b32.xlu0 %v629, 8
    %v1474 = vpop.permute.xlu0 %1473
    %1475 = vrot.lane.b32.xlu0 %v630, 8
    %v1476 = vpop.permute.xlu0 %1475
    %1477 = vrot.lane.b32.xlu0 %v631, 8
    %v1478 = vpop.permute.xlu0 %1477
    %1479 = vrot.lane.b32.xlu0 %v632, 8
    %v1480 = vpop.permute.xlu0 %1479
    %1481 = vrot.lane.b32.xlu0 %v633, 8
    %v1482 = vpop.permute.xlu0 %1481
    %1483 = vrot.lane.b32.xlu0 %v634, 8
    %v1484 = vpop.permute.xlu0 %1483
    %1485 = vrot.lane.b32.xlu0 %v635, 8
    %v1486 = vpop.permute.xlu0 %1485
    %1487 = vrot.lane.b32.xlu0 %v636, 8
    %v1488 = vpop.permute.xlu0 %1487
    %1489 = vrot.lane.b32.xlu0 %v637, 8
    %v1490 = vpop.permute.xlu0 %1489
    %1491 = vrot.lane.b32.xlu0 %v638, 8
    %v1492 = vpop.permute.xlu0 %1491
    %1493 = vrot.lane.b32.xlu0 %v639, 8
    %v1494 = vpop.permute.xlu0 %1493
    %1495 = vrot.lane.b32.xlu0 %v640, 8
    %v1496 = vpop.permute.xlu0 %1495
    %1497 = vrot.lane.b32.xlu0 %v641, 8
    %v1498 = vpop.permute.xlu0 %1497
    %1499 = vrot.lane.b32.xlu0 %v642, 8
    %v1500 = vpop.permute.xlu0 %1499
    %1501 = vrot.lane.b32.xlu0 %v643, 8
    %v1502 = vpop.permute.xlu0 %1501
    %1503 = vrot.lane.b32.xlu0 %v644, 8
    %v1504 = vpop.permute.xlu0 %1503
    %1505 = vrot.lane.b32.xlu0 %v645, 8
    %v1506 = vpop.permute.xlu0 %1505
    %1507 = vrot.lane.b32.xlu0 %v646, 8
    %v1508 = vpop.permute.xlu0 %1507
    %1509 = vrot.lane.b32.xlu0 %v647, 8
    %v1510 = vpop.permute.xlu0 %1509
    %1511 = vrot.lane.b32.xlu0 %v648, 8
    %v1512 = vpop.permute.xlu0 %1511
    %1513 = vrot.lane.b32.xlu0 %v649, 8
    %v1514 = vpop.permute.xlu0 %1513
    %1515 = vrot.lane.b32.xlu0 %v650, 8
    %v1516 = vpop.permute.xlu0 %1515
    %1517 = vrot.lane.b32.xlu0 %v651, 8
    %v1518 = vpop.permute.xlu0 %1517
    %1519 = vrot.lane.b32.xlu0 %v652, 8
    %v1520 = vpop.permute.xlu0 %1519
    %1521 = vrot.lane.b32.xlu0 %v653, 8
    %v1522 = vpop.permute.xlu0 %1521
    %1523 = vrot.lane.b32.xlu0 %v654, 8
    %v1524 = vpop.permute.xlu0 %1523
    %1525 = vrot.lane.b32.xlu0 %v655, 8
    %v1526 = vpop.permute.xlu0 %1525
    %1527 = vrot.lane.b32.xlu0 %v656, 8
    %v1528 = vpop.permute.xlu0 %1527
    %1529 = vrot.lane.b32.xlu0 %v657, 8
    %v1530 = vpop.permute.xlu0 %1529
    %1531 = vrot.lane.b32.xlu0 %v658, 8
    %v1532 = vpop.permute.xlu0 %1531
    %1533 = vrot.lane.b32.xlu0 %v659, 8
    %v1534 = vpop.permute.xlu0 %1533
    %1535 = vrot.lane.b32.xlu0 %v660, 8
    %v1536 = vpop.permute.xlu0 %1535
    %1537 = vrot.lane.b32.xlu0 %v661, 8
    %v1538 = vpop.permute.xlu0 %1537
    %1539 = vrot.lane.b32.xlu0 %v662, 8
    %v1540 = vpop.permute.xlu0 %1539
    %1541 = vrot.lane.b32.xlu0 %v663, 8
    %v1542 = vpop.permute.xlu0 %1541
    %1543 = vrot.lane.b32.xlu0 %v664, 8
    %v1544 = vpop.permute.xlu0 %1543
    %1545 = vrot.lane.b32.xlu0 %v665, 8
    %v1546 = vpop.permute.xlu0 %1545
    %1547 = vrot.lane.b32.xlu0 %v666, 8
    %v1548 = vpop.permute.xlu0 %1547
    %1549 = vrot.lane.b32.xlu0 %v667, 8
    %v1550 = vpop.permute.xlu0 %1549
    %1551 = vrot.lane.b32.xlu0 %v668, 8
    %v1552 = vpop.permute.xlu0 %1551
    %1553 = vrot.lane.b32.xlu0 %v669, 8
    %v1554 = vpop.permute.xlu0 %1553
    %1555 = vrot.lane.b32.xlu0 %v670, 8
    %v1556 = vpop.permute.xlu0 %1555
    %1557 = vrot.lane.b32.xlu0 %v671, 8
    %v1558 = vpop.permute.xlu0 %1557
    %1559 = vrot.lane.b32.xlu0 %v672, 8
    %v1560 = vpop.permute.xlu0 %1559
    %1561 = vrot.lane.b32.xlu0 %v673, 8
    %v1562 = vpop.permute.xlu0 %1561
    %1563 = vrot.lane.b32.xlu0 %v674, 8
    %v1564 = vpop.permute.xlu0 %1563
    %1565 = vrot.lane.b32.xlu0 %v675, 8
    %v1566 = vpop.permute.xlu0 %1565
    %1567 = vrot.lane.b32.xlu0 %v676, 8
    %v1568 = vpop.permute.xlu0 %1567
    %1569 = vrot.lane.b32.xlu0 %v677, 8
    %v1570 = vpop.permute.xlu0 %1569
    %1571 = vrot.lane.b32.xlu0 %v678, 8
    %v1572 = vpop.permute.xlu0 %1571
    %1573 = vrot.lane.b32.xlu0 %v679, 8
    %v1574 = vpop.permute.xlu0 %1573
    %1575 = vrot.lane.b32.xlu0 %v680, 8
    %v1576 = vpop.permute.xlu0 %1575
    %vm1705 = vcmask 31744
    %v1706 = vsel %vm1705, %v295, %v810
    %v1707 = vsel %vm1705, %v296, %v812
    %v1708 = vsel %vm1705, %v297, %v814
    %v1709 = vsel %vm1705, %v298, %v816
    %v1710 = vsel %vm1705, %v299, %v818
    %v1711 = vsel %vm1705, %v300, %v820
    %v1712 = vsel %vm1705, %v301, %v822
    %v1713 = vsel %vm1705, %v302, %v824
    %v1714 = vsel %vm1705, %v303, %v826
    %v1715 = vsel %vm1705, %v304, %v828
    %v1716 = vsel %vm1705, %v305, %v830
    %v1717 = vsel %vm1705, %v306, %v832
    %v1718 = vsel %vm1705, %v307, %v834
    %v1719 = vsel %vm1705, %v308, %v836
    %v1720 = vsel %vm1705, %v309, %v838
    %v1721 = vsel %vm1705, %v310, %v840
    %v1722 = vsel %vm1705, %v311, %v842
    %v1723 = vsel %vm1705, %v312, %v844
    %v1724 = vsel %vm1705, %v313, %v846
    %v1725 = vsel %vm1705, %v314, %v848
    %v1726 = vsel %vm1705, %v315, %v850
    %v1727 = vsel %vm1705, %v316, %v852
    %v1728 = vsel %vm1705, %v317, %v854
    %v1729 = vsel %vm1705, %v318, %v856
    %v1730 = vsel %vm1705, %v319, %v858
    %v1731 = vsel %vm1705, %v320, %v860
    %v1732 = vsel %vm1705, %v321, %v862
    %v1733 = vsel %vm1705, %v322, %v864
    %v1734 = vsel %vm1705, %v323, %v866
    %v1735 = vsel %vm1705, %v324, %v868
    %v1736 = vsel %vm1705, %v325, %v870
    %v1737 = vsel %vm1705, %v326, %v872
    %v1738 = vsel %vm1705, %v327, %v874
    %v1739 = vsel %vm1705, %v328, %v876
    %v1740 = vsel %vm1705, %v329, %v878
    %v1741 = vsel %vm1705, %v330, %v880
    %v1742 = vsel %vm1705, %v331, %v882
    %v1743 = vsel %vm1705, %v332, %v884
    %v1744 = vsel %vm1705, %v333, %v886
    %v1745 = vsel %vm1705, %v334, %v888
    %v1746 = vsel %vm1705, %v335, %v890
    %v1747 = vsel %vm1705, %v336, %v892
    %v1748 = vsel %vm1705, %v337, %v894
    %v1749 = vsel %vm1705, %v338, %v896
    %v1750 = vsel %vm1705, %v339, %v898
    %v1751 = vsel %vm1705, %v340, %v900
    %v1752 = vsel %vm1705, %v341, %v902
    %v1753 = vsel %vm1705, %v342, %v904
    %v1754 = vsel %vm1705, %v343, %v906
    %v1755 = vsel %vm1705, %v344, %v908
    %v1756 = vsel %vm1705, %v345, %v910
    %v1757 = vsel %vm1705, %v346, %v912
    %v1758 = vsel %vm1705, %v347, %v914
    %v1759 = vsel %vm1705, %v348, %v916
    %v1760 = vsel %vm1705, %v349, %v918
    %v1761 = vsel %vm1705, %v350, %v920
    %v1762 = vsel %vm1705, %v351, %v922
    %v1763 = vsel %vm1705, %v352, %v924
    %v1764 = vsel %vm1705, %v353, %v926
    %v1765 = vsel %vm1705, %v354, %v928
    %v1766 = vsel %vm1705, %v355, %v930
    %v1767 = vsel %vm1705, %v356, %v932
    %v1768 = vsel %vm1705, %v357, %v934
    %v1769 = vsel %vm1705, %v358, %v936
    %v1770 = vsel %vm1705, %v359, %v938
    %v1771 = vsel %vm1705, %v360, %v940
    %v1772 = vsel %vm1705, %v361, %v942
    %v1773 = vsel %vm1705, %v362, %v944
    %v1774 = vsel %vm1705, %v363, %v946
    %v1775 = vsel %vm1705, %v364, %v948
    %v1776 = vsel %vm1705, %v365, %v950
    %v1777 = vsel %vm1705, %v366, %v952
    %v1778 = vsel %vm1705, %v367, %v954
    %v1779 = vsel %vm1705, %v368, %v956
    %v1780 = vsel %vm1705, %v369, %v958
    %v1781 = vsel %vm1705, %v370, %v960
    %v1782 = vsel %vm1705, %v371, %v962
    %v1783 = vsel %vm1705, %v372, %v964
    %v1784 = vsel %vm1705, %v373, %v966
    %v1785 = vsel %vm1705, %v374, %v968
    %v1786 = vsel %vm1705, %v375, %v970
    %v1787 = vsel %vm1705, %v376, %v972
    %v1788 = vsel %vm1705, %v377, %v974
    %v1789 = vsel %vm1705, %v378, %v976
    %v1790 = vsel %vm1705, %v379, %v978
    %v1791 = vsel %vm1705, %v380, %v980
    %v1792 = vsel %vm1705, %v381, %v982
    %v1793 = vsel %vm1705, %v382, %v984
    %v1794 = vsel %vm1705, %v383, %v986
    %v1795 = vsel %vm1705, %v384, %v988
    %v1796 = vsel %vm1705, %v385, %v990
    %v1797 = vsel %vm1705, %v386, %v992
    %v1798 = vsel %vm1705, %v387, %v994
    %v1799 = vsel %vm1705, %v388, %v996
    %v1800 = vsel %vm1705, %v389, %v998
    %v1801 = vsel %vm1705, %v390, %v1000
    %v1802 = vsel %vm1705, %v391, %v1002
    %v1803 = vsel %vm1705, %v392, %v1004
    %v1804 = vsel %vm1705, %v393, %v1006
    %v1805 = vsel %vm1705, %v394, %v1008
    %v1806 = vsel %vm1705, %v395, %v1010
    %v1807 = vsel %vm1705, %v396, %v1012
    %v1808 = vsel %vm1705, %v397, %v1014
    %v1809 = vsel %vm1705, %v398, %v1016
    %v1810 = vsel %vm1705, %v399, %v1018
    %v1811 = vsel %vm1705, %v400, %v1020
    %v1812 = vsel %vm1705, %v401, %v1022
    %v1813 = vsel %vm1705, %v402, %v1024
    %v1814 = vsel %vm1705, %v403, %v1026
    %v1815 = vsel %vm1705, %v404, %v1028
    %v1816 = vsel %vm1705, %v405, %v1030
    %v1817 = vsel %vm1705, %v406, %v1032
    %v1818 = vsel %vm1705, %v407, %v1034
    %v1819 = vsel %vm1705, %v408, %v1036
    %v1820 = vsel %vm1705, %v409, %v1038
    %v1821 = vsel %vm1705, %v410, %v1040
    %v1822 = vsel %vm1705, %v411, %v1042
    %v1823 = vsel %vm1705, %v412, %v1044
    %v1824 = vsel %vm1705, %v413, %v1046
    %v1825 = vsel %vm1705, %v414, %v1048
    %v1826 = vsel %vm1705, %v415, %v1050
    %v1827 = vsel %vm1705, %v416, %v1052
    %v1828 = vsel %vm1705, %v417, %v1054
    %v1829 = vsel %vm1705, %v418, %v1056
    %v1830 = vsel %vm1705, %v419, %v1058
    %v1831 = vsel %vm1705, %v420, %v1060
    %v1832 = vsel %vm1705, %v421, %v1062
    %v1833 = vsel %vm1705, %v422, %v1064
    %vm1834 = vcmask 64512
    %v1835 = vsel %vm1834, %v1706, %v1322
    %v1836 = vsel %vm1834, %v1707, %v1324
    %v1837 = vsel %vm1834, %v1708, %v1326
    %v1838 = vsel %vm1834, %v1709, %v1328
    %v1839 = vsel %vm1834, %v1710, %v1330
    %v1840 = vsel %vm1834, %v1711, %v1332
    %v1841 = vsel %vm1834, %v1712, %v1334
    %v1842 = vsel %vm1834, %v1713, %v1336
    %v1843 = vsel %vm1834, %v1714, %v1338
    %v1844 = vsel %vm1834, %v1715, %v1340
    %v1845 = vsel %vm1834, %v1716, %v1342
    %v1846 = vsel %vm1834, %v1717, %v1344
    %v1847 = vsel %vm1834, %v1718, %v1346
    %v1848 = vsel %vm1834, %v1719, %v1348
    %v1849 = vsel %vm1834, %v1720, %v1350
    %v1850 = vsel %vm1834, %v1721, %v1352
    %v1851 = vsel %vm1834, %v1722, %v1354
    %v1852 = vsel %vm1834, %v1723, %v1356
    %v1853 = vsel %vm1834, %v1724, %v1358
    %v1854 = vsel %vm1834, %v1725, %v1360
    %v1855 = vsel %vm1834, %v1726, %v1362
    %v1856 = vsel %vm1834, %v1727, %v1364
    %v1857 = vsel %vm1834, %v1728, %v1366
    %v1858 = vsel %vm1834, %v1729, %v1368
    %v1859 = vsel %vm1834, %v1730, %v1370
    %v1860 = vsel %vm1834, %v1731, %v1372
    %v1861 = vsel %vm1834, %v1732, %v1374
    %v1862 = vsel %vm1834, %v1733, %v1376
    %v1863 = vsel %vm1834, %v1734, %v1378
    %v1864 = vsel %vm1834, %v1735, %v1380
    %v1865 = vsel %vm1834, %v1736, %v1382
    %v1866 = vsel %vm1834, %v1737, %v1384
    %v1867 = vsel %vm1834, %v1738, %v1386
    %v1868 = vsel %vm1834, %v1739, %v1388
    %v1869 = vsel %vm1834, %v1740, %v1390
    %v1870 = vsel %vm1834, %v1741, %v1392
    %v1871 = vsel %vm1834, %v1742, %v1394
    %v1872 = vsel %vm1834, %v1743, %v1396
    %v1873 = vsel %vm1834, %v1744, %v1398
    %v1874 = vsel %vm1834, %v1745, %v1400
    %v1875 = vsel %vm1834, %v1746, %v1402
    %v1876 = vsel %vm1834, %v1747, %v1404
    %v1877 = vsel %vm1834, %v1748, %v1406
    %v1878 = vsel %vm1834, %v1749, %v1408
    %v1879 = vsel %vm1834, %v1750, %v1410
    %v1880 = vsel %vm1834, %v1751, %v1412
    %v1881 = vsel %vm1834, %v1752, %v1414
    %v1882 = vsel %vm1834, %v1753, %v1416
    %v1883 = vsel %vm1834, %v1754, %v1418
    %v1884 = vsel %vm1834, %v1755, %v1420
    %v1885 = vsel %vm1834, %v1756, %v1422
    %v1886 = vsel %vm1834, %v1757, %v1424
    %v1887 = vsel %vm1834, %v1758, %v1426
    %v1888 = vsel %vm1834, %v1759, %v1428
    %v1889 = vsel %vm1834, %v1760, %v1430
    %v1890 = vsel %vm1834, %v1761, %v1432
    %v1891 = vsel %vm1834, %v1762, %v1434
    %v1892 = vsel %vm1834, %v1763, %v1436
    %v1893 = vsel %vm1834, %v1764, %v1438
    %v1894 = vsel %vm1834, %v1765, %v1440
    %v1895 = vsel %vm1834, %v1766, %v1442
    %v1896 = vsel %vm1834, %v1767, %v1444
    %v1897 = vsel %vm1834, %v1768, %v1446
    %v1898 = vsel %vm1834, %v1769, %v1448
    %v1899 = vsel %vm1834, %v1770, %v1450
    %v1900 = vsel %vm1834, %v1771, %v1452
    %v1901 = vsel %vm1834, %v1772, %v1454
    %v1902 = vsel %vm1834, %v1773, %v1456
    %v1903 = vsel %vm1834, %v1774, %v1458
    %v1904 = vsel %vm1834, %v1775, %v1460
    %v1905 = vsel %vm1834, %v1776, %v1462
    %v1906 = vsel %vm1834, %v1777, %v1464
    %v1907 = vsel %vm1834, %v1778, %v1466
    %v1908 = vsel %vm1834, %v1779, %v1468
    %v1909 = vsel %vm1834, %v1780, %v1470
    %v1910 = vsel %vm1834, %v1781, %v1472
    %v1911 = vsel %vm1834, %v1782, %v1474
    %v1912 = vsel %vm1834, %v1783, %v1476
    %v1913 = vsel %vm1834, %v1784, %v1478
    %v1914 = vsel %vm1834, %v1785, %v1480
    %v1915 = vsel %vm1834, %v1786, %v1482
    %v1916 = vsel %vm1834, %v1787, %v1484
    %v1917 = vsel %vm1834, %v1788, %v1486
    %v1918 = vsel %vm1834, %v1789, %v1488
    %v1919 = vsel %vm1834, %v1790, %v1490
    %v1920 = vsel %vm1834, %v1791, %v1492
    %v1921 = vsel %vm1834, %v1792, %v1494
    %v1922 = vsel %vm1834, %v1793, %v1496
    %v1923 = vsel %vm1834, %v1794, %v1498
    %v1924 = vsel %vm1834, %v1795, %v1500
    %v1925 = vsel %vm1834, %v1796, %v1502
    %v1926 = vsel %vm1834, %v1797, %v1504
    %v1927 = vsel %vm1834, %v1798, %v1506
    %v1928 = vsel %vm1834, %v1799, %v1508
    %v1929 = vsel %vm1834, %v1800, %v1510
    %v1930 = vsel %vm1834, %v1801, %v1512
    %v1931 = vsel %vm1834, %v1802, %v1514
    %v1932 = vsel %vm1834, %v1803, %v1516
    %v1933 = vsel %vm1834, %v1804, %v1518
    %v1934 = vsel %vm1834, %v1805, %v1520
    %v1935 = vsel %vm1834, %v1806, %v1522
    %v1936 = vsel %vm1834, %v1807, %v1524
    %v1937 = vsel %vm1834, %v1808, %v1526
    %v1938 = vsel %vm1834, %v1809, %v1528
    %v1939 = vsel %vm1834, %v1810, %v1530
    %v1940 = vsel %vm1834, %v1811, %v1532
    %v1941 = vsel %vm1834, %v1812, %v1534
    %v1942 = vsel %vm1834, %v1813, %v1536
    %v1943 = vsel %vm1834, %v1814, %v1538
    %v1944 = vsel %vm1834, %v1815, %v1540
    %v1945 = vsel %vm1834, %v1816, %v1542
    %v1946 = vsel %vm1834, %v1817, %v1544
    %v1947 = vsel %vm1834, %v1818, %v1546
    %v1948 = vsel %vm1834, %v1819, %v1548
    %v1949 = vsel %vm1834, %v1820, %v1550
    %v1950 = vsel %vm1834, %v1821, %v1552
    %v1951 = vsel %vm1834, %v1822, %v1554
    %v1952 = vsel %vm1834, %v1823, %v1556
    %v1953 = vsel %vm1834, %v1824, %v1558
    %v1954 = vsel %vm1834, %v1825, %v1560
    %v1955 = vsel %vm1834, %v1826, %v1562
    %v1956 = vsel %vm1834, %v1827, %v1564
    %v1957 = vsel %vm1834, %v1828, %v1566
    %v1958 = vsel %vm1834, %v1829, %v1568
    %v1959 = vsel %vm1834, %v1830, %v1570
    %v1960 = vsel %vm1834, %v1831, %v1572
    %v1961 = vsel %vm1834, %v1832, %v1574
    %v1962 = vsel %vm1834, %v1833, %v1576
    %v1963 = vld [vmem:[%s1] sm:$0xff]
    %v1964 = vld [vmem:[%s1 + $0x8] sm:$0xf]
    %v1965 = vld [vmem:[%s2] sm:$0x1]
    %v1967 = vlaneseq
    %v1968 = vshrl.u32 %v1967, 7
    %v1969 = vsub.s32 0, %v1968
    %v1970 = vrot.slane %v1965, %v1969
    %vm1972 = vcmask 97280
    %v1974 = vsel %vm1972, %v1835, 0
    %v1977 = vsel %vm1972, %v1836, 0
    %v1980 = vsel %vm1972, %v1837, 0
    %v1983 = vsel %vm1972, %v1838, 0
    %v1986 = vsel %vm1972, %v1839, 0
    %v1989 = vsel %vm1972, %v1840, 0
    %v1992 = vsel %vm1972, %v1841, 0
    %v1995 = vsel %vm1972, %v1842, 0
    %v1998 = vsel %vm1972, %v1843, 0
    %v2001 = vsel %vm1972, %v1844, 0
    %v2004 = vsel %vm1972, %v1845, 0
    %v2007 = vsel %vm1972, %v1846, 0
    %v2010 = vsel %vm1972, %v1847, 0
    %v2013 = vsel %vm1972, %v1848, 0
    %v2016 = vsel %vm1972, %v1849, 0
    %v2019 = vsel %vm1972, %v1850, 0
    %v2022 = vsel %vm1972, %v1851, 0
    %v2025 = vsel %vm1972, %v1852, 0
    %v2028 = vsel %vm1972, %v1853, 0
    %v2031 = vsel %vm1972, %v1854, 0
    %v2034 = vsel %vm1972, %v1855, 0
    %v2037 = vsel %vm1972, %v1856, 0
    %v2040 = vsel %vm1972, %v1857, 0
    %v2043 = vsel %vm1972, %v1858, 0
    %v2046 = vsel %vm1972, %v1859, 0
    %v2049 = vsel %vm1972, %v1860, 0
    %v2052 = vsel %vm1972, %v1861, 0
    %v2055 = vsel %vm1972, %v1862, 0
    %v2058 = vsel %vm1972, %v1863, 0
    %v2061 = vsel %vm1972, %v1864, 0
    %v2064 = vsel %vm1972, %v1865, 0
    %v2067 = vsel %vm1972, %v1866, 0
    %v2070 = vsel %vm1972, %v1867, 0
    %v2073 = vsel %vm1972, %v1868, 0
    %v2076 = vsel %vm1972, %v1869, 0
    %v2079 = vsel %vm1972, %v1870, 0
    %v2082 = vsel %vm1972, %v1871, 0
    %v2085 = vsel %vm1972, %v1872, 0
    %v2088 = vsel %vm1972, %v1873, 0
    %v2091 = vsel %vm1972, %v1874, 0
    %v2094 = vsel %vm1972, %v1875, 0
    %v2097 = vsel %vm1972, %v1876, 0
    %v2100 = vsel %vm1972, %v1877, 0
    %v2103 = vsel %vm1972, %v1878, 0
    %v2106 = vsel %vm1972, %v1879, 0
    %v2109 = vsel %vm1972, %v1880, 0
    %v2112 = vsel %vm1972, %v1881, 0
    %v2115 = vsel %vm1972, %v1882, 0
    %v2118 = vsel %vm1972, %v1883, 0
    %v2121 = vsel %vm1972, %v1884, 0
    %v2124 = vsel %vm1972, %v1885, 0
    %v2127 = vsel %vm1972, %v1886, 0
    %v2130 = vsel %vm1972, %v1887, 0
    %v2133 = vsel %vm1972, %v1888, 0
    %v2136 = vsel %vm1972, %v1889, 0
    %v2139 = vsel %vm1972, %v1890, 0
    %v2142 = vsel %vm1972, %v1891, 0
    %v2145 = vsel %vm1972, %v1892, 0
    %v2148 = vsel %vm1972, %v1893, 0
    %v2151 = vsel %vm1972, %v1894, 0
    %v2154 = vsel %vm1972, %v1895, 0
    %v2157 = vsel %vm1972, %v1896, 0
    %v2160 = vsel %vm1972, %v1897, 0
    %v2163 = vsel %vm1972, %v1898, 0
    %v2166 = vsel %vm1972, %v1899, 0
    %v2169 = vsel %vm1972, %v1900, 0
    %v2172 = vsel %vm1972, %v1901, 0
    %v2175 = vsel %vm1972, %v1902, 0
    %v2178 = vsel %vm1972, %v1903, 0
    %v2181 = vsel %vm1972, %v1904, 0
    %v2184 = vsel %vm1972, %v1905, 0
    %v2187 = vsel %vm1972, %v1906, 0
    %v2190 = vsel %vm1972, %v1907, 0
    %v2193 = vsel %vm1972, %v1908, 0
    %v2196 = vsel %vm1972, %v1909, 0
    %v2199 = vsel %vm1972, %v1910, 0
    %v2202 = vsel %vm1972, %v1911, 0
    %v2205 = vsel %vm1972, %v1912, 0
    %v2208 = vsel %vm1972, %v1913, 0
    %v2211 = vsel %vm1972, %v1914, 0
    %v2214 = vsel %vm1972, %v1915, 0
    %v2217 = vsel %vm1972, %v1916, 0
    %v2220 = vsel %vm1972, %v1917, 0
    %v2223 = vsel %vm1972, %v1918, 0
    %v2226 = vsel %vm1972, %v1919, 0
    %v2229 = vsel %vm1972, %v1920, 0
    %v2232 = vsel %vm1972, %v1921, 0
    %v2235 = vsel %vm1972, %v1922, 0
    %v2238 = vsel %vm1972, %v1923, 0
    %v2241 = vsel %vm1972, %v1924, 0
    %v2244 = vsel %vm1972, %v1925, 0
    %v2247 = vsel %vm1972, %v1926, 0
    %v2250 = vsel %vm1972, %v1927, 0
    %v2253 = vsel %vm1972, %v1928, 0
    %v2256 = vsel %vm1972, %v1929, 0
    %v2259 = vsel %vm1972, %v1930, 0
    %v2262 = vsel %vm1972, %v1931, 0
    %v2265 = vsel %vm1972, %v1932, 0
    %v2268 = vsel %vm1972, %v1933, 0
    %v2271 = vsel %vm1972, %v1934, 0
    %v2274 = vsel %vm1972, %v1935, 0
    %v2277 = vsel %vm1972, %v1936, 0
    %v2280 = vsel %vm1972, %v1937, 0
    %v2283 = vsel %vm1972, %v1938, 0
    %v2286 = vsel %vm1972, %v1939, 0
    %v2289 = vsel %vm1972, %v1940, 0
    %v2292 = vsel %vm1972, %v1941, 0
    %v2295 = vsel %vm1972, %v1942, 0
    %v2298 = vsel %vm1972, %v1943, 0
    %v2301 = vsel %vm1972, %v1944, 0
    %v2304 = vsel %vm1972, %v1945, 0
    %v2307 = vsel %vm1972, %v1946, 0
    %v2310 = vsel %vm1972, %v1947, 0
    %v2313 = vsel %vm1972, %v1948, 0
    %v2316 = vsel %vm1972, %v1949, 0
    %v2319 = vsel %vm1972, %v1950, 0
    %v2322 = vsel %vm1972, %v1951, 0
    %v2325 = vsel %vm1972, %v1952, 0
    %v2328 = vsel %vm1972, %v1953, 0
    %v2331 = vsel %vm1972, %v1954, 0
    %v2334 = vsel %vm1972, %v1955, 0
    %v2337 = vsel %vm1972, %v1956, 0
    %v2340 = vsel %vm1972, %v1957, 0
    %v2343 = vsel %vm1972, %v1958, 0
    %v2346 = vsel %vm1972, %v1959, 0
    %v2349 = vsel %vm1972, %v1960, 0
    %v2352 = vsel %vm1972, %v1961, 0
    %v2355 = vsel %vm1972, %v1962, 0
    %vm2357 = vcmask 1043456
    %v2359 = vsel %vm2357, %v1964, 0
    %2361 = vmatprep.subr.mxu0 0.0
    %2362 = vmatpush1.msra.mxu0 0.0
    %2363 = vmatprep.subr.mxu0 0.0
    %2364 = vmatpush1.msra.mxu0 0.0
    %2365 = vmatprep.subr.mxu0 0.0
    %2366 = vmatpush1.msra.mxu0 0.0
    %2367 = vmatprep.subr.mxu0 0.0
    %2368 = vmatpush1.msra.mxu0 0.0
    %2369 = vmatprep.subr.mxu0 0.0
    %2370 = vmatpush1.msra.mxu0 0.0
    %2371 = vmatprep.subr.mxu0 0.0
    %2372 = vmatpush1.msra.mxu0 0.0
    %2373 = vmatprep.subr.mxu0 0.0
    %2374 = vmatpush1.msra.mxu0 0.0
    %2375 = vmatprep.subr.mxu0 0.0
    %2376 = vmatpush1.msra.mxu0 0.0
    %2377 = vmatprep.subr.mxu0 0.0
    %2378 = vmatpush1.msra.mxu0 0.0
    %2379 = vmatprep.subr.mxu0 0.0
    %2380 = vmatpush1.msra.mxu0 0.0
    %2381 = vmatprep.subr.mxu0 0.0
    %2382 = vmatpush1.msra.mxu0 0.0
    %2383 = vmatprep.subr.mxu0 0.0
    %2384 = vmatpush1.msra.mxu0 0.0
    %2385 = vmatprep.subr.mxu0 0.0
    %2386 = vmatpush1.msra.mxu0 0.0
    %2387 = vmatprep.subr.mxu0 0.0
    %2388 = vmatpush1.msra.mxu0 0.0
    %2389 = vmatprep.subr.mxu0 0.0
    %2390 = vmatpush1.msra.mxu0 %v2359
    %2391 = vmatprep.subr.mxu0 0.0
    %2392 = vmatpush1.msra.mxu0 %v1963
    %2393 = vmatprep.subr.mxu0 0.0
    %2394 = vmatpush2.msra.mxu0 0.0
    %2395 = vmatprep.subr.mxu0 0.0
    %2396 = vmatpush2.msra.mxu0 0.0
    %2397 = vmatprep.subr.mxu0 0.0
    %2398 = vmatpush2.msra.mxu0 0.0
    %2399 = vmatprep.subr.mxu0 0.0
    %2400 = vmatpush2.msra.mxu0 0.0
    %2401 = vmatprep.subr.mxu0 0.0
    %2402 = vmatpush2.msra.mxu0 0.0
    %2403 = vmatprep.subr.mxu0 0.0
    %2404 = vmatpush2.msra.mxu0 0.0
    %2405 = vmatprep.subr.mxu0 0.0
    %2406 = vmatpush2.msra.mxu0 0.0
    %2407 = vmatprep.subr.mxu0 0.0
    %2408 = vmatpush2.msra.mxu0 0.0
    %2409 = vmatprep.subr.mxu0 0.0
    %2410 = vmatpush2.msra.mxu0 0.0
    %2411 = vmatprep.subr.mxu0 0.0
    %2412 = vmatpush2.msra.mxu0 0.0
    %2413 = vmatprep.subr.mxu0 0.0
    %2414 = vmatpush2.msra.mxu0 0.0
    %2415 = vmatprep.subr.mxu0 0.0
    %2416 = vmatpush2.msra.mxu0 0.0
    %2417 = vmatprep.subr.mxu0 0.0
    %2418 = vmatpush2.msra.mxu0 0.0
    %2419 = vmatprep.subr.mxu0 0.0
    %2420 = vmatpush2.msra.mxu0 0.0
    %2421 = vmatprep.subr.mxu0 0.0
    %2422 = vmatpush2.msra.mxu0 0.0
    %2423 = vmatprep.subr.mxu0 0.0
    %2424 = vmatpush2.msra.mxu0 0.0
    %2425 = vmatprep.mubr.f32.mxu0 0.0
    %2426 = vmatmul.mubr.f32.gmra.mxu0 %v1974
    %v2427 = vpop.f32.mrf.mxu0
    %v2428 = vadd.f32 %v1970, %v2427
    %v2429 = vpop.f32.mrf.mxu0
    %2430 = vmatprep.mubr.f32.mxu0 0.0
    %2431 = vmatmul.mubr.f32.gmra.mxu0 %v1977
    %v2432 = vpop.f32.mrf.mxu0
    %v2433 = vadd.f32 %v1970, %v2432
    %v2434 = vpop.f32.mrf.mxu0
    %2435 = vmatprep.mubr.f32.mxu0 0.0
    %2436 = vmatmul.mubr.f32.gmra.mxu0 %v1980
    %v2437 = vpop.f32.mrf.mxu0
    %v2438 = vadd.f32 %v1970, %v2437
    %v2439 = vpop.f32.mrf.mxu0
    %2440 = vmatprep.mubr.f32.mxu0 0.0
    %2441 = vmatmul.mubr.f32.gmra.mxu0 %v1983
    %v2442 = vpop.f32.mrf.mxu0
    %v2443 = vadd.f32 %v1970, %v2442
    %v2444 = vpop.f32.mrf.mxu0
    %2445 = vmatprep.mubr.f32.mxu0 0.0
    %2446 = vmatmul.mubr.f32.gmra.mxu0 %v1986
    %v2447 = vpop.f32.mrf.mxu0
    %v2448 = vadd.f32 %v1970, %v2447
    %v2449 = vpop.f32.mrf.mxu0
    %2450 = vmatprep.mubr.f32.mxu0 0.0
    %2451 = vmatmul.mubr.f32.gmra.mxu0 %v1989
    %v2452 = vpop.f32.mrf.mxu0
    %v2453 = vadd.f32 %v1970, %v2452
    %v2454 = vpop.f32.mrf.mxu0
    %2455 = vmatprep.mubr.f32.mxu0 0.0
    %2456 = vmatmul.mubr.f32.gmra.mxu0 %v1992
    %v2457 = vpop.f32.mrf.mxu0
    %v2458 = vadd.f32 %v1970, %v2457
    %v2459 = vpop.f32.mrf.mxu0
    %2460 = vmatprep.mubr.f32.mxu0 0.0
    %2461 = vmatmul.mubr.f32.gmra.mxu0 %v1995
    %v2462 = vpop.f32.mrf.mxu0
    %v2463 = vadd.f32 %v1970, %v2462
    %v2464 = vpop.f32.mrf.mxu0
    %2465 = vmatprep.mubr.f32.mxu0 0.0
    %2466 = vmatmul.mubr.f32.gmra.mxu0 %v1998
    %v2467 = vpop.f32.mrf.mxu0
    %v2468 = vadd.f32 %v1970, %v2467
    %v2469 = vpop.f32.mrf.mxu0
    %2470 = vmatprep.mubr.f32.mxu0 0.0
    %2471 = vmatmul.mubr.f32.gmra.mxu0 %v2001
    %v2472 = vpop.f32.mrf.mxu0
    %v2473 = vadd.f32 %v1970, %v2472
    %v2474 = vpop.f32.mrf.mxu0
    %2475 = vmatprep.mubr.f32.mxu0 0.0
    %2476 = vmatmul.mubr.f32.gmra.mxu0 %v2004
    %v2477 = vpop.f32.mrf.mxu0
    %v2478 = vadd.f32 %v1970, %v2477
    %v2479 = vpop.f32.mrf.mxu0
    %2480 = vmatprep.mubr.f32.mxu0 0.0
    %2481 = vmatmul.mubr.f32.gmra.mxu0 %v2007
    %v2482 = vpop.f32.mrf.mxu0
    %v2483 = vadd.f32 %v1970, %v2482
    %v2484 = vpop.f32.mrf.mxu0
    %2485 = vmatprep.mubr.f32.mxu0 0.0
    %2486 = vmatmul.mubr.f32.gmra.mxu0 %v2010
    %v2487 = vpop.f32.mrf.mxu0
    %v2488 = vadd.f32 %v1970, %v2487
    %v2489 = vpop.f32.mrf.mxu0
    %2490 = vmatprep.mubr.f32.mxu0 0.0
    %2491 = vmatmul.mubr.f32.gmra.mxu0 %v2013
    %v2492 = vpop.f32.mrf.mxu0
    %v2493 = vadd.f32 %v1970, %v2492
    %v2494 = vpop.f32.mrf.mxu0
    %2495 = vmatprep.mubr.f32.mxu0 0.0
    %2496 = vmatmul.mubr.f32.gmra.mxu0 %v2016
    %v2497 = vpop.f32.mrf.mxu0
    %v2498 = vadd.f32 %v1970, %v2497
    %v2499 = vpop.f32.mrf.mxu0
    %2500 = vmatprep.mubr.f32.mxu0 0.0
    %2501 = vmatmul.mubr.f32.gmra.mxu0 %v2019
    %v2502 = vpop.f32.mrf.mxu0
    %v2503 = vadd.f32 %v1970, %v2502
    %v2504 = vpop.f32.mrf.mxu0
    %2505 = vmatprep.mubr.f32.mxu0 0.0
    %2506 = vmatmul.mubr.f32.gmra.mxu0 %v2022
    %v2507 = vpop.f32.mrf.mxu0
    %v2508 = vadd.f32 %v1970, %v2507
    %v2509 = vpop.f32.mrf.mxu0
    %2510 = vmatprep.mubr.f32.mxu0 0.0
    %2511 = vmatmul.mubr.f32.gmra.mxu0 %v2025
    %v2512 = vpop.f32.mrf.mxu0
    %v2513 = vadd.f32 %v1970, %v2512
    %v2514 = vpop.f32.mrf.mxu0
    %2515 = vmatprep.mubr.f32.mxu0 0.0
    %2516 = vmatmul.mubr.f32.gmra.mxu0 %v2028
    %v2517 = vpop.f32.mrf.mxu0
    %v2518 = vadd.f32 %v1970, %v2517
    %v2519 = vpop.f32.mrf.mxu0
    %2520 = vmatprep.mubr.f32.mxu0 0.0
    %2521 = vmatmul.mubr.f32.gmra.mxu0 %v2031
    %v2522 = vpop.f32.mrf.mxu0
    %v2523 = vadd.f32 %v1970, %v2522
    %v2524 = vpop.f32.mrf.mxu0
    %2525 = vmatprep.mubr.f32.mxu0 0.0
    %2526 = vmatmul.mubr.f32.gmra.mxu0 %v2034
    %v2527 = vpop.f32.mrf.mxu0
    %v2528 = vadd.f32 %v1970, %v2527
    %v2529 = vpop.f32.mrf.mxu0
    %2530 = vmatprep.mubr.f32.mxu0 0.0
    %2531 = vmatmul.mubr.f32.gmra.mxu0 %v2037
    %v2532 = vpop.f32.mrf.mxu0
    %v2533 = vadd.f32 %v1970, %v2532
    %v2534 = vpop.f32.mrf.mxu0
    %2535 = vmatprep.mubr.f32.mxu0 0.0
    %2536 = vmatmul.mubr.f32.gmra.mxu0 %v2040
    %v2537 = vpop.f32.mrf.mxu0
    %v2538 = vadd.f32 %v1970, %v2537
    %v2539 = vpop.f32.mrf.mxu0
    %2540 = vmatprep.mubr.f32.mxu0 0.0
    %2541 = vmatmul.mubr.f32.gmra.mxu0 %v2043
    %v2542 = vpop.f32.mrf.mxu0
    %v2543 = vadd.f32 %v1970, %v2542
    %v2544 = vpop.f32.mrf.mxu0
    %2545 = vmatprep.mubr.f32.mxu0 0.0
    %2546 = vmatmul.mubr.f32.gmra.mxu0 %v2046
    %v2547 = vpop.f32.mrf.mxu0
    %v2548 = vadd.f32 %v1970, %v2547
    %v2549 = vpop.f32.mrf.mxu0
    %2550 = vmatprep.mubr.f32.mxu0 0.0
    %2551 = vmatmul.mubr.f32.gmra.mxu0 %v2049
    %v2552 = vpop.f32.mrf.mxu0
    %v2553 = vadd.f32 %v1970, %v2552
    %v2554 = vpop.f32.mrf.mxu0
    %2555 = vmatprep.mubr.f32.mxu0 0.0
    %2556 = vmatmul.mubr.f32.gmra.mxu0 %v2052
    %v2557 = vpop.f32.mrf.mxu0
    %v2558 = vadd.f32 %v1970, %v2557
    %v2559 = vpop.f32.mrf.mxu0
    %2560 = vmatprep.mubr.f32.mxu0 0.0
    %2561 = vmatmul.mubr.f32.gmra.mxu0 %v2055
    %v2562 = vpop.f32.mrf.mxu0
    %v2563 = vadd.f32 %v1970, %v2562
    %v2564 = vpop.f32.mrf.mxu0
    %2565 = vmatprep.mubr.f32.mxu0 0.0
    %2566 = vmatmul.mubr.f32.gmra.mxu0 %v2058
    %v2567 = vpop.f32.mrf.mxu0
    %v2568 = vadd.f32 %v1970, %v2567
    %v2569 = vpop.f32.mrf.mxu0
    %2570 = vmatprep.mubr.f32.mxu0 0.0
    %2571 = vmatmul.mubr.f32.gmra.mxu0 %v2061
    %v2572 = vpop.f32.mrf.mxu0
    %v2573 = vadd.f32 %v1970, %v2572
    %v2574 = vpop.f32.mrf.mxu0
    %2575 = vmatprep.mubr.f32.mxu0 0.0
    %2576 = vmatmul.mubr.f32.gmra.mxu0 %v2064
    %v2577 = vpop.f32.mrf.mxu0
    %v2578 = vadd.f32 %v1970, %v2577
    %v2579 = vpop.f32.mrf.mxu0
    %2580 = vmatprep.mubr.f32.mxu0 0.0
    %2581 = vmatmul.mubr.f32.gmra.mxu0 %v2067
    %v2582 = vpop.f32.mrf.mxu0
    %v2583 = vadd.f32 %v1970, %v2582
    %v2584 = vpop.f32.mrf.mxu0
    %2585 = vmatprep.mubr.f32.mxu0 0.0
    %2586 = vmatmul.mubr.f32.gmra.mxu0 %v2070
    %v2587 = vpop.f32.mrf.mxu0
    %v2588 = vadd.f32 %v1970, %v2587
    %v2589 = vpop.f32.mrf.mxu0
    %2590 = vmatprep.mubr.f32.mxu0 0.0
    %2591 = vmatmul.mubr.f32.gmra.mxu0 %v2073
    %v2592 = vpop.f32.mrf.mxu0
    %v2593 = vadd.f32 %v1970, %v2592
    %v2594 = vpop.f32.mrf.mxu0
    %2595 = vmatprep.mubr.f32.mxu0 0.0
    %2596 = vmatmul.mubr.f32.gmra.mxu0 %v2076
    %v2597 = vpop.f32.mrf.mxu0
    %v2598 = vadd.f32 %v1970, %v2597
    %v2599 = vpop.f32.mrf.mxu0
    %2600 = vmatprep.mubr.f32.mxu0 0.0
    %2601 = vmatmul.mubr.f32.gmra.mxu0 %v2079
    %v2602 = vpop.f32.mrf.mxu0
    %v2603 = vadd.f32 %v1970, %v2602
    %v2604 = vpop.f32.mrf.mxu0
    %2605 = vmatprep.mubr.f32.mxu0 0.0
    %2606 = vmatmul.mubr.f32.gmra.mxu0 %v2082
    %v2607 = vpop.f32.mrf.mxu0
    %v2608 = vadd.f32 %v1970, %v2607
    %v2609 = vpop.f32.mrf.mxu0
    %2610 = vmatprep.mubr.f32.mxu0 0.0
    %2611 = vmatmul.mubr.f32.gmra.mxu0 %v2085
    %v2612 = vpop.f32.mrf.mxu0
    %v2613 = vadd.f32 %v1970, %v2612
    %v2614 = vpop.f32.mrf.mxu0
    %2615 = vmatprep.mubr.f32.mxu0 0.0
    %2616 = vmatmul.mubr.f32.gmra.mxu0 %v2088
    %v2617 = vpop.f32.mrf.mxu0
    %v2618 = vadd.f32 %v1970, %v2617
    %v2619 = vpop.f32.mrf.mxu0
    %2620 = vmatprep.mubr.f32.mxu0 0.0
    %2621 = vmatmul.mubr.f32.gmra.mxu0 %v2091
    %v2622 = vpop.f32.mrf.mxu0
    %v2623 = vadd.f32 %v1970, %v2622
    %v2624 = vpop.f32.mrf.mxu0
    %2625 = vmatprep.mubr.f32.mxu0 0.0
    %2626 = vmatmul.mubr.f32.gmra.mxu0 %v2094
    %v2627 = vpop.f32.mrf.mxu0
    %v2628 = vadd.f32 %v1970, %v2627
    %v2629 = vpop.f32.mrf.mxu0
    %2630 = vmatprep.mubr.f32.mxu0 0.0
    %2631 = vmatmul.mubr.f32.gmra.mxu0 %v2097
    %v2632 = vpop.f32.mrf.mxu0
    %v2633 = vadd.f32 %v1970, %v2632
    %v2634 = vpop.f32.mrf.mxu0
    %2635 = vmatprep.mubr.f32.mxu0 0.0
    %2636 = vmatmul.mubr.f32.gmra.mxu0 %v2100
    %v2637 = vpop.f32.mrf.mxu0
    %v2638 = vadd.f32 %v1970, %v2637
    %v2639 = vpop.f32.mrf.mxu0
    %2640 = vmatprep.mubr.f32.mxu0 0.0
    %2641 = vmatmul.mubr.f32.gmra.mxu0 %v2103
    %v2642 = vpop.f32.mrf.mxu0
    %v2643 = vadd.f32 %v1970, %v2642
    %v2644 = vpop.f32.mrf.mxu0
    %2645 = vmatprep.mubr.f32.mxu0 0.0
    %2646 = vmatmul.mubr.f32.gmra.mxu0 %v2106
    %v2647 = vpop.f32.mrf.mxu0
    %v2648 = vadd.f32 %v1970, %v2647
    %v2649 = vpop.f32.mrf.mxu0
    %2650 = vmatprep.mubr.f32.mxu0 0.0
    %2651 = vmatmul.mubr.f32.gmra.mxu0 %v2109
    %v2652 = vpop.f32.mrf.mxu0
    %v2653 = vadd.f32 %v1970, %v2652
    %v2654 = vpop.f32.mrf.mxu0
    %2655 = vmatprep.mubr.f32.mxu0 0.0
    %2656 = vmatmul.mubr.f32.gmra.mxu0 %v2112
    %v2657 = vpop.f32.mrf.mxu0
    %v2658 = vadd.f32 %v1970, %v2657
    %v2659 = vpop.f32.mrf.mxu0
    %2660 = vmatprep.mubr.f32.mxu0 0.0
    %2661 = vmatmul.mubr.f32.gmra.mxu0 %v2115
    %v2662 = vpop.f32.mrf.mxu0
    %v2663 = vadd.f32 %v1970, %v2662
    %v2664 = vpop.f32.mrf.mxu0
    %2665 = vmatprep.mubr.f32.mxu0 0.0
    %2666 = vmatmul.mubr.f32.gmra.mxu0 %v2118
    %v2667 = vpop.f32.mrf.mxu0
    %v2668 = vadd.f32 %v1970, %v2667
    %v2669 = vpop.f32.mrf.mxu0
    %2670 = vmatprep.mubr.f32.mxu0 0.0
    %2671 = vmatmul.mubr.f32.gmra.mxu0 %v2121
    %v2672 = vpop.f32.mrf.mxu0
    %v2673 = vadd.f32 %v1970, %v2672
    %v2674 = vpop.f32.mrf.mxu0
    %2675 = vmatprep.mubr.f32.mxu0 0.0
    %2676 = vmatmul.mubr.f32.gmra.mxu0 %v2124
    %v2677 = vpop.f32.mrf.mxu0
    %v2678 = vadd.f32 %v1970, %v2677
    %v2679 = vpop.f32.mrf.mxu0
    %2680 = vmatprep.mubr.f32.mxu0 0.0
    %2681 = vmatmul.mubr.f32.gmra.mxu0 %v2127
    %v2682 = vpop.f32.mrf.mxu0
    %v2683 = vadd.f32 %v1970, %v2682
    %v2684 = vpop.f32.mrf.mxu0
    %2685 = vmatprep.mubr.f32.mxu0 0.0
    %2686 = vmatmul.mubr.f32.gmra.mxu0 %v2130
    %v2687 = vpop.f32.mrf.mxu0
    %v2688 = vadd.f32 %v1970, %v2687
    %v2689 = vpop.f32.mrf.mxu0
    %2690 = vmatprep.mubr.f32.mxu0 0.0
    %2691 = vmatmul.mubr.f32.gmra.mxu0 %v2133
    %v2692 = vpop.f32.mrf.mxu0
    %v2693 = vadd.f32 %v1970, %v2692
    %v2694 = vpop.f32.mrf.mxu0
    %2695 = vmatprep.mubr.f32.mxu0 0.0
    %2696 = vmatmul.mubr.f32.gmra.mxu0 %v2136
    %v2697 = vpop.f32.mrf.mxu0
    %v2698 = vadd.f32 %v1970, %v2697
    %v2699 = vpop.f32.mrf.mxu0
    %2700 = vmatprep.mubr.f32.mxu0 0.0
    %2701 = vmatmul.mubr.f32.gmra.mxu0 %v2139
    %v2702 = vpop.f32.mrf.mxu0
    %v2703 = vadd.f32 %v1970, %v2702
    %v2704 = vpop.f32.mrf.mxu0
    %2705 = vmatprep.mubr.f32.mxu0 0.0
    %2706 = vmatmul.mubr.f32.gmra.mxu0 %v2142
    %v2707 = vpop.f32.mrf.mxu0
    %v2708 = vadd.f32 %v1970, %v2707
    %v2709 = vpop.f32.mrf.mxu0
    %2710 = vmatprep.mubr.f32.mxu0 0.0
    %2711 = vmatmul.mubr.f32.gmra.mxu0 %v2145
    %v2712 = vpop.f32.mrf.mxu0
    %v2713 = vadd.f32 %v1970, %v2712
    %v2714 = vpop.f32.mrf.mxu0
    %2715 = vmatprep.mubr.f32.mxu0 0.0
    %2716 = vmatmul.mubr.f32.gmra.mxu0 %v2148
    %v2717 = vpop.f32.mrf.mxu0
    %v2718 = vadd.f32 %v1970, %v2717
    %v2719 = vpop.f32.mrf.mxu0
    %2720 = vmatprep.mubr.f32.mxu0 0.0
    %2721 = vmatmul.mubr.f32.gmra.mxu0 %v2151
    %v2722 = vpop.f32.mrf.mxu0
    %v2723 = vadd.f32 %v1970, %v2722
    %v2724 = vpop.f32.mrf.mxu0
    %2725 = vmatprep.mubr.f32.mxu0 0.0
    %2726 = vmatmul.mubr.f32.gmra.mxu0 %v2154
    %v2727 = vpop.f32.mrf.mxu0
    %v2728 = vadd.f32 %v1970, %v2727
    %v2729 = vpop.f32.mrf.mxu0
    %2730 = vmatprep.mubr.f32.mxu0 0.0
    %2731 = vmatmul.mubr.f32.gmra.mxu0 %v2157
    %v2732 = vpop.f32.mrf.mxu0
    %v2733 = vadd.f32 %v1970, %v2732
    %v2734 = vpop.f32.mrf.mxu0
    %2735 = vmatprep.mubr.f32.mxu0 0.0
    %2736 = vmatmul.mubr.f32.gmra.mxu0 %v2160
    %v2737 = vpop.f32.mrf.mxu0
    %v2738 = vadd.f32 %v1970, %v2737
    %v2739 = vpop.f32.mrf.mxu0
    %2740 = vmatprep.mubr.f32.mxu0 0.0
    %2741 = vmatmul.mubr.f32.gmra.mxu0 %v2163
    %v2742 = vpop.f32.mrf.mxu0
    %v2743 = vadd.f32 %v1970, %v2742
    %v2744 = vpop.f32.mrf.mxu0
    %2745 = vmatprep.mubr.f32.mxu0 0.0
    %2746 = vmatmul.mubr.f32.gmra.mxu0 %v2166
    %v2747 = vpop.f32.mrf.mxu0
    %v2748 = vadd.f32 %v1970, %v2747
    %v2749 = vpop.f32.mrf.mxu0
    %2750 = vmatprep.mubr.f32.mxu0 0.0
    %2751 = vmatmul.mubr.f32.gmra.mxu0 %v2169
    %v2752 = vpop.f32.mrf.mxu0
    %v2753 = vadd.f32 %v1970, %v2752
    %v2754 = vpop.f32.mrf.mxu0
    %2755 = vmatprep.mubr.f32.mxu0 0.0
    %2756 = vmatmul.mubr.f32.gmra.mxu0 %v2172
    %v2757 = vpop.f32.mrf.mxu0
    %v2758 = vadd.f32 %v1970, %v2757
    %v2759 = vpop.f32.mrf.mxu0
    %2760 = vmatprep.mubr.f32.mxu0 0.0
    %2761 = vmatmul.mubr.f32.gmra.mxu0 %v2175
    %v2762 = vpop.f32.mrf.mxu0
    %v2763 = vadd.f32 %v1970, %v2762
    %v2764 = vpop.f32.mrf.mxu0
    %2765 = vmatprep.mubr.f32.mxu0 0.0
    %2766 = vmatmul.mubr.f32.gmra.mxu0 %v2178
    %v2767 = vpop.f32.mrf.mxu0
    %v2768 = vadd.f32 %v1970, %v2767
    %v2769 = vpop.f32.mrf.mxu0
    %2770 = vmatprep.mubr.f32.mxu0 0.0
    %2771 = vmatmul.mubr.f32.gmra.mxu0 %v2181
    %v2772 = vpop.f32.mrf.mxu0
    %v2773 = vadd.f32 %v1970, %v2772
    %v2774 = vpop.f32.mrf.mxu0
    %2775 = vmatprep.mubr.f32.mxu0 0.0
    %2776 = vmatmul.mubr.f32.gmra.mxu0 %v2184
    %v2777 = vpop.f32.mrf.mxu0
    %v2778 = vadd.f32 %v1970, %v2777
    %v2779 = vpop.f32.mrf.mxu0
    %2780 = vmatprep.mubr.f32.mxu0 0.0
    %2781 = vmatmul.mubr.f32.gmra.mxu0 %v2187
    %v2782 = vpop.f32.mrf.mxu0
    %v2783 = vadd.f32 %v1970, %v2782
    %v2784 = vpop.f32.mrf.mxu0
    %2785 = vmatprep.mubr.f32.mxu0 0.0
    %2786 = vmatmul.mubr.f32.gmra.mxu0 %v2190
    %v2787 = vpop.f32.mrf.mxu0
    %v2788 = vadd.f32 %v1970, %v2787
    %v2789 = vpop.f32.mrf.mxu0
    %2790 = vmatprep.mubr.f32.mxu0 0.0
    %2791 = vmatmul.mubr.f32.gmra.mxu0 %v2193
    %v2792 = vpop.f32.mrf.mxu0
    %v2793 = vadd.f32 %v1970, %v2792
    %v2794 = vpop.f32.mrf.mxu0
    %2795 = vmatprep.mubr.f32.mxu0 0.0
    %2796 = vmatmul.mubr.f32.gmra.mxu0 %v2196
    %v2797 = vpop.f32.mrf.mxu0
    %v2798 = vadd.f32 %v1970, %v2797
    %v2799 = vpop.f32.mrf.mxu0
    %2800 = vmatprep.mubr.f32.mxu0 0.0
    %2801 = vmatmul.mubr.f32.gmra.mxu0 %v2199
    %v2802 = vpop.f32.mrf.mxu0
    %v2803 = vadd.f32 %v1970, %v2802
    %v2804 = vpop.f32.mrf.mxu0
    %2805 = vmatprep.mubr.f32.mxu0 0.0
    %2806 = vmatmul.mubr.f32.gmra.mxu0 %v2202
    %v2807 = vpop.f32.mrf.mxu0
    %v2808 = vadd.f32 %v1970, %v2807
    %v2809 = vpop.f32.mrf.mxu0
    %2810 = vmatprep.mubr.f32.mxu0 0.0
    %2811 = vmatmul.mubr.f32.gmra.mxu0 %v2205
    %v2812 = vpop.f32.mrf.mxu0
    %v2813 = vadd.f32 %v1970, %v2812
    %v2814 = vpop.f32.mrf.mxu0
    %2815 = vmatprep.mubr.f32.mxu0 0.0
    %2816 = vmatmul.mubr.f32.gmra.mxu0 %v2208
    %v2817 = vpop.f32.mrf.mxu0
    %v2818 = vadd.f32 %v1970, %v2817
    %v2819 = vpop.f32.mrf.mxu0
    %2820 = vmatprep.mubr.f32.mxu0 0.0
    %2821 = vmatmul.mubr.f32.gmra.mxu0 %v2211
    %v2822 = vpop.f32.mrf.mxu0
    %v2823 = vadd.f32 %v1970, %v2822
    %v2824 = vpop.f32.mrf.mxu0
    %2825 = vmatprep.mubr.f32.mxu0 0.0
    %2826 = vmatmul.mubr.f32.gmra.mxu0 %v2214
    %v2827 = vpop.f32.mrf.mxu0
    %v2828 = vadd.f32 %v1970, %v2827
    %v2829 = vpop.f32.mrf.mxu0
    %2830 = vmatprep.mubr.f32.mxu0 0.0
    %2831 = vmatmul.mubr.f32.gmra.mxu0 %v2217
    %v2832 = vpop.f32.mrf.mxu0
    %v2833 = vadd.f32 %v1970, %v2832
    %v2834 = vpop.f32.mrf.mxu0
    %2835 = vmatprep.mubr.f32.mxu0 0.0
    %2836 = vmatmul.mubr.f32.gmra.mxu0 %v2220
    %v2837 = vpop.f32.mrf.mxu0
    %v2838 = vadd.f32 %v1970, %v2837
    %v2839 = vpop.f32.mrf.mxu0
    %2840 = vmatprep.mubr.f32.mxu0 0.0
    %2841 = vmatmul.mubr.f32.gmra.mxu0 %v2223
    %v2842 = vpop.f32.mrf.mxu0
    %v2843 = vadd.f32 %v1970, %v2842
    %v2844 = vpop.f32.mrf.mxu0
    %2845 = vmatprep.mubr.f32.mxu0 0.0
    %2846 = vmatmul.mubr.f32.gmra.mxu0 %v2226
    %v2847 = vpop.f32.mrf.mxu0
    %v2848 = vadd.f32 %v1970, %v2847
    %v2849 = vpop.f32.mrf.mxu0
    %2850 = vmatprep.mubr.f32.mxu0 0.0
    %2851 = vmatmul.mubr.f32.gmra.mxu0 %v2229
    %v2852 = vpop.f32.mrf.mxu0
    %v2853 = vadd.f32 %v1970, %v2852
    %v2854 = vpop.f32.mrf.mxu0
    %2855 = vmatprep.mubr.f32.mxu0 0.0
    %2856 = vmatmul.mubr.f32.gmra.mxu0 %v2232
    %v2857 = vpop.f32.mrf.mxu0
    %v2858 = vadd.f32 %v1970, %v2857
    %v2859 = vpop.f32.mrf.mxu0
    %2860 = vmatprep.mubr.f32.mxu0 0.0
    %2861 = vmatmul.mubr.f32.gmra.mxu0 %v2235
    %v2862 = vpop.f32.mrf.mxu0
    %v2863 = vadd.f32 %v1970, %v2862
    %v2864 = vpop.f32.mrf.mxu0
    %2865 = vmatprep.mubr.f32.mxu0 0.0
    %2866 = vmatmul.mubr.f32.gmra.mxu0 %v2238
    %v2867 = vpop.f32.mrf.mxu0
    %v2868 = vadd.f32 %v1970, %v2867
    %v2869 = vpop.f32.mrf.mxu0
    %2870 = vmatprep.mubr.f32.mxu0 0.0
    %2871 = vmatmul.mubr.f32.gmra.mxu0 %v2241
    %v2872 = vpop.f32.mrf.mxu0
    %v2873 = vadd.f32 %v1970, %v2872
    %v2874 = vpop.f32.mrf.mxu0
    %2875 = vmatprep.mubr.f32.mxu0 0.0
    %2876 = vmatmul.mubr.f32.gmra.mxu0 %v2244
    %v2877 = vpop.f32.mrf.mxu0
    %v2878 = vadd.f32 %v1970, %v2877
    %v2879 = vpop.f32.mrf.mxu0
    %2880 = vmatprep.mubr.f32.mxu0 0.0
    %2881 = vmatmul.mubr.f32.gmra.mxu0 %v2247
    %v2882 = vpop.f32.mrf.mxu0
    %v2883 = vadd.f32 %v1970, %v2882
    %v2884 = vpop.f32.mrf.mxu0
    %2885 = vmatprep.mubr.f32.mxu0 0.0
    %2886 = vmatmul.mubr.f32.gmra.mxu0 %v2250
    %v2887 = vpop.f32.mrf.mxu0
    %v2888 = vadd.f32 %v1970, %v2887
    %v2889 = vpop.f32.mrf.mxu0
    %2890 = vmatprep.mubr.f32.mxu0 0.0
    %2891 = vmatmul.mubr.f32.gmra.mxu0 %v2253
    %v2892 = vpop.f32.mrf.mxu0
    %v2893 = vadd.f32 %v1970, %v2892
    %v2894 = vpop.f32.mrf.mxu0
    %2895 = vmatprep.mubr.f32.mxu0 0.0
    %2896 = vmatmul.mubr.f32.gmra.mxu0 %v2256
    %v2897 = vpop.f32.mrf.mxu0
    %v2898 = vadd.f32 %v1970, %v2897
    %v2899 = vpop.f32.mrf.mxu0
    %2900 = vmatprep.mubr.f32.mxu0 0.0
    %2901 = vmatmul.mubr.f32.gmra.mxu0 %v2259
    %v2902 = vpop.f32.mrf.mxu0
    %v2903 = vadd.f32 %v1970, %v2902
    %v2904 = vpop.f32.mrf.mxu0
    %2905 = vmatprep.mubr.f32.mxu0 0.0
    %2906 = vmatmul.mubr.f32.gmra.mxu0 %v2262
    %v2907 = vpop.f32.mrf.mxu0
    %v2908 = vadd.f32 %v1970, %v2907
    %v2909 = vpop.f32.mrf.mxu0
    %2910 = vmatprep.mubr.f32.mxu0 0.0
    %2911 = vmatmul.mubr.f32.gmra.mxu0 %v2265
    %v2912 = vpop.f32.mrf.mxu0
    %v2913 = vadd.f32 %v1970, %v2912
    %v2914 = vpop.f32.mrf.mxu0
    %2915 = vmatprep.mubr.f32.mxu0 0.0
    %2916 = vmatmul.mubr.f32.gmra.mxu0 %v2268
    %v2917 = vpop.f32.mrf.mxu0
    %v2918 = vadd.f32 %v1970, %v2917
    %v2919 = vpop.f32.mrf.mxu0
    %2920 = vmatprep.mubr.f32.mxu0 0.0
    %2921 = vmatmul.mubr.f32.gmra.mxu0 %v2271
    %v2922 = vpop.f32.mrf.mxu0
    %v2923 = vadd.f32 %v1970, %v2922
    %v2924 = vpop.f32.mrf.mxu0
    %2925 = vmatprep.mubr.f32.mxu0 0.0
    %2926 = vmatmul.mubr.f32.gmra.mxu0 %v2274
    %v2927 = vpop.f32.mrf.mxu0
    %v2928 = vadd.f32 %v1970, %v2927
    %v2929 = vpop.f32.mrf.mxu0
    %2930 = vmatprep.mubr.f32.mxu0 0.0
    %2931 = vmatmul.mubr.f32.gmra.mxu0 %v2277
    %v2932 = vpop.f32.mrf.mxu0
    %v2933 = vadd.f32 %v1970, %v2932
    %v2934 = vpop.f32.mrf.mxu0
    %2935 = vmatprep.mubr.f32.mxu0 0.0
    %2936 = vmatmul.mubr.f32.gmra.mxu0 %v2280
    %v2937 = vpop.f32.mrf.mxu0
    %v2938 = vadd.f32 %v1970, %v2937
    %v2939 = vpop.f32.mrf.mxu0
    %2940 = vmatprep.mubr.f32.mxu0 0.0
    %2941 = vmatmul.mubr.f32.gmra.mxu0 %v2283
    %v2942 = vpop.f32.mrf.mxu0
    %v2943 = vadd.f32 %v1970, %v2942
    %v2944 = vpop.f32.mrf.mxu0
    %2945 = vmatprep.mubr.f32.mxu0 0.0
    %2946 = vmatmul.mubr.f32.gmra.mxu0 %v2286
    %v2947 = vpop.f32.mrf.mxu0
    %v2948 = vadd.f32 %v1970, %v2947
    %v2949 = vpop.f32.mrf.mxu0
    %2950 = vmatprep.mubr.f32.mxu0 0.0
    %2951 = vmatmul.mubr.f32.gmra.mxu0 %v2289
    %v2952 = vpop.f32.mrf.mxu0
    %v2953 = vadd.f32 %v1970, %v2952
    %v2954 = vpop.f32.mrf.mxu0
    %2955 = vmatprep.mubr.f32.mxu0 0.0
    %2956 = vmatmul.mubr.f32.gmra.mxu0 %v2292
    %v2957 = vpop.f32.mrf.mxu0
    %v2958 = vadd.f32 %v1970, %v2957
    %v2959 = vpop.f32.mrf.mxu0
    %2960 = vmatprep.mubr.f32.mxu0 0.0
    %2961 = vmatmul.mubr.f32.gmra.mxu0 %v2295
    %v2962 = vpop.f32.mrf.mxu0
    %v2963 = vadd.f32 %v1970, %v2962
    %v2964 = vpop.f32.mrf.mxu0
    %2965 = vmatprep.mubr.f32.mxu0 0.0
    %2966 = vmatmul.mubr.f32.gmra.mxu0 %v2298
    %v2967 = vpop.f32.mrf.mxu0
    %v2968 = vadd.f32 %v1970, %v2967
    %v2969 = vpop.f32.mrf.mxu0
    %2970 = vmatprep.mubr.f32.mxu0 0.0
    %2971 = vmatmul.mubr.f32.gmra.mxu0 %v2301
    %v2972 = vpop.f32.mrf.mxu0
    %v2973 = vadd.f32 %v1970, %v2972
    %v2974 = vpop.f32.mrf.mxu0
    %2975 = vmatprep.mubr.f32.mxu0 0.0
    %2976 = vmatmul.mubr.f32.gmra.mxu0 %v2304
    %v2977 = vpop.f32.mrf.mxu0
    %v2978 = vadd.f32 %v1970, %v2977
    %v2979 = vpop.f32.mrf.mxu0
    %2980 = vmatprep.mubr.f32.mxu0 0.0
    %2981 = vmatmul.mubr.f32.gmra.mxu0 %v2307
    %v2982 = vpop.f32.mrf.mxu0
    %v2983 = vadd.f32 %v1970, %v2982
    %v2984 = vpop.f32.mrf.mxu0
    %2985 = vmatprep.mubr.f32.mxu0 0.0
    %2986 = vmatmul.mubr.f32.gmra.mxu0 %v2310
    %v2987 = vpop.f32.mrf.mxu0
    %v2988 = vadd.f32 %v1970, %v2987
    %v2989 = vpop.f32.mrf.mxu0
    %2990 = vmatprep.mubr.f32.mxu0 0.0
    %2991 = vmatmul.mubr.f32.gmra.mxu0 %v2313
    %v2992 = vpop.f32.mrf.mxu0
    %v2993 = vadd.f32 %v1970, %v2992
    %v2994 = vpop.f32.mrf.mxu0
    %2995 = vmatprep.mubr.f32.mxu0 0.0
    %2996 = vmatmul.mubr.f32.gmra.mxu0 %v2316
    %v2997 = vpop.f32.mrf.mxu0
    %v2998 = vadd.f32 %v1970, %v2997
    %v2999 = vpop.f32.mrf.mxu0
    %3000 = vmatprep.mubr.f32.mxu0 0.0
    %3001 = vmatmul.mubr.f32.gmra.mxu0 %v2319
    %v3002 = vpop.f32.mrf.mxu0
    %v3003 = vadd.f32 %v1970, %v3002
    %v3004 = vpop.f32.mrf.mxu0
    %3005 = vmatprep.mubr.f32.mxu0 0.0
    %3006 = vmatmul.mubr.f32.gmra.mxu0 %v2322
    %v3007 = vpop.f32.mrf.mxu0
    %v3008 = vadd.f32 %v1970, %v3007
    %v3009 = vpop.f32.mrf.mxu0
    %3010 = vmatprep.mubr.f32.mxu0 0.0
    %3011 = vmatmul.mubr.f32.gmra.mxu0 %v2325
    %v3012 = vpop.f32.mrf.mxu0
    %v3013 = vadd.f32 %v1970, %v3012
    %v3014 = vpop.f32.mrf.mxu0
    %3015 = vmatprep.mubr.f32.mxu0 0.0
    %3016 = vmatmul.mubr.f32.gmra.mxu0 %v2328
    %v3017 = vpop.f32.mrf.mxu0
    %v3018 = vadd.f32 %v1970, %v3017
    %v3019 = vpop.f32.mrf.mxu0
    %3020 = vmatprep.mubr.f32.mxu0 0.0
    %3021 = vmatmul.mubr.f32.gmra.mxu0 %v2331
    %v3022 = vpop.f32.mrf.mxu0
    %v3023 = vadd.f32 %v1970, %v3022
    %v3024 = vpop.f32.mrf.mxu0
    %3025 = vmatprep.mubr.f32.mxu0 0.0
    %3026 = vmatmul.mubr.f32.gmra.mxu0 %v2334
    %v3027 = vpop.f32.mrf.mxu0
    %v3028 = vadd.f32 %v1970, %v3027
    %v3029 = vpop.f32.mrf.mxu0
    %3030 = vmatprep.mubr.f32.mxu0 0.0
    %3031 = vmatmul.mubr.f32.gmra.mxu0 %v2337
    %v3032 = vpop.f32.mrf.mxu0
    %v3033 = vadd.f32 %v1970, %v3032
    %v3034 = vpop.f32.mrf.mxu0
    %3035 = vmatprep.mubr.f32.mxu0 0.0
    %3036 = vmatmul.mubr.f32.gmra.mxu0 %v2340
    %v3037 = vpop.f32.mrf.mxu0
    %v3038 = vadd.f32 %v1970, %v3037
    %v3039 = vpop.f32.mrf.mxu0
    %3040 = vmatprep.mubr.f32.mxu0 0.0
    %3041 = vmatmul.mubr.f32.gmra.mxu0 %v2343
    %v3042 = vpop.f32.mrf.mxu0
    %v3043 = vadd.f32 %v1970, %v3042
    %v3044 = vpop.f32.mrf.mxu0
    %3045 = vmatprep.mubr.f32.mxu0 0.0
    %3046 = vmatmul.mubr.f32.gmra.mxu0 %v2346
    %v3047 = vpop.f32.mrf.mxu0
    %v3048 = vadd.f32 %v1970, %v3047
    %v3049 = vpop.f32.mrf.mxu0
    %3050 = vmatprep.mubr.f32.mxu0 0.0
    %3051 = vmatmul.mubr.f32.gmra.mxu0 %v2349
    %v3052 = vpop.f32.mrf.mxu0
    %v3053 = vadd.f32 %v1970, %v3052
    %v3054 = vpop.f32.mrf.mxu0
    %3055 = vmatprep.mubr.f32.mxu0 0.0
    %3056 = vmatmul.mubr.f32.gmra.mxu0 %v2352
    %v3057 = vpop.f32.mrf.mxu0
    %v3058 = vadd.f32 %v1970, %v3057
    %v3059 = vpop.f32.mrf.mxu0
    %3060 = vmatprep.mubr.f32.mxu0 0.0
    %3061 = vmatmul.mubr.f32.gmra.mxu0 %v2355
    %v3062 = vpop.f32.mrf.mxu0
    %v3063 = vadd.f32 %v1970, %v3062
    %v3064 = vpop.f32.mrf.mxu0
    %3065 = vdwg.mxu0
    %v3066 = vmax.f32 %v2428, 0.0
    %v3067 = vmax.f32 %v2433, 0.0
    %v3068 = vmax.f32 %v2438, 0.0
    %v3069 = vmax.f32 %v2443, 0.0
    %v3070 = vmax.f32 %v2448, 0.0
    %v3071 = vmax.f32 %v2453, 0.0
    %v3072 = vmax.f32 %v2458, 0.0
    %v3073 = vmax.f32 %v2463, 0.0
    %v3074 = vmax.f32 %v2468, 0.0
    %v3075 = vmax.f32 %v2473, 0.0
    %v3076 = vmax.f32 %v2478, 0.0
    %v3077 = vmax.f32 %v2483, 0.0
    %v3078 = vmax.f32 %v2488, 0.0
    %v3079 = vmax.f32 %v2493, 0.0
    %v3080 = vmax.f32 %v2498, 0.0
    %v3081 = vmax.f32 %v2503, 0.0
    %v3082 = vmax.f32 %v2508, 0.0
    %v3083 = vmax.f32 %v2513, 0.0
    %v3084 = vmax.f32 %v2518, 0.0
    %v3085 = vmax.f32 %v2523, 0.0
    %v3086 = vmax.f32 %v2528, 0.0
    %v3087 = vmax.f32 %v2533, 0.0
    %v3088 = vmax.f32 %v2538, 0.0
    %v3089 = vmax.f32 %v2543, 0.0
    %v3090 = vmax.f32 %v2548, 0.0
    %v3091 = vmax.f32 %v2553, 0.0
    %v3092 = vmax.f32 %v2558, 0.0
    %v3093 = vmax.f32 %v2563, 0.0
    %v3094 = vmax.f32 %v2568, 0.0
    %v3095 = vmax.f32 %v2573, 0.0
    %v3096 = vmax.f32 %v2578, 0.0
    %v3097 = vmax.f32 %v2583, 0.0
    %v3098 = vmax.f32 %v2588, 0.0
    %v3099 = vmax.f32 %v2593, 0.0
    %v3100 = vmax.f32 %v2598, 0.0
    %v3101 = vmax.f32 %v2603, 0.0
    %v3102 = vmax.f32 %v2608, 0.0
    %v3103 = vmax.f32 %v2613, 0.0
    %v3104 = vmax.f32 %v2618, 0.0
    %v3105 = vmax.f32 %v2623, 0.0
    %v3106 = vmax.f32 %v2628, 0.0
    %v3107 = vmax.f32 %v2633, 0.0
    %v3108 = vmax.f32 %v2638, 0.0
    %v3109 = vmax.f32 %v2643, 0.0
    %v3110 = vmax.f32 %v2648, 0.0
    %v3111 = vmax.f32 %v2653, 0.0
    %v3112 = vmax.f32 %v2658, 0.0
    %v3113 = vmax.f32 %v2663, 0.0
    %v3114 = vmax.f32 %v2668, 0.0
    %v3115 = vmax.f32 %v2673, 0.0
    %v3116 = vmax.f32 %v2678, 0.0
    %v3117 = vmax.f32 %v2683, 0.0
    %v3118 = vmax.f32 %v2688, 0.0
    %v3119 = vmax.f32 %v2693, 0.0
    %v3120 = vmax.f32 %v2698, 0.0
    %v3121 = vmax.f32 %v2703, 0.0
    %v3122 = vmax.f32 %v2708, 0.0
    %v3123 = vmax.f32 %v2713, 0.0
    %v3124 = vmax.f32 %v2718, 0.0
    %v3125 = vmax.f32 %v2723, 0.0
    %v3126 = vmax.f32 %v2728, 0.0
    %v3127 = vmax.f32 %v2733, 0.0
    %v3128 = vmax.f32 %v2738, 0.0
    %v3129 = vmax.f32 %v2743, 0.0
    %v3130 = vmax.f32 %v2748, 0.0
    %v3131 = vmax.f32 %v2753, 0.0
    %v3132 = vmax.f32 %v2758, 0.0
    %v3133 = vmax.f32 %v2763, 0.0
    %v3134 = vmax.f32 %v2768, 0.0
    %v3135 = vmax.f32 %v2773, 0.0
    %v3136 = vmax.f32 %v2778, 0.0
    %v3137 = vmax.f32 %v2783, 0.0
    %v3138 = vmax.f32 %v2788, 0.0
    %v3139 = vmax.f32 %v2793, 0.0
    %v3140 = vmax.f32 %v2798, 0.0
    %v3141 = vmax.f32 %v2803, 0.0
    %v3142 = vmax.f32 %v2808, 0.0
    %v3143 = vmax.f32 %v2813, 0.0
    %v3144 = vmax.f32 %v2818, 0.0
    %v3145 = vmax.f32 %v2823, 0.0
    %v3146 = vmax.f32 %v2828, 0.0
    %v3147 = vmax.f32 %v2833, 0.0
    %v3148 = vmax.f32 %v2838, 0.0
    %v3149 = vmax.f32 %v2843, 0.0
    %v3150 = vmax.f32 %v2848, 0.0
    %v3151 = vmax.f32 %v2853, 0.0
    %v3152 = vmax.f32 %v2858, 0.0
    %v3153 = vmax.f32 %v2863, 0.0
    %v3154 = vmax.f32 %v2868, 0.0
    %v3155 = vmax.f32 %v2873, 0.0
    %v3156 = vmax.f32 %v2878, 0.0
    %v3157 = vmax.f32 %v2883, 0.0
    %v3158 = vmax.f32 %v2888, 0.0
    %v3159 = vmax.f32 %v2893, 0.0
    %v3160 = vmax.f32 %v2898, 0.0
    %v3161 = vmax.f32 %v2903, 0.0
    %v3162 = vmax.f32 %v2908, 0.0
    %v3163 = vmax.f32 %v2913, 0.0
    %v3164 = vmax.f32 %v2918, 0.0
    %v3165 = vmax.f32 %v2923, 0.0
    %v3166 = vmax.f32 %v2928, 0.0
    %v3167 = vmax.f32 %v2933, 0.0
    %v3168 = vmax.f32 %v2938, 0.0
    %v3169 = vmax.f32 %v2943, 0.0
    %v3170 = vmax.f32 %v2948, 0.0
    %v3171 = vmax.f32 %v2953, 0.0
    %v3172 = vmax.f32 %v2958, 0.0
    %v3173 = vmax.f32 %v2963, 0.0
    %v3174 = vmax.f32 %v2968, 0.0
    %v3175 = vmax.f32 %v2973, 0.0
    %v3176 = vmax.f32 %v2978, 0.0
    %v3177 = vmax.f32 %v2983, 0.0
    %v3178 = vmax.f32 %v2988, 0.0
    %v3179 = vmax.f32 %v2993, 0.0
    %v3180 = vmax.f32 %v2998, 0.0
    %v3181 = vmax.f32 %v3003, 0.0
    %v3182 = vmax.f32 %v3008, 0.0
    %v3183 = vmax.f32 %v3013, 0.0
    %v3184 = vmax.f32 %v3018, 0.0
    %v3185 = vmax.f32 %v3023, 0.0
    %v3186 = vmax.f32 %v3028, 0.0
    %v3187 = vmax.f32 %v3033, 0.0
    %v3188 = vmax.f32 %v3038, 0.0
    %v3189 = vmax.f32 %v3043, 0.0
    %v3190 = vmax.f32 %v3048, 0.0
    %v3191 = vmax.f32 %v3053, 0.0
    %v3192 = vmax.f32 %v3058, 0.0
    %v3193 = vmax.f32 %v3063, 0.0
    %v3194 = vrot.slane %v3066, 7
    %v3195 = vrot.slane %v3067, 7
    %v3196 = vrot.slane %v3068, 7
    %v3197 = vrot.slane %v3069, 7
    %v3198 = vrot.slane %v3070, 7
    %v3199 = vrot.slane %v3071, 7
    %v3200 = vrot.slane %v3072, 7
    %v3201 = vrot.slane %v3073, 7
    %v3202 = vrot.slane %v3074, 7
    %v3203 = vrot.slane %v3075, 7
    %v3204 = vrot.slane %v3076, 7
    %v3205 = vrot.slane %v3077, 7
    %v3206 = vrot.slane %v3078, 7
    %v3207 = vrot.slane %v3079, 7
    %v3208 = vrot.slane %v3080, 7
    %v3209 = vrot.slane %v3081, 7
    %v3210 = vrot.slane %v3082, 7
    %v3211 = vrot.slane %v3083, 7
    %v3212 = vrot.slane %v3084, 7
    %v3213 = vrot.slane %v3085, 7
    %v3214 = vrot.slane %v3086, 7
    %v3215 = vrot.slane %v3087, 7
    %v3216 = vrot.slane %v3088, 7
    %v3217 = vrot.slane %v3089, 7
    %v3218 = vrot.slane %v3090, 7
    %v3219 = vrot.slane %v3091, 7
    %v3220 = vrot.slane %v3092, 7
    %v3221 = vrot.slane %v3093, 7
    %v3222 = vrot.slane %v3094, 7
    %v3223 = vrot.slane %v3095, 7
    %v3224 = vrot.slane %v3096, 7
    %v3225 = vrot.slane %v3097, 7
    %v3226 = vrot.slane %v3098, 7
    %v3227 = vrot.slane %v3099, 7
    %v3228 = vrot.slane %v3100, 7
    %v3229 = vrot.slane %v3101, 7
    %v3230 = vrot.slane %v3102, 7
    %v3231 = vrot.slane %v3103, 7
    %v3232 = vrot.slane %v3104, 7
    %v3233 = vrot.slane %v3105, 7
    %v3234 = vrot.slane %v3106, 7
    %v3235 = vrot.slane %v3107, 7
    %v3236 = vrot.slane %v3108, 7
    %v3237 = vrot.slane %v3109, 7
    %v3238 = vrot.slane %v3110, 7
    %v3239 = vrot.slane %v3111, 7
    %v3240 = vrot.slane %v3112, 7
    %v3241 = vrot.slane %v3113, 7
    %v3242 = vrot.slane %v3114, 7
    %v3243 = vrot.slane %v3115, 7
    %v3244 = vrot.slane %v3116, 7
    %v3245 = vrot.slane %v3117, 7
    %v3246 = vrot.slane %v3118, 7
    %v3247 = vrot.slane %v3119, 7
    %v3248 = vrot.slane %v3120, 7
    %v3249 = vrot.slane %v3121, 7
    %v3250 = vrot.slane %v3122, 7
    %v3251 = vrot.slane %v3123, 7
    %v3252 = vrot.slane %v3124, 7
    %v3253 = vrot.slane %v3125, 7
    %v3254 = vrot.slane %v3126, 7
    %v3255 = vrot.slane %v3127, 7
    %v3256 = vrot.slane %v3128, 7
    %v3257 = vrot.slane %v3129, 7
    %v3258 = vrot.slane %v3130, 7
    %v3259 = vrot.slane %v3131, 7
    %v3260 = vrot.slane %v3132, 7
    %v3261 = vrot.slane %v3133, 7
    %v3262 = vrot.slane %v3134, 7
    %v3263 = vrot.slane %v3135, 7
    %v3264 = vrot.slane %v3136, 7
    %v3265 = vrot.slane %v3137, 7
    %v3266 = vrot.slane %v3138, 7
    %v3267 = vrot.slane %v3139, 7
    %v3268 = vrot.slane %v3140, 7
    %v3269 = vrot.slane %v3141, 7
    %v3270 = vrot.slane %v3142, 7
    %v3271 = vrot.slane %v3143, 7
    %v3272 = vrot.slane %v3144, 7
    %v3273 = vrot.slane %v3145, 7
    %v3274 = vrot.slane %v3146, 7
    %v3275 = vrot.slane %v3147, 7
    %v3276 = vrot.slane %v3148, 7
    %v3277 = vrot.slane %v3149, 7
    %v3278 = vrot.slane %v3150, 7
    %v3279 = vrot.slane %v3151, 7
    %v3280 = vrot.slane %v3152, 7
    %v3281 = vrot.slane %v3153, 7
    %v3282 = vrot.slane %v3154, 7
    %v3283 = vrot.slane %v3155, 7
    %v3284 = vrot.slane %v3156, 7
    %v3285 = vrot.slane %v3157, 7
    %v3286 = vrot.slane %v3158, 7
    %v3287 = vrot.slane %v3159, 7
    %v3288 = vrot.slane %v3160, 7
    %v3289 = vrot.slane %v3161, 7
    %v3290 = vrot.slane %v3162, 7
    %v3291 = vrot.slane %v3163, 7
    %v3292 = vrot.slane %v3164, 7
    %v3293 = vrot.slane %v3165, 7
    %v3294 = vrot.slane %v3166, 7
    %v3295 = vrot.slane %v3167, 7
    %v3296 = vrot.slane %v3168, 7
    %v3297 = vrot.slane %v3169, 7
    %v3298 = vrot.slane %v3170, 7
    %v3299 = vrot.slane %v3171, 7
    %v3300 = vrot.slane %v3172, 7
    %v3301 = vrot.slane %v3173, 7
    %v3302 = vrot.slane %v3174, 7
    %v3303 = vrot.slane %v3175, 7
    %v3304 = vrot.slane %v3176, 7
    %v3305 = vrot.slane %v3177, 7
    %v3306 = vrot.slane %v3178, 7
    %v3307 = vrot.slane %v3179, 7
    %v3308 = vrot.slane %v3180, 7
    %v3309 = vrot.slane %v3181, 7
    %v3310 = vrot.slane %v3182, 7
    %v3311 = vrot.slane %v3183, 7
    %v3312 = vrot.slane %v3184, 7
    %v3313 = vrot.slane %v3185, 7
    %v3314 = vrot.slane %v3186, 7
    %v3315 = vrot.slane %v3187, 7
    %v3316 = vrot.slane %v3188, 7
    %v3317 = vrot.slane %v3189, 7
    %v3318 = vrot.slane %v3190, 7
    %v3319 = vrot.slane %v3191, 7
    %v3320 = vrot.slane %v3192, 7
    %v3321 = vrot.slane %v3193, 7
    %v3322 = vsel %vm294, 0.0, %v3194
    %v3323 = vsel %vm294, 0.0, %v3195
    %v3324 = vsel %vm294, 0.0, %v3196
    %v3325 = vsel %vm294, 0.0, %v3197
    %v3326 = vsel %vm294, 0.0, %v3198
    %v3327 = vsel %vm294, 0.0, %v3199
    %v3328 = vsel %vm294, 0.0, %v3200
    %v3329 = vsel %vm294, 0.0, %v3201
    %v3330 = vsel %vm294, 0.0, %v3202
    %v3331 = vsel %vm294, 0.0, %v3203
    %v3332 = vsel %vm294, 0.0, %v3204
    %v3333 = vsel %vm294, 0.0, %v3205
    %v3334 = vsel %vm294, 0.0, %v3206
    %v3335 = vsel %vm294, 0.0, %v3207
    %v3336 = vsel %vm294, 0.0, %v3208
    %v3337 = vsel %vm294, 0.0, %v3209
    %v3338 = vsel %vm294, 0.0, %v3210
    %v3339 = vsel %vm294, 0.0, %v3211
    %v3340 = vsel %vm294, 0.0, %v3212
    %v3341 = vsel %vm294, 0.0, %v3213
    %v3342 = vsel %vm294, 0.0, %v3214
    %v3343 = vsel %vm294, 0.0, %v3215
    %v3344 = vsel %vm294, 0.0, %v3216
    %v3345 = vsel %vm294, 0.0, %v3217
    %v3346 = vsel %vm294, 0.0, %v3218
    %v3347 = vsel %vm294, 0.0, %v3219
    %v3348 = vsel %vm294, 0.0, %v3220
    %v3349 = vsel %vm294, 0.0, %v3221
    %v3350 = vsel %vm294, 0.0, %v3222
    %v3351 = vsel %vm294, 0.0, %v3223
    %v3352 = vsel %vm294, 0.0, %v3224
    %v3353 = vsel %vm294, 0.0, %v3225
    %v3354 = vsel %vm294, 0.0, %v3226
    %v3355 = vsel %vm294, 0.0, %v3227
    %v3356 = vsel %vm294, 0.0, %v3228
    %v3357 = vsel %vm294, 0.0, %v3229
    %v3358 = vsel %vm294, 0.0, %v3230
    %v3359 = vsel %vm294, 0.0, %v3231
    %v3360 = vsel %vm294, 0.0, %v3232
    %v3361 = vsel %vm294, 0.0, %v3233
    %v3362 = vsel %vm294, 0.0, %v3234
    %v3363 = vsel %vm294, 0.0, %v3235
    %v3364 = vsel %vm294, 0.0, %v3236
    %v3365 = vsel %vm294, 0.0, %v3237
    %v3366 = vsel %vm294, 0.0, %v3238
    %v3367 = vsel %vm294, 0.0, %v3239
    %v3368 = vsel %vm294, 0.0, %v3240
    %v3369 = vsel %vm294, 0.0, %v3241
    %v3370 = vsel %vm294, 0.0, %v3242
    %v3371 = vsel %vm294, 0.0, %v3243
    %v3372 = vsel %vm294, 0.0, %v3244
    %v3373 = vsel %vm294, 0.0, %v3245
    %v3374 = vsel %vm294, 0.0, %v3246
    %v3375 = vsel %vm294, 0.0, %v3247
    %v3376 = vsel %vm294, 0.0, %v3248
    %v3377 = vsel %vm294, 0.0, %v3249
    %v3378 = vsel %vm294, 0.0, %v3250
    %v3379 = vsel %vm294, 0.0, %v3251
    %v3380 = vsel %vm294, 0.0, %v3252
    %v3381 = vsel %vm294, 0.0, %v3253
    %v3382 = vsel %vm294, 0.0, %v3254
    %v3383 = vsel %vm294, 0.0, %v3255
    %v3384 = vsel %vm294, 0.0, %v3256
    %v3385 = vsel %vm294, 0.0, %v3257
    %v3386 = vsel %vm294, 0.0, %v3258
    %v3387 = vsel %vm294, 0.0, %v3259
    %v3388 = vsel %vm294, 0.0, %v3260
    %v3389 = vsel %vm294, 0.0, %v3261
    %v3390 = vsel %vm294, 0.0, %v3262
    %v3391 = vsel %vm294, 0.0, %v3263
    %v3392 = vsel %vm294, 0.0, %v3264
    %v3393 = vsel %vm294, 0.0, %v3265
    %v3394 = vsel %vm294, 0.0, %v3266
    %v3395 = vsel %vm294, 0.0, %v3267
    %v3396 = vsel %vm294, 0.0, %v3268
    %v3397 = vsel %vm294, 0.0, %v3269
    %v3398 = vsel %vm294, 0.0, %v3270
    %v3399 = vsel %vm294, 0.0, %v3271
    %v3400 = vsel %vm294, 0.0, %v3272
    %v3401 = vsel %vm294, 0.0, %v3273
    %v3402 = vsel %vm294, 0.0, %v3274
    %v3403 = vsel %vm294, 0.0, %v3275
    %v3404 = vsel %vm294, 0.0, %v3276
    %v3405 = vsel %vm294, 0.0, %v3277
    %v3406 = vsel %vm294, 0.0, %v3278
    %v3407 = vsel %vm294, 0.0, %v3279
    %v3408 = vsel %vm294, 0.0, %v3280
    %v3409 = vsel %vm294, 0.0, %v3281
    %v3410 = vsel %vm294, 0.0, %v3282
    %v3411 = vsel %vm294, 0.0, %v3283
    %v3412 = vsel %vm294, 0.0, %v3284
    %v3413 = vsel %vm294, 0.0, %v3285
    %v3414 = vsel %vm294, 0.0, %v3286
    %v3415 = vsel %vm294, 0.0, %v3287
    %v3416 = vsel %vm294, 0.0, %v3288
    %v3417 = vsel %vm294, 0.0, %v3289
    %v3418 = vsel %vm294, 0.0, %v3290
    %v3419 = vsel %vm294, 0.0, %v3291
    %v3420 = vsel %vm294, 0.0, %v3292
    %v3421 = vsel %vm294, 0.0, %v3293
    %v3422 = vsel %vm294, 0.0, %v3294
    %v3423 = vsel %vm294, 0.0, %v3295
    %v3424 = vsel %vm294, 0.0, %v3296
    %v3425 = vsel %vm294, 0.0, %v3297
    %v3426 = vsel %vm294, 0.0, %v3298
    %v3427 = vsel %vm294, 0.0, %v3299
    %v3428 = vsel %vm294, 0.0, %v3300
    %v3429 = vsel %vm294, 0.0, %v3301
    %v3430 = vsel %vm294, 0.0, %v3302
    %v3431 = vsel %vm294, 0.0, %v3303
    %v3432 = vsel %vm294, 0.0, %v3304
    %v3433 = vsel %vm294, 0.0, %v3305
    %v3434 = vsel %vm294, 0.0, %v3306
    %v3435 = vsel %vm294, 0.0, %v3307
    %v3436 = vsel %vm294, 0.0, %v3308
    %v3437 = vsel %vm294, 0.0, %v3309
    %v3438 = vsel %vm294, 0.0, %v3310
    %v3439 = vsel %vm294, 0.0, %v3311
    %v3440 = vsel %vm294, 0.0, %v3312
    %v3441 = vsel %vm294, 0.0, %v3313
    %v3442 = vsel %vm294, 0.0, %v3314
    %v3443 = vsel %vm294, 0.0, %v3315
    %v3444 = vsel %vm294, 0.0, %v3316
    %v3445 = vsel %vm294, 0.0, %v3317
    %v3446 = vsel %vm294, 0.0, %v3318
    %v3447 = vsel %vm294, 0.0, %v3319
    %v3448 = vsel %vm294, 0.0, %v3320
    %v3449 = vsel %vm294, 0.0, %v3321
    %v3450 = vrot.slane %v3066, 1
    %v3451 = vrot.slane %v3067, 1
    %v3452 = vrot.slane %v3068, 1
    %v3453 = vrot.slane %v3069, 1
    %v3454 = vrot.slane %v3070, 1
    %v3455 = vrot.slane %v3071, 1
    %v3456 = vrot.slane %v3072, 1
    %v3457 = vrot.slane %v3073, 1
    %v3458 = vrot.slane %v3074, 1
    %v3459 = vrot.slane %v3075, 1
    %v3460 = vrot.slane %v3076, 1
    %v3461 = vrot.slane %v3077, 1
    %v3462 = vrot.slane %v3078, 1
    %v3463 = vrot.slane %v3079, 1
    %v3464 = vrot.slane %v3080, 1
    %v3465 = vrot.slane %v3081, 1
    %v3466 = vrot.slane %v3082, 1
    %v3467 = vrot.slane %v3083, 1
    %v3468 = vrot.slane %v3084, 1
    %v3469 = vrot.slane %v3085, 1
    %v3470 = vrot.slane %v3086, 1
    %v3471 = vrot.slane %v3087, 1
    %v3472 = vrot.slane %v3088, 1
    %v3473 = vrot.slane %v3089, 1
    %v3474 = vrot.slane %v3090, 1
    %v3475 = vrot.slane %v3091, 1
    %v3476 = vrot.slane %v3092, 1
    %v3477 = vrot.slane %v3093, 1
    %v3478 = vrot.slane %v3094, 1
    %v3479 = vrot.slane %v3095, 1
    %v3480 = vrot.slane %v3096, 1
    %v3481 = vrot.slane %v3097, 1
    %v3482 = vrot.slane %v3098, 1
    %v3483 = vrot.slane %v3099, 1
    %v3484 = vrot.slane %v3100, 1
    %v3485 = vrot.slane %v3101, 1
    %v3486 = vrot.slane %v3102, 1
    %v3487 = vrot.slane %v3103, 1
    %v3488 = vrot.slane %v3104, 1
    %v3489 = vrot.slane %v3105, 1
    %v3490 = vrot.slane %v3106, 1
    %v3491 = vrot.slane %v3107, 1
    %v3492 = vrot.slane %v3108, 1
    %v3493 = vrot.slane %v3109, 1
    %v3494 = vrot.slane %v3110, 1
    %v3495 = vrot.slane %v3111, 1
    %v3496 = vrot.slane %v3112, 1
    %v3497 = vrot.slane %v3113, 1
    %v3498 = vrot.slane %v3114, 1
    %v3499 = vrot.slane %v3115, 1
    %v3500 = vrot.slane %v3116, 1
    %v3501 = vrot.slane %v3117, 1
    %v3502 = vrot.slane %v3118, 1
    %v3503 = vrot.slane %v3119, 1
    %v3504 = vrot.slane %v3120, 1
    %v3505 = vrot.slane %v3121, 1
    %v3506 = vrot.slane %v3122, 1
    %v3507 = vrot.slane %v3123, 1
    %v3508 = vrot.slane %v3124, 1
    %v3509 = vrot.slane %v3125, 1
    %v3510 = vrot.slane %v3126, 1
    %v3511 = vrot.slane %v3127, 1
    %v3512 = vrot.slane %v3128, 1
    %v3513 = vrot.slane %v3129, 1
    %v3514 = vrot.slane %v3130, 1
    %v3515 = vrot.slane %v3131, 1
    %v3516 = vrot.slane %v3132, 1
    %v3517 = vrot.slane %v3133, 1
    %v3518 = vrot.slane %v3134, 1
    %v3519 = vrot.slane %v3135, 1
    %v3520 = vrot.slane %v3136, 1
    %v3521 = vrot.slane %v3137, 1
    %v3522 = vrot.slane %v3138, 1
    %v3523 = vrot.slane %v3139, 1
    %v3524 = vrot.slane %v3140, 1
    %v3525 = vrot.slane %v3141, 1
    %v3526 = vrot.slane %v3142, 1
    %v3527 = vrot.slane %v3143, 1
    %v3528 = vrot.slane %v3144, 1
    %v3529 = vrot.slane %v3145, 1
    %v3530 = vrot.slane %v3146, 1
    %v3531 = vrot.slane %v3147, 1
    %v3532 = vrot.slane %v3148, 1
    %v3533 = vrot.slane %v3149, 1
    %v3534 = vrot.slane %v3150, 1
    %v3535 = vrot.slane %v3151, 1
    %v3536 = vrot.slane %v3152, 1
    %v3537 = vrot.slane %v3153, 1
    %v3538 = vrot.slane %v3154, 1
    %v3539 = vrot.slane %v3155, 1
    %v3540 = vrot.slane %v3156, 1
    %v3541 = vrot.slane %v3157, 1
    %v3542 = vrot.slane %v3158, 1
    %v3543 = vrot.slane %v3159, 1
    %v3544 = vrot.slane %v3160, 1
    %v3545 = vrot.slane %v3161, 1
    %v3546 = vrot.slane %v3162, 1
    %v3547 = vrot.slane %v3163, 1
    %v3548 = vrot.slane %v3164, 1
    %v3549 = vrot.slane %v3165, 1
    %v3550 = vrot.slane %v3166, 1
    %v3551 = vrot.slane %v3167, 1
    %v3552 = vrot.slane %v3168, 1
    %v3553 = vrot.slane %v3169, 1
    %v3554 = vrot.slane %v3170, 1
    %v3555 = vrot.slane %v3171, 1
    %v3556 = vrot.slane %v3172, 1
    %v3557 = vrot.slane %v3173, 1
    %v3558 = vrot.slane %v3174, 1
    %v3559 = vrot.slane %v3175, 1
    %v3560 = vrot.slane %v3176, 1
    %v3561 = vrot.slane %v3177, 1
    %v3562 = vrot.slane %v3178, 1
    %v3563 = vrot.slane %v3179, 1
    %v3564 = vrot.slane %v3180, 1
    %v3565 = vrot.slane %v3181, 1
    %v3566 = vrot.slane %v3182, 1
    %v3567 = vrot.slane %v3183, 1
    %v3568 = vrot.slane %v3184, 1
    %v3569 = vrot.slane %v3185, 1
    %v3570 = vrot.slane %v3186, 1
    %v3571 = vrot.slane %v3187, 1
    %v3572 = vrot.slane %v3188, 1
    %v3573 = vrot.slane %v3189, 1
    %v3574 = vrot.slane %v3190, 1
    %v3575 = vrot.slane %v3191, 1
    %v3576 = vrot.slane %v3192, 1
    %v3577 = vrot.slane %v3193, 1
    %v3578 = vsel %vm552, 0.0, %v3450
    %v3579 = vsel %vm552, 0.0, %v3451
    %v3580 = vsel %vm552, 0.0, %v3452
    %v3581 = vsel %vm552, 0.0, %v3453
    %v3582 = vsel %vm552, 0.0, %v3454
    %v3583 = vsel %vm552, 0.0, %v3455
    %v3584 = vsel %vm552, 0.0, %v3456
    %v3585 = vsel %vm552, 0.0, %v3457
    %v3586 = vsel %vm552, 0.0, %v3458
    %v3587 = vsel %vm552, 0.0, %v3459
    %v3588 = vsel %vm552, 0.0, %v3460
    %v3589 = vsel %vm552, 0.0, %v3461
    %v3590 = vsel %vm552, 0.0, %v3462
    %v3591 = vsel %vm552, 0.0, %v3463
    %v3592 = vsel %vm552, 0.0, %v3464
    %v3593 = vsel %vm552, 0.0, %v3465
    %v3594 = vsel %vm552, 0.0, %v3466
    %v3595 = vsel %vm552, 0.0, %v3467
    %v3596 = vsel %vm552, 0.0, %v3468
    %v3597 = vsel %vm552, 0.0, %v3469
    %v3598 = vsel %vm552, 0.0, %v3470
    %v3599 = vsel %vm552, 0.0, %v3471
    %v3600 = vsel %vm552, 0.0, %v3472
    %v3601 = vsel %vm552, 0.0, %v3473
    %v3602 = vsel %vm552, 0.0, %v3474
    %v3603 = vsel %vm552, 0.0, %v3475
    %v3604 = vsel %vm552, 0.0, %v3476
    %v3605 = vsel %vm552, 0.0, %v3477
    %v3606 = vsel %vm552, 0.0, %v3478
    %v3607 = vsel %vm552, 0.0, %v3479
    %v3608 = vsel %vm552, 0.0, %v3480
    %v3609 = vsel %vm552, 0.0, %v3481
    %v3610 = vsel %vm552, 0.0, %v3482
    %v3611 = vsel %vm552, 0.0, %v3483
    %v3612 = vsel %vm552, 0.0, %v3484
    %v3613 = vsel %vm552, 0.0, %v3485
    %v3614 = vsel %vm552, 0.0, %v3486
    %v3615 = vsel %vm552, 0.0, %v3487
    %v3616 = vsel %vm552, 0.0, %v3488
    %v3617 = vsel %vm552, 0.0, %v3489
    %v3618 = vsel %vm552, 0.0, %v3490
    %v3619 = vsel %vm552, 0.0, %v3491
    %v3620 = vsel %vm552, 0.0, %v3492
    %v3621 = vsel %vm552, 0.0, %v3493
    %v3622 = vsel %vm552, 0.0, %v3494
    %v3623 = vsel %vm552, 0.0, %v3495
    %v3624 = vsel %vm552, 0.0, %v3496
    %v3625 = vsel %vm552, 0.0, %v3497
    %v3626 = vsel %vm552, 0.0, %v3498
    %v3627 = vsel %vm552, 0.0, %v3499
    %v3628 = vsel %vm552, 0.0, %v3500
    %v3629 = vsel %vm552, 0.0, %v3501
    %v3630 = vsel %vm552, 0.0, %v3502
    %v3631 = vsel %vm552, 0.0, %v3503
    %v3632 = vsel %vm552, 0.0, %v3504
    %v3633 = vsel %vm552, 0.0, %v3505
    %v3634 = vsel %vm552, 0.0, %v3506
    %v3635 = vsel %vm552, 0.0, %v3507
    %v3636 = vsel %vm552, 0.0, %v3508
    %v3637 = vsel %vm552, 0.0, %v3509
    %v3638 = vsel %vm552, 0.0, %v3510
    %v3639 = vsel %vm552, 0.0, %v3511
    %v3640 = vsel %vm552, 0.0, %v3512
    %v3641 = vsel %vm552, 0.0, %v3513
    %v3642 = vsel %vm552, 0.0, %v3514
    %v3643 = vsel %vm552, 0.0, %v3515
    %v3644 = vsel %vm552, 0.0, %v3516
    %v3645 = vsel %vm552, 0.0, %v3517
    %v3646 = vsel %vm552, 0.0, %v3518
    %v3647 = vsel %vm552, 0.0, %v3519
    %v3648 = vsel %vm552, 0.0, %v3520
    %v3649 = vsel %vm552, 0.0, %v3521
    %v3650 = vsel %vm552, 0.0, %v3522
    %v3651 = vsel %vm552, 0.0, %v3523
    %v3652 = vsel %vm552, 0.0, %v3524
    %v3653 = vsel %vm552, 0.0, %v3525
    %v3654 = vsel %vm552, 0.0, %v3526
    %v3655 = vsel %vm552, 0.0, %v3527
    %v3656 = vsel %vm552, 0.0, %v3528
    %v3657 = vsel %vm552, 0.0, %v3529
    %v3658 = vsel %vm552, 0.0, %v3530
    %v3659 = vsel %vm552, 0.0, %v3531
    %v3660 = vsel %vm552, 0.0, %v3532
    %v3661 = vsel %vm552, 0.0, %v3533
    %v3662 = vsel %vm552, 0.0, %v3534
    %v3663 = vsel %vm552, 0.0, %v3535
    %v3664 = vsel %vm552, 0.0, %v3536
    %v3665 = vsel %vm552, 0.0, %v3537
    %v3666 = vsel %vm552, 0.0, %v3538
    %v3667 = vsel %vm552, 0.0, %v3539
    %v3668 = vsel %vm552, 0.0, %v3540
    %v3669 = vsel %vm552, 0.0, %v3541
    %v3670 = vsel %vm552, 0.0, %v3542
    %v3671 = vsel %vm552, 0.0, %v3543
    %v3672 = vsel %vm552, 0.0, %v3544
    %v3673 = vsel %vm552, 0.0, %v3545
    %v3674 = vsel %vm552, 0.0, %v3546
    %v3675 = vsel %vm552, 0.0, %v3547
    %v3676 = vsel %vm552, 0.0, %v3548
    %v3677 = vsel %vm552, 0.0, %v3549
    %v3678 = vsel %vm552, 0.0, %v3550
    %v3679 = vsel %vm552, 0.0, %v3551
    %v3680 = vsel %vm552, 0.0, %v3552
    %v3681 = vsel %vm552, 0.0, %v3553
    %v3682 = vsel %vm552, 0.0, %v3554
    %v3683 = vsel %vm552, 0.0, %v3555
    %v3684 = vsel %vm552, 0.0, %v3556
    %v3685 = vsel %vm552, 0.0, %v3557
    %v3686 = vsel %vm552, 0.0, %v3558
    %v3687 = vsel %vm552, 0.0, %v3559
    %v3688 = vsel %vm552, 0.0, %v3560
    %v3689 = vsel %vm552, 0.0, %v3561
    %v3690 = vsel %vm552, 0.0, %v3562
    %v3691 = vsel %vm552, 0.0, %v3563
    %v3692 = vsel %vm552, 0.0, %v3564
    %v3693 = vsel %vm552, 0.0, %v3565
    %v3694 = vsel %vm552, 0.0, %v3566
    %v3695 = vsel %vm552, 0.0, %v3567
    %v3696 = vsel %vm552, 0.0, %v3568
    %v3697 = vsel %vm552, 0.0, %v3569
    %v3698 = vsel %vm552, 0.0, %v3570
    %v3699 = vsel %vm552, 0.0, %v3571
    %v3700 = vsel %vm552, 0.0, %v3572
    %v3701 = vsel %vm552, 0.0, %v3573
    %v3702 = vsel %vm552, 0.0, %v3574
    %v3703 = vsel %vm552, 0.0, %v3575
    %v3704 = vsel %vm552, 0.0, %v3576
    %v3705 = vsel %vm552, 0.0, %v3577
    %3834 = vrot.lane.b32.xlu0 %v3066, 32
    %v3835 = vpop.permute.xlu0 %3834
    %3836 = vrot.lane.b32.xlu0 %v3067, 32
    %v3837 = vpop.permute.xlu0 %3836
    %3838 = vrot.lane.b32.xlu0 %v3068, 32
    %v3839 = vpop.permute.xlu0 %3838
    %3840 = vrot.lane.b32.xlu0 %v3069, 32
    %v3841 = vpop.permute.xlu0 %3840
    %3842 = vrot.lane.b32.xlu0 %v3070, 32
    %v3843 = vpop.permute.xlu0 %3842
    %3844 = vrot.lane.b32.xlu0 %v3071, 32
    %v3845 = vpop.permute.xlu0 %3844
    %3846 = vrot.lane.b32.xlu0 %v3072, 32
    %v3847 = vpop.permute.xlu0 %3846
    %3848 = vrot.lane.b32.xlu0 %v3073, 32
    %v3849 = vpop.permute.xlu0 %3848
    %3850 = vrot.lane.b32.xlu0 %v3074, 32
    %v3851 = vpop.permute.xlu0 %3850
    %3852 = vrot.lane.b32.xlu0 %v3075, 32
    %v3853 = vpop.permute.xlu0 %3852
    %3854 = vrot.lane.b32.xlu0 %v3076, 32
    %v3855 = vpop.permute.xlu0 %3854
    %3856 = vrot.lane.b32.xlu0 %v3077, 32
    %v3857 = vpop.permute.xlu0 %3856
    %3858 = vrot.lane.b32.xlu0 %v3078, 32
    %v3859 = vpop.permute.xlu0 %3858
    %3860 = vrot.lane.b32.xlu0 %v3079, 32
    %v3861 = vpop.permute.xlu0 %3860
    %3862 = vrot.lane.b32.xlu0 %v3080, 32
    %v3863 = vpop.permute.xlu0 %3862
    %3864 = vrot.lane.b32.xlu0 %v3081, 32
    %v3865 = vpop.permute.xlu0 %3864
    %3866 = vrot.lane.b32.xlu0 %v3082, 32
    %v3867 = vpop.permute.xlu0 %3866
    %3868 = vrot.lane.b32.xlu0 %v3083, 32
    %v3869 = vpop.permute.xlu0 %3868
    %3870 = vrot.lane.b32.xlu0 %v3084, 32
    %v3871 = vpop.permute.xlu0 %3870
    %3872 = vrot.lane.b32.xlu0 %v3085, 32
    %v3873 = vpop.permute.xlu0 %3872
    %3874 = vrot.lane.b32.xlu0 %v3086, 32
    %v3875 = vpop.permute.xlu0 %3874
    %3876 = vrot.lane.b32.xlu0 %v3087, 32
    %v3877 = vpop.permute.xlu0 %3876
    %3878 = vrot.lane.b32.xlu0 %v3088, 32
    %v3879 = vpop.permute.xlu0 %3878
    %3880 = vrot.lane.b32.xlu0 %v3089, 32
    %v3881 = vpop.permute.xlu0 %3880
    %3882 = vrot.lane.b32.xlu0 %v3090, 32
    %v3883 = vpop.permute.xlu0 %3882
    %3884 = vrot.lane.b32.xlu0 %v3091, 32
    %v3885 = vpop.permute.xlu0 %3884
    %3886 = vrot.lane.b32.xlu0 %v3092, 32
    %v3887 = vpop.permute.xlu0 %3886
    %3888 = vrot.lane.b32.xlu0 %v3093, 32
    %v3889 = vpop.permute.xlu0 %3888
    %3890 = vrot.lane.b32.xlu0 %v3094, 32
    %v3891 = vpop.permute.xlu0 %3890
    %3892 = vrot.lane.b32.xlu0 %v3095, 32
    %v3893 = vpop.permute.xlu0 %3892
    %3894 = vrot.lane.b32.xlu0 %v3096, 32
    %v3895 = vpop.permute.xlu0 %3894
    %3896 = vrot.lane.b32.xlu0 %v3097, 32
    %v3897 = vpop.permute.xlu0 %3896
    %3898 = vrot.lane.b32.xlu0 %v3098, 32
    %v3899 = vpop.permute.xlu0 %3898
    %3900 = vrot.lane.b32.xlu0 %v3099, 32
    %v3901 = vpop.permute.xlu0 %3900
    %3902 = vrot.lane.b32.xlu0 %v3100, 32
    %v3903 = vpop.permute.xlu0 %3902
    %3904 = vrot.lane.b32.xlu0 %v3101, 32
    %v3905 = vpop.permute.xlu0 %3904
    %3906 = vrot.lane.b32.xlu0 %v3102, 32
    %v3907 = vpop.permute.xlu0 %3906
    %3908 = vrot.lane.b32.xlu0 %v3103, 32
    %v3909 = vpop.permute.xlu0 %3908
    %3910 = vrot.lane.b32.xlu0 %v3104, 32
    %v3911 = vpop.permute.xlu0 %3910
    %3912 = vrot.lane.b32.xlu0 %v3105, 32
    %v3913 = vpop.permute.xlu0 %3912
    %3914 = vrot.lane.b32.xlu0 %v3106, 32
    %v3915 = vpop.permute.xlu0 %3914
    %3916 = vrot.lane.b32.xlu0 %v3107, 32
    %v3917 = vpop.permute.xlu0 %3916
    %3918 = vrot.lane.b32.xlu0 %v3108, 32
    %v3919 = vpop.permute.xlu0 %3918
    %3920 = vrot.lane.b32.xlu0 %v3109, 32
    %v3921 = vpop.permute.xlu0 %3920
    %3922 = vrot.lane.b32.xlu0 %v3110, 32
    %v3923 = vpop.permute.xlu0 %3922
    %3924 = vrot.lane.b32.xlu0 %v3111, 32
    %v3925 = vpop.permute.xlu0 %3924
    %3926 = vrot.lane.b32.xlu0 %v3112, 32
    %v3927 = vpop.permute.xlu0 %3926
    %3928 = vrot.lane.b32.xlu0 %v3113, 32
    %v3929 = vpop.permute.xlu0 %3928
    %3930 = vrot.lane.b32.xlu0 %v3114, 32
    %v3931 = vpop.permute.xlu0 %3930
    %3932 = vrot.lane.b32.xlu0 %v3115, 32
    %v3933 = vpop.permute.xlu0 %3932
    %3934 = vrot.lane.b32.xlu0 %v3116, 32
    %v3935 = vpop.permute.xlu0 %3934
    %3936 = vrot.lane.b32.xlu0 %v3117, 32
    %v3937 = vpop.permute.xlu0 %3936
    %3938 = vrot.lane.b32.xlu0 %v3118, 32
    %v3939 = vpop.permute.xlu0 %3938
    %3940 = vrot.lane.b32.xlu0 %v3119, 32
    %v3941 = vpop.permute.xlu0 %3940
    %3942 = vrot.lane.b32.xlu0 %v3120, 32
    %v3943 = vpop.permute.xlu0 %3942
    %3944 = vrot.lane.b32.xlu0 %v3121, 32
    %v3945 = vpop.permute.xlu0 %3944
    %3946 = vrot.lane.b32.xlu0 %v3122, 32
    %v3947 = vpop.permute.xlu0 %3946
    %3948 = vrot.lane.b32.xlu0 %v3123, 32
    %v3949 = vpop.permute.xlu0 %3948
    %3950 = vrot.lane.b32.xlu0 %v3124, 32
    %v3951 = vpop.permute.xlu0 %3950
    %3952 = vrot.lane.b32.xlu0 %v3125, 32
    %v3953 = vpop.permute.xlu0 %3952
    %3954 = vrot.lane.b32.xlu0 %v3126, 32
    %v3955 = vpop.permute.xlu0 %3954
    %3956 = vrot.lane.b32.xlu0 %v3127, 32
    %v3957 = vpop.permute.xlu0 %3956
    %3958 = vrot.lane.b32.xlu0 %v3128, 32
    %v3959 = vpop.permute.xlu0 %3958
    %3960 = vrot.lane.b32.xlu0 %v3129, 32
    %v3961 = vpop.permute.xlu0 %3960
    %3962 = vrot.lane.b32.xlu0 %v3130, 32
    %v3963 = vpop.permute.xlu0 %3962
    %3964 = vrot.lane.b32.xlu0 %v3131, 32
    %v3965 = vpop.permute.xlu0 %3964
    %3966 = vrot.lane.b32.xlu0 %v3132, 32
    %v3967 = vpop.permute.xlu0 %3966
    %3968 = vrot.lane.b32.xlu0 %v3133, 32
    %v3969 = vpop.permute.xlu0 %3968
    %3970 = vrot.lane.b32.xlu0 %v3134, 32
    %v3971 = vpop.permute.xlu0 %3970
    %3972 = vrot.lane.b32.xlu0 %v3135, 32
    %v3973 = vpop.permute.xlu0 %3972
    %3974 = vrot.lane.b32.xlu0 %v3136, 32
    %v3975 = vpop.permute.xlu0 %3974
    %3976 = vrot.lane.b32.xlu0 %v3137, 32
    %v3977 = vpop.permute.xlu0 %3976
    %3978 = vrot.lane.b32.xlu0 %v3138, 32
    %v3979 = vpop.permute.xlu0 %3978
    %3980 = vrot.lane.b32.xlu0 %v3139, 32
    %v3981 = vpop.permute.xlu0 %3980
    %3982 = vrot.lane.b32.xlu0 %v3140, 32
    %v3983 = vpop.permute.xlu0 %3982
    %3984 = vrot.lane.b32.xlu0 %v3141, 32
    %v3985 = vpop.permute.xlu0 %3984
    %3986 = vrot.lane.b32.xlu0 %v3142, 32
    %v3987 = vpop.permute.xlu0 %3986
    %3988 = vrot.lane.b32.xlu0 %v3143, 32
    %v3989 = vpop.permute.xlu0 %3988
    %3990 = vrot.lane.b32.xlu0 %v3144, 32
    %v3991 = vpop.permute.xlu0 %3990
    %3992 = vrot.lane.b32.xlu0 %v3145, 32
    %v3993 = vpop.permute.xlu0 %3992
    %3994 = vrot.lane.b32.xlu0 %v3146, 32
    %v3995 = vpop.permute.xlu0 %3994
    %3996 = vrot.lane.b32.xlu0 %v3147, 32
    %v3997 = vpop.permute.xlu0 %3996
    %3998 = vrot.lane.b32.xlu0 %v3148, 32
    %v3999 = vpop.permute.xlu0 %3998
    %4000 = vrot.lane.b32.xlu0 %v3149, 32
    %v4001 = vpop.permute.xlu0 %4000
    %4002 = vrot.lane.b32.xlu0 %v3150, 32
    %v4003 = vpop.permute.xlu0 %4002
    %4004 = vrot.lane.b32.xlu0 %v3151, 32
    %v4005 = vpop.permute.xlu0 %4004
    %4006 = vrot.lane.b32.xlu0 %v3152, 32
    %v4007 = vpop.permute.xlu0 %4006
    %4008 = vrot.lane.b32.xlu0 %v3153, 32
    %v4009 = vpop.permute.xlu0 %4008
    %4010 = vrot.lane.b32.xlu0 %v3154, 32
    %v4011 = vpop.permute.xlu0 %4010
    %4012 = vrot.lane.b32.xlu0 %v3155, 32
    %v4013 = vpop.permute.xlu0 %4012
    %4014 = vrot.lane.b32.xlu0 %v3156, 32
    %v4015 = vpop.permute.xlu0 %4014
    %4016 = vrot.lane.b32.xlu0 %v3157, 32
    %v4017 = vpop.permute.xlu0 %4016
    %4018 = vrot.lane.b32.xlu0 %v3158, 32
    %v4019 = vpop.permute.xlu0 %4018
    %4020 = vrot.lane.b32.xlu0 %v3159, 32
    %v4021 = vpop.permute.xlu0 %4020
    %4022 = vrot.lane.b32.xlu0 %v3160, 32
    %v4023 = vpop.permute.xlu0 %4022
    %4024 = vrot.lane.b32.xlu0 %v3161, 32
    %v4025 = vpop.permute.xlu0 %4024
    %4026 = vrot.lane.b32.xlu0 %v3162, 32
    %v4027 = vpop.permute.xlu0 %4026
    %4028 = vrot.lane.b32.xlu0 %v3163, 32
    %v4029 = vpop.permute.xlu0 %4028
    %4030 = vrot.lane.b32.xlu0 %v3164, 32
    %v4031 = vpop.permute.xlu0 %4030
    %4032 = vrot.lane.b32.xlu0 %v3165, 32
    %v4033 = vpop.permute.xlu0 %4032
    %4034 = vrot.lane.b32.xlu0 %v3166, 32
    %v4035 = vpop.permute.xlu0 %4034
    %4036 = vrot.lane.b32.xlu0 %v3167, 32
    %v4037 = vpop.permute.xlu0 %4036
    %4038 = vrot.lane.b32.xlu0 %v3168, 32
    %v4039 = vpop.permute.xlu0 %4038
    %4040 = vrot.lane.b32.xlu0 %v3169, 32
    %v4041 = vpop.permute.xlu0 %4040
    %4042 = vrot.lane.b32.xlu0 %v3170, 32
    %v4043 = vpop.permute.xlu0 %4042
    %4044 = vrot.lane.b32.xlu0 %v3171, 32
    %v4045 = vpop.permute.xlu0 %4044
    %4046 = vrot.lane.b32.xlu0 %v3172, 32
    %v4047 = vpop.permute.xlu0 %4046
    %4048 = vrot.lane.b32.xlu0 %v3173, 32
    %v4049 = vpop.permute.xlu0 %4048
    %4050 = vrot.lane.b32.xlu0 %v3174, 32
    %v4051 = vpop.permute.xlu0 %4050
    %4052 = vrot.lane.b32.xlu0 %v3175, 32
    %v4053 = vpop.permute.xlu0 %4052
    %4054 = vrot.lane.b32.xlu0 %v3176, 32
    %v4055 = vpop.permute.xlu0 %4054
    %4056 = vrot.lane.b32.xlu0 %v3177, 32
    %v4057 = vpop.permute.xlu0 %4056
    %4058 = vrot.lane.b32.xlu0 %v3178, 32
    %v4059 = vpop.permute.xlu0 %4058
    %4060 = vrot.lane.b32.xlu0 %v3179, 32
    %v4061 = vpop.permute.xlu0 %4060
    %4062 = vrot.lane.b32.xlu0 %v3180, 32
    %v4063 = vpop.permute.xlu0 %4062
    %4064 = vrot.lane.b32.xlu0 %v3181, 32
    %v4065 = vpop.permute.xlu0 %4064
    %4066 = vrot.lane.b32.xlu0 %v3182, 32
    %v4067 = vpop.permute.xlu0 %4066
    %4068 = vrot.lane.b32.xlu0 %v3183, 32
    %v4069 = vpop.permute.xlu0 %4068
    %4070 = vrot.lane.b32.xlu0 %v3184, 32
    %v4071 = vpop.permute.xlu0 %4070
    %4072 = vrot.lane.b32.xlu0 %v3185, 32
    %v4073 = vpop.permute.xlu0 %4072
    %4074 = vrot.lane.b32.xlu0 %v3186, 32
    %v4075 = vpop.permute.xlu0 %4074
    %4076 = vrot.lane.b32.xlu0 %v3187, 32
    %v4077 = vpop.permute.xlu0 %4076
    %4078 = vrot.lane.b32.xlu0 %v3188, 32
    %v4079 = vpop.permute.xlu0 %4078
    %4080 = vrot.lane.b32.xlu0 %v3189, 32
    %v4081 = vpop.permute.xlu0 %4080
    %4082 = vrot.lane.b32.xlu0 %v3190, 32
    %v4083 = vpop.permute.xlu0 %4082
    %4084 = vrot.lane.b32.xlu0 %v3191, 32
    %v4085 = vpop.permute.xlu0 %4084
    %4086 = vrot.lane.b32.xlu0 %v3192, 32
    %v4087 = vpop.permute.xlu0 %4086
    %4088 = vrot.lane.b32.xlu0 %v3193, 32
    %v4089 = vpop.permute.xlu0 %4088
    %4346 = vrot.lane.b32.xlu0 %v3578, 64
    %v4347 = vpop.permute.xlu0 %4346
    %4348 = vrot.lane.b32.xlu0 %v3579, 64
    %v4349 = vpop.permute.xlu0 %4348
    %4350 = vrot.lane.b32.xlu0 %v3580, 64
    %v4351 = vpop.permute.xlu0 %4350
    %4352 = vrot.lane.b32.xlu0 %v3581, 64
    %v4353 = vpop.permute.xlu0 %4352
    %4354 = vrot.lane.b32.xlu0 %v3582, 64
    %v4355 = vpop.permute.xlu0 %4354
    %4356 = vrot.lane.b32.xlu0 %v3583, 64
    %v4357 = vpop.permute.xlu0 %4356
    %4358 = vrot.lane.b32.xlu0 %v3584, 64
    %v4359 = vpop.permute.xlu0 %4358
    %4360 = vrot.lane.b32.xlu0 %v3585, 64
    %v4361 = vpop.permute.xlu0 %4360
    %4362 = vrot.lane.b32.xlu0 %v3586, 64
    %v4363 = vpop.permute.xlu0 %4362
    %4364 = vrot.lane.b32.xlu0 %v3587, 64
    %v4365 = vpop.permute.xlu0 %4364
    %4366 = vrot.lane.b32.xlu0 %v3588, 64
    %v4367 = vpop.permute.xlu0 %4366
    %4368 = vrot.lane.b32.xlu0 %v3589, 64
    %v4369 = vpop.permute.xlu0 %4368
    %4370 = vrot.lane.b32.xlu0 %v3590, 64
    %v4371 = vpop.permute.xlu0 %4370
    %4372 = vrot.lane.b32.xlu0 %v3591, 64
    %v4373 = vpop.permute.xlu0 %4372
    %4374 = vrot.lane.b32.xlu0 %v3592, 64
    %v4375 = vpop.permute.xlu0 %4374
    %4376 = vrot.lane.b32.xlu0 %v3593, 64
    %v4377 = vpop.permute.xlu0 %4376
    %4378 = vrot.lane.b32.xlu0 %v3594, 64
    %v4379 = vpop.permute.xlu0 %4378
    %4380 = vrot.lane.b32.xlu0 %v3595, 64
    %v4381 = vpop.permute.xlu0 %4380
    %4382 = vrot.lane.b32.xlu0 %v3596, 64
    %v4383 = vpop.permute.xlu0 %4382
    %4384 = vrot.lane.b32.xlu0 %v3597, 64
    %v4385 = vpop.permute.xlu0 %4384
    %4386 = vrot.lane.b32.xlu0 %v3598, 64
    %v4387 = vpop.permute.xlu0 %4386
    %4388 = vrot.lane.b32.xlu0 %v3599, 64
    %v4389 = vpop.permute.xlu0 %4388
    %4390 = vrot.lane.b32.xlu0 %v3600, 64
    %v4391 = vpop.permute.xlu0 %4390
    %4392 = vrot.lane.b32.xlu0 %v3601, 64
    %v4393 = vpop.permute.xlu0 %4392
    %4394 = vrot.lane.b32.xlu0 %v3602, 64
    %v4395 = vpop.permute.xlu0 %4394
    %4396 = vrot.lane.b32.xlu0 %v3603, 64
    %v4397 = vpop.permute.xlu0 %4396
    %4398 = vrot.lane.b32.xlu0 %v3604, 64
    %v4399 = vpop.permute.xlu0 %4398
    %4400 = vrot.lane.b32.xlu0 %v3605, 64
    %v4401 = vpop.permute.xlu0 %4400
    %4402 = vrot.lane.b32.xlu0 %v3606, 64
    %v4403 = vpop.permute.xlu0 %4402
    %4404 = vrot.lane.b32.xlu0 %v3607, 64
    %v4405 = vpop.permute.xlu0 %4404
    %4406 = vrot.lane.b32.xlu0 %v3608, 64
    %v4407 = vpop.permute.xlu0 %4406
    %4408 = vrot.lane.b32.xlu0 %v3609, 64
    %v4409 = vpop.permute.xlu0 %4408
    %4410 = vrot.lane.b32.xlu0 %v3610, 64
    %v4411 = vpop.permute.xlu0 %4410
    %4412 = vrot.lane.b32.xlu0 %v3611, 64
    %v4413 = vpop.permute.xlu0 %4412
    %4414 = vrot.lane.b32.xlu0 %v3612, 64
    %v4415 = vpop.permute.xlu0 %4414
    %4416 = vrot.lane.b32.xlu0 %v3613, 64
    %v4417 = vpop.permute.xlu0 %4416
    %4418 = vrot.lane.b32.xlu0 %v3614, 64
    %v4419 = vpop.permute.xlu0 %4418
    %4420 = vrot.lane.b32.xlu0 %v3615, 64
    %v4421 = vpop.permute.xlu0 %4420
    %4422 = vrot.lane.b32.xlu0 %v3616, 64
    %v4423 = vpop.permute.xlu0 %4422
    %4424 = vrot.lane.b32.xlu0 %v3617, 64
    %v4425 = vpop.permute.xlu0 %4424
    %4426 = vrot.lane.b32.xlu0 %v3618, 64
    %v4427 = vpop.permute.xlu0 %4426
    %4428 = vrot.lane.b32.xlu0 %v3619, 64
    %v4429 = vpop.permute.xlu0 %4428
    %4430 = vrot.lane.b32.xlu0 %v3620, 64
    %v4431 = vpop.permute.xlu0 %4430
    %4432 = vrot.lane.b32.xlu0 %v3621, 64
    %v4433 = vpop.permute.xlu0 %4432
    %4434 = vrot.lane.b32.xlu0 %v3622, 64
    %v4435 = vpop.permute.xlu0 %4434
    %4436 = vrot.lane.b32.xlu0 %v3623, 64
    %v4437 = vpop.permute.xlu0 %4436
    %4438 = vrot.lane.b32.xlu0 %v3624, 64
    %v4439 = vpop.permute.xlu0 %4438
    %4440 = vrot.lane.b32.xlu0 %v3625, 64
    %v4441 = vpop.permute.xlu0 %4440
    %4442 = vrot.lane.b32.xlu0 %v3626, 64
    %v4443 = vpop.permute.xlu0 %4442
    %4444 = vrot.lane.b32.xlu0 %v3627, 64
    %v4445 = vpop.permute.xlu0 %4444
    %4446 = vrot.lane.b32.xlu0 %v3628, 64
    %v4447 = vpop.permute.xlu0 %4446
    %4448 = vrot.lane.b32.xlu0 %v3629, 64
    %v4449 = vpop.permute.xlu0 %4448
    %4450 = vrot.lane.b32.xlu0 %v3630, 64
    %v4451 = vpop.permute.xlu0 %4450
    %4452 = vrot.lane.b32.xlu0 %v3631, 64
    %v4453 = vpop.permute.xlu0 %4452
    %4454 = vrot.lane.b32.xlu0 %v3632, 64
    %v4455 = vpop.permute.xlu0 %4454
    %4456 = vrot.lane.b32.xlu0 %v3633, 64
    %v4457 = vpop.permute.xlu0 %4456
    %4458 = vrot.lane.b32.xlu0 %v3634, 64
    %v4459 = vpop.permute.xlu0 %4458
    %4460 = vrot.lane.b32.xlu0 %v3635, 64
    %v4461 = vpop.permute.xlu0 %4460
    %4462 = vrot.lane.b32.xlu0 %v3636, 64
    %v4463 = vpop.permute.xlu0 %4462
    %4464 = vrot.lane.b32.xlu0 %v3637, 64
    %v4465 = vpop.permute.xlu0 %4464
    %4466 = vrot.lane.b32.xlu0 %v3638, 64
    %v4467 = vpop.permute.xlu0 %4466
    %4468 = vrot.lane.b32.xlu0 %v3639, 64
    %v4469 = vpop.permute.xlu0 %4468
    %4470 = vrot.lane.b32.xlu0 %v3640, 64
    %v4471 = vpop.permute.xlu0 %4470
    %4472 = vrot.lane.b32.xlu0 %v3641, 64
    %v4473 = vpop.permute.xlu0 %4472
    %4474 = vrot.lane.b32.xlu0 %v3642, 64
    %v4475 = vpop.permute.xlu0 %4474
    %4476 = vrot.lane.b32.xlu0 %v3643, 64
    %v4477 = vpop.permute.xlu0 %4476
    %4478 = vrot.lane.b32.xlu0 %v3644, 64
    %v4479 = vpop.permute.xlu0 %4478
    %4480 = vrot.lane.b32.xlu0 %v3645, 64
    %v4481 = vpop.permute.xlu0 %4480
    %4482 = vrot.lane.b32.xlu0 %v3646, 64
    %v4483 = vpop.permute.xlu0 %4482
    %4484 = vrot.lane.b32.xlu0 %v3647, 64
    %v4485 = vpop.permute.xlu0 %4484
    %4486 = vrot.lane.b32.xlu0 %v3648, 64
    %v4487 = vpop.permute.xlu0 %4486
    %4488 = vrot.lane.b32.xlu0 %v3649, 64
    %v4489 = vpop.permute.xlu0 %4488
    %4490 = vrot.lane.b32.xlu0 %v3650, 64
    %v4491 = vpop.permute.xlu0 %4490
    %4492 = vrot.lane.b32.xlu0 %v3651, 64
    %v4493 = vpop.permute.xlu0 %4492
    %4494 = vrot.lane.b32.xlu0 %v3652, 64
    %v4495 = vpop.permute.xlu0 %4494
    %4496 = vrot.lane.b32.xlu0 %v3653, 64
    %v4497 = vpop.permute.xlu0 %4496
    %4498 = vrot.lane.b32.xlu0 %v3654, 64
    %v4499 = vpop.permute.xlu0 %4498
    %4500 = vrot.lane.b32.xlu0 %v3655, 64
    %v4501 = vpop.permute.xlu0 %4500
    %4502 = vrot.lane.b32.xlu0 %v3656, 64
    %v4503 = vpop.permute.xlu0 %4502
    %4504 = vrot.lane.b32.xlu0 %v3657, 64
    %v4505 = vpop.permute.xlu0 %4504
    %4506 = vrot.lane.b32.xlu0 %v3658, 64
    %v4507 = vpop.permute.xlu0 %4506
    %4508 = vrot.lane.b32.xlu0 %v3659, 64
    %v4509 = vpop.permute.xlu0 %4508
    %4510 = vrot.lane.b32.xlu0 %v3660, 64
    %v4511 = vpop.permute.xlu0 %4510
    %4512 = vrot.lane.b32.xlu0 %v3661, 64
    %v4513 = vpop.permute.xlu0 %4512
    %4514 = vrot.lane.b32.xlu0 %v3662, 64
    %v4515 = vpop.permute.xlu0 %4514
    %4516 = vrot.lane.b32.xlu0 %v3663, 64
    %v4517 = vpop.permute.xlu0 %4516
    %4518 = vrot.lane.b32.xlu0 %v3664, 64
    %v4519 = vpop.permute.xlu0 %4518
    %4520 = vrot.lane.b32.xlu0 %v3665, 64
    %v4521 = vpop.permute.xlu0 %4520
    %4522 = vrot.lane.b32.xlu0 %v3666, 64
    %v4523 = vpop.permute.xlu0 %4522
    %4524 = vrot.lane.b32.xlu0 %v3667, 64
    %v4525 = vpop.permute.xlu0 %4524
    %4526 = vrot.lane.b32.xlu0 %v3668, 64
    %v4527 = vpop.permute.xlu0 %4526
    %4528 = vrot.lane.b32.xlu0 %v3669, 64
    %v4529 = vpop.permute.xlu0 %4528
    %4530 = vrot.lane.b32.xlu0 %v3670, 64
    %v4531 = vpop.permute.xlu0 %4530
    %4532 = vrot.lane.b32.xlu0 %v3671, 64
    %v4533 = vpop.permute.xlu0 %4532
    %4534 = vrot.lane.b32.xlu0 %v3672, 64
    %v4535 = vpop.permute.xlu0 %4534
    %4536 = vrot.lane.b32.xlu0 %v3673, 64
    %v4537 = vpop.permute.xlu0 %4536
    %4538 = vrot.lane.b32.xlu0 %v3674, 64
    %v4539 = vpop.permute.xlu0 %4538
    %4540 = vrot.lane.b32.xlu0 %v3675, 64
    %v4541 = vpop.permute.xlu0 %4540
    %4542 = vrot.lane.b32.xlu0 %v3676, 64
    %v4543 = vpop.permute.xlu0 %4542
    %4544 = vrot.lane.b32.xlu0 %v3677, 64
    %v4545 = vpop.permute.xlu0 %4544
    %4546 = vrot.lane.b32.xlu0 %v3678, 64
    %v4547 = vpop.permute.xlu0 %4546
    %4548 = vrot.lane.b32.xlu0 %v3679, 64
    %v4549 = vpop.permute.xlu0 %4548
    %4550 = vrot.lane.b32.xlu0 %v3680, 64
    %v4551 = vpop.permute.xlu0 %4550
    %4552 = vrot.lane.b32.xlu0 %v3681, 64
    %v4553 = vpop.permute.xlu0 %4552
    %4554 = vrot.lane.b32.xlu0 %v3682, 64
    %v4555 = vpop.permute.xlu0 %4554
    %4556 = vrot.lane.b32.xlu0 %v3683, 64
    %v4557 = vpop.permute.xlu0 %4556
    %4558 = vrot.lane.b32.xlu0 %v3684, 64
    %v4559 = vpop.permute.xlu0 %4558
    %4560 = vrot.lane.b32.xlu0 %v3685, 64
    %v4561 = vpop.permute.xlu0 %4560
    %4562 = vrot.lane.b32.xlu0 %v3686, 64
    %v4563 = vpop.permute.xlu0 %4562
    %4564 = vrot.lane.b32.xlu0 %v3687, 64
    %v4565 = vpop.permute.xlu0 %4564
    %4566 = vrot.lane.b32.xlu0 %v3688, 64
    %v4567 = vpop.permute.xlu0 %4566
    %4568 = vrot.lane.b32.xlu0 %v3689, 64
    %v4569 = vpop.permute.xlu0 %4568
    %4570 = vrot.lane.b32.xlu0 %v3690, 64
    %v4571 = vpop.permute.xlu0 %4570
    %4572 = vrot.lane.b32.xlu0 %v3691, 64
    %v4573 = vpop.permute.xlu0 %4572
    %4574 = vrot.lane.b32.xlu0 %v3692, 64
    %v4575 = vpop.permute.xlu0 %4574
    %4576 = vrot.lane.b32.xlu0 %v3693, 64
    %v4577 = vpop.permute.xlu0 %4576
    %4578 = vrot.lane.b32.xlu0 %v3694, 64
    %v4579 = vpop.permute.xlu0 %4578
    %4580 = vrot.lane.b32.xlu0 %v3695, 64
    %v4581 = vpop.permute.xlu0 %4580
    %4582 = vrot.lane.b32.xlu0 %v3696, 64
    %v4583 = vpop.permute.xlu0 %4582
    %4584 = vrot.lane.b32.xlu0 %v3697, 64
    %v4585 = vpop.permute.xlu0 %4584
    %4586 = vrot.lane.b32.xlu0 %v3698, 64
    %v4587 = vpop.permute.xlu0 %4586
    %4588 = vrot.lane.b32.xlu0 %v3699, 64
    %v4589 = vpop.permute.xlu0 %4588
    %4590 = vrot.lane.b32.xlu0 %v3700, 64
    %v4591 = vpop.permute.xlu0 %4590
    %4592 = vrot.lane.b32.xlu0 %v3701, 64
    %v4593 = vpop.permute.xlu0 %4592
    %4594 = vrot.lane.b32.xlu0 %v3702, 64
    %v4595 = vpop.permute.xlu0 %4594
    %4596 = vrot.lane.b32.xlu0 %v3703, 64
    %v4597 = vpop.permute.xlu0 %4596
    %4598 = vrot.lane.b32.xlu0 %v3704, 64
    %v4599 = vpop.permute.xlu0 %4598
    %4600 = vrot.lane.b32.xlu0 %v3705, 64
    %v4601 = vpop.permute.xlu0 %4600
    %vm4730 = vcmask 261120
    %v4731 = vsel %vm4730, %v3322, %v3835
    %v4732 = vsel %vm4730, %v3323, %v3837
    %v4733 = vsel %vm4730, %v3324, %v3839
    %v4734 = vsel %vm4730, %v3325, %v3841
    %v4735 = vsel %vm4730, %v3326, %v3843
    %v4736 = vsel %vm4730, %v3327, %v3845
    %v4737 = vsel %vm4730, %v3328, %v3847
    %v4738 = vsel %vm4730, %v3329, %v3849
    %v4739 = vsel %vm4730, %v3330, %v3851
    %v4740 = vsel %vm4730, %v3331, %v3853
    %v4741 = vsel %vm4730, %v3332, %v3855
    %v4742 = vsel %vm4730, %v3333, %v3857
    %v4743 = vsel %vm4730, %v3334, %v3859
    %v4744 = vsel %vm4730, %v3335, %v3861
    %v4745 = vsel %vm4730, %v3336, %v3863
    %v4746 = vsel %vm4730, %v3337, %v3865
    %v4747 = vsel %vm4730, %v3338, %v3867
    %v4748 = vsel %vm4730, %v3339, %v3869
    %v4749 = vsel %vm4730, %v3340, %v3871
    %v4750 = vsel %vm4730, %v3341, %v3873
    %v4751 = vsel %vm4730, %v3342, %v3875
    %v4752 = vsel %vm4730, %v3343, %v3877
    %v4753 = vsel %vm4730, %v3344, %v3879
    %v4754 = vsel %vm4730, %v3345, %v3881
    %v4755 = vsel %vm4730, %v3346, %v3883
    %v4756 = vsel %vm4730, %v3347, %v3885
    %v4757 = vsel %vm4730, %v3348, %v3887
    %v4758 = vsel %vm4730, %v3349, %v3889
    %v4759 = vsel %vm4730, %v3350, %v3891
    %v4760 = vsel %vm4730, %v3351, %v3893
    %v4761 = vsel %vm4730, %v3352, %v3895
    %v4762 = vsel %vm4730, %v3353, %v3897
    %v4763 = vsel %vm4730, %v3354, %v3899
    %v4764 = vsel %vm4730, %v3355, %v3901
    %v4765 = vsel %vm4730, %v3356, %v3903
    %v4766 = vsel %vm4730, %v3357, %v3905
    %v4767 = vsel %vm4730, %v3358, %v3907
    %v4768 = vsel %vm4730, %v3359, %v3909
    %v4769 = vsel %vm4730, %v3360, %v3911
    %v4770 = vsel %vm4730, %v3361, %v3913
    %v4771 = vsel %vm4730, %v3362, %v3915
    %v4772 = vsel %vm4730, %v3363, %v3917
    %v4773 = vsel %vm4730, %v3364, %v3919
    %v4774 = vsel %vm4730, %v3365, %v3921
    %v4775 = vsel %vm4730, %v3366, %v3923
    %v4776 = vsel %vm4730, %v3367, %v3925
    %v4777 = vsel %vm4730, %v3368, %v3927
    %v4778 = vsel %vm4730, %v3369, %v3929
    %v4779 = vsel %vm4730, %v3370, %v3931
    %v4780 = vsel %vm4730, %v3371, %v3933
    %v4781 = vsel %vm4730, %v3372, %v3935
    %v4782 = vsel %vm4730, %v3373, %v3937
    %v4783 = vsel %vm4730, %v3374, %v3939
    %v4784 = vsel %vm4730, %v3375, %v3941
    %v4785 = vsel %vm4730, %v3376, %v3943
    %v4786 = vsel %vm4730, %v3377, %v3945
    %v4787 = vsel %vm4730, %v3378, %v3947
    %v4788 = vsel %vm4730, %v3379, %v3949
    %v4789 = vsel %vm4730, %v3380, %v3951
    %v4790 = vsel %vm4730, %v3381, %v3953
    %v4791 = vsel %vm4730, %v3382, %v3955
    %v4792 = vsel %vm4730, %v3383, %v3957
    %v4793 = vsel %vm4730, %v3384, %v3959
    %v4794 = vsel %vm4730, %v3385, %v3961
    %v4795 = vsel %vm4730, %v3386, %v3963
    %v4796 = vsel %vm4730, %v3387, %v3965
    %v4797 = vsel %vm4730, %v3388, %v3967
    %v4798 = vsel %vm4730, %v3389, %v3969
    %v4799 = vsel %vm4730, %v3390, %v3971
    %v4800 = vsel %vm4730, %v3391, %v3973
    %v4801 = vsel %vm4730, %v3392, %v3975
    %v4802 = vsel %vm4730, %v3393, %v3977
    %v4803 = vsel %vm4730, %v3394, %v3979
    %v4804 = vsel %vm4730, %v3395, %v3981
    %v4805 = vsel %vm4730, %v3396, %v3983
    %v4806 = vsel %vm4730, %v3397, %v3985
    %v4807 = vsel %vm4730, %v3398, %v3987
    %v4808 = vsel %vm4730, %v3399, %v3989
    %v4809 = vsel %vm4730, %v3400, %v3991
    %v4810 = vsel %vm4730, %v3401, %v3993
    %v4811 = vsel %vm4730, %v3402, %v3995
    %v4812 = vsel %vm4730, %v3403, %v3997
    %v4813 = vsel %vm4730, %v3404, %v3999
    %v4814 = vsel %vm4730, %v3405, %v4001
    %v4815 = vsel %vm4730, %v3406, %v4003
    %v4816 = vsel %vm4730, %v3407, %v4005
    %v4817 = vsel %vm4730, %v3408, %v4007
    %v4818 = vsel %vm4730, %v3409, %v4009
    %v4819 = vsel %vm4730, %v3410, %v4011
    %v4820 = vsel %vm4730, %v3411, %v4013
    %v4821 = vsel %vm4730, %v3412, %v4015
    %v4822 = vsel %vm4730, %v3413, %v4017
    %v4823 = vsel %vm4730, %v3414, %v4019
    %v4824 = vsel %vm4730, %v3415, %v4021
    %v4825 = vsel %vm4730, %v3416, %v4023
    %v4826 = vsel %vm4730, %v3417, %v4025
    %v4827 = vsel %vm4730, %v3418, %v4027
    %v4828 = vsel %vm4730, %v3419, %v4029
    %v4829 = vsel %vm4730, %v3420, %v4031
    %v4830 = vsel %vm4730, %v3421, %v4033
    %v4831 = vsel %vm4730, %v3422, %v4035
    %v4832 = vsel %vm4730, %v3423, %v4037
    %v4833 = vsel %vm4730, %v3424, %v4039
    %v4834 = vsel %vm4730, %v3425, %v4041
    %v4835 = vsel %vm4730, %v3426, %v4043
    %v4836 = vsel %vm4730, %v3427, %v4045
    %v4837 = vsel %vm4730, %v3428, %v4047
    %v4838 = vsel %vm4730, %v3429, %v4049
    %v4839 = vsel %vm4730, %v3430, %v4051
    %v4840 = vsel %vm4730, %v3431, %v4053
    %v4841 = vsel %vm4730, %v3432, %v4055
    %v4842 = vsel %vm4730, %v3433, %v4057
    %v4843 = vsel %vm4730, %v3434, %v4059
    %v4844 = vsel %vm4730, %v3435, %v4061
    %v4845 = vsel %vm4730, %v3436, %v4063
    %v4846 = vsel %vm4730, %v3437, %v4065
    %v4847 = vsel %vm4730, %v3438, %v4067
    %v4848 = vsel %vm4730, %v3439, %v4069
    %v4849 = vsel %vm4730, %v3440, %v4071
    %v4850 = vsel %vm4730, %v3441, %v4073
    %v4851 = vsel %vm4730, %v3442, %v4075
    %v4852 = vsel %vm4730, %v3443, %v4077
    %v4853 = vsel %vm4730, %v3444, %v4079
    %v4854 = vsel %vm4730, %v3445, %v4081
    %v4855 = vsel %vm4730, %v3446, %v4083
    %v4856 = vsel %vm4730, %v3447, %v4085
    %v4857 = vsel %vm4730, %v3448, %v4087
    %v4858 = vsel %vm4730, %v3449, %v4089
    %vm4859 = vcmask 523264
    %v4860 = vsel %vm4859, %v4731, %v4347
    %v4861 = vsel %vm4859, %v4732, %v4349
    %v4862 = vsel %vm4859, %v4733, %v4351
    %v4863 = vsel %vm4859, %v4734, %v4353
    %v4864 = vsel %vm4859, %v4735, %v4355
    %v4865 = vsel %vm4859, %v4736, %v4357
    %v4866 = vsel %vm4859, %v4737, %v4359
    %v4867 = vsel %vm4859, %v4738, %v4361
    %v4868 = vsel %vm4859, %v4739, %v4363
    %v4869 = vsel %vm4859, %v4740, %v4365
    %v4870 = vsel %vm4859, %v4741, %v4367
    %v4871 = vsel %vm4859, %v4742, %v4369
    %v4872 = vsel %vm4859, %v4743, %v4371
    %v4873 = vsel %vm4859, %v4744, %v4373
    %v4874 = vsel %vm4859, %v4745, %v4375
    %v4875 = vsel %vm4859, %v4746, %v4377
    %v4876 = vsel %vm4859, %v4747, %v4379
    %v4877 = vsel %vm4859, %v4748, %v4381
    %v4878 = vsel %vm4859, %v4749, %v4383
    %v4879 = vsel %vm4859, %v4750, %v4385
    %v4880 = vsel %vm4859, %v4751, %v4387
    %v4881 = vsel %vm4859, %v4752, %v4389
    %v4882 = vsel %vm4859, %v4753, %v4391
    %v4883 = vsel %vm4859, %v4754, %v4393
    %v4884 = vsel %vm4859, %v4755, %v4395
    %v4885 = vsel %vm4859, %v4756, %v4397
    %v4886 = vsel %vm4859, %v4757, %v4399
    %v4887 = vsel %vm4859, %v4758, %v4401
    %v4888 = vsel %vm4859, %v4759, %v4403
    %v4889 = vsel %vm4859, %v4760, %v4405
    %v4890 = vsel %vm4859, %v4761, %v4407
    %v4891 = vsel %vm4859, %v4762, %v4409
    %v4892 = vsel %vm4859, %v4763, %v4411
    %v4893 = vsel %vm4859, %v4764, %v4413
    %v4894 = vsel %vm4859, %v4765, %v4415
    %v4895 = vsel %vm4859, %v4766, %v4417
    %v4896 = vsel %vm4859, %v4767, %v4419
    %v4897 = vsel %vm4859, %v4768, %v4421
    %v4898 = vsel %vm4859, %v4769, %v4423
    %v4899 = vsel %vm4859, %v4770, %v4425
    %v4900 = vsel %vm4859, %v4771, %v4427
    %v4901 = vsel %vm4859, %v4772, %v4429
    %v4902 = vsel %vm4859, %v4773, %v4431
    %v4903 = vsel %vm4859, %v4774, %v4433
    %v4904 = vsel %vm4859, %v4775, %v4435
    %v4905 = vsel %vm4859, %v4776, %v4437
    %v4906 = vsel %vm4859, %v4777, %v4439
    %v4907 = vsel %vm4859, %v4778, %v4441
    %v4908 = vsel %vm4859, %v4779, %v4443
    %v4909 = vsel %vm4859, %v4780, %v4445
    %v4910 = vsel %vm4859, %v4781, %v4447
    %v4911 = vsel %vm4859, %v4782, %v4449
    %v4912 = vsel %vm4859, %v4783, %v4451
    %v4913 = vsel %vm4859, %v4784, %v4453
    %v4914 = vsel %vm4859, %v4785, %v4455
    %v4915 = vsel %vm4859, %v4786, %v4457
    %v4916 = vsel %vm4859, %v4787, %v4459
    %v4917 = vsel %vm4859, %v4788, %v4461
    %v4918 = vsel %vm4859, %v4789, %v4463
    %v4919 = vsel %vm4859, %v4790, %v4465
    %v4920 = vsel %vm4859, %v4791, %v4467
    %v4921 = vsel %vm4859, %v4792, %v4469
    %v4922 = vsel %vm4859, %v4793, %v4471
    %v4923 = vsel %vm4859, %v4794, %v4473
    %v4924 = vsel %vm4859, %v4795, %v4475
    %v4925 = vsel %vm4859, %v4796, %v4477
    %v4926 = vsel %vm4859, %v4797, %v4479
    %v4927 = vsel %vm4859, %v4798, %v4481
    %v4928 = vsel %vm4859, %v4799, %v4483
    %v4929 = vsel %vm4859, %v4800, %v4485
    %v4930 = vsel %vm4859, %v4801, %v4487
    %v4931 = vsel %vm4859, %v4802, %v4489
    %v4932 = vsel %vm4859, %v4803, %v4491
    %v4933 = vsel %vm4859, %v4804, %v4493
    %v4934 = vsel %vm4859, %v4805, %v4495
    %v4935 = vsel %vm4859, %v4806, %v4497
    %v4936 = vsel %vm4859, %v4807, %v4499
    %v4937 = vsel %vm4859, %v4808, %v4501
    %v4938 = vsel %vm4859, %v4809, %v4503
    %v4939 = vsel %vm4859, %v4810, %v4505
    %v4940 = vsel %vm4859, %v4811, %v4507
    %v4941 = vsel %vm4859, %v4812, %v4509
    %v4942 = vsel %vm4859, %v4813, %v4511
    %v4943 = vsel %vm4859, %v4814, %v4513
    %v4944 = vsel %vm4859, %v4815, %v4515
    %v4945 = vsel %vm4859, %v4816, %v4517
    %v4946 = vsel %vm4859, %v4817, %v4519
    %v4947 = vsel %vm4859, %v4818, %v4521
    %v4948 = vsel %vm4859, %v4819, %v4523
    %v4949 = vsel %vm4859, %v4820, %v4525
    %v4950 = vsel %vm4859, %v4821, %v4527
    %v4951 = vsel %vm4859, %v4822, %v4529
    %v4952 = vsel %vm4859, %v4823, %v4531
    %v4953 = vsel %vm4859, %v4824, %v4533
    %v4954 = vsel %vm4859, %v4825, %v4535
    %v4955 = vsel %vm4859, %v4826, %v4537
    %v4956 = vsel %vm4859, %v4827, %v4539
    %v4957 = vsel %vm4859, %v4828, %v4541
    %v4958 = vsel %vm4859, %v4829, %v4543
    %v4959 = vsel %vm4859, %v4830, %v4545
    %v4960 = vsel %vm4859, %v4831, %v4547
    %v4961 = vsel %vm4859, %v4832, %v4549
    %v4962 = vsel %vm4859, %v4833, %v4551
    %v4963 = vsel %vm4859, %v4834, %v4553
    %v4964 = vsel %vm4859, %v4835, %v4555
    %v4965 = vsel %vm4859, %v4836, %v4557
    %v4966 = vsel %vm4859, %v4837, %v4559
    %v4967 = vsel %vm4859, %v4838, %v4561
    %v4968 = vsel %vm4859, %v4839, %v4563
    %v4969 = vsel %vm4859, %v4840, %v4565
    %v4970 = vsel %vm4859, %v4841, %v4567
    %v4971 = vsel %vm4859, %v4842, %v4569
    %v4972 = vsel %vm4859, %v4843, %v4571
    %v4973 = vsel %vm4859, %v4844, %v4573
    %v4974 = vsel %vm4859, %v4845, %v4575
    %v4975 = vsel %vm4859, %v4846, %v4577
    %v4976 = vsel %vm4859, %v4847, %v4579
    %v4977 = vsel %vm4859, %v4848, %v4581
    %v4978 = vsel %vm4859, %v4849, %v4583
    %v4979 = vsel %vm4859, %v4850, %v4585
    %v4980 = vsel %vm4859, %v4851, %v4587
    %v4981 = vsel %vm4859, %v4852, %v4589
    %v4982 = vsel %vm4859, %v4853, %v4591
    %v4983 = vsel %vm4859, %v4854, %v4593
    %v4984 = vsel %vm4859, %v4855, %v4595
    %v4985 = vsel %vm4859, %v4856, %v4597
    %v4986 = vsel %vm4859, %v4857, %v4599
    %v4987 = vsel %vm4859, %v4858, %v4601
    %v4988 = vld [vmem:[%s3] sm:$0xff]
    %v4989 = vld [vmem:[%s3 + $0x8] sm:$0xff]
    %v4990 = vld [vmem:[%s3 + $0x10] sm:$0xff]
    %v4991 = vld [vmem:[%s3 + $0x18] sm:$0xff]
    %v4992 = vld [vmem:[%s3 + $0x20] sm:$0xff]
    %v4993 = vld [vmem:[%s3 + $0x28] sm:$0xff]
    %v4994 = vld [vmem:[%s3 + $0x30] sm:$0xff]
    %v4995 = vld [vmem:[%s3 + $0x38] sm:$0xff]
    %v4996 = vld [vmem:[%s3 + $0x40] sm:$0xff]
    %v4997 = vld [vmem:[%s3 + $0x48] sm:$0xff]
    %v4998 = vld [vmem:[%s3 + $0x50] sm:$0xff]
    %v4999 = vld [vmem:[%s3 + $0x58] sm:$0xff]
    %v5000 = vld [vmem:[%s4] sm:$0x1]
    %v5002 = vlaneseq
    %v5003 = vshrl.u32 %v5002, 7
    %v5004 = vsub.s32 0, %v5003
    %v5005 = vrot.slane %v5000, %v5004
    %vm5007 = vcmask 785408
    %v5009 = vsel %vm5007, %v4860, 0
    %v5012 = vsel %vm5007, %v4861, 0
    %v5015 = vsel %vm5007, %v4862, 0
    %v5018 = vsel %vm5007, %v4863, 0
    %v5021 = vsel %vm5007, %v4864, 0
    %v5024 = vsel %vm5007, %v4865, 0
    %v5027 = vsel %vm5007, %v4866, 0
    %v5030 = vsel %vm5007, %v4867, 0
    %v5033 = vsel %vm5007, %v4868, 0
    %v5036 = vsel %vm5007, %v4869, 0
    %v5039 = vsel %vm5007, %v4870, 0
    %v5042 = vsel %vm5007, %v4871, 0
    %v5045 = vsel %vm5007, %v4872, 0
    %v5048 = vsel %vm5007, %v4873, 0
    %v5051 = vsel %vm5007, %v4874, 0
    %v5054 = vsel %vm5007, %v4875, 0
    %v5057 = vsel %vm5007, %v4876, 0
    %v5060 = vsel %vm5007, %v4877, 0
    %v5063 = vsel %vm5007, %v4878, 0
    %v5066 = vsel %vm5007, %v4879, 0
    %v5069 = vsel %vm5007, %v4880, 0
    %v5072 = vsel %vm5007, %v4881, 0
    %v5075 = vsel %vm5007, %v4882, 0
    %v5078 = vsel %vm5007, %v4883, 0
    %v5081 = vsel %vm5007, %v4884, 0
    %v5084 = vsel %vm5007, %v4885, 0
    %v5087 = vsel %vm5007, %v4886, 0
    %v5090 = vsel %vm5007, %v4887, 0
    %v5093 = vsel %vm5007, %v4888, 0
    %v5096 = vsel %vm5007, %v4889, 0
    %v5099 = vsel %vm5007, %v4890, 0
    %v5102 = vsel %vm5007, %v4891, 0
    %v5105 = vsel %vm5007, %v4892, 0
    %v5108 = vsel %vm5007, %v4893, 0
    %v5111 = vsel %vm5007, %v4894, 0
    %v5114 = vsel %vm5007, %v4895, 0
    %v5117 = vsel %vm5007, %v4896, 0
    %v5120 = vsel %vm5007, %v4897, 0
    %v5123 = vsel %vm5007, %v4898, 0
    %v5126 = vsel %vm5007, %v4899, 0
    %v5129 = vsel %vm5007, %v4900, 0
    %v5132 = vsel %vm5007, %v4901, 0
    %v5135 = vsel %vm5007, %v4902, 0
    %v5138 = vsel %vm5007, %v4903, 0
    %v5141 = vsel %vm5007, %v4904, 0
    %v5144 = vsel %vm5007, %v4905, 0
    %v5147 = vsel %vm5007, %v4906, 0
    %v5150 = vsel %vm5007, %v4907, 0
    %v5153 = vsel %vm5007, %v4908, 0
    %v5156 = vsel %vm5007, %v4909, 0
    %v5159 = vsel %vm5007, %v4910, 0
    %v5162 = vsel %vm5007, %v4911, 0
    %v5165 = vsel %vm5007, %v4912, 0
    %v5168 = vsel %vm5007, %v4913, 0
    %v5171 = vsel %vm5007, %v4914, 0
    %v5174 = vsel %vm5007, %v4915, 0
    %v5177 = vsel %vm5007, %v4916, 0
    %v5180 = vsel %vm5007, %v4917, 0
    %v5183 = vsel %vm5007, %v4918, 0
    %v5186 = vsel %vm5007, %v4919, 0
    %v5189 = vsel %vm5007, %v4920, 0
    %v5192 = vsel %vm5007, %v4921, 0
    %v5195 = vsel %vm5007, %v4922, 0
    %v5198 = vsel %vm5007, %v4923, 0
    %v5201 = vsel %vm5007, %v4924, 0
    %v5204 = vsel %vm5007, %v4925, 0
    %v5207 = vsel %vm5007, %v4926, 0
    %v5210 = vsel %vm5007, %v4927, 0
    %v5213 = vsel %vm5007, %v4928, 0
    %v5216 = vsel %vm5007, %v4929, 0
    %v5219 = vsel %vm5007, %v4930, 0
    %v5222 = vsel %vm5007, %v4931, 0
    %v5225 = vsel %vm5007, %v4932, 0
    %v5228 = vsel %vm5007, %v4933, 0
    %v5231 = vsel %vm5007, %v4934, 0
    %v5234 = vsel %vm5007, %v4935, 0
    %v5237 = vsel %vm5007, %v4936, 0
    %v5240 = vsel %vm5007, %v4937, 0
    %v5243 = vsel %vm5007, %v4938, 0
    %v5246 = vsel %vm5007, %v4939, 0
    %v5249 = vsel %vm5007, %v4940, 0
    %v5252 = vsel %vm5007, %v4941, 0
    %v5255 = vsel %vm5007, %v4942, 0
    %v5258 = vsel %vm5007, %v4943, 0
    %v5261 = vsel %vm5007, %v4944, 0
    %v5264 = vsel %vm5007, %v4945, 0
    %v5267 = vsel %vm5007, %v4946, 0
    %v5270 = vsel %vm5007, %v4947, 0
    %v5273 = vsel %vm5007, %v4948, 0
    %v5276 = vsel %vm5007, %v4949, 0
    %v5279 = vsel %vm5007, %v4950, 0
    %v5282 = vsel %vm5007, %v4951, 0
    %v5285 = vsel %vm5007, %v4952, 0
    %v5288 = vsel %vm5007, %v4953, 0
    %v5291 = vsel %vm5007, %v4954, 0
    %v5294 = vsel %vm5007, %v4955, 0
    %v5297 = vsel %vm5007, %v4956, 0
    %v5300 = vsel %vm5007, %v4957, 0
    %v5303 = vsel %vm5007, %v4958, 0
    %v5306 = vsel %vm5007, %v4959, 0
    %v5309 = vsel %vm5007, %v4960, 0
    %v5312 = vsel %vm5007, %v4961, 0
    %v5315 = vsel %vm5007, %v4962, 0
    %v5318 = vsel %vm5007, %v4963, 0
    %v5321 = vsel %vm5007, %v4964, 0
    %v5324 = vsel %vm5007, %v4965, 0
    %v5327 = vsel %vm5007, %v4966, 0
    %v5330 = vsel %vm5007, %v4967, 0
    %v5333 = vsel %vm5007, %v4968, 0
    %v5336 = vsel %vm5007, %v4969, 0
    %v5339 = vsel %vm5007, %v4970, 0
    %v5342 = vsel %vm5007, %v4971, 0
    %v5345 = vsel %vm5007, %v4972, 0
    %v5348 = vsel %vm5007, %v4973, 0
    %v5351 = vsel %vm5007, %v4974, 0
    %v5354 = vsel %vm5007, %v4975, 0
    %v5357 = vsel %vm5007, %v4976, 0
    %v5360 = vsel %vm5007, %v4977, 0
    %v5363 = vsel %vm5007, %v4978, 0
    %v5366 = vsel %vm5007, %v4979, 0
    %v5369 = vsel %vm5007, %v4980, 0
    %v5372 = vsel %vm5007, %v4981, 0
    %v5375 = vsel %vm5007, %v4982, 0
    %v5378 = vsel %vm5007, %v4983, 0
    %v5381 = vsel %vm5007, %v4984, 0
    %v5384 = vsel %vm5007, %v4985, 0
    %v5387 = vsel %vm5007, %v4986, 0
    %v5390 = vsel %vm5007, %v4987, 0
    %5392 = vmatprep.subr.mxu0 0.0
    %5393 = vmatpush1.msra.mxu0 0.0
    %5394 = vmatprep.subr.mxu0 0.0
    %5395 = vmatpush1.msra.mxu0 0.0
    %5396 = vmatprep.subr.mxu0 0.0
    %5397 = vmatpush1.msra.mxu0 0.0
    %5398 = vmatprep.subr.mxu0 0.0
    %5399 = vmatpush1.msra.mxu0 0.0
    %5400 = vmatprep.subr.mxu0 0.0
    %5401 = vmatpush1.msra.mxu0 %v4999
    %5402 = vmatprep.subr.mxu0 0.0
    %5403 = vmatpush1.msra.mxu0 %v4998
    %5404 = vmatprep.subr.mxu0 0.0
    %5405 = vmatpush1.msra.mxu0 %v4997
    %5406 = vmatprep.subr.mxu0 0.0
    %5407 = vmatpush1.msra.mxu0 %v4996
    %5408 = vmatprep.subr.mxu0 0.0
    %5409 = vmatpush1.msra.mxu0 %v4995
    %5410 = vmatprep.subr.mxu0 0.0
    %5411 = vmatpush1.msra.mxu0 %v4994
    %5412 = vmatprep.subr.mxu0 0.0
    %5413 = vmatpush1.msra.mxu0 %v4993
    %5414 = vmatprep.subr.mxu0 0.0
    %5415 = vmatpush1.msra.mxu0 %v4992
    %5416 = vmatprep.subr.mxu0 0.0
    %5417 = vmatpush1.msra.mxu0 %v4991
    %5418 = vmatprep.subr.mxu0 0.0
    %5419 = vmatpush1.msra.mxu0 %v4990
    %5420 = vmatprep.subr.mxu0 0.0
    %5421 = vmatpush1.msra.mxu0 %v4989
    %5422 = vmatprep.subr.mxu0 0.0
    %5423 = vmatpush1.msra.mxu0 %v4988
    %5424 = vmatprep.subr.mxu0 0.0
    %5425 = vmatpush2.msra.mxu0 0.0
    %5426 = vmatprep.subr.mxu0 0.0
    %5427 = vmatpush2.msra.mxu0 0.0
    %5428 = vmatprep.subr.mxu0 0.0
    %5429 = vmatpush2.msra.mxu0 0.0
    %5430 = vmatprep.subr.mxu0 0.0
    %5431 = vmatpush2.msra.mxu0 0.0
    %5432 = vmatprep.subr.mxu0 0.0
    %5433 = vmatpush2.msra.mxu0 0.0
    %5434 = vmatprep.subr.mxu0 0.0
    %5435 = vmatpush2.msra.mxu0 0.0
    %5436 = vmatprep.subr.mxu0 0.0
    %5437 = vmatpush2.msra.mxu0 0.0
    %5438 = vmatprep.subr.mxu0 0.0
    %5439 = vmatpush2.msra.mxu0 0.0
    %5440 = vmatprep.subr.mxu0 0.0
    %5441 = vmatpush2.msra.mxu0 0.0
    %5442 = vmatprep.subr.mxu0 0.0
    %5443 = vmatpush2.msra.mxu0 0.0
    %5444 = vmatprep.subr.mxu0 0.0
    %5445 = vmatpush2.msra.mxu0 0.0
    %5446 = vmatprep.subr.mxu0 0.0
    %5447 = vmatpush2.msra.mxu0 0.0
    %5448 = vmatprep.subr.mxu0 0.0
    %5449 = vmatpush2.msra.mxu0 0.0
    %5450 = vmatprep.subr.mxu0 0.0
    %5451 = vmatpush2.msra.mxu0 0.0
    %5452 = vmatprep.subr.mxu0 0.0
    %5453 = vmatpush2.msra.mxu0 0.0
    %5454 = vmatprep.subr.mxu0 0.0
    %5455 = vmatpush2.msra.mxu0 0.0
    %5456 = vmatprep.mubr.f32.mxu0 0.0
    %5457 = vmatmul.mubr.f32.gmra.mxu0 %v5009
    %v5458 = vpop.f32.mrf.mxu0
    %v5459 = vadd.f32 %v5005, %v5458
    %v5460 = vpop.f32.mrf.mxu0
    %5461 = vmatprep.mubr.f32.mxu0 0.0
    %5462 = vmatmul.mubr.f32.gmra.mxu0 %v5012
    %v5463 = vpop.f32.mrf.mxu0
    %v5464 = vadd.f32 %v5005, %v5463
    %v5465 = vpop.f32.mrf.mxu0
    %5466 = vmatprep.mubr.f32.mxu0 0.0
    %5467 = vmatmul.mubr.f32.gmra.mxu0 %v5015
    %v5468 = vpop.f32.mrf.mxu0
    %v5469 = vadd.f32 %v5005, %v5468
    %v5470 = vpop.f32.mrf.mxu0
    %5471 = vmatprep.mubr.f32.mxu0 0.0
    %5472 = vmatmul.mubr.f32.gmra.mxu0 %v5018
    %v5473 = vpop.f32.mrf.mxu0
    %v5474 = vadd.f32 %v5005, %v5473
    %v5475 = vpop.f32.mrf.mxu0
    %5476 = vmatprep.mubr.f32.mxu0 0.0
    %5477 = vmatmul.mubr.f32.gmra.mxu0 %v5021
    %v5478 = vpop.f32.mrf.mxu0
    %v5479 = vadd.f32 %v5005, %v5478
    %v5480 = vpop.f32.mrf.mxu0
    %5481 = vmatprep.mubr.f32.mxu0 0.0
    %5482 = vmatmul.mubr.f32.gmra.mxu0 %v5024
    %v5483 = vpop.f32.mrf.mxu0
    %v5484 = vadd.f32 %v5005, %v5483
    %v5485 = vpop.f32.mrf.mxu0
    %5486 = vmatprep.mubr.f32.mxu0 0.0
    %5487 = vmatmul.mubr.f32.gmra.mxu0 %v5027
    %v5488 = vpop.f32.mrf.mxu0
    %v5489 = vadd.f32 %v5005, %v5488
    %v5490 = vpop.f32.mrf.mxu0
    %5491 = vmatprep.mubr.f32.mxu0 0.0
    %5492 = vmatmul.mubr.f32.gmra.mxu0 %v5030
    %v5493 = vpop.f32.mrf.mxu0
    %v5494 = vadd.f32 %v5005, %v5493
    %v5495 = vpop.f32.mrf.mxu0
    %5496 = vmatprep.mubr.f32.mxu0 0.0
    %5497 = vmatmul.mubr.f32.gmra.mxu0 %v5033
    %v5498 = vpop.f32.mrf.mxu0
    %v5499 = vadd.f32 %v5005, %v5498
    %v5500 = vpop.f32.mrf.mxu0
    %5501 = vmatprep.mubr.f32.mxu0 0.0
    %5502 = vmatmul.mubr.f32.gmra.mxu0 %v5036
    %v5503 = vpop.f32.mrf.mxu0
    %v5504 = vadd.f32 %v5005, %v5503
    %v5505 = vpop.f32.mrf.mxu0
    %5506 = vmatprep.mubr.f32.mxu0 0.0
    %5507 = vmatmul.mubr.f32.gmra.mxu0 %v5039
    %v5508 = vpop.f32.mrf.mxu0
    %v5509 = vadd.f32 %v5005, %v5508
    %v5510 = vpop.f32.mrf.mxu0
    %5511 = vmatprep.mubr.f32.mxu0 0.0
    %5512 = vmatmul.mubr.f32.gmra.mxu0 %v5042
    %v5513 = vpop.f32.mrf.mxu0
    %v5514 = vadd.f32 %v5005, %v5513
    %v5515 = vpop.f32.mrf.mxu0
    %5516 = vmatprep.mubr.f32.mxu0 0.0
    %5517 = vmatmul.mubr.f32.gmra.mxu0 %v5045
    %v5518 = vpop.f32.mrf.mxu0
    %v5519 = vadd.f32 %v5005, %v5518
    %v5520 = vpop.f32.mrf.mxu0
    %5521 = vmatprep.mubr.f32.mxu0 0.0
    %5522 = vmatmul.mubr.f32.gmra.mxu0 %v5048
    %v5523 = vpop.f32.mrf.mxu0
    %v5524 = vadd.f32 %v5005, %v5523
    %v5525 = vpop.f32.mrf.mxu0
    %5526 = vmatprep.mubr.f32.mxu0 0.0
    %5527 = vmatmul.mubr.f32.gmra.mxu0 %v5051
    %v5528 = vpop.f32.mrf.mxu0
    %v5529 = vadd.f32 %v5005, %v5528
    %v5530 = vpop.f32.mrf.mxu0
    %5531 = vmatprep.mubr.f32.mxu0 0.0
    %5532 = vmatmul.mubr.f32.gmra.mxu0 %v5054
    %v5533 = vpop.f32.mrf.mxu0
    %v5534 = vadd.f32 %v5005, %v5533
    %v5535 = vpop.f32.mrf.mxu0
    %5536 = vmatprep.mubr.f32.mxu0 0.0
    %5537 = vmatmul.mubr.f32.gmra.mxu0 %v5057
    %v5538 = vpop.f32.mrf.mxu0
    %v5539 = vadd.f32 %v5005, %v5538
    %v5540 = vpop.f32.mrf.mxu0
    %5541 = vmatprep.mubr.f32.mxu0 0.0
    %5542 = vmatmul.mubr.f32.gmra.mxu0 %v5060
    %v5543 = vpop.f32.mrf.mxu0
    %v5544 = vadd.f32 %v5005, %v5543
    %v5545 = vpop.f32.mrf.mxu0
    %5546 = vmatprep.mubr.f32.mxu0 0.0
    %5547 = vmatmul.mubr.f32.gmra.mxu0 %v5063
    %v5548 = vpop.f32.mrf.mxu0
    %v5549 = vadd.f32 %v5005, %v5548
    %v5550 = vpop.f32.mrf.mxu0
    %5551 = vmatprep.mubr.f32.mxu0 0.0
    %5552 = vmatmul.mubr.f32.gmra.mxu0 %v5066
    %v5553 = vpop.f32.mrf.mxu0
    %v5554 = vadd.f32 %v5005, %v5553
    %v5555 = vpop.f32.mrf.mxu0
    %5556 = vmatprep.mubr.f32.mxu0 0.0
    %5557 = vmatmul.mubr.f32.gmra.mxu0 %v5069
    %v5558 = vpop.f32.mrf.mxu0
    %v5559 = vadd.f32 %v5005, %v5558
    %v5560 = vpop.f32.mrf.mxu0
    %5561 = vmatprep.mubr.f32.mxu0 0.0
    %5562 = vmatmul.mubr.f32.gmra.mxu0 %v5072
    %v5563 = vpop.f32.mrf.mxu0
    %v5564 = vadd.f32 %v5005, %v5563
    %v5565 = vpop.f32.mrf.mxu0
    %5566 = vmatprep.mubr.f32.mxu0 0.0
    %5567 = vmatmul.mubr.f32.gmra.mxu0 %v5075
    %v5568 = vpop.f32.mrf.mxu0
    %v5569 = vadd.f32 %v5005, %v5568
    %v5570 = vpop.f32.mrf.mxu0
    %5571 = vmatprep.mubr.f32.mxu0 0.0
    %5572 = vmatmul.mubr.f32.gmra.mxu0 %v5078
    %v5573 = vpop.f32.mrf.mxu0
    %v5574 = vadd.f32 %v5005, %v5573
    %v5575 = vpop.f32.mrf.mxu0
    %5576 = vmatprep.mubr.f32.mxu0 0.0
    %5577 = vmatmul.mubr.f32.gmra.mxu0 %v5081
    %v5578 = vpop.f32.mrf.mxu0
    %v5579 = vadd.f32 %v5005, %v5578
    %v5580 = vpop.f32.mrf.mxu0
    %5581 = vmatprep.mubr.f32.mxu0 0.0
    %5582 = vmatmul.mubr.f32.gmra.mxu0 %v5084
    %v5583 = vpop.f32.mrf.mxu0
    %v5584 = vadd.f32 %v5005, %v5583
    %v5585 = vpop.f32.mrf.mxu0
    %5586 = vmatprep.mubr.f32.mxu0 0.0
    %5587 = vmatmul.mubr.f32.gmra.mxu0 %v5087
    %v5588 = vpop.f32.mrf.mxu0
    %v5589 = vadd.f32 %v5005, %v5588
    %v5590 = vpop.f32.mrf.mxu0
    %5591 = vmatprep.mubr.f32.mxu0 0.0
    %5592 = vmatmul.mubr.f32.gmra.mxu0 %v5090
    %v5593 = vpop.f32.mrf.mxu0
    %v5594 = vadd.f32 %v5005, %v5593
    %v5595 = vpop.f32.mrf.mxu0
    %5596 = vmatprep.mubr.f32.mxu0 0.0
    %5597 = vmatmul.mubr.f32.gmra.mxu0 %v5093
    %v5598 = vpop.f32.mrf.mxu0
    %v5599 = vadd.f32 %v5005, %v5598
    %v5600 = vpop.f32.mrf.mxu0
    %5601 = vmatprep.mubr.f32.mxu0 0.0
    %5602 = vmatmul.mubr.f32.gmra.mxu0 %v5096
    %v5603 = vpop.f32.mrf.mxu0
    %v5604 = vadd.f32 %v5005, %v5603
    %v5605 = vpop.f32.mrf.mxu0
    %5606 = vmatprep.mubr.f32.mxu0 0.0
    %5607 = vmatmul.mubr.f32.gmra.mxu0 %v5099
    %v5608 = vpop.f32.mrf.mxu0
    %v5609 = vadd.f32 %v5005, %v5608
    %v5610 = vpop.f32.mrf.mxu0
    %5611 = vmatprep.mubr.f32.mxu0 0.0
    %5612 = vmatmul.mubr.f32.gmra.mxu0 %v5102
    %v5613 = vpop.f32.mrf.mxu0
    %v5614 = vadd.f32 %v5005, %v5613
    %v5615 = vpop.f32.mrf.mxu0
    %5616 = vmatprep.mubr.f32.mxu0 0.0
    %5617 = vmatmul.mubr.f32.gmra.mxu0 %v5105
    %v5618 = vpop.f32.mrf.mxu0
    %v5619 = vadd.f32 %v5005, %v5618
    %v5620 = vpop.f32.mrf.mxu0
    %5621 = vmatprep.mubr.f32.mxu0 0.0
    %5622 = vmatmul.mubr.f32.gmra.mxu0 %v5108
    %v5623 = vpop.f32.mrf.mxu0
    %v5624 = vadd.f32 %v5005, %v5623
    %v5625 = vpop.f32.mrf.mxu0
    %5626 = vmatprep.mubr.f32.mxu0 0.0
    %5627 = vmatmul.mubr.f32.gmra.mxu0 %v5111
    %v5628 = vpop.f32.mrf.mxu0
    %v5629 = vadd.f32 %v5005, %v5628
    %v5630 = vpop.f32.mrf.mxu0
    %5631 = vmatprep.mubr.f32.mxu0 0.0
    %5632 = vmatmul.mubr.f32.gmra.mxu0 %v5114
    %v5633 = vpop.f32.mrf.mxu0
    %v5634 = vadd.f32 %v5005, %v5633
    %v5635 = vpop.f32.mrf.mxu0
    %5636 = vmatprep.mubr.f32.mxu0 0.0
    %5637 = vmatmul.mubr.f32.gmra.mxu0 %v5117
    %v5638 = vpop.f32.mrf.mxu0
    %v5639 = vadd.f32 %v5005, %v5638
    %v5640 = vpop.f32.mrf.mxu0
    %5641 = vmatprep.mubr.f32.mxu0 0.0
    %5642 = vmatmul.mubr.f32.gmra.mxu0 %v5120
    %v5643 = vpop.f32.mrf.mxu0
    %v5644 = vadd.f32 %v5005, %v5643
    %v5645 = vpop.f32.mrf.mxu0
    %5646 = vmatprep.mubr.f32.mxu0 0.0
    %5647 = vmatmul.mubr.f32.gmra.mxu0 %v5123
    %v5648 = vpop.f32.mrf.mxu0
    %v5649 = vadd.f32 %v5005, %v5648
    %v5650 = vpop.f32.mrf.mxu0
    %5651 = vmatprep.mubr.f32.mxu0 0.0
    %5652 = vmatmul.mubr.f32.gmra.mxu0 %v5126
    %v5653 = vpop.f32.mrf.mxu0
    %v5654 = vadd.f32 %v5005, %v5653
    %v5655 = vpop.f32.mrf.mxu0
    %5656 = vmatprep.mubr.f32.mxu0 0.0
    %5657 = vmatmul.mubr.f32.gmra.mxu0 %v5129
    %v5658 = vpop.f32.mrf.mxu0
    %v5659 = vadd.f32 %v5005, %v5658
    %v5660 = vpop.f32.mrf.mxu0
    %5661 = vmatprep.mubr.f32.mxu0 0.0
    %5662 = vmatmul.mubr.f32.gmra.mxu0 %v5132
    %v5663 = vpop.f32.mrf.mxu0
    %v5664 = vadd.f32 %v5005, %v5663
    %v5665 = vpop.f32.mrf.mxu0
    %5666 = vmatprep.mubr.f32.mxu0 0.0
    %5667 = vmatmul.mubr.f32.gmra.mxu0 %v5135
    %v5668 = vpop.f32.mrf.mxu0
    %v5669 = vadd.f32 %v5005, %v5668
    %v5670 = vpop.f32.mrf.mxu0
    %5671 = vmatprep.mubr.f32.mxu0 0.0
    %5672 = vmatmul.mubr.f32.gmra.mxu0 %v5138
    %v5673 = vpop.f32.mrf.mxu0
    %v5674 = vadd.f32 %v5005, %v5673
    %v5675 = vpop.f32.mrf.mxu0
    %5676 = vmatprep.mubr.f32.mxu0 0.0
    %5677 = vmatmul.mubr.f32.gmra.mxu0 %v5141
    %v5678 = vpop.f32.mrf.mxu0
    %v5679 = vadd.f32 %v5005, %v5678
    %v5680 = vpop.f32.mrf.mxu0
    %5681 = vmatprep.mubr.f32.mxu0 0.0
    %5682 = vmatmul.mubr.f32.gmra.mxu0 %v5144
    %v5683 = vpop.f32.mrf.mxu0
    %v5684 = vadd.f32 %v5005, %v5683
    %v5685 = vpop.f32.mrf.mxu0
    %5686 = vmatprep.mubr.f32.mxu0 0.0
    %5687 = vmatmul.mubr.f32.gmra.mxu0 %v5147
    %v5688 = vpop.f32.mrf.mxu0
    %v5689 = vadd.f32 %v5005, %v5688
    %v5690 = vpop.f32.mrf.mxu0
    %5691 = vmatprep.mubr.f32.mxu0 0.0
    %5692 = vmatmul.mubr.f32.gmra.mxu0 %v5150
    %v5693 = vpop.f32.mrf.mxu0
    %v5694 = vadd.f32 %v5005, %v5693
    %v5695 = vpop.f32.mrf.mxu0
    %5696 = vmatprep.mubr.f32.mxu0 0.0
    %5697 = vmatmul.mubr.f32.gmra.mxu0 %v5153
    %v5698 = vpop.f32.mrf.mxu0
    %v5699 = vadd.f32 %v5005, %v5698
    %v5700 = vpop.f32.mrf.mxu0
    %5701 = vmatprep.mubr.f32.mxu0 0.0
    %5702 = vmatmul.mubr.f32.gmra.mxu0 %v5156
    %v5703 = vpop.f32.mrf.mxu0
    %v5704 = vadd.f32 %v5005, %v5703
    %v5705 = vpop.f32.mrf.mxu0
    %5706 = vmatprep.mubr.f32.mxu0 0.0
    %5707 = vmatmul.mubr.f32.gmra.mxu0 %v5159
    %v5708 = vpop.f32.mrf.mxu0
    %v5709 = vadd.f32 %v5005, %v5708
    %v5710 = vpop.f32.mrf.mxu0
    %5711 = vmatprep.mubr.f32.mxu0 0.0
    %5712 = vmatmul.mubr.f32.gmra.mxu0 %v5162
    %v5713 = vpop.f32.mrf.mxu0
    %v5714 = vadd.f32 %v5005, %v5713
    %v5715 = vpop.f32.mrf.mxu0
    %5716 = vmatprep.mubr.f32.mxu0 0.0
    %5717 = vmatmul.mubr.f32.gmra.mxu0 %v5165
    %v5718 = vpop.f32.mrf.mxu0
    %v5719 = vadd.f32 %v5005, %v5718
    %v5720 = vpop.f32.mrf.mxu0
    %5721 = vmatprep.mubr.f32.mxu0 0.0
    %5722 = vmatmul.mubr.f32.gmra.mxu0 %v5168
    %v5723 = vpop.f32.mrf.mxu0
    %v5724 = vadd.f32 %v5005, %v5723
    %v5725 = vpop.f32.mrf.mxu0
    %5726 = vmatprep.mubr.f32.mxu0 0.0
    %5727 = vmatmul.mubr.f32.gmra.mxu0 %v5171
    %v5728 = vpop.f32.mrf.mxu0
    %v5729 = vadd.f32 %v5005, %v5728
    %v5730 = vpop.f32.mrf.mxu0
    %5731 = vmatprep.mubr.f32.mxu0 0.0
    %5732 = vmatmul.mubr.f32.gmra.mxu0 %v5174
    %v5733 = vpop.f32.mrf.mxu0
    %v5734 = vadd.f32 %v5005, %v5733
    %v5735 = vpop.f32.mrf.mxu0
    %5736 = vmatprep.mubr.f32.mxu0 0.0
    %5737 = vmatmul.mubr.f32.gmra.mxu0 %v5177
    %v5738 = vpop.f32.mrf.mxu0
    %v5739 = vadd.f32 %v5005, %v5738
    %v5740 = vpop.f32.mrf.mxu0
    %5741 = vmatprep.mubr.f32.mxu0 0.0
    %5742 = vmatmul.mubr.f32.gmra.mxu0 %v5180
    %v5743 = vpop.f32.mrf.mxu0
    %v5744 = vadd.f32 %v5005, %v5743
    %v5745 = vpop.f32.mrf.mxu0
    %5746 = vmatprep.mubr.f32.mxu0 0.0
    %5747 = vmatmul.mubr.f32.gmra.mxu0 %v5183
    %v5748 = vpop.f32.mrf.mxu0
    %v5749 = vadd.f32 %v5005, %v5748
    %v5750 = vpop.f32.mrf.mxu0
    %5751 = vmatprep.mubr.f32.mxu0 0.0
    %5752 = vmatmul.mubr.f32.gmra.mxu0 %v5186
    %v5753 = vpop.f32.mrf.mxu0
    %v5754 = vadd.f32 %v5005, %v5753
    %v5755 = vpop.f32.mrf.mxu0
    %5756 = vmatprep.mubr.f32.mxu0 0.0
    %5757 = vmatmul.mubr.f32.gmra.mxu0 %v5189
    %v5758 = vpop.f32.mrf.mxu0
    %v5759 = vadd.f32 %v5005, %v5758
    %v5760 = vpop.f32.mrf.mxu0
    %5761 = vmatprep.mubr.f32.mxu0 0.0
    %5762 = vmatmul.mubr.f32.gmra.mxu0 %v5192
    %v5763 = vpop.f32.mrf.mxu0
    %v5764 = vadd.f32 %v5005, %v5763
    %v5765 = vpop.f32.mrf.mxu0
    %5766 = vmatprep.mubr.f32.mxu0 0.0
    %5767 = vmatmul.mubr.f32.gmra.mxu0 %v5195
    %v5768 = vpop.f32.mrf.mxu0
    %v5769 = vadd.f32 %v5005, %v5768
    %v5770 = vpop.f32.mrf.mxu0
    %5771 = vmatprep.mubr.f32.mxu0 0.0
    %5772 = vmatmul.mubr.f32.gmra.mxu0 %v5198
    %v5773 = vpop.f32.mrf.mxu0
    %v5774 = vadd.f32 %v5005, %v5773
    %v5775 = vpop.f32.mrf.mxu0
    %5776 = vmatprep.mubr.f32.mxu0 0.0
    %5777 = vmatmul.mubr.f32.gmra.mxu0 %v5201
    %v5778 = vpop.f32.mrf.mxu0
    %v5779 = vadd.f32 %v5005, %v5778
    %v5780 = vpop.f32.mrf.mxu0
    %5781 = vmatprep.mubr.f32.mxu0 0.0
    %5782 = vmatmul.mubr.f32.gmra.mxu0 %v5204
    %v5783 = vpop.f32.mrf.mxu0
    %v5784 = vadd.f32 %v5005, %v5783
    %v5785 = vpop.f32.mrf.mxu0
    %5786 = vmatprep.mubr.f32.mxu0 0.0
    %5787 = vmatmul.mubr.f32.gmra.mxu0 %v5207
    %v5788 = vpop.f32.mrf.mxu0
    %v5789 = vadd.f32 %v5005, %v5788
    %v5790 = vpop.f32.mrf.mxu0
    %5791 = vmatprep.mubr.f32.mxu0 0.0
    %5792 = vmatmul.mubr.f32.gmra.mxu0 %v5210
    %v5793 = vpop.f32.mrf.mxu0
    %v5794 = vadd.f32 %v5005, %v5793
    %v5795 = vpop.f32.mrf.mxu0
    %5796 = vmatprep.mubr.f32.mxu0 0.0
    %5797 = vmatmul.mubr.f32.gmra.mxu0 %v5213
    %v5798 = vpop.f32.mrf.mxu0
    %v5799 = vadd.f32 %v5005, %v5798
    %v5800 = vpop.f32.mrf.mxu0
    %5801 = vmatprep.mubr.f32.mxu0 0.0
    %5802 = vmatmul.mubr.f32.gmra.mxu0 %v5216
    %v5803 = vpop.f32.mrf.mxu0
    %v5804 = vadd.f32 %v5005, %v5803
    %v5805 = vpop.f32.mrf.mxu0
    %5806 = vmatprep.mubr.f32.mxu0 0.0
    %5807 = vmatmul.mubr.f32.gmra.mxu0 %v5219
    %v5808 = vpop.f32.mrf.mxu0
    %v5809 = vadd.f32 %v5005, %v5808
    %v5810 = vpop.f32.mrf.mxu0
    %5811 = vmatprep.mubr.f32.mxu0 0.0
    %5812 = vmatmul.mubr.f32.gmra.mxu0 %v5222
    %v5813 = vpop.f32.mrf.mxu0
    %v5814 = vadd.f32 %v5005, %v5813
    %v5815 = vpop.f32.mrf.mxu0
    %5816 = vmatprep.mubr.f32.mxu0 0.0
    %5817 = vmatmul.mubr.f32.gmra.mxu0 %v5225
    %v5818 = vpop.f32.mrf.mxu0
    %v5819 = vadd.f32 %v5005, %v5818
    %v5820 = vpop.f32.mrf.mxu0
    %5821 = vmatprep.mubr.f32.mxu0 0.0
    %5822 = vmatmul.mubr.f32.gmra.mxu0 %v5228
    %v5823 = vpop.f32.mrf.mxu0
    %v5824 = vadd.f32 %v5005, %v5823
    %v5825 = vpop.f32.mrf.mxu0
    %5826 = vmatprep.mubr.f32.mxu0 0.0
    %5827 = vmatmul.mubr.f32.gmra.mxu0 %v5231
    %v5828 = vpop.f32.mrf.mxu0
    %v5829 = vadd.f32 %v5005, %v5828
    %v5830 = vpop.f32.mrf.mxu0
    %5831 = vmatprep.mubr.f32.mxu0 0.0
    %5832 = vmatmul.mubr.f32.gmra.mxu0 %v5234
    %v5833 = vpop.f32.mrf.mxu0
    %v5834 = vadd.f32 %v5005, %v5833
    %v5835 = vpop.f32.mrf.mxu0
    %5836 = vmatprep.mubr.f32.mxu0 0.0
    %5837 = vmatmul.mubr.f32.gmra.mxu0 %v5237
    %v5838 = vpop.f32.mrf.mxu0
    %v5839 = vadd.f32 %v5005, %v5838
    %v5840 = vpop.f32.mrf.mxu0
    %5841 = vmatprep.mubr.f32.mxu0 0.0
    %5842 = vmatmul.mubr.f32.gmra.mxu0 %v5240
    %v5843 = vpop.f32.mrf.mxu0
    %v5844 = vadd.f32 %v5005, %v5843
    %v5845 = vpop.f32.mrf.mxu0
    %5846 = vmatprep.mubr.f32.mxu0 0.0
    %5847 = vmatmul.mubr.f32.gmra.mxu0 %v5243
    %v5848 = vpop.f32.mrf.mxu0
    %v5849 = vadd.f32 %v5005, %v5848
    %v5850 = vpop.f32.mrf.mxu0
    %5851 = vmatprep.mubr.f32.mxu0 0.0
    %5852 = vmatmul.mubr.f32.gmra.mxu0 %v5246
    %v5853 = vpop.f32.mrf.mxu0
    %v5854 = vadd.f32 %v5005, %v5853
    %v5855 = vpop.f32.mrf.mxu0
    %5856 = vmatprep.mubr.f32.mxu0 0.0
    %5857 = vmatmul.mubr.f32.gmra.mxu0 %v5249
    %v5858 = vpop.f32.mrf.mxu0
    %v5859 = vadd.f32 %v5005, %v5858
    %v5860 = vpop.f32.mrf.mxu0
    %5861 = vmatprep.mubr.f32.mxu0 0.0
    %5862 = vmatmul.mubr.f32.gmra.mxu0 %v5252
    %v5863 = vpop.f32.mrf.mxu0
    %v5864 = vadd.f32 %v5005, %v5863
    %v5865 = vpop.f32.mrf.mxu0
    %5866 = vmatprep.mubr.f32.mxu0 0.0
    %5867 = vmatmul.mubr.f32.gmra.mxu0 %v5255
    %v5868 = vpop.f32.mrf.mxu0
    %v5869 = vadd.f32 %v5005, %v5868
    %v5870 = vpop.f32.mrf.mxu0
    %5871 = vmatprep.mubr.f32.mxu0 0.0
    %5872 = vmatmul.mubr.f32.gmra.mxu0 %v5258
    %v5873 = vpop.f32.mrf.mxu0
    %v5874 = vadd.f32 %v5005, %v5873
    %v5875 = vpop.f32.mrf.mxu0
    %5876 = vmatprep.mubr.f32.mxu0 0.0
    %5877 = vmatmul.mubr.f32.gmra.mxu0 %v5261
    %v5878 = vpop.f32.mrf.mxu0
    %v5879 = vadd.f32 %v5005, %v5878
    %v5880 = vpop.f32.mrf.mxu0
    %5881 = vmatprep.mubr.f32.mxu0 0.0
    %5882 = vmatmul.mubr.f32.gmra.mxu0 %v5264
    %v5883 = vpop.f32.mrf.mxu0
    %v5884 = vadd.f32 %v5005, %v5883
    %v5885 = vpop.f32.mrf.mxu0
    %5886 = vmatprep.mubr.f32.mxu0 0.0
    %5887 = vmatmul.mubr.f32.gmra.mxu0 %v5267
    %v5888 = vpop.f32.mrf.mxu0
    %v5889 = vadd.f32 %v5005, %v5888
    %v5890 = vpop.f32.mrf.mxu0
    %5891 = vmatprep.mubr.f32.mxu0 0.0
    %5892 = vmatmul.mubr.f32.gmra.mxu0 %v5270
    %v5893 = vpop.f32.mrf.mxu0
    %v5894 = vadd.f32 %v5005, %v5893
    %v5895 = vpop.f32.mrf.mxu0
    %5896 = vmatprep.mubr.f32.mxu0 0.0
    %5897 = vmatmul.mubr.f32.gmra.mxu0 %v5273
    %v5898 = vpop.f32.mrf.mxu0
    %v5899 = vadd.f32 %v5005, %v5898
    %v5900 = vpop.f32.mrf.mxu0
    %5901 = vmatprep.mubr.f32.mxu0 0.0
    %5902 = vmatmul.mubr.f32.gmra.mxu0 %v5276
    %v5903 = vpop.f32.mrf.mxu0
    %v5904 = vadd.f32 %v5005, %v5903
    %v5905 = vpop.f32.mrf.mxu0
    %5906 = vmatprep.mubr.f32.mxu0 0.0
    %5907 = vmatmul.mubr.f32.gmra.mxu0 %v5279
    %v5908 = vpop.f32.mrf.mxu0
    %v5909 = vadd.f32 %v5005, %v5908
    %v5910 = vpop.f32.mrf.mxu0
    %5911 = vmatprep.mubr.f32.mxu0 0.0
    %5912 = vmatmul.mubr.f32.gmra.mxu0 %v5282
    %v5913 = vpop.f32.mrf.mxu0
    %v5914 = vadd.f32 %v5005, %v5913
    %v5915 = vpop.f32.mrf.mxu0
    %5916 = vmatprep.mubr.f32.mxu0 0.0
    %5917 = vmatmul.mubr.f32.gmra.mxu0 %v5285
    %v5918 = vpop.f32.mrf.mxu0
    %v5919 = vadd.f32 %v5005, %v5918
    %v5920 = vpop.f32.mrf.mxu0
    %5921 = vmatprep.mubr.f32.mxu0 0.0
    %5922 = vmatmul.mubr.f32.gmra.mxu0 %v5288
    %v5923 = vpop.f32.mrf.mxu0
    %v5924 = vadd.f32 %v5005, %v5923
    %v5925 = vpop.f32.mrf.mxu0
    %5926 = vmatprep.mubr.f32.mxu0 0.0
    %5927 = vmatmul.mubr.f32.gmra.mxu0 %v5291
    %v5928 = vpop.f32.mrf.mxu0
    %v5929 = vadd.f32 %v5005, %v5928
    %v5930 = vpop.f32.mrf.mxu0
    %5931 = vmatprep.mubr.f32.mxu0 0.0
    %5932 = vmatmul.mubr.f32.gmra.mxu0 %v5294
    %v5933 = vpop.f32.mrf.mxu0
    %v5934 = vadd.f32 %v5005, %v5933
    %v5935 = vpop.f32.mrf.mxu0
    %5936 = vmatprep.mubr.f32.mxu0 0.0
    %5937 = vmatmul.mubr.f32.gmra.mxu0 %v5297
    %v5938 = vpop.f32.mrf.mxu0
    %v5939 = vadd.f32 %v5005, %v5938
    %v5940 = vpop.f32.mrf.mxu0
    %5941 = vmatprep.mubr.f32.mxu0 0.0
    %5942 = vmatmul.mubr.f32.gmra.mxu0 %v5300
    %v5943 = vpop.f32.mrf.mxu0
    %v5944 = vadd.f32 %v5005, %v5943
    %v5945 = vpop.f32.mrf.mxu0
    %5946 = vmatprep.mubr.f32.mxu0 0.0
    %5947 = vmatmul.mubr.f32.gmra.mxu0 %v5303
    %v5948 = vpop.f32.mrf.mxu0
    %v5949 = vadd.f32 %v5005, %v5948
    %v5950 = vpop.f32.mrf.mxu0
    %5951 = vmatprep.mubr.f32.mxu0 0.0
    %5952 = vmatmul.mubr.f32.gmra.mxu0 %v5306
    %v5953 = vpop.f32.mrf.mxu0
    %v5954 = vadd.f32 %v5005, %v5953
    %v5955 = vpop.f32.mrf.mxu0
    %5956 = vmatprep.mubr.f32.mxu0 0.0
    %5957 = vmatmul.mubr.f32.gmra.mxu0 %v5309
    %v5958 = vpop.f32.mrf.mxu0
    %v5959 = vadd.f32 %v5005, %v5958
    %v5960 = vpop.f32.mrf.mxu0
    %5961 = vmatprep.mubr.f32.mxu0 0.0
    %5962 = vmatmul.mubr.f32.gmra.mxu0 %v5312
    %v5963 = vpop.f32.mrf.mxu0
    %v5964 = vadd.f32 %v5005, %v5963
    %v5965 = vpop.f32.mrf.mxu0
    %5966 = vmatprep.mubr.f32.mxu0 0.0
    %5967 = vmatmul.mubr.f32.gmra.mxu0 %v5315
    %v5968 = vpop.f32.mrf.mxu0
    %v5969 = vadd.f32 %v5005, %v5968
    %v5970 = vpop.f32.mrf.mxu0
    %5971 = vmatprep.mubr.f32.mxu0 0.0
    %5972 = vmatmul.mubr.f32.gmra.mxu0 %v5318
    %v5973 = vpop.f32.mrf.mxu0
    %v5974 = vadd.f32 %v5005, %v5973
    %v5975 = vpop.f32.mrf.mxu0
    %5976 = vmatprep.mubr.f32.mxu0 0.0
    %5977 = vmatmul.mubr.f32.gmra.mxu0 %v5321
    %v5978 = vpop.f32.mrf.mxu0
    %v5979 = vadd.f32 %v5005, %v5978
    %v5980 = vpop.f32.mrf.mxu0
    %5981 = vmatprep.mubr.f32.mxu0 0.0
    %5982 = vmatmul.mubr.f32.gmra.mxu0 %v5324
    %v5983 = vpop.f32.mrf.mxu0
    %v5984 = vadd.f32 %v5005, %v5983
    %v5985 = vpop.f32.mrf.mxu0
    %5986 = vmatprep.mubr.f32.mxu0 0.0
    %5987 = vmatmul.mubr.f32.gmra.mxu0 %v5327
    %v5988 = vpop.f32.mrf.mxu0
    %v5989 = vadd.f32 %v5005, %v5988
    %v5990 = vpop.f32.mrf.mxu0
    %5991 = vmatprep.mubr.f32.mxu0 0.0
    %5992 = vmatmul.mubr.f32.gmra.mxu0 %v5330
    %v5993 = vpop.f32.mrf.mxu0
    %v5994 = vadd.f32 %v5005, %v5993
    %v5995 = vpop.f32.mrf.mxu0
    %5996 = vmatprep.mubr.f32.mxu0 0.0
    %5997 = vmatmul.mubr.f32.gmra.mxu0 %v5333
    %v5998 = vpop.f32.mrf.mxu0
    %v5999 = vadd.f32 %v5005, %v5998
    %v6000 = vpop.f32.mrf.mxu0
    %6001 = vmatprep.mubr.f32.mxu0 0.0
    %6002 = vmatmul.mubr.f32.gmra.mxu0 %v5336
    %v6003 = vpop.f32.mrf.mxu0
    %v6004 = vadd.f32 %v5005, %v6003
    %v6005 = vpop.f32.mrf.mxu0
    %6006 = vmatprep.mubr.f32.mxu0 0.0
    %6007 = vmatmul.mubr.f32.gmra.mxu0 %v5339
    %v6008 = vpop.f32.mrf.mxu0
    %v6009 = vadd.f32 %v5005, %v6008
    %v6010 = vpop.f32.mrf.mxu0
    %6011 = vmatprep.mubr.f32.mxu0 0.0
    %6012 = vmatmul.mubr.f32.gmra.mxu0 %v5342
    %v6013 = vpop.f32.mrf.mxu0
    %v6014 = vadd.f32 %v5005, %v6013
    %v6015 = vpop.f32.mrf.mxu0
    %6016 = vmatprep.mubr.f32.mxu0 0.0
    %6017 = vmatmul.mubr.f32.gmra.mxu0 %v5345
    %v6018 = vpop.f32.mrf.mxu0
    %v6019 = vadd.f32 %v5005, %v6018
    %v6020 = vpop.f32.mrf.mxu0
    %6021 = vmatprep.mubr.f32.mxu0 0.0
    %6022 = vmatmul.mubr.f32.gmra.mxu0 %v5348
    %v6023 = vpop.f32.mrf.mxu0
    %v6024 = vadd.f32 %v5005, %v6023
    %v6025 = vpop.f32.mrf.mxu0
    %6026 = vmatprep.mubr.f32.mxu0 0.0
    %6027 = vmatmul.mubr.f32.gmra.mxu0 %v5351
    %v6028 = vpop.f32.mrf.mxu0
    %v6029 = vadd.f32 %v5005, %v6028
    %v6030 = vpop.f32.mrf.mxu0
    %6031 = vmatprep.mubr.f32.mxu0 0.0
    %6032 = vmatmul.mubr.f32.gmra.mxu0 %v5354
    %v6033 = vpop.f32.mrf.mxu0
    %v6034 = vadd.f32 %v5005, %v6033
    %v6035 = vpop.f32.mrf.mxu0
    %6036 = vmatprep.mubr.f32.mxu0 0.0
    %6037 = vmatmul.mubr.f32.gmra.mxu0 %v5357
    %v6038 = vpop.f32.mrf.mxu0
    %v6039 = vadd.f32 %v5005, %v6038
    %v6040 = vpop.f32.mrf.mxu0
    %6041 = vmatprep.mubr.f32.mxu0 0.0
    %6042 = vmatmul.mubr.f32.gmra.mxu0 %v5360
    %v6043 = vpop.f32.mrf.mxu0
    %v6044 = vadd.f32 %v5005, %v6043
    %v6045 = vpop.f32.mrf.mxu0
    %6046 = vmatprep.mubr.f32.mxu0 0.0
    %6047 = vmatmul.mubr.f32.gmra.mxu0 %v5363
    %v6048 = vpop.f32.mrf.mxu0
    %v6049 = vadd.f32 %v5005, %v6048
    %v6050 = vpop.f32.mrf.mxu0
    %6051 = vmatprep.mubr.f32.mxu0 0.0
    %6052 = vmatmul.mubr.f32.gmra.mxu0 %v5366
    %v6053 = vpop.f32.mrf.mxu0
    %v6054 = vadd.f32 %v5005, %v6053
    %v6055 = vpop.f32.mrf.mxu0
    %6056 = vmatprep.mubr.f32.mxu0 0.0
    %6057 = vmatmul.mubr.f32.gmra.mxu0 %v5369
    %v6058 = vpop.f32.mrf.mxu0
    %v6059 = vadd.f32 %v5005, %v6058
    %v6060 = vpop.f32.mrf.mxu0
    %6061 = vmatprep.mubr.f32.mxu0 0.0
    %6062 = vmatmul.mubr.f32.gmra.mxu0 %v5372
    %v6063 = vpop.f32.mrf.mxu0
    %v6064 = vadd.f32 %v5005, %v6063
    %v6065 = vpop.f32.mrf.mxu0
    %6066 = vmatprep.mubr.f32.mxu0 0.0
    %6067 = vmatmul.mubr.f32.gmra.mxu0 %v5375
    %v6068 = vpop.f32.mrf.mxu0
    %v6069 = vadd.f32 %v5005, %v6068
    %v6070 = vpop.f32.mrf.mxu0
    %6071 = vmatprep.mubr.f32.mxu0 0.0
    %6072 = vmatmul.mubr.f32.gmra.mxu0 %v5378
    %v6073 = vpop.f32.mrf.mxu0
    %v6074 = vadd.f32 %v5005, %v6073
    %v6075 = vpop.f32.mrf.mxu0
    %6076 = vmatprep.mubr.f32.mxu0 0.0
    %6077 = vmatmul.mubr.f32.gmra.mxu0 %v5381
    %v6078 = vpop.f32.mrf.mxu0
    %v6079 = vadd.f32 %v5005, %v6078
    %v6080 = vpop.f32.mrf.mxu0
    %6081 = vmatprep.mubr.f32.mxu0 0.0
    %6082 = vmatmul.mubr.f32.gmra.mxu0 %v5384
    %v6083 = vpop.f32.mrf.mxu0
    %v6084 = vadd.f32 %v5005, %v6083
    %v6085 = vpop.f32.mrf.mxu0
    %6086 = vmatprep.mubr.f32.mxu0 0.0
    %6087 = vmatmul.mubr.f32.gmra.mxu0 %v5387
    %v6088 = vpop.f32.mrf.mxu0
    %v6089 = vadd.f32 %v5005, %v6088
    %v6090 = vpop.f32.mrf.mxu0
    %6091 = vmatprep.mubr.f32.mxu0 0.0
    %6092 = vmatmul.mubr.f32.gmra.mxu0 %v5390
    %v6093 = vpop.f32.mrf.mxu0
    %v6094 = vadd.f32 %v5005, %v6093
    %v6095 = vpop.f32.mrf.mxu0
    %6096 = vdwg.mxu0
    %v6097 = vmax.f32 %v5459, 0.0
    %v6098 = vmax.f32 %v5464, 0.0
    %v6099 = vmax.f32 %v5469, 0.0
    %v6100 = vmax.f32 %v5474, 0.0
    %v6101 = vmax.f32 %v5479, 0.0
    %v6102 = vmax.f32 %v5484, 0.0
    %v6103 = vmax.f32 %v5489, 0.0
    %v6104 = vmax.f32 %v5494, 0.0
    %v6105 = vmax.f32 %v5499, 0.0
    %v6106 = vmax.f32 %v5504, 0.0
    %v6107 = vmax.f32 %v5509, 0.0
    %v6108 = vmax.f32 %v5514, 0.0
    %v6109 = vmax.f32 %v5519, 0.0
    %v6110 = vmax.f32 %v5524, 0.0
    %v6111 = vmax.f32 %v5529, 0.0
    %v6112 = vmax.f32 %v5534, 0.0
    %v6113 = vmax.f32 %v5539, 0.0
    %v6114 = vmax.f32 %v5544, 0.0
    %v6115 = vmax.f32 %v5549, 0.0
    %v6116 = vmax.f32 %v5554, 0.0
    %v6117 = vmax.f32 %v5559, 0.0
    %v6118 = vmax.f32 %v5564, 0.0
    %v6119 = vmax.f32 %v5569, 0.0
    %v6120 = vmax.f32 %v5574, 0.0
    %v6121 = vmax.f32 %v5579, 0.0
    %v6122 = vmax.f32 %v5584, 0.0
    %v6123 = vmax.f32 %v5589, 0.0
    %v6124 = vmax.f32 %v5594, 0.0
    %v6125 = vmax.f32 %v5599, 0.0
    %v6126 = vmax.f32 %v5604, 0.0
    %v6127 = vmax.f32 %v5609, 0.0
    %v6128 = vmax.f32 %v5614, 0.0
    %v6129 = vmax.f32 %v5619, 0.0
    %v6130 = vmax.f32 %v5624, 0.0
    %v6131 = vmax.f32 %v5629, 0.0
    %v6132 = vmax.f32 %v5634, 0.0
    %v6133 = vmax.f32 %v5639, 0.0
    %v6134 = vmax.f32 %v5644, 0.0
    %v6135 = vmax.f32 %v5649, 0.0
    %v6136 = vmax.f32 %v5654, 0.0
    %v6137 = vmax.f32 %v5659, 0.0
    %v6138 = vmax.f32 %v5664, 0.0
    %v6139 = vmax.f32 %v5669, 0.0
    %v6140 = vmax.f32 %v5674, 0.0
    %v6141 = vmax.f32 %v5679, 0.0
    %v6142 = vmax.f32 %v5684, 0.0
    %v6143 = vmax.f32 %v5689, 0.0
    %v6144 = vmax.f32 %v5694, 0.0
    %v6145 = vmax.f32 %v5699, 0.0
    %v6146 = vmax.f32 %v5704, 0.0
    %v6147 = vmax.f32 %v5709, 0.0
    %v6148 = vmax.f32 %v5714, 0.0
    %v6149 = vmax.f32 %v5719, 0.0
    %v6150 = vmax.f32 %v5724, 0.0
    %v6151 = vmax.f32 %v5729, 0.0
    %v6152 = vmax.f32 %v5734, 0.0
    %v6153 = vmax.f32 %v5739, 0.0
    %v6154 = vmax.f32 %v5744, 0.0
    %v6155 = vmax.f32 %v5749, 0.0
    %v6156 = vmax.f32 %v5754, 0.0
    %v6157 = vmax.f32 %v5759, 0.0
    %v6158 = vmax.f32 %v5764, 0.0
    %v6159 = vmax.f32 %v5769, 0.0
    %v6160 = vmax.f32 %v5774, 0.0
    %v6161 = vmax.f32 %v5779, 0.0
    %v6162 = vmax.f32 %v5784, 0.0
    %v6163 = vmax.f32 %v5789, 0.0
    %v6164 = vmax.f32 %v5794, 0.0
    %v6165 = vmax.f32 %v5799, 0.0
    %v6166 = vmax.f32 %v5804, 0.0
    %v6167 = vmax.f32 %v5809, 0.0
    %v6168 = vmax.f32 %v5814, 0.0
    %v6169 = vmax.f32 %v5819, 0.0
    %v6170 = vmax.f32 %v5824, 0.0
    %v6171 = vmax.f32 %v5829, 0.0
    %v6172 = vmax.f32 %v5834, 0.0
    %v6173 = vmax.f32 %v5839, 0.0
    %v6174 = vmax.f32 %v5844, 0.0
    %v6175 = vmax.f32 %v5849, 0.0
    %v6176 = vmax.f32 %v5854, 0.0
    %v6177 = vmax.f32 %v5859, 0.0
    %v6178 = vmax.f32 %v5864, 0.0
    %v6179 = vmax.f32 %v5869, 0.0
    %v6180 = vmax.f32 %v5874, 0.0
    %v6181 = vmax.f32 %v5879, 0.0
    %v6182 = vmax.f32 %v5884, 0.0
    %v6183 = vmax.f32 %v5889, 0.0
    %v6184 = vmax.f32 %v5894, 0.0
    %v6185 = vmax.f32 %v5899, 0.0
    %v6186 = vmax.f32 %v5904, 0.0
    %v6187 = vmax.f32 %v5909, 0.0
    %v6188 = vmax.f32 %v5914, 0.0
    %v6189 = vmax.f32 %v5919, 0.0
    %v6190 = vmax.f32 %v5924, 0.0
    %v6191 = vmax.f32 %v5929, 0.0
    %v6192 = vmax.f32 %v5934, 0.0
    %v6193 = vmax.f32 %v5939, 0.0
    %v6194 = vmax.f32 %v5944, 0.0
    %v6195 = vmax.f32 %v5949, 0.0
    %v6196 = vmax.f32 %v5954, 0.0
    %v6197 = vmax.f32 %v5959, 0.0
    %v6198 = vmax.f32 %v5964, 0.0
    %v6199 = vmax.f32 %v5969, 0.0
    %v6200 = vmax.f32 %v5974, 0.0
    %v6201 = vmax.f32 %v5979, 0.0
    %v6202 = vmax.f32 %v5984, 0.0
    %v6203 = vmax.f32 %v5989, 0.0
    %v6204 = vmax.f32 %v5994, 0.0
    %v6205 = vmax.f32 %v5999, 0.0
    %v6206 = vmax.f32 %v6004, 0.0
    %v6207 = vmax.f32 %v6009, 0.0
    %v6208 = vmax.f32 %v6014, 0.0
    %v6209 = vmax.f32 %v6019, 0.0
    %v6210 = vmax.f32 %v6024, 0.0
    %v6211 = vmax.f32 %v6029, 0.0
    %v6212 = vmax.f32 %v6034, 0.0
    %v6213 = vmax.f32 %v6039, 0.0
    %v6214 = vmax.f32 %v6044, 0.0
    %v6215 = vmax.f32 %v6049, 0.0
    %v6216 = vmax.f32 %v6054, 0.0
    %v6217 = vmax.f32 %v6059, 0.0
    %v6218 = vmax.f32 %v6064, 0.0
    %v6219 = vmax.f32 %v6069, 0.0
    %v6220 = vmax.f32 %v6074, 0.0
    %v6221 = vmax.f32 %v6079, 0.0
    %v6222 = vmax.f32 %v6084, 0.0
    %v6223 = vmax.f32 %v6089, 0.0
    %v6224 = vmax.f32 %v6094, 0.0
    %v6353 = vrot.slane %v6098, 7
    %vm6354 = vcmask 1041409
    %v6355 = vsel %vm6354, %v6353, %v6097
    %v6356 = vrot.slane %v6099, 6
    %vm6357 = vcmask 1042434
    %v6358 = vsel %vm6357, %v6356, %v6355
    %v6359 = vrot.slane %v6100, 5
    %vm6360 = vcmask 1043459
    %v6361 = vsel %vm6360, %v6359, %v6358
    %v6362 = vrot.slane %v6101, 4
    %vm6363 = vcmask 1044484
    %v6364 = vsel %vm6363, %v6362, %v6361
    %v6365 = vrot.slane %v6102, 3
    %vm6366 = vcmask 1045509
    %v6367 = vsel %vm6366, %v6365, %v6364
    %v6368 = vrot.slane %v6103, 2
    %vm6369 = vcmask 1046534
    %v6370 = vsel %vm6369, %v6368, %v6367
    %v6371 = vrot.slane %v6104, 1
    %vm6372 = vcmask 1047559
    %v6373 = vsel %vm6372, %v6371, %v6370
    %v6374 = vrot.slane %v6106, 7
    %v6375 = vsel %vm6354, %v6374, %v6105
    %v6376 = vrot.slane %v6107, 6
    %v6377 = vsel %vm6357, %v6376, %v6375
    %v6378 = vrot.slane %v6108, 5
    %v6379 = vsel %vm6360, %v6378, %v6377
    %v6380 = vrot.slane %v6109, 4
    %v6381 = vsel %vm6363, %v6380, %v6379
    %v6382 = vrot.slane %v6110, 3
    %v6383 = vsel %vm6366, %v6382, %v6381
    %v6384 = vrot.slane %v6111, 2
    %v6385 = vsel %vm6369, %v6384, %v6383
    %v6386 = vrot.slane %v6112, 1
    %v6387 = vsel %vm6372, %v6386, %v6385
    %v6388 = vrot.slane %v6114, 7
    %v6389 = vsel %vm6354, %v6388, %v6113
    %v6390 = vrot.slane %v6115, 6
    %v6391 = vsel %vm6357, %v6390, %v6389
    %v6392 = vrot.slane %v6116, 5
    %v6393 = vsel %vm6360, %v6392, %v6391
    %v6394 = vrot.slane %v6117, 4
    %v6395 = vsel %vm6363, %v6394, %v6393
    %v6396 = vrot.slane %v6118, 3
    %v6397 = vsel %vm6366, %v6396, %v6395
    %v6398 = vrot.slane %v6119, 2
    %v6399 = vsel %vm6369, %v6398, %v6397
    %v6400 = vrot.slane %v6120, 1
    %v6401 = vsel %vm6372, %v6400, %v6399
    %v6402 = vrot.slane %v6122, 7
    %v6403 = vsel %vm6354, %v6402, %v6121
    %v6404 = vrot.slane %v6123, 6
    %v6405 = vsel %vm6357, %v6404, %v6403
    %v6406 = vrot.slane %v6124, 5
    %v6407 = vsel %vm6360, %v6406, %v6405
    %v6408 = vrot.slane %v6125, 4
    %v6409 = vsel %vm6363, %v6408, %v6407
    %v6410 = vrot.slane %v6126, 3
    %v6411 = vsel %vm6366, %v6410, %v6409
    %v6412 = vrot.slane %v6127, 2
    %v6413 = vsel %vm6369, %v6412, %v6411
    %v6414 = vrot.slane %v6128, 1
    %v6415 = vsel %vm6372, %v6414, %v6413
    %v6416 = vrot.slane %v6130, 7
    %v6417 = vsel %vm6354, %v6416, %v6129
    %v6418 = vrot.slane %v6131, 6
    %v6419 = vsel %vm6357, %v6418, %v6417
    %v6420 = vrot.slane %v6132, 5
    %v6421 = vsel %vm6360, %v6420, %v6419
    %v6422 = vrot.slane %v6133, 4
    %v6423 = vsel %vm6363, %v6422, %v6421
    %v6424 = vrot.slane %v6134, 3
    %v6425 = vsel %vm6366, %v6424, %v6423
    %v6426 = vrot.slane %v6135, 2
    %v6427 = vsel %vm6369, %v6426, %v6425
    %v6428 = vrot.slane %v6136, 1
    %v6429 = vsel %vm6372, %v6428, %v6427
    %v6430 = vrot.slane %v6138, 7
    %v6431 = vsel %vm6354, %v6430, %v6137
    %v6432 = vrot.slane %v6139, 6
    %v6433 = vsel %vm6357, %v6432, %v6431
    %v6434 = vrot.slane %v6140, 5
    %v6435 = vsel %vm6360, %v6434, %v6433
    %v6436 = vrot.slane %v6141, 4
    %v6437 = vsel %vm6363, %v6436, %v6435
    %v6438 = vrot.slane %v6142, 3
    %v6439 = vsel %vm6366, %v6438, %v6437
    %v6440 = vrot.slane %v6143, 2
    %v6441 = vsel %vm6369, %v6440, %v6439
    %v6442 = vrot.slane %v6144, 1
    %v6443 = vsel %vm6372, %v6442, %v6441
    %v6444 = vrot.slane %v6146, 7
    %v6445 = vsel %vm6354, %v6444, %v6145
    %v6446 = vrot.slane %v6147, 6
    %v6447 = vsel %vm6357, %v6446, %v6445
    %v6448 = vrot.slane %v6148, 5
    %v6449 = vsel %vm6360, %v6448, %v6447
    %v6450 = vrot.slane %v6149, 4
    %v6451 = vsel %vm6363, %v6450, %v6449
    %v6452 = vrot.slane %v6150, 3
    %v6453 = vsel %vm6366, %v6452, %v6451
    %v6454 = vrot.slane %v6151, 2
    %v6455 = vsel %vm6369, %v6454, %v6453
    %v6456 = vrot.slane %v6152, 1
    %v6457 = vsel %vm6372, %v6456, %v6455
    %v6458 = vrot.slane %v6154, 7
    %v6459 = vsel %vm6354, %v6458, %v6153
    %v6460 = vrot.slane %v6155, 6
    %v6461 = vsel %vm6357, %v6460, %v6459
    %v6462 = vrot.slane %v6156, 5
    %v6463 = vsel %vm6360, %v6462, %v6461
    %v6464 = vrot.slane %v6157, 4
    %v6465 = vsel %vm6363, %v6464, %v6463
    %v6466 = vrot.slane %v6158, 3
    %v6467 = vsel %vm6366, %v6466, %v6465
    %v6468 = vrot.slane %v6159, 2
    %v6469 = vsel %vm6369, %v6468, %v6467
    %v6470 = vrot.slane %v6160, 1
    %v6471 = vsel %vm6372, %v6470, %v6469
    %v6472 = vrot.slane %v6162, 7
    %v6473 = vsel %vm6354, %v6472, %v6161
    %v6474 = vrot.slane %v6163, 6
    %v6475 = vsel %vm6357, %v6474, %v6473
    %v6476 = vrot.slane %v6164, 5
    %v6477 = vsel %vm6360, %v6476, %v6475
    %v6478 = vrot.slane %v6165, 4
    %v6479 = vsel %vm6363, %v6478, %v6477
    %v6480 = vrot.slane %v6166, 3
    %v6481 = vsel %vm6366, %v6480, %v6479
    %v6482 = vrot.slane %v6167, 2
    %v6483 = vsel %vm6369, %v6482, %v6481
    %v6484 = vrot.slane %v6168, 1
    %v6485 = vsel %vm6372, %v6484, %v6483
    %v6486 = vrot.slane %v6170, 7
    %v6487 = vsel %vm6354, %v6486, %v6169
    %v6488 = vrot.slane %v6171, 6
    %v6489 = vsel %vm6357, %v6488, %v6487
    %v6490 = vrot.slane %v6172, 5
    %v6491 = vsel %vm6360, %v6490, %v6489
    %v6492 = vrot.slane %v6173, 4
    %v6493 = vsel %vm6363, %v6492, %v6491
    %v6494 = vrot.slane %v6174, 3
    %v6495 = vsel %vm6366, %v6494, %v6493
    %v6496 = vrot.slane %v6175, 2
    %v6497 = vsel %vm6369, %v6496, %v6495
    %v6498 = vrot.slane %v6176, 1
    %v6499 = vsel %vm6372, %v6498, %v6497
    %v6500 = vrot.slane %v6178, 7
    %v6501 = vsel %vm6354, %v6500, %v6177
    %v6502 = vrot.slane %v6179, 6
    %v6503 = vsel %vm6357, %v6502, %v6501
    %v6504 = vrot.slane %v6180, 5
    %v6505 = vsel %vm6360, %v6504, %v6503
    %v6506 = vrot.slane %v6181, 4
    %v6507 = vsel %vm6363, %v6506, %v6505
    %v6508 = vrot.slane %v6182, 3
    %v6509 = vsel %vm6366, %v6508, %v6507
    %v6510 = vrot.slane %v6183, 2
    %v6511 = vsel %vm6369, %v6510, %v6509
    %v6512 = vrot.slane %v6184, 1
    %v6513 = vsel %vm6372, %v6512, %v6511
    %v6514 = vrot.slane %v6186, 7
    %v6515 = vsel %vm6354, %v6514, %v6185
    %v6516 = vrot.slane %v6187, 6
    %v6517 = vsel %vm6357, %v6516, %v6515
    %v6518 = vrot.slane %v6188, 5
    %v6519 = vsel %vm6360, %v6518, %v6517
    %v6520 = vrot.slane %v6189, 4
    %v6521 = vsel %vm6363, %v6520, %v6519
    %v6522 = vrot.slane %v6190, 3
    %v6523 = vsel %vm6366, %v6522, %v6521
    %v6524 = vrot.slane %v6191, 2
    %v6525 = vsel %vm6369, %v6524, %v6523
    %v6526 = vrot.slane %v6192, 1
    %v6527 = vsel %vm6372, %v6526, %v6525
    %v6528 = vrot.slane %v6194, 7
    %v6529 = vsel %vm6354, %v6528, %v6193
    %v6530 = vrot.slane %v6195, 6
    %v6531 = vsel %vm6357, %v6530, %v6529
    %v6532 = vrot.slane %v6196, 5
    %v6533 = vsel %vm6360, %v6532, %v6531
    %v6534 = vrot.slane %v6197, 4
    %v6535 = vsel %vm6363, %v6534, %v6533
    %v6536 = vrot.slane %v6198, 3
    %v6537 = vsel %vm6366, %v6536, %v6535
    %v6538 = vrot.slane %v6199, 2
    %v6539 = vsel %vm6369, %v6538, %v6537
    %v6540 = vrot.slane %v6200, 1
    %v6541 = vsel %vm6372, %v6540, %v6539
    %v6542 = vrot.slane %v6202, 7
    %v6543 = vsel %vm6354, %v6542, %v6201
    %v6544 = vrot.slane %v6203, 6
    %v6545 = vsel %vm6357, %v6544, %v6543
    %v6546 = vrot.slane %v6204, 5
    %v6547 = vsel %vm6360, %v6546, %v6545
    %v6548 = vrot.slane %v6205, 4
    %v6549 = vsel %vm6363, %v6548, %v6547
    %v6550 = vrot.slane %v6206, 3
    %v6551 = vsel %vm6366, %v6550, %v6549
    %v6552 = vrot.slane %v6207, 2
    %v6553 = vsel %vm6369, %v6552, %v6551
    %v6554 = vrot.slane %v6208, 1
    %v6555 = vsel %vm6372, %v6554, %v6553
    %v6556 = vrot.slane %v6210, 7
    %v6557 = vsel %vm6354, %v6556, %v6209
    %v6558 = vrot.slane %v6211, 6
    %v6559 = vsel %vm6357, %v6558, %v6557
    %v6560 = vrot.slane %v6212, 5
    %v6561 = vsel %vm6360, %v6560, %v6559
    %v6562 = vrot.slane %v6213, 4
    %v6563 = vsel %vm6363, %v6562, %v6561
    %v6564 = vrot.slane %v6214, 3
    %v6565 = vsel %vm6366, %v6564, %v6563
    %v6566 = vrot.slane %v6215, 2
    %v6567 = vsel %vm6369, %v6566, %v6565
    %v6568 = vrot.slane %v6216, 1
    %v6569 = vsel %vm6372, %v6568, %v6567
    %v6570 = vrot.slane %v6218, 7
    %v6571 = vsel %vm6354, %v6570, %v6217
    %v6572 = vrot.slane %v6219, 6
    %v6573 = vsel %vm6357, %v6572, %v6571
    %v6574 = vrot.slane %v6220, 5
    %v6575 = vsel %vm6360, %v6574, %v6573
    %v6576 = vrot.slane %v6221, 4
    %v6577 = vsel %vm6363, %v6576, %v6575
    %v6578 = vrot.slane %v6222, 3
    %v6579 = vsel %vm6366, %v6578, %v6577
    %v6580 = vrot.slane %v6223, 2
    %v6581 = vsel %vm6369, %v6580, %v6579
    %v6582 = vrot.slane %v6224, 1
    %v6583 = vsel %vm6372, %v6582, %v6581
    %v6600 = vrot.slane %v6097, 1
    %v6601 = vsel %vm6354, %v6098, %v6600
    %v6602 = vrot.slane %v6099, 7
    %v6603 = vsel %vm6357, %v6602, %v6601
    %v6604 = vrot.slane %v6100, 6
    %v6605 = vsel %vm6360, %v6604, %v6603
    %v6606 = vrot.slane %v6101, 5
    %v6607 = vsel %vm6363, %v6606, %v6605
    %v6608 = vrot.slane %v6102, 4
    %v6609 = vsel %vm6366, %v6608, %v6607
    %v6610 = vrot.slane %v6103, 3
    %v6611 = vsel %vm6369, %v6610, %v6609
    %v6612 = vrot.slane %v6104, 2
    %v6613 = vsel %vm6372, %v6612, %v6611
    %v6614 = vrot.slane %v6105, 1
    %v6615 = vsel %vm6354, %v6106, %v6614
    %v6616 = vrot.slane %v6107, 7
    %v6617 = vsel %vm6357, %v6616, %v6615
    %v6618 = vrot.slane %v6108, 6
    %v6619 = vsel %vm6360, %v6618, %v6617
    %v6620 = vrot.slane %v6109, 5
    %v6621 = vsel %vm6363, %v6620, %v6619
    %v6622 = vrot.slane %v6110, 4
    %v6623 = vsel %vm6366, %v6622, %v6621
    %v6624 = vrot.slane %v6111, 3
    %v6625 = vsel %vm6369, %v6624, %v6623
    %v6626 = vrot.slane %v6112, 2
    %v6627 = vsel %vm6372, %v6626, %v6625
    %v6628 = vrot.slane %v6113, 1
    %v6629 = vsel %vm6354, %v6114, %v6628
    %v6630 = vrot.slane %v6115, 7
    %v6631 = vsel %vm6357, %v6630, %v6629
    %v6632 = vrot.slane %v6116, 6
    %v6633 = vsel %vm6360, %v6632, %v6631
    %v6634 = vrot.slane %v6117, 5
    %v6635 = vsel %vm6363, %v6634, %v6633
    %v6636 = vrot.slane %v6118, 4
    %v6637 = vsel %vm6366, %v6636, %v6635
    %v6638 = vrot.slane %v6119, 3
    %v6639 = vsel %vm6369, %v6638, %v6637
    %v6640 = vrot.slane %v6120, 2
    %v6641 = vsel %vm6372, %v6640, %v6639
    %v6642 = vrot.slane %v6121, 1
    %v6643 = vsel %vm6354, %v6122, %v6642
    %v6644 = vrot.slane %v6123, 7
    %v6645 = vsel %vm6357, %v6644, %v6643
    %v6646 = vrot.slane %v6124, 6
    %v6647 = vsel %vm6360, %v6646, %v6645
    %v6648 = vrot.slane %v6125, 5
    %v6649 = vsel %vm6363, %v6648, %v6647
    %v6650 = vrot.slane %v6126, 4
    %v6651 = vsel %vm6366, %v6650, %v6649
    %v6652 = vrot.slane %v6127, 3
    %v6653 = vsel %vm6369, %v6652, %v6651
    %v6654 = vrot.slane %v6128, 2
    %v6655 = vsel %vm6372, %v6654, %v6653
    %v6656 = vrot.slane %v6129, 1
    %v6657 = vsel %vm6354, %v6130, %v6656
    %v6658 = vrot.slane %v6131, 7
    %v6659 = vsel %vm6357, %v6658, %v6657
    %v6660 = vrot.slane %v6132, 6
    %v6661 = vsel %vm6360, %v6660, %v6659
    %v6662 = vrot.slane %v6133, 5
    %v6663 = vsel %vm6363, %v6662, %v6661
    %v6664 = vrot.slane %v6134, 4
    %v6665 = vsel %vm6366, %v6664, %v6663
    %v6666 = vrot.slane %v6135, 3
    %v6667 = vsel %vm6369, %v6666, %v6665
    %v6668 = vrot.slane %v6136, 2
    %v6669 = vsel %vm6372, %v6668, %v6667
    %v6670 = vrot.slane %v6137, 1
    %v6671 = vsel %vm6354, %v6138, %v6670
    %v6672 = vrot.slane %v6139, 7
    %v6673 = vsel %vm6357, %v6672, %v6671
    %v6674 = vrot.slane %v6140, 6
    %v6675 = vsel %vm6360, %v6674, %v6673
    %v6676 = vrot.slane %v6141, 5
    %v6677 = vsel %vm6363, %v6676, %v6675
    %v6678 = vrot.slane %v6142, 4
    %v6679 = vsel %vm6366, %v6678, %v6677
    %v6680 = vrot.slane %v6143, 3
    %v6681 = vsel %vm6369, %v6680, %v6679
    %v6682 = vrot.slane %v6144, 2
    %v6683 = vsel %vm6372, %v6682, %v6681
    %v6684 = vrot.slane %v6145, 1
    %v6685 = vsel %vm6354, %v6146, %v6684
    %v6686 = vrot.slane %v6147, 7
    %v6687 = vsel %vm6357, %v6686, %v6685
    %v6688 = vrot.slane %v6148, 6
    %v6689 = vsel %vm6360, %v6688, %v6687
    %v6690 = vrot.slane %v6149, 5
    %v6691 = vsel %vm6363, %v6690, %v6689
    %v6692 = vrot.slane %v6150, 4
    %v6693 = vsel %vm6366, %v6692, %v6691
    %v6694 = vrot.slane %v6151, 3
    %v6695 = vsel %vm6369, %v6694, %v6693
    %v6696 = vrot.slane %v6152, 2
    %v6697 = vsel %vm6372, %v6696, %v6695
    %v6698 = vrot.slane %v6153, 1
    %v6699 = vsel %vm6354, %v6154, %v6698
    %v6700 = vrot.slane %v6155, 7
    %v6701 = vsel %vm6357, %v6700, %v6699
    %v6702 = vrot.slane %v6156, 6
    %v6703 = vsel %vm6360, %v6702, %v6701
    %v6704 = vrot.slane %v6157, 5
    %v6705 = vsel %vm6363, %v6704, %v6703
    %v6706 = vrot.slane %v6158, 4
    %v6707 = vsel %vm6366, %v6706, %v6705
    %v6708 = vrot.slane %v6159, 3
    %v6709 = vsel %vm6369, %v6708, %v6707
    %v6710 = vrot.slane %v6160, 2
    %v6711 = vsel %vm6372, %v6710, %v6709
    %v6712 = vrot.slane %v6161, 1
    %v6713 = vsel %vm6354, %v6162, %v6712
    %v6714 = vrot.slane %v6163, 7
    %v6715 = vsel %vm6357, %v6714, %v6713
    %v6716 = vrot.slane %v6164, 6
    %v6717 = vsel %vm6360, %v6716, %v6715
    %v6718 = vrot.slane %v6165, 5
    %v6719 = vsel %vm6363, %v6718, %v6717
    %v6720 = vrot.slane %v6166, 4
    %v6721 = vsel %vm6366, %v6720, %v6719
    %v6722 = vrot.slane %v6167, 3
    %v6723 = vsel %vm6369, %v6722, %v6721
    %v6724 = vrot.slane %v6168, 2
    %v6725 = vsel %vm6372, %v6724, %v6723
    %v6726 = vrot.slane %v6169, 1
    %v6727 = vsel %vm6354, %v6170, %v6726
    %v6728 = vrot.slane %v6171, 7
    %v6729 = vsel %vm6357, %v6728, %v6727
    %v6730 = vrot.slane %v6172, 6
    %v6731 = vsel %vm6360, %v6730, %v6729
    %v6732 = vrot.slane %v6173, 5
    %v6733 = vsel %vm6363, %v6732, %v6731
    %v6734 = vrot.slane %v6174, 4
    %v6735 = vsel %vm6366, %v6734, %v6733
    %v6736 = vrot.slane %v6175, 3
    %v6737 = vsel %vm6369, %v6736, %v6735
    %v6738 = vrot.slane %v6176, 2
    %v6739 = vsel %vm6372, %v6738, %v6737
    %v6740 = vrot.slane %v6177, 1
    %v6741 = vsel %vm6354, %v6178, %v6740
    %v6742 = vrot.slane %v6179, 7
    %v6743 = vsel %vm6357, %v6742, %v6741
    %v6744 = vrot.slane %v6180, 6
    %v6745 = vsel %vm6360, %v6744, %v6743
    %v6746 = vrot.slane %v6181, 5
    %v6747 = vsel %vm6363, %v6746, %v6745
    %v6748 = vrot.slane %v6182, 4
    %v6749 = vsel %vm6366, %v6748, %v6747
    %v6750 = vrot.slane %v6183, 3
    %v6751 = vsel %vm6369, %v6750, %v6749
    %v6752 = vrot.slane %v6184, 2
    %v6753 = vsel %vm6372, %v6752, %v6751
    %v6754 = vrot.slane %v6185, 1
    %v6755 = vsel %vm6354, %v6186, %v6754
    %v6756 = vrot.slane %v6187, 7
    %v6757 = vsel %vm6357, %v6756, %v6755
    %v6758 = vrot.slane %v6188, 6
    %v6759 = vsel %vm6360, %v6758, %v6757
    %v6760 = vrot.slane %v6189, 5
    %v6761 = vsel %vm6363, %v6760, %v6759
    %v6762 = vrot.slane %v6190, 4
    %v6763 = vsel %vm6366, %v6762, %v6761
    %v6764 = vrot.slane %v6191, 3
    %v6765 = vsel %vm6369, %v6764, %v6763
    %v6766 = vrot.slane %v6192, 2
    %v6767 = vsel %vm6372, %v6766, %v6765
    %v6768 = vrot.slane %v6193, 1
    %v6769 = vsel %vm6354, %v6194, %v6768
    %v6770 = vrot.slane %v6195, 7
    %v6771 = vsel %vm6357, %v6770, %v6769
    %v6772 = vrot.slane %v6196, 6
    %v6773 = vsel %vm6360, %v6772, %v6771
    %v6774 = vrot.slane %v6197, 5
    %v6775 = vsel %vm6363, %v6774, %v6773
    %v6776 = vrot.slane %v6198, 4
    %v6777 = vsel %vm6366, %v6776, %v6775
    %v6778 = vrot.slane %v6199, 3
    %v6779 = vsel %vm6369, %v6778, %v6777
    %v6780 = vrot.slane %v6200, 2
    %v6781 = vsel %vm6372, %v6780, %v6779
    %v6782 = vrot.slane %v6201, 1
    %v6783 = vsel %vm6354, %v6202, %v6782
    %v6784 = vrot.slane %v6203, 7
    %v6785 = vsel %vm6357, %v6784, %v6783
    %v6786 = vrot.slane %v6204, 6
    %v6787 = vsel %vm6360, %v6786, %v6785
    %v6788 = vrot.slane %v6205, 5
    %v6789 = vsel %vm6363, %v6788, %v6787
    %v6790 = vrot.slane %v6206, 4
    %v6791 = vsel %vm6366, %v6790, %v6789
    %v6792 = vrot.slane %v6207, 3
    %v6793 = vsel %vm6369, %v6792, %v6791
    %v6794 = vrot.slane %v6208, 2
    %v6795 = vsel %vm6372, %v6794, %v6793
    %v6796 = vrot.slane %v6209, 1
    %v6797 = vsel %vm6354, %v6210, %v6796
    %v6798 = vrot.slane %v6211, 7
    %v6799 = vsel %vm6357, %v6798, %v6797
    %v6800 = vrot.slane %v6212, 6
    %v6801 = vsel %vm6360, %v6800, %v6799
    %v6802 = vrot.slane %v6213, 5
    %v6803 = vsel %vm6363, %v6802, %v6801
    %v6804 = vrot.slane %v6214, 4
    %v6805 = vsel %vm6366, %v6804, %v6803
    %v6806 = vrot.slane %v6215, 3
    %v6807 = vsel %vm6369, %v6806, %v6805
    %v6808 = vrot.slane %v6216, 2
    %v6809 = vsel %vm6372, %v6808, %v6807
    %v6810 = vrot.slane %v6217, 1
    %v6811 = vsel %vm6354, %v6218, %v6810
    %v6812 = vrot.slane %v6219, 7
    %v6813 = vsel %vm6357, %v6812, %v6811
    %v6814 = vrot.slane %v6220, 6
    %v6815 = vsel %vm6360, %v6814, %v6813
    %v6816 = vrot.slane %v6221, 5
    %v6817 = vsel %vm6363, %v6816, %v6815
    %v6818 = vrot.slane %v6222, 4
    %v6819 = vsel %vm6366, %v6818, %v6817
    %v6820 = vrot.slane %v6223, 3
    %v6821 = vsel %vm6369, %v6820, %v6819
    %v6822 = vrot.slane %v6224, 2
    %v6823 = vsel %vm6372, %v6822, %v6821
    %6824 = vrot.lane.b32.xlu0 %v6613, 64
    %v6825 = vpop.permute.xlu0 %6824
    %6826 = vrot.lane.b32.xlu0 %v6627, 64
    %v6827 = vpop.permute.xlu0 %6826
    %6828 = vrot.lane.b32.xlu0 %v6641, 64
    %v6829 = vpop.permute.xlu0 %6828
    %6830 = vrot.lane.b32.xlu0 %v6655, 64
    %v6831 = vpop.permute.xlu0 %6830
    %6832 = vrot.lane.b32.xlu0 %v6669, 64
    %v6833 = vpop.permute.xlu0 %6832
    %6834 = vrot.lane.b32.xlu0 %v6683, 64
    %v6835 = vpop.permute.xlu0 %6834
    %6836 = vrot.lane.b32.xlu0 %v6697, 64
    %v6837 = vpop.permute.xlu0 %6836
    %6838 = vrot.lane.b32.xlu0 %v6711, 64
    %v6839 = vpop.permute.xlu0 %6838
    %6840 = vrot.lane.b32.xlu0 %v6725, 64
    %v6841 = vpop.permute.xlu0 %6840
    %6842 = vrot.lane.b32.xlu0 %v6739, 64
    %v6843 = vpop.permute.xlu0 %6842
    %6844 = vrot.lane.b32.xlu0 %v6753, 64
    %v6845 = vpop.permute.xlu0 %6844
    %6846 = vrot.lane.b32.xlu0 %v6767, 64
    %v6847 = vpop.permute.xlu0 %6846
    %6848 = vrot.lane.b32.xlu0 %v6781, 64
    %v6849 = vpop.permute.xlu0 %6848
    %6850 = vrot.lane.b32.xlu0 %v6795, 64
    %v6851 = vpop.permute.xlu0 %6850
    %6852 = vrot.lane.b32.xlu0 %v6809, 64
    %v6853 = vpop.permute.xlu0 %6852
    %6854 = vrot.lane.b32.xlu0 %v6823, 64
    %v6855 = vpop.permute.xlu0 %6854
    %v6872 = vrot.slane %v6097, 2
    %v6873 = vrot.slane %v6098, 1
    %v6874 = vsel %vm6354, %v6873, %v6872
    %v6875 = vsel %vm6357, %v6099, %v6874
    %v6876 = vrot.slane %v6100, 7
    %v6877 = vsel %vm6360, %v6876, %v6875
    %v6878 = vrot.slane %v6101, 6
    %v6879 = vsel %vm6363, %v6878, %v6877
    %v6880 = vrot.slane %v6102, 5
    %v6881 = vsel %vm6366, %v6880, %v6879
    %v6882 = vrot.slane %v6103, 4
    %v6883 = vsel %vm6369, %v6882, %v6881
    %v6884 = vrot.slane %v6104, 3
    %v6885 = vsel %vm6372, %v6884, %v6883
    %v6886 = vrot.slane %v6105, 2
    %v6887 = vrot.slane %v6106, 1
    %v6888 = vsel %vm6354, %v6887, %v6886
    %v6889 = vsel %vm6357, %v6107, %v6888
    %v6890 = vrot.slane %v6108, 7
    %v6891 = vsel %vm6360, %v6890, %v6889
    %v6892 = vrot.slane %v6109, 6
    %v6893 = vsel %vm6363, %v6892, %v6891
    %v6894 = vrot.slane %v6110, 5
    %v6895 = vsel %vm6366, %v6894, %v6893
    %v6896 = vrot.slane %v6111, 4
    %v6897 = vsel %vm6369, %v6896, %v6895
    %v6898 = vrot.slane %v6112, 3
    %v6899 = vsel %vm6372, %v6898, %v6897
    %v6900 = vrot.slane %v6113, 2
    %v6901 = vrot.slane %v6114, 1
    %v6902 = vsel %vm6354, %v6901, %v6900
    %v6903 = vsel %vm6357, %v6115, %v6902
    %v6904 = vrot.slane %v6116, 7
    %v6905 = vsel %vm6360, %v6904, %v6903
    %v6906 = vrot.slane %v6117, 6
    %v6907 = vsel %vm6363, %v6906, %v6905
    %v6908 = vrot.slane %v6118, 5
    %v6909 = vsel %vm6366, %v6908, %v6907
    %v6910 = vrot.slane %v6119, 4
    %v6911 = vsel %vm6369, %v6910, %v6909
    %v6912 = vrot.slane %v6120, 3
    %v6913 = vsel %vm6372, %v6912, %v6911
    %v6914 = vrot.slane %v6121, 2
    %v6915 = vrot.slane %v6122, 1
    %v6916 = vsel %vm6354, %v6915, %v6914
    %v6917 = vsel %vm6357, %v6123, %v6916
    %v6918 = vrot.slane %v6124, 7
    %v6919 = vsel %vm6360, %v6918, %v6917
    %v6920 = vrot.slane %v6125, 6
    %v6921 = vsel %vm6363, %v6920, %v6919
    %v6922 = vrot.slane %v6126, 5
    %v6923 = vsel %vm6366, %v6922, %v6921
    %v6924 = vrot.slane %v6127, 4
    %v6925 = vsel %vm6369, %v6924, %v6923
    %v6926 = vrot.slane %v6128, 3
    %v6927 = vsel %vm6372, %v6926, %v6925
    %v6928 = vrot.slane %v6129, 2
    %v6929 = vrot.slane %v6130, 1
    %v6930 = vsel %vm6354, %v6929, %v6928
    %v6931 = vsel %vm6357, %v6131, %v6930
    %v6932 = vrot.slane %v6132, 7
    %v6933 = vsel %vm6360, %v6932, %v6931
    %v6934 = vrot.slane %v6133, 6
    %v6935 = vsel %vm6363, %v6934, %v6933
    %v6936 = vrot.slane %v6134, 5
    %v6937 = vsel %vm6366, %v6936, %v6935
    %v6938 = vrot.slane %v6135, 4
    %v6939 = vsel %vm6369, %v6938, %v6937
    %v6940 = vrot.slane %v6136, 3
    %v6941 = vsel %vm6372, %v6940, %v6939
    %v6942 = vrot.slane %v6137, 2
    %v6943 = vrot.slane %v6138, 1
    %v6944 = vsel %vm6354, %v6943, %v6942
    %v6945 = vsel %vm6357, %v6139, %v6944
    %v6946 = vrot.slane %v6140, 7
    %v6947 = vsel %vm6360, %v6946, %v6945
    %v6948 = vrot.slane %v6141, 6
    %v6949 = vsel %vm6363, %v6948, %v6947
    %v6950 = vrot.slane %v6142, 5
    %v6951 = vsel %vm6366, %v6950, %v6949
    %v6952 = vrot.slane %v6143, 4
    %v6953 = vsel %vm6369, %v6952, %v6951
    %v6954 = vrot.slane %v6144, 3
    %v6955 = vsel %vm6372, %v6954, %v6953
    %v6956 = vrot.slane %v6145, 2
    %v6957 = vrot.slane %v6146, 1
    %v6958 = vsel %vm6354, %v6957, %v6956
    %v6959 = vsel %vm6357, %v6147, %v6958
    %v6960 = vrot.slane %v6148, 7
    %v6961 = vsel %vm6360, %v6960, %v6959
    %v6962 = vrot.slane %v6149, 6
    %v6963 = vsel %vm6363, %v6962, %v6961
    %v6964 = vrot.slane %v6150, 5
    %v6965 = vsel %vm6366, %v6964, %v6963
    %v6966 = vrot.slane %v6151, 4
    %v6967 = vsel %vm6369, %v6966, %v6965
    %v6968 = vrot.slane %v6152, 3
    %v6969 = vsel %vm6372, %v6968, %v6967
    %v6970 = vrot.slane %v6153, 2
    %v6971 = vrot.slane %v6154, 1
    %v6972 = vsel %vm6354, %v6971, %v6970
    %v6973 = vsel %vm6357, %v6155, %v6972
    %v6974 = vrot.slane %v6156, 7
    %v6975 = vsel %vm6360, %v6974, %v6973
    %v6976 = vrot.slane %v6157, 6
    %v6977 = vsel %vm6363, %v6976, %v6975
    %v6978 = vrot.slane %v6158, 5
    %v6979 = vsel %vm6366, %v6978, %v6977
    %v6980 = vrot.slane %v6159, 4
    %v6981 = vsel %vm6369, %v6980, %v6979
    %v6982 = vrot.slane %v6160, 3
    %v6983 = vsel %vm6372, %v6982, %v6981
    %v6984 = vrot.slane %v6161, 2
    %v6985 = vrot.slane %v6162, 1
    %v6986 = vsel %vm6354, %v6985, %v6984
    %v6987 = vsel %vm6357, %v6163, %v6986
    %v6988 = vrot.slane %v6164, 7
    %v6989 = vsel %vm6360, %v6988, %v6987
    %v6990 = vrot.slane %v6165, 6
    %v6991 = vsel %vm6363, %v6990, %v6989
    %v6992 = vrot.slane %v6166, 5
    %v6993 = vsel %vm6366, %v6992, %v6991
    %v6994 = vrot.slane %v6167, 4
    %v6995 = vsel %vm6369, %v6994, %v6993
    %v6996 = vrot.slane %v6168, 3
    %v6997 = vsel %vm6372, %v6996, %v6995
    %v6998 = vrot.slane %v6169, 2
    %v6999 = vrot.slane %v6170, 1
    %v7000 = vsel %vm6354, %v6999, %v6998
    %v7001 = vsel %vm6357, %v6171, %v7000
    %v7002 = vrot.slane %v6172, 7
    %v7003 = vsel %vm6360, %v7002, %v7001
    %v7004 = vrot.slane %v6173, 6
    %v7005 = vsel %vm6363, %v7004, %v7003
    %v7006 = vrot.slane %v6174, 5
    %v7007 = vsel %vm6366, %v7006, %v7005
    %v7008 = vrot.slane %v6175, 4
    %v7009 = vsel %vm6369, %v7008, %v7007
    %v7010 = vrot.slane %v6176, 3
    %v7011 = vsel %vm6372, %v7010, %v7009
    %v7012 = vrot.slane %v6177, 2
    %v7013 = vrot.slane %v6178, 1
    %v7014 = vsel %vm6354, %v7013, %v7012
    %v7015 = vsel %vm6357, %v6179, %v7014
    %v7016 = vrot.slane %v6180, 7
    %v7017 = vsel %vm6360, %v7016, %v7015
    %v7018 = vrot.slane %v6181, 6
    %v7019 = vsel %vm6363, %v7018, %v7017
    %v7020 = vrot.slane %v6182, 5
    %v7021 = vsel %vm6366, %v7020, %v7019
    %v7022 = vrot.slane %v6183, 4
    %v7023 = vsel %vm6369, %v7022, %v7021
    %v7024 = vrot.slane %v6184, 3
    %v7025 = vsel %vm6372, %v7024, %v7023
    %v7026 = vrot.slane %v6185, 2
    %v7027 = vrot.slane %v6186, 1
    %v7028 = vsel %vm6354, %v7027, %v7026
    %v7029 = vsel %vm6357, %v6187, %v7028
    %v7030 = vrot.slane %v6188, 7
    %v7031 = vsel %vm6360, %v7030, %v7029
    %v7032 = vrot.slane %v6189, 6
    %v7033 = vsel %vm6363, %v7032, %v7031
    %v7034 = vrot.slane %v6190, 5
    %v7035 = vsel %vm6366, %v7034, %v7033
    %v7036 = vrot.slane %v6191, 4
    %v7037 = vsel %vm6369, %v7036, %v7035
    %v7038 = vrot.slane %v6192, 3
    %v7039 = vsel %vm6372, %v7038, %v7037
    %v7040 = vrot.slane %v6193, 2
    %v7041 = vrot.slane %v6194, 1
    %v7042 = vsel %vm6354, %v7041, %v7040
    %v7043 = vsel %vm6357, %v6195, %v7042
    %v7044 = vrot.slane %v6196, 7
    %v7045 = vsel %vm6360, %v7044, %v7043
    %v7046 = vrot.slane %v6197, 6
    %v7047 = vsel %vm6363, %v7046, %v7045
    %v7048 = vrot.slane %v6198, 5
    %v7049 = vsel %vm6366, %v7048, %v7047
    %v7050 = vrot.slane %v6199, 4
    %v7051 = vsel %vm6369, %v7050, %v7049
    %v7052 = vrot.slane %v6200, 3
    %v7053 = vsel %vm6372, %v7052, %v7051
    %v7054 = vrot.slane %v6201, 2
    %v7055 = vrot.slane %v6202, 1
    %v7056 = vsel %vm6354, %v7055, %v7054
    %v7057 = vsel %vm6357, %v6203, %v7056
    %v7058 = vrot.slane %v6204, 7
    %v7059 = vsel %vm6360, %v7058, %v7057
    %v7060 = vrot.slane %v6205, 6
    %v7061 = vsel %vm6363, %v7060, %v7059
    %v7062 = vrot.slane %v6206, 5
    %v7063 = vsel %vm6366, %v7062, %v7061
    %v7064 = vrot.slane %v6207, 4
    %v7065 = vsel %vm6369, %v7064, %v7063
    %v7066 = vrot.slane %v6208, 3
    %v7067 = vsel %vm6372, %v7066, %v7065
    %v7068 = vrot.slane %v6209, 2
    %v7069 = vrot.slane %v6210, 1
    %v7070 = vsel %vm6354, %v7069, %v7068
    %v7071 = vsel %vm6357, %v6211, %v7070
    %v7072 = vrot.slane %v6212, 7
    %v7073 = vsel %vm6360, %v7072, %v7071
    %v7074 = vrot.slane %v6213, 6
    %v7075 = vsel %vm6363, %v7074, %v7073
    %v7076 = vrot.slane %v6214, 5
    %v7077 = vsel %vm6366, %v7076, %v7075
    %v7078 = vrot.slane %v6215, 4
    %v7079 = vsel %vm6369, %v7078, %v7077
    %v7080 = vrot.slane %v6216, 3
    %v7081 = vsel %vm6372, %v7080, %v7079
    %v7082 = vrot.slane %v6217, 2
    %v7083 = vrot.slane %v6218, 1
    %v7084 = vsel %vm6354, %v7083, %v7082
    %v7085 = vsel %vm6357, %v6219, %v7084
    %v7086 = vrot.slane %v6220, 7
    %v7087 = vsel %vm6360, %v7086, %v7085
    %v7088 = vrot.slane %v6221, 6
    %v7089 = vsel %vm6363, %v7088, %v7087
    %v7090 = vrot.slane %v6222, 5
    %v7091 = vsel %vm6366, %v7090, %v7089
    %v7092 = vrot.slane %v6223, 4
    %v7093 = vsel %vm6369, %v7092, %v7091
    %v7094 = vrot.slane %v6224, 3
    %v7095 = vsel %vm6372, %v7094, %v7093
    %v7112 = vrot.slane %v6097, 3
    %v7113 = vrot.slane %v6098, 2
    %v7114 = vsel %vm6354, %v7113, %v7112
    %v7115 = vrot.slane %v6099, 1
    %v7116 = vsel %vm6357, %v7115, %v7114
    %v7117 = vsel %vm6360, %v6100, %v7116
    %v7118 = vrot.slane %v6101, 7
    %v7119 = vsel %vm6363, %v7118, %v7117
    %v7120 = vrot.slane %v6102, 6
    %v7121 = vsel %vm6366, %v7120, %v7119
    %v7122 = vrot.slane %v6103, 5
    %v7123 = vsel %vm6369, %v7122, %v7121
    %v7124 = vrot.slane %v6104, 4
    %v7125 = vsel %vm6372, %v7124, %v7123
    %v7126 = vrot.slane %v6105, 3
    %v7127 = vrot.slane %v6106, 2
    %v7128 = vsel %vm6354, %v7127, %v7126
    %v7129 = vrot.slane %v6107, 1
    %v7130 = vsel %vm6357, %v7129, %v7128
    %v7131 = vsel %vm6360, %v6108, %v7130
    %v7132 = vrot.slane %v6109, 7
    %v7133 = vsel %vm6363, %v7132, %v7131
    %v7134 = vrot.slane %v6110, 6
    %v7135 = vsel %vm6366, %v7134, %v7133
    %v7136 = vrot.slane %v6111, 5
    %v7137 = vsel %vm6369, %v7136, %v7135
    %v7138 = vrot.slane %v6112, 4
    %v7139 = vsel %vm6372, %v7138, %v7137
    %v7140 = vrot.slane %v6113, 3
    %v7141 = vrot.slane %v6114, 2
    %v7142 = vsel %vm6354, %v7141, %v7140
    %v7143 = vrot.slane %v6115, 1
    %v7144 = vsel %vm6357, %v7143, %v7142
    %v7145 = vsel %vm6360, %v6116, %v7144
    %v7146 = vrot.slane %v6117, 7
    %v7147 = vsel %vm6363, %v7146, %v7145
    %v7148 = vrot.slane %v6118, 6
    %v7149 = vsel %vm6366, %v7148, %v7147
    %v7150 = vrot.slane %v6119, 5
    %v7151 = vsel %vm6369, %v7150, %v7149
    %v7152 = vrot.slane %v6120, 4
    %v7153 = vsel %vm6372, %v7152, %v7151
    %v7154 = vrot.slane %v6121, 3
    %v7155 = vrot.slane %v6122, 2
    %v7156 = vsel %vm6354, %v7155, %v7154
    %v7157 = vrot.slane %v6123, 1
    %v7158 = vsel %vm6357, %v7157, %v7156
    %v7159 = vsel %vm6360, %v6124, %v7158
    %v7160 = vrot.slane %v6125, 7
    %v7161 = vsel %vm6363, %v7160, %v7159
    %v7162 = vrot.slane %v6126, 6
    %v7163 = vsel %vm6366, %v7162, %v7161
    %v7164 = vrot.slane %v6127, 5
    %v7165 = vsel %vm6369, %v7164, %v7163
    %v7166 = vrot.slane %v6128, 4
    %v7167 = vsel %vm6372, %v7166, %v7165
    %v7168 = vrot.slane %v6129, 3
    %v7169 = vrot.slane %v6130, 2
    %v7170 = vsel %vm6354, %v7169, %v7168
    %v7171 = vrot.slane %v6131, 1
    %v7172 = vsel %vm6357, %v7171, %v7170
    %v7173 = vsel %vm6360, %v6132, %v7172
    %v7174 = vrot.slane %v6133, 7
    %v7175 = vsel %vm6363, %v7174, %v7173
    %v7176 = vrot.slane %v6134, 6
    %v7177 = vsel %vm6366, %v7176, %v7175
    %v7178 = vrot.slane %v6135, 5
    %v7179 = vsel %vm6369, %v7178, %v7177
    %v7180 = vrot.slane %v6136, 4
    %v7181 = vsel %vm6372, %v7180, %v7179
    %v7182 = vrot.slane %v6137, 3
    %v7183 = vrot.slane %v6138, 2
    %v7184 = vsel %vm6354, %v7183, %v7182
    %v7185 = vrot.slane %v6139, 1
    %v7186 = vsel %vm6357, %v7185, %v7184
    %v7187 = vsel %vm6360, %v6140, %v7186
    %v7188 = vrot.slane %v6141, 7
    %v7189 = vsel %vm6363, %v7188, %v7187
    %v7190 = vrot.slane %v6142, 6
    %v7191 = vsel %vm6366, %v7190, %v7189
    %v7192 = vrot.slane %v6143, 5
    %v7193 = vsel %vm6369, %v7192, %v7191
    %v7194 = vrot.slane %v6144, 4
    %v7195 = vsel %vm6372, %v7194, %v7193
    %v7196 = vrot.slane %v6145, 3
    %v7197 = vrot.slane %v6146, 2
    %v7198 = vsel %vm6354, %v7197, %v7196
    %v7199 = vrot.slane %v6147, 1
    %v7200 = vsel %vm6357, %v7199, %v7198
    %v7201 = vsel %vm6360, %v6148, %v7200
    %v7202 = vrot.slane %v6149, 7
    %v7203 = vsel %vm6363, %v7202, %v7201
    %v7204 = vrot.slane %v6150, 6
    %v7205 = vsel %vm6366, %v7204, %v7203
    %v7206 = vrot.slane %v6151, 5
    %v7207 = vsel %vm6369, %v7206, %v7205
    %v7208 = vrot.slane %v6152, 4
    %v7209 = vsel %vm6372, %v7208, %v7207
    %v7210 = vrot.slane %v6153, 3
    %v7211 = vrot.slane %v6154, 2
    %v7212 = vsel %vm6354, %v7211, %v7210
    %v7213 = vrot.slane %v6155, 1
    %v7214 = vsel %vm6357, %v7213, %v7212
    %v7215 = vsel %vm6360, %v6156, %v7214
    %v7216 = vrot.slane %v6157, 7
    %v7217 = vsel %vm6363, %v7216, %v7215
    %v7218 = vrot.slane %v6158, 6
    %v7219 = vsel %vm6366, %v7218, %v7217
    %v7220 = vrot.slane %v6159, 5
    %v7221 = vsel %vm6369, %v7220, %v7219
    %v7222 = vrot.slane %v6160, 4
    %v7223 = vsel %vm6372, %v7222, %v7221
    %v7224 = vrot.slane %v6161, 3
    %v7225 = vrot.slane %v6162, 2
    %v7226 = vsel %vm6354, %v7225, %v7224
    %v7227 = vrot.slane %v6163, 1
    %v7228 = vsel %vm6357, %v7227, %v7226
    %v7229 = vsel %vm6360, %v6164, %v7228
    %v7230 = vrot.slane %v6165, 7
    %v7231 = vsel %vm6363, %v7230, %v7229
    %v7232 = vrot.slane %v6166, 6
    %v7233 = vsel %vm6366, %v7232, %v7231
    %v7234 = vrot.slane %v6167, 5
    %v7235 = vsel %vm6369, %v7234, %v7233
    %v7236 = vrot.slane %v6168, 4
    %v7237 = vsel %vm6372, %v7236, %v7235
    %v7238 = vrot.slane %v6169, 3
    %v7239 = vrot.slane %v6170, 2
    %v7240 = vsel %vm6354, %v7239, %v7238
    %v7241 = vrot.slane %v6171, 1
    %v7242 = vsel %vm6357, %v7241, %v7240
    %v7243 = vsel %vm6360, %v6172, %v7242
    %v7244 = vrot.slane %v6173, 7
    %v7245 = vsel %vm6363, %v7244, %v7243
    %v7246 = vrot.slane %v6174, 6
    %v7247 = vsel %vm6366, %v7246, %v7245
    %v7248 = vrot.slane %v6175, 5
    %v7249 = vsel %vm6369, %v7248, %v7247
    %v7250 = vrot.slane %v6176, 4
    %v7251 = vsel %vm6372, %v7250, %v7249
    %v7252 = vrot.slane %v6177, 3
    %v7253 = vrot.slane %v6178, 2
    %v7254 = vsel %vm6354, %v7253, %v7252
    %v7255 = vrot.slane %v6179, 1
    %v7256 = vsel %vm6357, %v7255, %v7254
    %v7257 = vsel %vm6360, %v6180, %v7256
    %v7258 = vrot.slane %v6181, 7
    %v7259 = vsel %vm6363, %v7258, %v7257
    %v7260 = vrot.slane %v6182, 6
    %v7261 = vsel %vm6366, %v7260, %v7259
    %v7262 = vrot.slane %v6183, 5
    %v7263 = vsel %vm6369, %v7262, %v7261
    %v7264 = vrot.slane %v6184, 4
    %v7265 = vsel %vm6372, %v7264, %v7263
    %v7266 = vrot.slane %v6185, 3
    %v7267 = vrot.slane %v6186, 2
    %v7268 = vsel %vm6354, %v7267, %v7266
    %v7269 = vrot.slane %v6187, 1
    %v7270 = vsel %vm6357, %v7269, %v7268
    %v7271 = vsel %vm6360, %v6188, %v7270
    %v7272 = vrot.slane %v6189, 7
    %v7273 = vsel %vm6363, %v7272, %v7271
    %v7274 = vrot.slane %v6190, 6
    %v7275 = vsel %vm6366, %v7274, %v7273
    %v7276 = vrot.slane %v6191, 5
    %v7277 = vsel %vm6369, %v7276, %v7275
    %v7278 = vrot.slane %v6192, 4
    %v7279 = vsel %vm6372, %v7278, %v7277
    %v7280 = vrot.slane %v6193, 3
    %v7281 = vrot.slane %v6194, 2
    %v7282 = vsel %vm6354, %v7281, %v7280
    %v7283 = vrot.slane %v6195, 1
    %v7284 = vsel %vm6357, %v7283, %v7282
    %v7285 = vsel %vm6360, %v6196, %v7284
    %v7286 = vrot.slane %v6197, 7
    %v7287 = vsel %vm6363, %v7286, %v7285
    %v7288 = vrot.slane %v6198, 6
    %v7289 = vsel %vm6366, %v7288, %v7287
    %v7290 = vrot.slane %v6199, 5
    %v7291 = vsel %vm6369, %v7290, %v7289
    %v7292 = vrot.slane %v6200, 4
    %v7293 = vsel %vm6372, %v7292, %v7291
    %v7294 = vrot.slane %v6201, 3
    %v7295 = vrot.slane %v6202, 2
    %v7296 = vsel %vm6354, %v7295, %v7294
    %v7297 = vrot.slane %v6203, 1
    %v7298 = vsel %vm6357, %v7297, %v7296
    %v7299 = vsel %vm6360, %v6204, %v7298
    %v7300 = vrot.slane %v6205, 7
    %v7301 = vsel %vm6363, %v7300, %v7299
    %v7302 = vrot.slane %v6206, 6
    %v7303 = vsel %vm6366, %v7302, %v7301
    %v7304 = vrot.slane %v6207, 5
    %v7305 = vsel %vm6369, %v7304, %v7303
    %v7306 = vrot.slane %v6208, 4
    %v7307 = vsel %vm6372, %v7306, %v7305
    %v7308 = vrot.slane %v6209, 3
    %v7309 = vrot.slane %v6210, 2
    %v7310 = vsel %vm6354, %v7309, %v7308
    %v7311 = vrot.slane %v6211, 1
    %v7312 = vsel %vm6357, %v7311, %v7310
    %v7313 = vsel %vm6360, %v6212, %v7312
    %v7314 = vrot.slane %v6213, 7
    %v7315 = vsel %vm6363, %v7314, %v7313
    %v7316 = vrot.slane %v6214, 6
    %v7317 = vsel %vm6366, %v7316, %v7315
    %v7318 = vrot.slane %v6215, 5
    %v7319 = vsel %vm6369, %v7318, %v7317
    %v7320 = vrot.slane %v6216, 4
    %v7321 = vsel %vm6372, %v7320, %v7319
    %v7322 = vrot.slane %v6217, 3
    %v7323 = vrot.slane %v6218, 2
    %v7324 = vsel %vm6354, %v7323, %v7322
    %v7325 = vrot.slane %v6219, 1
    %v7326 = vsel %vm6357, %v7325, %v7324
    %v7327 = vsel %vm6360, %v6220, %v7326
    %v7328 = vrot.slane %v6221, 7
    %v7329 = vsel %vm6363, %v7328, %v7327
    %v7330 = vrot.slane %v6222, 6
    %v7331 = vsel %vm6366, %v7330, %v7329
    %v7332 = vrot.slane %v6223, 5
    %v7333 = vsel %vm6369, %v7332, %v7331
    %v7334 = vrot.slane %v6224, 4
    %v7335 = vsel %vm6372, %v7334, %v7333
    %7336 = vrot.lane.b32.xlu0 %v7125, 64
    %v7337 = vpop.permute.xlu0 %7336
    %7338 = vrot.lane.b32.xlu0 %v7139, 64
    %v7339 = vpop.permute.xlu0 %7338
    %7340 = vrot.lane.b32.xlu0 %v7153, 64
    %v7341 = vpop.permute.xlu0 %7340
    %7342 = vrot.lane.b32.xlu0 %v7167, 64
    %v7343 = vpop.permute.xlu0 %7342
    %7344 = vrot.lane.b32.xlu0 %v7181, 64
    %v7345 = vpop.permute.xlu0 %7344
    %7346 = vrot.lane.b32.xlu0 %v7195, 64
    %v7347 = vpop.permute.xlu0 %7346
    %7348 = vrot.lane.b32.xlu0 %v7209, 64
    %v7349 = vpop.permute.xlu0 %7348
    %7350 = vrot.lane.b32.xlu0 %v7223, 64
    %v7351 = vpop.permute.xlu0 %7350
    %7352 = vrot.lane.b32.xlu0 %v7237, 64
    %v7353 = vpop.permute.xlu0 %7352
    %7354 = vrot.lane.b32.xlu0 %v7251, 64
    %v7355 = vpop.permute.xlu0 %7354
    %7356 = vrot.lane.b32.xlu0 %v7265, 64
    %v7357 = vpop.permute.xlu0 %7356
    %7358 = vrot.lane.b32.xlu0 %v7279, 64
    %v7359 = vpop.permute.xlu0 %7358
    %7360 = vrot.lane.b32.xlu0 %v7293, 64
    %v7361 = vpop.permute.xlu0 %7360
    %7362 = vrot.lane.b32.xlu0 %v7307, 64
    %v7363 = vpop.permute.xlu0 %7362
    %7364 = vrot.lane.b32.xlu0 %v7321, 64
    %v7365 = vpop.permute.xlu0 %7364
    %7366 = vrot.lane.b32.xlu0 %v7335, 64
    %v7367 = vpop.permute.xlu0 %7366
    %v7384 = vrot.slane %v6097, 4
    %v7385 = vrot.slane %v6098, 3
    %v7386 = vsel %vm6354, %v7385, %v7384
    %v7387 = vrot.slane %v6099, 2
    %v7388 = vsel %vm6357, %v7387, %v7386
    %v7389 = vrot.slane %v6100, 1
    %v7390 = vsel %vm6360, %v7389, %v7388
    %v7391 = vsel %vm6363, %v6101, %v7390
    %v7392 = vrot.slane %v6102, 7
    %v7393 = vsel %vm6366, %v7392, %v7391
    %v7394 = vrot.slane %v6103, 6
    %v7395 = vsel %vm6369, %v7394, %v7393
    %v7396 = vrot.slane %v6104, 5
    %v7397 = vsel %vm6372, %v7396, %v7395
    %v7398 = vrot.slane %v6105, 4
    %v7399 = vrot.slane %v6106, 3
    %v7400 = vsel %vm6354, %v7399, %v7398
    %v7401 = vrot.slane %v6107, 2
    %v7402 = vsel %vm6357, %v7401, %v7400
    %v7403 = vrot.slane %v6108, 1
    %v7404 = vsel %vm6360, %v7403, %v7402
    %v7405 = vsel %vm6363, %v6109, %v7404
    %v7406 = vrot.slane %v6110, 7
    %v7407 = vsel %vm6366, %v7406, %v7405
    %v7408 = vrot.slane %v6111, 6
    %v7409 = vsel %vm6369, %v7408, %v7407
    %v7410 = vrot.slane %v6112, 5
    %v7411 = vsel %vm6372, %v7410, %v7409
    %v7412 = vrot.slane %v6113, 4
    %v7413 = vrot.slane %v6114, 3
    %v7414 = vsel %vm6354, %v7413, %v7412
    %v7415 = vrot.slane %v6115, 2
    %v7416 = vsel %vm6357, %v7415, %v7414
    %v7417 = vrot.slane %v6116, 1
    %v7418 = vsel %vm6360, %v7417, %v7416
    %v7419 = vsel %vm6363, %v6117, %v7418
    %v7420 = vrot.slane %v6118, 7
    %v7421 = vsel %vm6366, %v7420, %v7419
    %v7422 = vrot.slane %v6119, 6
    %v7423 = vsel %vm6369, %v7422, %v7421
    %v7424 = vrot.slane %v6120, 5
    %v7425 = vsel %vm6372, %v7424, %v7423
    %v7426 = vrot.slane %v6121, 4
    %v7427 = vrot.slane %v6122, 3
    %v7428 = vsel %vm6354, %v7427, %v7426
    %v7429 = vrot.slane %v6123, 2
    %v7430 = vsel %vm6357, %v7429, %v7428
    %v7431 = vrot.slane %v6124, 1
    %v7432 = vsel %vm6360, %v7431, %v7430
    %v7433 = vsel %vm6363, %v6125, %v7432
    %v7434 = vrot.slane %v6126, 7
    %v7435 = vsel %vm6366, %v7434, %v7433
    %v7436 = vrot.slane %v6127, 6
    %v7437 = vsel %vm6369, %v7436, %v7435
    %v7438 = vrot.slane %v6128, 5
    %v7439 = vsel %vm6372, %v7438, %v7437
    %v7440 = vrot.slane %v6129, 4
    %v7441 = vrot.slane %v6130, 3
    %v7442 = vsel %vm6354, %v7441, %v7440
    %v7443 = vrot.slane %v6131, 2
    %v7444 = vsel %vm6357, %v7443, %v7442
    %v7445 = vrot.slane %v6132, 1
    %v7446 = vsel %vm6360, %v7445, %v7444
    %v7447 = vsel %vm6363, %v6133, %v7446
    %v7448 = vrot.slane %v6134, 7
    %v7449 = vsel %vm6366, %v7448, %v7447
    %v7450 = vrot.slane %v6135, 6
    %v7451 = vsel %vm6369, %v7450, %v7449
    %v7452 = vrot.slane %v6136, 5
    %v7453 = vsel %vm6372, %v7452, %v7451
    %v7454 = vrot.slane %v6137, 4
    %v7455 = vrot.slane %v6138, 3
    %v7456 = vsel %vm6354, %v7455, %v7454
    %v7457 = vrot.slane %v6139, 2
    %v7458 = vsel %vm6357, %v7457, %v7456
    %v7459 = vrot.slane %v6140, 1
    %v7460 = vsel %vm6360, %v7459, %v7458
    %v7461 = vsel %vm6363, %v6141, %v7460
    %v7462 = vrot.slane %v6142, 7
    %v7463 = vsel %vm6366, %v7462, %v7461
    %v7464 = vrot.slane %v6143, 6
    %v7465 = vsel %vm6369, %v7464, %v7463
    %v7466 = vrot.slane %v6144, 5
    %v7467 = vsel %vm6372, %v7466, %v7465
    %v7468 = vrot.slane %v6145, 4
    %v7469 = vrot.slane %v6146, 3
    %v7470 = vsel %vm6354, %v7469, %v7468
    %v7471 = vrot.slane %v6147, 2
    %v7472 = vsel %vm6357, %v7471, %v7470
    %v7473 = vrot.slane %v6148, 1
    %v7474 = vsel %vm6360, %v7473, %v7472
    %v7475 = vsel %vm6363, %v6149, %v7474
    %v7476 = vrot.slane %v6150, 7
    %v7477 = vsel %vm6366, %v7476, %v7475
    %v7478 = vrot.slane %v6151, 6
    %v7479 = vsel %vm6369, %v7478, %v7477
    %v7480 = vrot.slane %v6152, 5
    %v7481 = vsel %vm6372, %v7480, %v7479
    %v7482 = vrot.slane %v6153, 4
    %v7483 = vrot.slane %v6154, 3
    %v7484 = vsel %vm6354, %v7483, %v7482
    %v7485 = vrot.slane %v6155, 2
    %v7486 = vsel %vm6357, %v7485, %v7484
    %v7487 = vrot.slane %v6156, 1
    %v7488 = vsel %vm6360, %v7487, %v7486
    %v7489 = vsel %vm6363, %v6157, %v7488
    %v7490 = vrot.slane %v6158, 7
    %v7491 = vsel %vm6366, %v7490, %v7489
    %v7492 = vrot.slane %v6159, 6
    %v7493 = vsel %vm6369, %v7492, %v7491
    %v7494 = vrot.slane %v6160, 5
    %v7495 = vsel %vm6372, %v7494, %v7493
    %v7496 = vrot.slane %v6161, 4
    %v7497 = vrot.slane %v6162, 3
    %v7498 = vsel %vm6354, %v7497, %v7496
    %v7499 = vrot.slane %v6163, 2
    %v7500 = vsel %vm6357, %v7499, %v7498
    %v7501 = vrot.slane %v6164, 1
    %v7502 = vsel %vm6360, %v7501, %v7500
    %v7503 = vsel %vm6363, %v6165, %v7502
    %v7504 = vrot.slane %v6166, 7
    %v7505 = vsel %vm6366, %v7504, %v7503
    %v7506 = vrot.slane %v6167, 6
    %v7507 = vsel %vm6369, %v7506, %v7505
    %v7508 = vrot.slane %v6168, 5
    %v7509 = vsel %vm6372, %v7508, %v7507
    %v7510 = vrot.slane %v6169, 4
    %v7511 = vrot.slane %v6170, 3
    %v7512 = vsel %vm6354, %v7511, %v7510
    %v7513 = vrot.slane %v6171, 2
    %v7514 = vsel %vm6357, %v7513, %v7512
    %v7515 = vrot.slane %v6172, 1
    %v7516 = vsel %vm6360, %v7515, %v7514
    %v7517 = vsel %vm6363, %v6173, %v7516
    %v7518 = vrot.slane %v6174, 7
    %v7519 = vsel %vm6366, %v7518, %v7517
    %v7520 = vrot.slane %v6175, 6
    %v7521 = vsel %vm6369, %v7520, %v7519
    %v7522 = vrot.slane %v6176, 5
    %v7523 = vsel %vm6372, %v7522, %v7521
    %v7524 = vrot.slane %v6177, 4
    %v7525 = vrot.slane %v6178, 3
    %v7526 = vsel %vm6354, %v7525, %v7524
    %v7527 = vrot.slane %v6179, 2
    %v7528 = vsel %vm6357, %v7527, %v7526
    %v7529 = vrot.slane %v6180, 1
    %v7530 = vsel %vm6360, %v7529, %v7528
    %v7531 = vsel %vm6363, %v6181, %v7530
    %v7532 = vrot.slane %v6182, 7
    %v7533 = vsel %vm6366, %v7532, %v7531
    %v7534 = vrot.slane %v6183, 6
    %v7535 = vsel %vm6369, %v7534, %v7533
    %v7536 = vrot.slane %v6184, 5
    %v7537 = vsel %vm6372, %v7536, %v7535
    %v7538 = vrot.slane %v6185, 4
    %v7539 = vrot.slane %v6186, 3
    %v7540 = vsel %vm6354, %v7539, %v7538
    %v7541 = vrot.slane %v6187, 2
    %v7542 = vsel %vm6357, %v7541, %v7540
    %v7543 = vrot.slane %v6188, 1
    %v7544 = vsel %vm6360, %v7543, %v7542
    %v7545 = vsel %vm6363, %v6189, %v7544
    %v7546 = vrot.slane %v6190, 7
    %v7547 = vsel %vm6366, %v7546, %v7545
    %v7548 = vrot.slane %v6191, 6
    %v7549 = vsel %vm6369, %v7548, %v7547
    %v7550 = vrot.slane %v6192, 5
    %v7551 = vsel %vm6372, %v7550, %v7549
    %v7552 = vrot.slane %v6193, 4
    %v7553 = vrot.slane %v6194, 3
    %v7554 = vsel %vm6354, %v7553, %v7552
    %v7555 = vrot.slane %v6195, 2
    %v7556 = vsel %vm6357, %v7555, %v7554
    %v7557 = vrot.slane %v6196, 1
    %v7558 = vsel %vm6360, %v7557, %v7556
    %v7559 = vsel %vm6363, %v6197, %v7558
    %v7560 = vrot.slane %v6198, 7
    %v7561 = vsel %vm6366, %v7560, %v7559
    %v7562 = vrot.slane %v6199, 6
    %v7563 = vsel %vm6369, %v7562, %v7561
    %v7564 = vrot.slane %v6200, 5
    %v7565 = vsel %vm6372, %v7564, %v7563
    %v7566 = vrot.slane %v6201, 4
    %v7567 = vrot.slane %v6202, 3
    %v7568 = vsel %vm6354, %v7567, %v7566
    %v7569 = vrot.slane %v6203, 2
    %v7570 = vsel %vm6357, %v7569, %v7568
    %v7571 = vrot.slane %v6204, 1
    %v7572 = vsel %vm6360, %v7571, %v7570
    %v7573 = vsel %vm6363, %v6205, %v7572
    %v7574 = vrot.slane %v6206, 7
    %v7575 = vsel %vm6366, %v7574, %v7573
    %v7576 = vrot.slane %v6207, 6
    %v7577 = vsel %vm6369, %v7576, %v7575
    %v7578 = vrot.slane %v6208, 5
    %v7579 = vsel %vm6372, %v7578, %v7577
    %v7580 = vrot.slane %v6209, 4
    %v7581 = vrot.slane %v6210, 3
    %v7582 = vsel %vm6354, %v7581, %v7580
    %v7583 = vrot.slane %v6211, 2
    %v7584 = vsel %vm6357, %v7583, %v7582
    %v7585 = vrot.slane %v6212, 1
    %v7586 = vsel %vm6360, %v7585, %v7584
    %v7587 = vsel %vm6363, %v6213, %v7586
    %v7588 = vrot.slane %v6214, 7
    %v7589 = vsel %vm6366, %v7588, %v7587
    %v7590 = vrot.slane %v6215, 6
    %v7591 = vsel %vm6369, %v7590, %v7589
    %v7592 = vrot.slane %v6216, 5
    %v7593 = vsel %vm6372, %v7592, %v7591
    %v7594 = vrot.slane %v6217, 4
    %v7595 = vrot.slane %v6218, 3
    %v7596 = vsel %vm6354, %v7595, %v7594
    %v7597 = vrot.slane %v6219, 2
    %v7598 = vsel %vm6357, %v7597, %v7596
    %v7599 = vrot.slane %v6220, 1
    %v7600 = vsel %vm6360, %v7599, %v7598
    %v7601 = vsel %vm6363, %v6221, %v7600
    %v7602 = vrot.slane %v6222, 7
    %v7603 = vsel %vm6366, %v7602, %v7601
    %v7604 = vrot.slane %v6223, 6
    %v7605 = vsel %vm6369, %v7604, %v7603
    %v7606 = vrot.slane %v6224, 5
    %v7607 = vsel %vm6372, %v7606, %v7605
    %v7624 = vrot.slane %v6097, 5
    %v7625 = vrot.slane %v6098, 4
    %v7626 = vsel %vm6354, %v7625, %v7624
    %v7627 = vrot.slane %v6099, 3
    %v7628 = vsel %vm6357, %v7627, %v7626
    %v7629 = vrot.slane %v6100, 2
    %v7630 = vsel %vm6360, %v7629, %v7628
    %v7631 = vrot.slane %v6101, 1
    %v7632 = vsel %vm6363, %v7631, %v7630
    %v7633 = vsel %vm6366, %v6102, %v7632
    %v7634 = vrot.slane %v6103, 7
    %v7635 = vsel %vm6369, %v7634, %v7633
    %v7636 = vrot.slane %v6104, 6
    %v7637 = vsel %vm6372, %v7636, %v7635
    %v7638 = vrot.slane %v6105, 5
    %v7639 = vrot.slane %v6106, 4
    %v7640 = vsel %vm6354, %v7639, %v7638
    %v7641 = vrot.slane %v6107, 3
    %v7642 = vsel %vm6357, %v7641, %v7640
    %v7643 = vrot.slane %v6108, 2
    %v7644 = vsel %vm6360, %v7643, %v7642
    %v7645 = vrot.slane %v6109, 1
    %v7646 = vsel %vm6363, %v7645, %v7644
    %v7647 = vsel %vm6366, %v6110, %v7646
    %v7648 = vrot.slane %v6111, 7
    %v7649 = vsel %vm6369, %v7648, %v7647
    %v7650 = vrot.slane %v6112, 6
    %v7651 = vsel %vm6372, %v7650, %v7649
    %v7652 = vrot.slane %v6113, 5
    %v7653 = vrot.slane %v6114, 4
    %v7654 = vsel %vm6354, %v7653, %v7652
    %v7655 = vrot.slane %v6115, 3
    %v7656 = vsel %vm6357, %v7655, %v7654
    %v7657 = vrot.slane %v6116, 2
    %v7658 = vsel %vm6360, %v7657, %v7656
    %v7659 = vrot.slane %v6117, 1
    %v7660 = vsel %vm6363, %v7659, %v7658
    %v7661 = vsel %vm6366, %v6118, %v7660
    %v7662 = vrot.slane %v6119, 7
    %v7663 = vsel %vm6369, %v7662, %v7661
    %v7664 = vrot.slane %v6120, 6
    %v7665 = vsel %vm6372, %v7664, %v7663
    %v7666 = vrot.slane %v6121, 5
    %v7667 = vrot.slane %v6122, 4
    %v7668 = vsel %vm6354, %v7667, %v7666
    %v7669 = vrot.slane %v6123, 3
    %v7670 = vsel %vm6357, %v7669, %v7668
    %v7671 = vrot.slane %v6124, 2
    %v7672 = vsel %vm6360, %v7671, %v7670
    %v7673 = vrot.slane %v6125, 1
    %v7674 = vsel %vm6363, %v7673, %v7672
    %v7675 = vsel %vm6366, %v6126, %v7674
    %v7676 = vrot.slane %v6127, 7
    %v7677 = vsel %vm6369, %v7676, %v7675
    %v7678 = vrot.slane %v6128, 6
    %v7679 = vsel %vm6372, %v7678, %v7677
    %v7680 = vrot.slane %v6129, 5
    %v7681 = vrot.slane %v6130, 4
    %v7682 = vsel %vm6354, %v7681, %v7680
    %v7683 = vrot.slane %v6131, 3
    %v7684 = vsel %vm6357, %v7683, %v7682
    %v7685 = vrot.slane %v6132, 2
    %v7686 = vsel %vm6360, %v7685, %v7684
    %v7687 = vrot.slane %v6133, 1
    %v7688 = vsel %vm6363, %v7687, %v7686
    %v7689 = vsel %vm6366, %v6134, %v7688
    %v7690 = vrot.slane %v6135, 7
    %v7691 = vsel %vm6369, %v7690, %v7689
    %v7692 = vrot.slane %v6136, 6
    %v7693 = vsel %vm6372, %v7692, %v7691
    %v7694 = vrot.slane %v6137, 5
    %v7695 = vrot.slane %v6138, 4
    %v7696 = vsel %vm6354, %v7695, %v7694
    %v7697 = vrot.slane %v6139, 3
    %v7698 = vsel %vm6357, %v7697, %v7696
    %v7699 = vrot.slane %v6140, 2
    %v7700 = vsel %vm6360, %v7699, %v7698
    %v7701 = vrot.slane %v6141, 1
    %v7702 = vsel %vm6363, %v7701, %v7700
    %v7703 = vsel %vm6366, %v6142, %v7702
    %v7704 = vrot.slane %v6143, 7
    %v7705 = vsel %vm6369, %v7704, %v7703
    %v7706 = vrot.slane %v6144, 6
    %v7707 = vsel %vm6372, %v7706, %v7705
    %v7708 = vrot.slane %v6145, 5
    %v7709 = vrot.slane %v6146, 4
    %v7710 = vsel %vm6354, %v7709, %v7708
    %v7711 = vrot.slane %v6147, 3
    %v7712 = vsel %vm6357, %v7711, %v7710
    %v7713 = vrot.slane %v6148, 2
    %v7714 = vsel %vm6360, %v7713, %v7712
    %v7715 = vrot.slane %v6149, 1
    %v7716 = vsel %vm6363, %v7715, %v7714
    %v7717 = vsel %vm6366, %v6150, %v7716
    %v7718 = vrot.slane %v6151, 7
    %v7719 = vsel %vm6369, %v7718, %v7717
    %v7720 = vrot.slane %v6152, 6
    %v7721 = vsel %vm6372, %v7720, %v7719
    %v7722 = vrot.slane %v6153, 5
    %v7723 = vrot.slane %v6154, 4
    %v7724 = vsel %vm6354, %v7723, %v7722
    %v7725 = vrot.slane %v6155, 3
    %v7726 = vsel %vm6357, %v7725, %v7724
    %v7727 = vrot.slane %v6156, 2
    %v7728 = vsel %vm6360, %v7727, %v7726
    %v7729 = vrot.slane %v6157, 1
    %v7730 = vsel %vm6363, %v7729, %v7728
    %v7731 = vsel %vm6366, %v6158, %v7730
    %v7732 = vrot.slane %v6159, 7
    %v7733 = vsel %vm6369, %v7732, %v7731
    %v7734 = vrot.slane %v6160, 6
    %v7735 = vsel %vm6372, %v7734, %v7733
    %v7736 = vrot.slane %v6161, 5
    %v7737 = vrot.slane %v6162, 4
    %v7738 = vsel %vm6354, %v7737, %v7736
    %v7739 = vrot.slane %v6163, 3
    %v7740 = vsel %vm6357, %v7739, %v7738
    %v7741 = vrot.slane %v6164, 2
    %v7742 = vsel %vm6360, %v7741, %v7740
    %v7743 = vrot.slane %v6165, 1
    %v7744 = vsel %vm6363, %v7743, %v7742
    %v7745 = vsel %vm6366, %v6166, %v7744
    %v7746 = vrot.slane %v6167, 7
    %v7747 = vsel %vm6369, %v7746, %v7745
    %v7748 = vrot.slane %v6168, 6
    %v7749 = vsel %vm6372, %v7748, %v7747
    %v7750 = vrot.slane %v6169, 5
    %v7751 = vrot.slane %v6170, 4
    %v7752 = vsel %vm6354, %v7751, %v7750
    %v7753 = vrot.slane %v6171, 3
    %v7754 = vsel %vm6357, %v7753, %v7752
    %v7755 = vrot.slane %v6172, 2
    %v7756 = vsel %vm6360, %v7755, %v7754
    %v7757 = vrot.slane %v6173, 1
    %v7758 = vsel %vm6363, %v7757, %v7756
    %v7759 = vsel %vm6366, %v6174, %v7758
    %v7760 = vrot.slane %v6175, 7
    %v7761 = vsel %vm6369, %v7760, %v7759
    %v7762 = vrot.slane %v6176, 6
    %v7763 = vsel %vm6372, %v7762, %v7761
    %v7764 = vrot.slane %v6177, 5
    %v7765 = vrot.slane %v6178, 4
    %v7766 = vsel %vm6354, %v7765, %v7764
    %v7767 = vrot.slane %v6179, 3
    %v7768 = vsel %vm6357, %v7767, %v7766
    %v7769 = vrot.slane %v6180, 2
    %v7770 = vsel %vm6360, %v7769, %v7768
    %v7771 = vrot.slane %v6181, 1
    %v7772 = vsel %vm6363, %v7771, %v7770
    %v7773 = vsel %vm6366, %v6182, %v7772
    %v7774 = vrot.slane %v6183, 7
    %v7775 = vsel %vm6369, %v7774, %v7773
    %v7776 = vrot.slane %v6184, 6
    %v7777 = vsel %vm6372, %v7776, %v7775
    %v7778 = vrot.slane %v6185, 5
    %v7779 = vrot.slane %v6186, 4
    %v7780 = vsel %vm6354, %v7779, %v7778
    %v7781 = vrot.slane %v6187, 3
    %v7782 = vsel %vm6357, %v7781, %v7780
    %v7783 = vrot.slane %v6188, 2
    %v7784 = vsel %vm6360, %v7783, %v7782
    %v7785 = vrot.slane %v6189, 1
    %v7786 = vsel %vm6363, %v7785, %v7784
    %v7787 = vsel %vm6366, %v6190, %v7786
    %v7788 = vrot.slane %v6191, 7
    %v7789 = vsel %vm6369, %v7788, %v7787
    %v7790 = vrot.slane %v6192, 6
    %v7791 = vsel %vm6372, %v7790, %v7789
    %v7792 = vrot.slane %v6193, 5
    %v7793 = vrot.slane %v6194, 4
    %v7794 = vsel %vm6354, %v7793, %v7792
    %v7795 = vrot.slane %v6195, 3
    %v7796 = vsel %vm6357, %v7795, %v7794
    %v7797 = vrot.slane %v6196, 2
    %v7798 = vsel %vm6360, %v7797, %v7796
    %v7799 = vrot.slane %v6197, 1
    %v7800 = vsel %vm6363, %v7799, %v7798
    %v7801 = vsel %vm6366, %v6198, %v7800
    %v7802 = vrot.slane %v6199, 7
    %v7803 = vsel %vm6369, %v7802, %v7801
    %v7804 = vrot.slane %v6200, 6
    %v7805 = vsel %vm6372, %v7804, %v7803
    %v7806 = vrot.slane %v6201, 5
    %v7807 = vrot.slane %v6202, 4
    %v7808 = vsel %vm6354, %v7807, %v7806
    %v7809 = vrot.slane %v6203, 3
    %v7810 = vsel %vm6357, %v7809, %v7808
    %v7811 = vrot.slane %v6204, 2
    %v7812 = vsel %vm6360, %v7811, %v7810
    %v7813 = vrot.slane %v6205, 1
    %v7814 = vsel %vm6363, %v7813, %v7812
    %v7815 = vsel %vm6366, %v6206, %v7814
    %v7816 = vrot.slane %v6207, 7
    %v7817 = vsel %vm6369, %v7816, %v7815
    %v7818 = vrot.slane %v6208, 6
    %v7819 = vsel %vm6372, %v7818, %v7817
    %v7820 = vrot.slane %v6209, 5
    %v7821 = vrot.slane %v6210, 4
    %v7822 = vsel %vm6354, %v7821, %v7820
    %v7823 = vrot.slane %v6211, 3
    %v7824 = vsel %vm6357, %v7823, %v7822
    %v7825 = vrot.slane %v6212, 2
    %v7826 = vsel %vm6360, %v7825, %v7824
    %v7827 = vrot.slane %v6213, 1
    %v7828 = vsel %vm6363, %v7827, %v7826
    %v7829 = vsel %vm6366, %v6214, %v7828
    %v7830 = vrot.slane %v6215, 7
    %v7831 = vsel %vm6369, %v7830, %v7829
    %v7832 = vrot.slane %v6216, 6
    %v7833 = vsel %vm6372, %v7832, %v7831
    %v7834 = vrot.slane %v6217, 5
    %v7835 = vrot.slane %v6218, 4
    %v7836 = vsel %vm6354, %v7835, %v7834
    %v7837 = vrot.slane %v6219, 3
    %v7838 = vsel %vm6357, %v7837, %v7836
    %v7839 = vrot.slane %v6220, 2
    %v7840 = vsel %vm6360, %v7839, %v7838
    %v7841 = vrot.slane %v6221, 1
    %v7842 = vsel %vm6363, %v7841, %v7840
    %v7843 = vsel %vm6366, %v6222, %v7842
    %v7844 = vrot.slane %v6223, 7
    %v7845 = vsel %vm6369, %v7844, %v7843
    %v7846 = vrot.slane %v6224, 6
    %v7847 = vsel %vm6372, %v7846, %v7845
    %7848 = vrot.lane.b32.xlu0 %v7637, 64
    %v7849 = vpop.permute.xlu0 %7848
    %7850 = vrot.lane.b32.xlu0 %v7651, 64
    %v7851 = vpop.permute.xlu0 %7850
    %7852 = vrot.lane.b32.xlu0 %v7665, 64
    %v7853 = vpop.permute.xlu0 %7852
    %7854 = vrot.lane.b32.xlu0 %v7679, 64
    %v7855 = vpop.permute.xlu0 %7854
    %7856 = vrot.lane.b32.xlu0 %v7693, 64
    %v7857 = vpop.permute.xlu0 %7856
    %7858 = vrot.lane.b32.xlu0 %v7707, 64
    %v7859 = vpop.permute.xlu0 %7858
    %7860 = vrot.lane.b32.xlu0 %v7721, 64
    %v7861 = vpop.permute.xlu0 %7860
    %7862 = vrot.lane.b32.xlu0 %v7735, 64
    %v7863 = vpop.permute.xlu0 %7862
    %7864 = vrot.lane.b32.xlu0 %v7749, 64
    %v7865 = vpop.permute.xlu0 %7864
    %7866 = vrot.lane.b32.xlu0 %v7763, 64
    %v7867 = vpop.permute.xlu0 %7866
    %7868 = vrot.lane.b32.xlu0 %v7777, 64
    %v7869 = vpop.permute.xlu0 %7868
    %7870 = vrot.lane.b32.xlu0 %v7791, 64
    %v7871 = vpop.permute.xlu0 %7870
    %7872 = vrot.lane.b32.xlu0 %v7805, 64
    %v7873 = vpop.permute.xlu0 %7872
    %7874 = vrot.lane.b32.xlu0 %v7819, 64
    %v7875 = vpop.permute.xlu0 %7874
    %7876 = vrot.lane.b32.xlu0 %v7833, 64
    %v7877 = vpop.permute.xlu0 %7876
    %7878 = vrot.lane.b32.xlu0 %v7847, 64
    %v7879 = vpop.permute.xlu0 %7878
    %v7896 = vrot.slane %v6097, 6
    %v7897 = vrot.slane %v6098, 5
    %v7898 = vsel %vm6354, %v7897, %v7896
    %v7899 = vrot.slane %v6099, 4
    %v7900 = vsel %vm6357, %v7899, %v7898
    %v7901 = vrot.slane %v6100, 3
    %v7902 = vsel %vm6360, %v7901, %v7900
    %v7903 = vrot.slane %v6101, 2
    %v7904 = vsel %vm6363, %v7903, %v7902
    %v7905 = vrot.slane %v6102, 1
    %v7906 = vsel %vm6366, %v7905, %v7904
    %v7907 = vsel %vm6369, %v6103, %v7906
    %v7908 = vrot.slane %v6104, 7
    %v7909 = vsel %vm6372, %v7908, %v7907
    %v7910 = vrot.slane %v6105, 6
    %v7911 = vrot.slane %v6106, 5
    %v7912 = vsel %vm6354, %v7911, %v7910
    %v7913 = vrot.slane %v6107, 4
    %v7914 = vsel %vm6357, %v7913, %v7912
    %v7915 = vrot.slane %v6108, 3
    %v7916 = vsel %vm6360, %v7915, %v7914
    %v7917 = vrot.slane %v6109, 2
    %v7918 = vsel %vm6363, %v7917, %v7916
    %v7919 = vrot.slane %v6110, 1
    %v7920 = vsel %vm6366, %v7919, %v7918
    %v7921 = vsel %vm6369, %v6111, %v7920
    %v7922 = vrot.slane %v6112, 7
    %v7923 = vsel %vm6372, %v7922, %v7921
    %v7924 = vrot.slane %v6113, 6
    %v7925 = vrot.slane %v6114, 5
    %v7926 = vsel %vm6354, %v7925, %v7924
    %v7927 = vrot.slane %v6115, 4
    %v7928 = vsel %vm6357, %v7927, %v7926
    %v7929 = vrot.slane %v6116, 3
    %v7930 = vsel %vm6360, %v7929, %v7928
    %v7931 = vrot.slane %v6117, 2
    %v7932 = vsel %vm6363, %v7931, %v7930
    %v7933 = vrot.slane %v6118, 1
    %v7934 = vsel %vm6366, %v7933, %v7932
    %v7935 = vsel %vm6369, %v6119, %v7934
    %v7936 = vrot.slane %v6120, 7
    %v7937 = vsel %vm6372, %v7936, %v7935
    %v7938 = vrot.slane %v6121, 6
    %v7939 = vrot.slane %v6122, 5
    %v7940 = vsel %vm6354, %v7939, %v7938
    %v7941 = vrot.slane %v6123, 4
    %v7942 = vsel %vm6357, %v7941, %v7940
    %v7943 = vrot.slane %v6124, 3
    %v7944 = vsel %vm6360, %v7943, %v7942
    %v7945 = vrot.slane %v6125, 2
    %v7946 = vsel %vm6363, %v7945, %v7944
    %v7947 = vrot.slane %v6126, 1
    %v7948 = vsel %vm6366, %v7947, %v7946
    %v7949 = vsel %vm6369, %v6127, %v7948
    %v7950 = vrot.slane %v6128, 7
    %v7951 = vsel %vm6372, %v7950, %v7949
    %v7952 = vrot.slane %v6129, 6
    %v7953 = vrot.slane %v6130, 5
    %v7954 = vsel %vm6354, %v7953, %v7952
    %v7955 = vrot.slane %v6131, 4
    %v7956 = vsel %vm6357, %v7955, %v7954
    %v7957 = vrot.slane %v6132, 3
    %v7958 = vsel %vm6360, %v7957, %v7956
    %v7959 = vrot.slane %v6133, 2
    %v7960 = vsel %vm6363, %v7959, %v7958
    %v7961 = vrot.slane %v6134, 1
    %v7962 = vsel %vm6366, %v7961, %v7960
    %v7963 = vsel %vm6369, %v6135, %v7962
    %v7964 = vrot.slane %v6136, 7
    %v7965 = vsel %vm6372, %v7964, %v7963
    %v7966 = vrot.slane %v6137, 6
    %v7967 = vrot.slane %v6138, 5
    %v7968 = vsel %vm6354, %v7967, %v7966
    %v7969 = vrot.slane %v6139, 4
    %v7970 = vsel %vm6357, %v7969, %v7968
    %v7971 = vrot.slane %v6140, 3
    %v7972 = vsel %vm6360, %v7971, %v7970
    %v7973 = vrot.slane %v6141, 2
    %v7974 = vsel %vm6363, %v7973, %v7972
    %v7975 = vrot.slane %v6142, 1
    %v7976 = vsel %vm6366, %v7975, %v7974
    %v7977 = vsel %vm6369, %v6143, %v7976
    %v7978 = vrot.slane %v6144, 7
    %v7979 = vsel %vm6372, %v7978, %v7977
    %v7980 = vrot.slane %v6145, 6
    %v7981 = vrot.slane %v6146, 5
    %v7982 = vsel %vm6354, %v7981, %v7980
    %v7983 = vrot.slane %v6147, 4
    %v7984 = vsel %vm6357, %v7983, %v7982
    %v7985 = vrot.slane %v6148, 3
    %v7986 = vsel %vm6360, %v7985, %v7984
    %v7987 = vrot.slane %v6149, 2
    %v7988 = vsel %vm6363, %v7987, %v7986
    %v7989 = vrot.slane %v6150, 1
    %v7990 = vsel %vm6366, %v7989, %v7988
    %v7991 = vsel %vm6369, %v6151, %v7990
    %v7992 = vrot.slane %v6152, 7
    %v7993 = vsel %vm6372, %v7992, %v7991
    %v7994 = vrot.slane %v6153, 6
    %v7995 = vrot.slane %v6154, 5
    %v7996 = vsel %vm6354, %v7995, %v7994
    %v7997 = vrot.slane %v6155, 4
    %v7998 = vsel %vm6357, %v7997, %v7996
    %v7999 = vrot.slane %v6156, 3
    %v8000 = vsel %vm6360, %v7999, %v7998
    %v8001 = vrot.slane %v6157, 2
    %v8002 = vsel %vm6363, %v8001, %v8000
    %v8003 = vrot.slane %v6158, 1
    %v8004 = vsel %vm6366, %v8003, %v8002
    %v8005 = vsel %vm6369, %v6159, %v8004
    %v8006 = vrot.slane %v6160, 7
    %v8007 = vsel %vm6372, %v8006, %v8005
    %v8008 = vrot.slane %v6161, 6
    %v8009 = vrot.slane %v6162, 5
    %v8010 = vsel %vm6354, %v8009, %v8008
    %v8011 = vrot.slane %v6163, 4
    %v8012 = vsel %vm6357, %v8011, %v8010
    %v8013 = vrot.slane %v6164, 3
    %v8014 = vsel %vm6360, %v8013, %v8012
    %v8015 = vrot.slane %v6165, 2
    %v8016 = vsel %vm6363, %v8015, %v8014
    %v8017 = vrot.slane %v6166, 1
    %v8018 = vsel %vm6366, %v8017, %v8016
    %v8019 = vsel %vm6369, %v6167, %v8018
    %v8020 = vrot.slane %v6168, 7
    %v8021 = vsel %vm6372, %v8020, %v8019
    %v8022 = vrot.slane %v6169, 6
    %v8023 = vrot.slane %v6170, 5
    %v8024 = vsel %vm6354, %v8023, %v8022
    %v8025 = vrot.slane %v6171, 4
    %v8026 = vsel %vm6357, %v8025, %v8024
    %v8027 = vrot.slane %v6172, 3
    %v8028 = vsel %vm6360, %v8027, %v8026
    %v8029 = vrot.slane %v6173, 2
    %v8030 = vsel %vm6363, %v8029, %v8028
    %v8031 = vrot.slane %v6174, 1
    %v8032 = vsel %vm6366, %v8031, %v8030
    %v8033 = vsel %vm6369, %v6175, %v8032
    %v8034 = vrot.slane %v6176, 7
    %v8035 = vsel %vm6372, %v8034, %v8033
    %v8036 = vrot.slane %v6177, 6
    %v8037 = vrot.slane %v6178, 5
    %v8038 = vsel %vm6354, %v8037, %v8036
    %v8039 = vrot.slane %v6179, 4
    %v8040 = vsel %vm6357, %v8039, %v8038
    %v8041 = vrot.slane %v6180, 3
    %v8042 = vsel %vm6360, %v8041, %v8040
    %v8043 = vrot.slane %v6181, 2
    %v8044 = vsel %vm6363, %v8043, %v8042
    %v8045 = vrot.slane %v6182, 1
    %v8046 = vsel %vm6366, %v8045, %v8044
    %v8047 = vsel %vm6369, %v6183, %v8046
    %v8048 = vrot.slane %v6184, 7
    %v8049 = vsel %vm6372, %v8048, %v8047
    %v8050 = vrot.slane %v6185, 6
    %v8051 = vrot.slane %v6186, 5
    %v8052 = vsel %vm6354, %v8051, %v8050
    %v8053 = vrot.slane %v6187, 4
    %v8054 = vsel %vm6357, %v8053, %v8052
    %v8055 = vrot.slane %v6188, 3
    %v8056 = vsel %vm6360, %v8055, %v8054
    %v8057 = vrot.slane %v6189, 2
    %v8058 = vsel %vm6363, %v8057, %v8056
    %v8059 = vrot.slane %v6190, 1
    %v8060 = vsel %vm6366, %v8059, %v8058
    %v8061 = vsel %vm6369, %v6191, %v8060
    %v8062 = vrot.slane %v6192, 7
    %v8063 = vsel %vm6372, %v8062, %v8061
    %v8064 = vrot.slane %v6193, 6
    %v8065 = vrot.slane %v6194, 5
    %v8066 = vsel %vm6354, %v8065, %v8064
    %v8067 = vrot.slane %v6195, 4
    %v8068 = vsel %vm6357, %v8067, %v8066
    %v8069 = vrot.slane %v6196, 3
    %v8070 = vsel %vm6360, %v8069, %v8068
    %v8071 = vrot.slane %v6197, 2
    %v8072 = vsel %vm6363, %v8071, %v8070
    %v8073 = vrot.slane %v6198, 1
    %v8074 = vsel %vm6366, %v8073, %v8072
    %v8075 = vsel %vm6369, %v6199, %v8074
    %v8076 = vrot.slane %v6200, 7
    %v8077 = vsel %vm6372, %v8076, %v8075
    %v8078 = vrot.slane %v6201, 6
    %v8079 = vrot.slane %v6202, 5
    %v8080 = vsel %vm6354, %v8079, %v8078
    %v8081 = vrot.slane %v6203, 4
    %v8082 = vsel %vm6357, %v8081, %v8080
    %v8083 = vrot.slane %v6204, 3
    %v8084 = vsel %vm6360, %v8083, %v8082
    %v8085 = vrot.slane %v6205, 2
    %v8086 = vsel %vm6363, %v8085, %v8084
    %v8087 = vrot.slane %v6206, 1
    %v8088 = vsel %vm6366, %v8087, %v8086
    %v8089 = vsel %vm6369, %v6207, %v8088
    %v8090 = vrot.slane %v6208, 7
    %v8091 = vsel %vm6372, %v8090, %v8089
    %v8092 = vrot.slane %v6209, 6
    %v8093 = vrot.slane %v6210, 5
    %v8094 = vsel %vm6354, %v8093, %v8092
    %v8095 = vrot.slane %v6211, 4
    %v8096 = vsel %vm6357, %v8095, %v8094
    %v8097 = vrot.slane %v6212, 3
    %v8098 = vsel %vm6360, %v8097, %v8096
    %v8099 = vrot.slane %v6213, 2
    %v8100 = vsel %vm6363, %v8099, %v8098
    %v8101 = vrot.slane %v6214, 1
    %v8102 = vsel %vm6366, %v8101, %v8100
    %v8103 = vsel %vm6369, %v6215, %v8102
    %v8104 = vrot.slane %v6216, 7
    %v8105 = vsel %vm6372, %v8104, %v8103
    %v8106 = vrot.slane %v6217, 6
    %v8107 = vrot.slane %v6218, 5
    %v8108 = vsel %vm6354, %v8107, %v8106
    %v8109 = vrot.slane %v6219, 4
    %v8110 = vsel %vm6357, %v8109, %v8108
    %v8111 = vrot.slane %v6220, 3
    %v8112 = vsel %vm6360, %v8111, %v8110
    %v8113 = vrot.slane %v6221, 2
    %v8114 = vsel %vm6363, %v8113, %v8112
    %v8115 = vrot.slane %v6222, 1
    %v8116 = vsel %vm6366, %v8115, %v8114
    %v8117 = vsel %vm6369, %v6223, %v8116
    %v8118 = vrot.slane %v6224, 7
    %v8119 = vsel %vm6372, %v8118, %v8117
    %v8136 = vrot.slane %v6097, 7
    %v8137 = vrot.slane %v6098, 6
    %v8138 = vsel %vm6354, %v8137, %v8136
    %v8139 = vrot.slane %v6099, 5
    %v8140 = vsel %vm6357, %v8139, %v8138
    %v8141 = vrot.slane %v6100, 4
    %v8142 = vsel %vm6360, %v8141, %v8140
    %v8143 = vrot.slane %v6101, 3
    %v8144 = vsel %vm6363, %v8143, %v8142
    %v8145 = vrot.slane %v6102, 2
    %v8146 = vsel %vm6366, %v8145, %v8144
    %v8147 = vrot.slane %v6103, 1
    %v8148 = vsel %vm6369, %v8147, %v8146
    %v8149 = vsel %vm6372, %v6104, %v8148
    %v8150 = vrot.slane %v6105, 7
    %v8151 = vrot.slane %v6106, 6
    %v8152 = vsel %vm6354, %v8151, %v8150
    %v8153 = vrot.slane %v6107, 5
    %v8154 = vsel %vm6357, %v8153, %v8152
    %v8155 = vrot.slane %v6108, 4
    %v8156 = vsel %vm6360, %v8155, %v8154
    %v8157 = vrot.slane %v6109, 3
    %v8158 = vsel %vm6363, %v8157, %v8156
    %v8159 = vrot.slane %v6110, 2
    %v8160 = vsel %vm6366, %v8159, %v8158
    %v8161 = vrot.slane %v6111, 1
    %v8162 = vsel %vm6369, %v8161, %v8160
    %v8163 = vsel %vm6372, %v6112, %v8162
    %v8164 = vrot.slane %v6113, 7
    %v8165 = vrot.slane %v6114, 6
    %v8166 = vsel %vm6354, %v8165, %v8164
    %v8167 = vrot.slane %v6115, 5
    %v8168 = vsel %vm6357, %v8167, %v8166
    %v8169 = vrot.slane %v6116, 4
    %v8170 = vsel %vm6360, %v8169, %v8168
    %v8171 = vrot.slane %v6117, 3
    %v8172 = vsel %vm6363, %v8171, %v8170
    %v8173 = vrot.slane %v6118, 2
    %v8174 = vsel %vm6366, %v8173, %v8172
    %v8175 = vrot.slane %v6119, 1
    %v8176 = vsel %vm6369, %v8175, %v8174
    %v8177 = vsel %vm6372, %v6120, %v8176
    %v8178 = vrot.slane %v6121, 7
    %v8179 = vrot.slane %v6122, 6
    %v8180 = vsel %vm6354, %v8179, %v8178
    %v8181 = vrot.slane %v6123, 5
    %v8182 = vsel %vm6357, %v8181, %v8180
    %v8183 = vrot.slane %v6124, 4
    %v8184 = vsel %vm6360, %v8183, %v8182
    %v8185 = vrot.slane %v6125, 3
    %v8186 = vsel %vm6363, %v8185, %v8184
    %v8187 = vrot.slane %v6126, 2
    %v8188 = vsel %vm6366, %v8187, %v8186
    %v8189 = vrot.slane %v6127, 1
    %v8190 = vsel %vm6369, %v8189, %v8188
    %v8191 = vsel %vm6372, %v6128, %v8190
    %v8192 = vrot.slane %v6129, 7
    %v8193 = vrot.slane %v6130, 6
    %v8194 = vsel %vm6354, %v8193, %v8192
    %v8195 = vrot.slane %v6131, 5
    %v8196 = vsel %vm6357, %v8195, %v8194
    %v8197 = vrot.slane %v6132, 4
    %v8198 = vsel %vm6360, %v8197, %v8196
    %v8199 = vrot.slane %v6133, 3
    %v8200 = vsel %vm6363, %v8199, %v8198
    %v8201 = vrot.slane %v6134, 2
    %v8202 = vsel %vm6366, %v8201, %v8200
    %v8203 = vrot.slane %v6135, 1
    %v8204 = vsel %vm6369, %v8203, %v8202
    %v8205 = vsel %vm6372, %v6136, %v8204
    %v8206 = vrot.slane %v6137, 7
    %v8207 = vrot.slane %v6138, 6
    %v8208 = vsel %vm6354, %v8207, %v8206
    %v8209 = vrot.slane %v6139, 5
    %v8210 = vsel %vm6357, %v8209, %v8208
    %v8211 = vrot.slane %v6140, 4
    %v8212 = vsel %vm6360, %v8211, %v8210
    %v8213 = vrot.slane %v6141, 3
    %v8214 = vsel %vm6363, %v8213, %v8212
    %v8215 = vrot.slane %v6142, 2
    %v8216 = vsel %vm6366, %v8215, %v8214
    %v8217 = vrot.slane %v6143, 1
    %v8218 = vsel %vm6369, %v8217, %v8216
    %v8219 = vsel %vm6372, %v6144, %v8218
    %v8220 = vrot.slane %v6145, 7
    %v8221 = vrot.slane %v6146, 6
    %v8222 = vsel %vm6354, %v8221, %v8220
    %v8223 = vrot.slane %v6147, 5
    %v8224 = vsel %vm6357, %v8223, %v8222
    %v8225 = vrot.slane %v6148, 4
    %v8226 = vsel %vm6360, %v8225, %v8224
    %v8227 = vrot.slane %v6149, 3
    %v8228 = vsel %vm6363, %v8227, %v8226
    %v8229 = vrot.slane %v6150, 2
    %v8230 = vsel %vm6366, %v8229, %v8228
    %v8231 = vrot.slane %v6151, 1
    %v8232 = vsel %vm6369, %v8231, %v8230
    %v8233 = vsel %vm6372, %v6152, %v8232
    %v8234 = vrot.slane %v6153, 7
    %v8235 = vrot.slane %v6154, 6
    %v8236 = vsel %vm6354, %v8235, %v8234
    %v8237 = vrot.slane %v6155, 5
    %v8238 = vsel %vm6357, %v8237, %v8236
    %v8239 = vrot.slane %v6156, 4
    %v8240 = vsel %vm6360, %v8239, %v8238
    %v8241 = vrot.slane %v6157, 3
    %v8242 = vsel %vm6363, %v8241, %v8240
    %v8243 = vrot.slane %v6158, 2
    %v8244 = vsel %vm6366, %v8243, %v8242
    %v8245 = vrot.slane %v6159, 1
    %v8246 = vsel %vm6369, %v8245, %v8244
    %v8247 = vsel %vm6372, %v6160, %v8246
    %v8248 = vrot.slane %v6161, 7
    %v8249 = vrot.slane %v6162, 6
    %v8250 = vsel %vm6354, %v8249, %v8248
    %v8251 = vrot.slane %v6163, 5
    %v8252 = vsel %vm6357, %v8251, %v8250
    %v8253 = vrot.slane %v6164, 4
    %v8254 = vsel %vm6360, %v8253, %v8252
    %v8255 = vrot.slane %v6165, 3
    %v8256 = vsel %vm6363, %v8255, %v8254
    %v8257 = vrot.slane %v6166, 2
    %v8258 = vsel %vm6366, %v8257, %v8256
    %v8259 = vrot.slane %v6167, 1
    %v8260 = vsel %vm6369, %v8259, %v8258
    %v8261 = vsel %vm6372, %v6168, %v8260
    %v8262 = vrot.slane %v6169, 7
    %v8263 = vrot.slane %v6170, 6
    %v8264 = vsel %vm6354, %v8263, %v8262
    %v8265 = vrot.slane %v6171, 5
    %v8266 = vsel %vm6357, %v8265, %v8264
    %v8267 = vrot.slane %v6172, 4
    %v8268 = vsel %vm6360, %v8267, %v8266
    %v8269 = vrot.slane %v6173, 3
    %v8270 = vsel %vm6363, %v8269, %v8268
    %v8271 = vrot.slane %v6174, 2
    %v8272 = vsel %vm6366, %v8271, %v8270
    %v8273 = vrot.slane %v6175, 1
    %v8274 = vsel %vm6369, %v8273, %v8272
    %v8275 = vsel %vm6372, %v6176, %v8274
    %v8276 = vrot.slane %v6177, 7
    %v8277 = vrot.slane %v6178, 6
    %v8278 = vsel %vm6354, %v8277, %v8276
    %v8279 = vrot.slane %v6179, 5
    %v8280 = vsel %vm6357, %v8279, %v8278
    %v8281 = vrot.slane %v6180, 4
    %v8282 = vsel %vm6360, %v8281, %v8280
    %v8283 = vrot.slane %v6181, 3
    %v8284 = vsel %vm6363, %v8283, %v8282
    %v8285 = vrot.slane %v6182, 2
    %v8286 = vsel %vm6366, %v8285, %v8284
    %v8287 = vrot.slane %v6183, 1
    %v8288 = vsel %vm6369, %v8287, %v8286
    %v8289 = vsel %vm6372, %v6184, %v8288
    %v8290 = vrot.slane %v6185, 7
    %v8291 = vrot.slane %v6186, 6
    %v8292 = vsel %vm6354, %v8291, %v8290
    %v8293 = vrot.slane %v6187, 5
    %v8294 = vsel %vm6357, %v8293, %v8292
    %v8295 = vrot.slane %v6188, 4
    %v8296 = vsel %vm6360, %v8295, %v8294
    %v8297 = vrot.slane %v6189, 3
    %v8298 = vsel %vm6363, %v8297, %v8296
    %v8299 = vrot.slane %v6190, 2
    %v8300 = vsel %vm6366, %v8299, %v8298
    %v8301 = vrot.slane %v6191, 1
    %v8302 = vsel %vm6369, %v8301, %v8300
    %v8303 = vsel %vm6372, %v6192, %v8302
    %v8304 = vrot.slane %v6193, 7
    %v8305 = vrot.slane %v6194, 6
    %v8306 = vsel %vm6354, %v8305, %v8304
    %v8307 = vrot.slane %v6195, 5
    %v8308 = vsel %vm6357, %v8307, %v8306
    %v8309 = vrot.slane %v6196, 4
    %v8310 = vsel %vm6360, %v8309, %v8308
    %v8311 = vrot.slane %v6197, 3
    %v8312 = vsel %vm6363, %v8311, %v8310
    %v8313 = vrot.slane %v6198, 2
    %v8314 = vsel %vm6366, %v8313, %v8312
    %v8315 = vrot.slane %v6199, 1
    %v8316 = vsel %vm6369, %v8315, %v8314
    %v8317 = vsel %vm6372, %v6200, %v8316
    %v8318 = vrot.slane %v6201, 7
    %v8319 = vrot.slane %v6202, 6
    %v8320 = vsel %vm6354, %v8319, %v8318
    %v8321 = vrot.slane %v6203, 5
    %v8322 = vsel %vm6357, %v8321, %v8320
    %v8323 = vrot.slane %v6204, 4
    %v8324 = vsel %vm6360, %v8323, %v8322
    %v8325 = vrot.slane %v6205, 3
    %v8326 = vsel %vm6363, %v8325, %v8324
    %v8327 = vrot.slane %v6206, 2
    %v8328 = vsel %vm6366, %v8327, %v8326
    %v8329 = vrot.slane %v6207, 1
    %v8330 = vsel %vm6369, %v8329, %v8328
    %v8331 = vsel %vm6372, %v6208, %v8330
    %v8332 = vrot.slane %v6209, 7
    %v8333 = vrot.slane %v6210, 6
    %v8334 = vsel %vm6354, %v8333, %v8332
    %v8335 = vrot.slane %v6211, 5
    %v8336 = vsel %vm6357, %v8335, %v8334
    %v8337 = vrot.slane %v6212, 4
    %v8338 = vsel %vm6360, %v8337, %v8336
    %v8339 = vrot.slane %v6213, 3
    %v8340 = vsel %vm6363, %v8339, %v8338
    %v8341 = vrot.slane %v6214, 2
    %v8342 = vsel %vm6366, %v8341, %v8340
    %v8343 = vrot.slane %v6215, 1
    %v8344 = vsel %vm6369, %v8343, %v8342
    %v8345 = vsel %vm6372, %v6216, %v8344
    %v8346 = vrot.slane %v6217, 7
    %v8347 = vrot.slane %v6218, 6
    %v8348 = vsel %vm6354, %v8347, %v8346
    %v8349 = vrot.slane %v6219, 5
    %v8350 = vsel %vm6357, %v8349, %v8348
    %v8351 = vrot.slane %v6220, 4
    %v8352 = vsel %vm6360, %v8351, %v8350
    %v8353 = vrot.slane %v6221, 3
    %v8354 = vsel %vm6363, %v8353, %v8352
    %v8355 = vrot.slane %v6222, 2
    %v8356 = vsel %vm6366, %v8355, %v8354
    %v8357 = vrot.slane %v6223, 1
    %v8358 = vsel %vm6369, %v8357, %v8356
    %v8359 = vsel %vm6372, %v6224, %v8358
    %8360 = vrot.lane.b32.xlu0 %v8149, 64
    %v8361 = vpop.permute.xlu0 %8360
    %8362 = vrot.lane.b32.xlu0 %v8163, 64
    %v8363 = vpop.permute.xlu0 %8362
    %8364 = vrot.lane.b32.xlu0 %v8177, 64
    %v8365 = vpop.permute.xlu0 %8364
    %8366 = vrot.lane.b32.xlu0 %v8191, 64
    %v8367 = vpop.permute.xlu0 %8366
    %8368 = vrot.lane.b32.xlu0 %v8205, 64
    %v8369 = vpop.permute.xlu0 %8368
    %8370 = vrot.lane.b32.xlu0 %v8219, 64
    %v8371 = vpop.permute.xlu0 %8370
    %8372 = vrot.lane.b32.xlu0 %v8233, 64
    %v8373 = vpop.permute.xlu0 %8372
    %8374 = vrot.lane.b32.xlu0 %v8247, 64
    %v8375 = vpop.permute.xlu0 %8374
    %8376 = vrot.lane.b32.xlu0 %v8261, 64
    %v8377 = vpop.permute.xlu0 %8376
    %8378 = vrot.lane.b32.xlu0 %v8275, 64
    %v8379 = vpop.permute.xlu0 %8378
    %8380 = vrot.lane.b32.xlu0 %v8289, 64
    %v8381 = vpop.permute.xlu0 %8380
    %8382 = vrot.lane.b32.xlu0 %v8303, 64
    %v8383 = vpop.permute.xlu0 %8382
    %8384 = vrot.lane.b32.xlu0 %v8317, 64
    %v8385 = vpop.permute.xlu0 %8384
    %8386 = vrot.lane.b32.xlu0 %v8331, 64
    %v8387 = vpop.permute.xlu0 %8386
    %8388 = vrot.lane.b32.xlu0 %v8345, 64
    %v8389 = vpop.permute.xlu0 %8388
    %8390 = vrot.lane.b32.xlu0 %v8359, 64
    %v8391 = vpop.permute.xlu0 %8390
    %v8408 = vsel %vm4859, %v6373, %v6825
    %v8409 = vsel %vm4859, %v6387, %v6827
    %v8410 = vsel %vm4859, %v6401, %v6829
    %v8411 = vsel %vm4859, %v6415, %v6831
    %v8412 = vsel %vm4859, %v6429, %v6833
    %v8413 = vsel %vm4859, %v6443, %v6835
    %v8414 = vsel %vm4859, %v6457, %v6837
    %v8415 = vsel %vm4859, %v6471, %v6839
    %v8416 = vsel %vm4859, %v6485, %v6841
    %v8417 = vsel %vm4859, %v6499, %v6843
    %v8418 = vsel %vm4859, %v6513, %v6845
    %v8419 = vsel %vm4859, %v6527, %v6847
    %v8420 = vsel %vm4859, %v6541, %v6849
    %v8421 = vsel %vm4859, %v6555, %v6851
    %v8422 = vsel %vm4859, %v6569, %v6853
    %v8423 = vsel %vm4859, %v6583, %v6855
    %v8424 = vsel %vm4859, %v6885, %v7337
    %v8425 = vsel %vm4859, %v6899, %v7339
    %v8426 = vsel %vm4859, %v6913, %v7341
    %v8427 = vsel %vm4859, %v6927, %v7343
    %v8428 = vsel %vm4859, %v6941, %v7345
    %v8429 = vsel %vm4859, %v6955, %v7347
    %v8430 = vsel %vm4859, %v6969, %v7349
    %v8431 = vsel %vm4859, %v6983, %v7351
    %v8432 = vsel %vm4859, %v6997, %v7353
    %v8433 = vsel %vm4859, %v7011, %v7355
    %v8434 = vsel %vm4859, %v7025, %v7357
    %v8435 = vsel %vm4859, %v7039, %v7359
    %v8436 = vsel %vm4859, %v7053, %v7361
    %v8437 = vsel %vm4859, %v7067, %v7363
    %v8438 = vsel %vm4859, %v7081, %v7365
    %v8439 = vsel %vm4859, %v7095, %v7367
    %v8440 = vsel %vm4859, %v7397, %v7849
    %v8441 = vsel %vm4859, %v7411, %v7851
    %v8442 = vsel %vm4859, %v7425, %v7853
    %v8443 = vsel %vm4859, %v7439, %v7855
    %v8444 = vsel %vm4859, %v7453, %v7857
    %v8445 = vsel %vm4859, %v7467, %v7859
    %v8446 = vsel %vm4859, %v7481, %v7861
    %v8447 = vsel %vm4859, %v7495, %v7863
    %v8448 = vsel %vm4859, %v7509, %v7865
    %v8449 = vsel %vm4859, %v7523, %v7867
    %v8450 = vsel %vm4859, %v7537, %v7869
    %v8451 = vsel %vm4859, %v7551, %v7871
    %v8452 = vsel %vm4859, %v7565, %v7873
    %v8453 = vsel %vm4859, %v7579, %v7875
    %v8454 = vsel %vm4859, %v7593, %v7877
    %v8455 = vsel %vm4859, %v7607, %v7879
    %v8456 = vsel %vm4859, %v7909, %v8361
    %v8457 = vsel %vm4859, %v7923, %v8363
    %v8458 = vsel %vm4859, %v7937, %v8365
    %v8459 = vsel %vm4859, %v7951, %v8367
    %v8460 = vsel %vm4859, %v7965, %v8369
    %v8461 = vsel %vm4859, %v7979, %v8371
    %v8462 = vsel %vm4859, %v7993, %v8373
    %v8463 = vsel %vm4859, %v8007, %v8375
    %v8464 = vsel %vm4859, %v8021, %v8377
    %v8465 = vsel %vm4859, %v8035, %v8379
    %v8466 = vsel %vm4859, %v8049, %v8381
    %v8467 = vsel %vm4859, %v8063, %v8383
    %v8468 = vsel %vm4859, %v8077, %v8385
    %v8469 = vsel %vm4859, %v8091, %v8387
    %v8470 = vsel %vm4859, %v8105, %v8389
    %v8471 = vsel %vm4859, %v8119, %v8391
    %v8472 = vld [vmem:[%s5] sm:$0xff]
    %v8473 = vld [vmem:[%s5 + $0x8] sm:$0xff]
    %v8474 = vld [vmem:[%s5 + $0x10] sm:$0xff]
    %v8475 = vld [vmem:[%s5 + $0x18] sm:$0xff]
    %v8476 = vld [vmem:[%s5 + $0x20] sm:$0xff]
    %v8477 = vld [vmem:[%s5 + $0x28] sm:$0xff]
    %v8478 = vld [vmem:[%s5 + $0x30] sm:$0xff]
    %v8479 = vld [vmem:[%s5 + $0x38] sm:$0xff]
    %v8480 = vld [vmem:[%s5 + $0x40] sm:$0xff]
    %v8481 = vld [vmem:[%s5 + $0x48] sm:$0xff]
    %v8482 = vld [vmem:[%s5 + $0x50] sm:$0xff]
    %v8483 = vld [vmem:[%s5 + $0x58] sm:$0xff]
    %v8484 = vld [vmem:[%s5 + $0x60] sm:$0xff]
    %v8485 = vld [vmem:[%s5 + $0x68] sm:$0xff]
    %v8486 = vld [vmem:[%s5 + $0x70] sm:$0xff]
    %v8487 = vld [vmem:[%s5 + $0x78] sm:$0xff]
    %v8488 = vld [vmem:[%s5 + $0x80] sm:$0xff]
    %v8489 = vld [vmem:[%s5 + $0x88] sm:$0xff]
    %v8490 = vld [vmem:[%s5 + $0x90] sm:$0xff]
    %v8491 = vld [vmem:[%s5 + $0x98] sm:$0xff]
    %v8492 = vld [vmem:[%s5 + $0xa0] sm:$0xff]
    %v8493 = vld [vmem:[%s5 + $0xa8] sm:$0xff]
    %v8494 = vld [vmem:[%s5 + $0xb0] sm:$0xff]
    %v8495 = vld [vmem:[%s5 + $0xb8] sm:$0xff]
    %v8496 = vld [vmem:[%s5 + $0xc0] sm:$0xff]
    %v8497 = vld [vmem:[%s5 + $0xc8] sm:$0xff]
    %v8498 = vld [vmem:[%s5 + $0xd0] sm:$0xff]
    %v8499 = vld [vmem:[%s5 + $0xd8] sm:$0xff]
    %v8500 = vld [vmem:[%s5 + $0xe0] sm:$0xff]
    %v8501 = vld [vmem:[%s5 + $0xe8] sm:$0xff]
    %v8502 = vld [vmem:[%s5 + $0xf0] sm:$0xff]
    %v8503 = vld [vmem:[%s5 + $0xf8] sm:$0xff]
    %v8504 = vld [vmem:[%s5 + $0x100] sm:$0xff]
    %v8505 = vld [vmem:[%s5 + $0x108] sm:$0xff]
    %v8506 = vld [vmem:[%s5 + $0x110] sm:$0xff]
    %v8507 = vld [vmem:[%s5 + $0x118] sm:$0xff]
    %v8508 = vld [vmem:[%s5 + $0x120] sm:$0xff]
    %v8509 = vld [vmem:[%s5 + $0x128] sm:$0xff]
    %v8510 = vld [vmem:[%s5 + $0x130] sm:$0xff]
    %v8511 = vld [vmem:[%s5 + $0x138] sm:$0xff]
    %v8512 = vld [vmem:[%s5 + $0x140] sm:$0xff]
    %v8513 = vld [vmem:[%s5 + $0x148] sm:$0xff]
    %v8514 = vld [vmem:[%s5 + $0x150] sm:$0xff]
    %v8515 = vld [vmem:[%s5 + $0x158] sm:$0xff]
    %v8516 = vld [vmem:[%s5 + $0x160] sm:$0xff]
    %v8517 = vld [vmem:[%s5 + $0x168] sm:$0xff]
    %v8518 = vld [vmem:[%s5 + $0x170] sm:$0xff]
    %v8519 = vld [vmem:[%s5 + $0x178] sm:$0xff]
    %v8520 = vld [vmem:[%s5 + $0x180] sm:$0xff]
    %v8521 = vld [vmem:[%s5 + $0x188] sm:$0xff]
    %v8522 = vld [vmem:[%s5 + $0x190] sm:$0xff]
    %v8523 = vld [vmem:[%s5 + $0x198] sm:$0xff]
    %v8524 = vld [vmem:[%s5 + $0x1a0] sm:$0xff]
    %v8525 = vld [vmem:[%s5 + $0x1a8] sm:$0xff]
    %v8526 = vld [vmem:[%s5 + $0x1b0] sm:$0xff]
    %v8527 = vld [vmem:[%s5 + $0x1b8] sm:$0xff]
    %v8528 = vld [vmem:[%s5 + $0x1c0] sm:$0xff]
    %v8529 = vld [vmem:[%s5 + $0x1c8] sm:$0xff]
    %v8530 = vld [vmem:[%s5 + $0x1d0] sm:$0xff]
    %v8531 = vld [vmem:[%s5 + $0x1d8] sm:$0xff]
    %v8532 = vld [vmem:[%s5 + $0x1e0] sm:$0xff]
    %v8533 = vld [vmem:[%s5 + $0x1e8] sm:$0xff]
    %v8534 = vld [vmem:[%s5 + $0x1f0] sm:$0xff]
    %v8535 = vld [vmem:[%s5 + $0x1f8] sm:$0xff]
    %v8536 = vld [vmem:[%s6] sm:$0x1]
    %v8538 = vlaneseq
    %v8539 = vshrl.u32 %v8538, 7
    %v8540 = vsub.s32 0, %v8539
    %v8541 = vrot.slane %v8536, %v8540
    %8543 = vmatprep.subr.mxu0 0.0
    %8544 = vmatpush1.msra.mxu0 %v8487
    %8545 = vmatprep.subr.mxu0 0.0
    %8546 = vmatpush1.msra.mxu0 %v8486
    %8547 = vmatprep.subr.mxu0 0.0
    %8548 = vmatpush1.msra.mxu0 %v8485
    %8549 = vmatprep.subr.mxu0 0.0
    %8550 = vmatpush1.msra.mxu0 %v8484
    %8551 = vmatprep.subr.mxu0 0.0
    %8552 = vmatpush1.msra.mxu0 %v8483
    %8553 = vmatprep.subr.mxu0 0.0
    %8554 = vmatpush1.msra.mxu0 %v8482
    %8555 = vmatprep.subr.mxu0 0.0
    %8556 = vmatpush1.msra.mxu0 %v8481
    %8557 = vmatprep.subr.mxu0 0.0
    %8558 = vmatpush1.msra.mxu0 %v8480
    %8559 = vmatprep.subr.mxu0 0.0
    %8560 = vmatpush1.msra.mxu0 %v8479
    %8561 = vmatprep.subr.mxu0 0.0
    %8562 = vmatpush1.msra.mxu0 %v8478
    %8563 = vmatprep.subr.mxu0 0.0
    %8564 = vmatpush1.msra.mxu0 %v8477
    %8565 = vmatprep.subr.mxu0 0.0
    %8566 = vmatpush1.msra.mxu0 %v8476
    %8567 = vmatprep.subr.mxu0 0.0
    %8568 = vmatpush1.msra.mxu0 %v8475
    %8569 = vmatprep.subr.mxu0 0.0
    %8570 = vmatpush1.msra.mxu0 %v8474
    %8571 = vmatprep.subr.mxu0 0.0
    %8572 = vmatpush1.msra.mxu0 %v8473
    %8573 = vmatprep.subr.mxu0 0.0
    %8574 = vmatpush1.msra.mxu0 %v8472
    %8575 = vmatprep.subr.mxu0 0.0
    %8576 = vmatpush2.msra.mxu0 %v8503
    %8577 = vmatprep.subr.mxu0 0.0
    %8578 = vmatpush2.msra.mxu0 %v8502
    %8579 = vmatprep.subr.mxu0 0.0
    %8580 = vmatpush2.msra.mxu0 %v8501
    %8581 = vmatprep.subr.mxu0 0.0
    %8582 = vmatpush2.msra.mxu0 %v8500
    %8583 = vmatprep.subr.mxu0 0.0
    %8584 = vmatpush2.msra.mxu0 %v8499
    %8585 = vmatprep.subr.mxu0 0.0
    %8586 = vmatpush2.msra.mxu0 %v8498
    %8587 = vmatprep.subr.mxu0 0.0
    %8588 = vmatpush2.msra.mxu0 %v8497
    %8589 = vmatprep.subr.mxu0 0.0
    %8590 = vmatpush2.msra.mxu0 %v8496
    %8591 = vmatprep.subr.mxu0 0.0
    %8592 = vmatpush2.msra.mxu0 %v8495
    %8593 = vmatprep.subr.mxu0 0.0
    %8594 = vmatpush2.msra.mxu0 %v8494
    %8595 = vmatprep.subr.mxu0 0.0
    %8596 = vmatpush2.msra.mxu0 %v8493
    %8597 = vmatprep.subr.mxu0 0.0
    %8598 = vmatpush2.msra.mxu0 %v8492
    %8599 = vmatprep.subr.mxu0 0.0
    %8600 = vmatpush2.msra.mxu0 %v8491
    %8601 = vmatprep.subr.mxu0 0.0
    %8602 = vmatpush2.msra.mxu0 %v8490
    %8603 = vmatprep.subr.mxu0 0.0
    %8604 = vmatpush2.msra.mxu0 %v8489
    %8605 = vmatprep.subr.mxu0 0.0
    %8606 = vmatpush2.msra.mxu0 %v8488
    %8607 = vmatprep.mubr.f32.mxu0 %v8424
    %8608 = vmatmul.mubr.f32.gmra.mxu0 %v8408
    %v8609 = vpop.f32.mrf.mxu0
    %v8610 = vadd.f32 %v8541, %v8609
    %v8611 = vpop.f32.mrf.mxu0
    %8612 = vmatprep.mubr.f32.mxu0 %v8425
    %8613 = vmatmul.mubr.f32.gmra.mxu0 %v8409
    %v8614 = vpop.f32.mrf.mxu0
    %v8615 = vadd.f32 %v8541, %v8614
    %v8616 = vpop.f32.mrf.mxu0
    %8617 = vmatprep.mubr.f32.mxu0 %v8426
    %8618 = vmatmul.mubr.f32.gmra.mxu0 %v8410
    %v8619 = vpop.f32.mrf.mxu0
    %v8620 = vadd.f32 %v8541, %v8619
    %v8621 = vpop.f32.mrf.mxu0
    %8622 = vmatprep.mubr.f32.mxu0 %v8427
    %8623 = vmatmul.mubr.f32.gmra.mxu0 %v8411
    %v8624 = vpop.f32.mrf.mxu0
    %v8625 = vadd.f32 %v8541, %v8624
    %v8626 = vpop.f32.mrf.mxu0
    %8627 = vmatprep.mubr.f32.mxu0 %v8428
    %8628 = vmatmul.mubr.f32.gmra.mxu0 %v8412
    %v8629 = vpop.f32.mrf.mxu0
    %v8630 = vadd.f32 %v8541, %v8629
    %v8631 = vpop.f32.mrf.mxu0
    %8632 = vmatprep.mubr.f32.mxu0 %v8429
    %8633 = vmatmul.mubr.f32.gmra.mxu0 %v8413
    %v8634 = vpop.f32.mrf.mxu0
    %v8635 = vadd.f32 %v8541, %v8634
    %v8636 = vpop.f32.mrf.mxu0
    %8637 = vmatprep.mubr.f32.mxu0 %v8430
    %8638 = vmatmul.mubr.f32.gmra.mxu0 %v8414
    %v8639 = vpop.f32.mrf.mxu0
    %v8640 = vadd.f32 %v8541, %v8639
    %v8641 = vpop.f32.mrf.mxu0
    %8642 = vmatprep.mubr.f32.mxu0 %v8431
    %8643 = vmatmul.mubr.f32.gmra.mxu0 %v8415
    %v8644 = vpop.f32.mrf.mxu0
    %v8645 = vadd.f32 %v8541, %v8644
    %v8646 = vpop.f32.mrf.mxu0
    %8647 = vmatprep.mubr.f32.mxu0 %v8432
    %8648 = vmatmul.mubr.f32.gmra.mxu0 %v8416
    %v8649 = vpop.f32.mrf.mxu0
    %v8650 = vadd.f32 %v8541, %v8649
    %v8651 = vpop.f32.mrf.mxu0
    %8652 = vmatprep.mubr.f32.mxu0 %v8433
    %8653 = vmatmul.mubr.f32.gmra.mxu0 %v8417
    %v8654 = vpop.f32.mrf.mxu0
    %v8655 = vadd.f32 %v8541, %v8654
    %v8656 = vpop.f32.mrf.mxu0
    %8657 = vmatprep.mubr.f32.mxu0 %v8434
    %8658 = vmatmul.mubr.f32.gmra.mxu0 %v8418
    %v8659 = vpop.f32.mrf.mxu0
    %v8660 = vadd.f32 %v8541, %v8659
    %v8661 = vpop.f32.mrf.mxu0
    %8662 = vmatprep.mubr.f32.mxu0 %v8435
    %8663 = vmatmul.mubr.f32.gmra.mxu0 %v8419
    %v8664 = vpop.f32.mrf.mxu0
    %v8665 = vadd.f32 %v8541, %v8664
    %v8666 = vpop.f32.mrf.mxu0
    %8667 = vmatprep.mubr.f32.mxu0 %v8436
    %8668 = vmatmul.mubr.f32.gmra.mxu0 %v8420
    %v8669 = vpop.f32.mrf.mxu0
    %v8670 = vadd.f32 %v8541, %v8669
    %v8671 = vpop.f32.mrf.mxu0
    %8672 = vmatprep.mubr.f32.mxu0 %v8437
    %8673 = vmatmul.mubr.f32.gmra.mxu0 %v8421
    %v8674 = vpop.f32.mrf.mxu0
    %v8675 = vadd.f32 %v8541, %v8674
    %v8676 = vpop.f32.mrf.mxu0
    %8677 = vmatprep.mubr.f32.mxu0 %v8438
    %8678 = vmatmul.mubr.f32.gmra.mxu0 %v8422
    %v8679 = vpop.f32.mrf.mxu0
    %v8680 = vadd.f32 %v8541, %v8679
    %v8681 = vpop.f32.mrf.mxu0
    %8682 = vmatprep.mubr.f32.mxu0 %v8439
    %8683 = vmatmul.mubr.f32.gmra.mxu0 %v8423
    %v8684 = vpop.f32.mrf.mxu0
    %v8685 = vadd.f32 %v8541, %v8684
    %v8686 = vpop.f32.mrf.mxu0
    %8687 = vdwg.mxu0
    %8688 = vmatprep.subr.mxu0 0.0
    %8689 = vmatpush1.msra.mxu0 %v8519
    %8690 = vmatprep.subr.mxu0 0.0
    %8691 = vmatpush1.msra.mxu0 %v8518
    %8692 = vmatprep.subr.mxu0 0.0
    %8693 = vmatpush1.msra.mxu0 %v8517
    %8694 = vmatprep.subr.mxu0 0.0
    %8695 = vmatpush1.msra.mxu0 %v8516
    %8696 = vmatprep.subr.mxu0 0.0
    %8697 = vmatpush1.msra.mxu0 %v8515
    %8698 = vmatprep.subr.mxu0 0.0
    %8699 = vmatpush1.msra.mxu0 %v8514
    %8700 = vmatprep.subr.mxu0 0.0
    %8701 = vmatpush1.msra.mxu0 %v8513
    %8702 = vmatprep.subr.mxu0 0.0
    %8703 = vmatpush1.msra.mxu0 %v8512
    %8704 = vmatprep.subr.mxu0 0.0
    %8705 = vmatpush1.msra.mxu0 %v8511
    %8706 = vmatprep.subr.mxu0 0.0
    %8707 = vmatpush1.msra.mxu0 %v8510
    %8708 = vmatprep.subr.mxu0 0.0
    %8709 = vmatpush1.msra.mxu0 %v8509
    %8710 = vmatprep.subr.mxu0 0.0
    %8711 = vmatpush1.msra.mxu0 %v8508
    %8712 = vmatprep.subr.mxu0 0.0
    %8713 = vmatpush1.msra.mxu0 %v8507
    %8714 = vmatprep.subr.mxu0 0.0
    %8715 = vmatpush1.msra.mxu0 %v8506
    %8716 = vmatprep.subr.mxu0 0.0
    %8717 = vmatpush1.msra.mxu0 %v8505
    %8718 = vmatprep.subr.mxu0 0.0
    %8719 = vmatpush1.msra.mxu0 %v8504
    %8720 = vmatprep.subr.mxu0 0.0
    %8721 = vmatpush2.msra.mxu0 %v8535
    %8722 = vmatprep.subr.mxu0 0.0
    %8723 = vmatpush2.msra.mxu0 %v8534
    %8724 = vmatprep.subr.mxu0 0.0
    %8725 = vmatpush2.msra.mxu0 %v8533
    %8726 = vmatprep.subr.mxu0 0.0
    %8727 = vmatpush2.msra.mxu0 %v8532
    %8728 = vmatprep.subr.mxu0 0.0
    %8729 = vmatpush2.msra.mxu0 %v8531
    %8730 = vmatprep.subr.mxu0 0.0
    %8731 = vmatpush2.msra.mxu0 %v8530
    %8732 = vmatprep.subr.mxu0 0.0
    %8733 = vmatpush2.msra.mxu0 %v8529
    %8734 = vmatprep.subr.mxu0 0.0
    %8735 = vmatpush2.msra.mxu0 %v8528
    %8736 = vmatprep.subr.mxu0 0.0
    %8737 = vmatpush2.msra.mxu0 %v8527
    %8738 = vmatprep.subr.mxu0 0.0
    %8739 = vmatpush2.msra.mxu0 %v8526
    %8740 = vmatprep.subr.mxu0 0.0
    %8741 = vmatpush2.msra.mxu0 %v8525
    %8742 = vmatprep.subr.mxu0 0.0
    %8743 = vmatpush2.msra.mxu0 %v8524
    %8744 = vmatprep.subr.mxu0 0.0
    %8745 = vmatpush2.msra.mxu0 %v8523
    %8746 = vmatprep.subr.mxu0 0.0
    %8747 = vmatpush2.msra.mxu0 %v8522
    %8748 = vmatprep.subr.mxu0 0.0
    %8749 = vmatpush2.msra.mxu0 %v8521
    %8750 = vmatprep.subr.mxu0 0.0
    %8751 = vmatpush2.msra.mxu0 %v8520
    %8752 = vmatprep.mubr.f32.mxu0 %v8456
    %8753 = vmatmul.mubr.f32.gmra.mxu0 %v8440
    %v8754 = vpop.f32.mrf.mxu0
    %v8755 = vadd.f32 %v8610, %v8754
    %v8756 = vpop.f32.mrf.mxu0
    %8757 = vmatprep.mubr.f32.mxu0 %v8457
    %8758 = vmatmul.mubr.f32.gmra.mxu0 %v8441
    %v8759 = vpop.f32.mrf.mxu0
    %v8760 = vadd.f32 %v8615, %v8759
    %v8761 = vpop.f32.mrf.mxu0
    %8762 = vmatprep.mubr.f32.mxu0 %v8458
    %8763 = vmatmul.mubr.f32.gmra.mxu0 %v8442
    %v8764 = vpop.f32.mrf.mxu0
    %v8765 = vadd.f32 %v8620, %v8764
    %v8766 = vpop.f32.mrf.mxu0
    %8767 = vmatprep.mubr.f32.mxu0 %v8459
    %8768 = vmatmul.mubr.f32.gmra.mxu0 %v8443
    %v8769 = vpop.f32.mrf.mxu0
    %v8770 = vadd.f32 %v8625, %v8769
    %v8771 = vpop.f32.mrf.mxu0
    %8772 = vmatprep.mubr.f32.mxu0 %v8460
    %8773 = vmatmul.mubr.f32.gmra.mxu0 %v8444
    %v8774 = vpop.f32.mrf.mxu0
    %v8775 = vadd.f32 %v8630, %v8774
    %v8776 = vpop.f32.mrf.mxu0
    %8777 = vmatprep.mubr.f32.mxu0 %v8461
    %8778 = vmatmul.mubr.f32.gmra.mxu0 %v8445
    %v8779 = vpop.f32.mrf.mxu0
    %v8780 = vadd.f32 %v8635, %v8779
    %v8781 = vpop.f32.mrf.mxu0
    %8782 = vmatprep.mubr.f32.mxu0 %v8462
    %8783 = vmatmul.mubr.f32.gmra.mxu0 %v8446
    %v8784 = vpop.f32.mrf.mxu0
    %v8785 = vadd.f32 %v8640, %v8784
    %v8786 = vpop.f32.mrf.mxu0
    %8787 = vmatprep.mubr.f32.mxu0 %v8463
    %8788 = vmatmul.mubr.f32.gmra.mxu0 %v8447
    %v8789 = vpop.f32.mrf.mxu0
    %v8790 = vadd.f32 %v8645, %v8789
    %v8791 = vpop.f32.mrf.mxu0
    %8792 = vmatprep.mubr.f32.mxu0 %v8464
    %8793 = vmatmul.mubr.f32.gmra.mxu0 %v8448
    %v8794 = vpop.f32.mrf.mxu0
    %v8795 = vadd.f32 %v8650, %v8794
    %v8796 = vpop.f32.mrf.mxu0
    %8797 = vmatprep.mubr.f32.mxu0 %v8465
    %8798 = vmatmul.mubr.f32.gmra.mxu0 %v8449
    %v8799 = vpop.f32.mrf.mxu0
    %v8800 = vadd.f32 %v8655, %v8799
    %v8801 = vpop.f32.mrf.mxu0
    %8802 = vmatprep.mubr.f32.mxu0 %v8466
    %8803 = vmatmul.mubr.f32.gmra.mxu0 %v8450
    %v8804 = vpop.f32.mrf.mxu0
    %v8805 = vadd.f32 %v8660, %v8804
    %v8806 = vpop.f32.mrf.mxu0
    %8807 = vmatprep.mubr.f32.mxu0 %v8467
    %8808 = vmatmul.mubr.f32.gmra.mxu0 %v8451
    %v8809 = vpop.f32.mrf.mxu0
    %v8810 = vadd.f32 %v8665, %v8809
    %v8811 = vpop.f32.mrf.mxu0
    %8812 = vmatprep.mubr.f32.mxu0 %v8468
    %8813 = vmatmul.mubr.f32.gmra.mxu0 %v8452
    %v8814 = vpop.f32.mrf.mxu0
    %v8815 = vadd.f32 %v8670, %v8814
    %v8816 = vpop.f32.mrf.mxu0
    %8817 = vmatprep.mubr.f32.mxu0 %v8469
    %8818 = vmatmul.mubr.f32.gmra.mxu0 %v8453
    %v8819 = vpop.f32.mrf.mxu0
    %v8820 = vadd.f32 %v8675, %v8819
    %v8821 = vpop.f32.mrf.mxu0
    %8822 = vmatprep.mubr.f32.mxu0 %v8470
    %8823 = vmatmul.mubr.f32.gmra.mxu0 %v8454
    %v8824 = vpop.f32.mrf.mxu0
    %v8825 = vadd.f32 %v8680, %v8824
    %v8826 = vpop.f32.mrf.mxu0
    %8827 = vmatprep.mubr.f32.mxu0 %v8471
    %8828 = vmatmul.mubr.f32.gmra.mxu0 %v8455
    %v8829 = vpop.f32.mrf.mxu0
    %v8830 = vadd.f32 %v8685, %v8829
    %v8831 = vpop.f32.mrf.mxu0
    %8832 = vdwg.mxu0
    %v8833 = vmax.f32 %v8755, 0.0
    %v8834 = vmax.f32 %v8760, 0.0
    %v8835 = vmax.f32 %v8765, 0.0
    %v8836 = vmax.f32 %v8770, 0.0
    %v8837 = vmax.f32 %v8775, 0.0
    %v8838 = vmax.f32 %v8780, 0.0
    %v8839 = vmax.f32 %v8785, 0.0
    %v8840 = vmax.f32 %v8790, 0.0
    %v8841 = vmax.f32 %v8795, 0.0
    %v8842 = vmax.f32 %v8800, 0.0
    %v8843 = vmax.f32 %v8805, 0.0
    %v8844 = vmax.f32 %v8810, 0.0
    %v8845 = vmax.f32 %v8815, 0.0
    %v8846 = vmax.f32 %v8820, 0.0
    %v8847 = vmax.f32 %v8825, 0.0
    %v8848 = vmax.f32 %v8830, 0.0
    %v8849 = vld [vmem:[%s7] sm:$0xff]
    %v8850 = vld [vmem:[%s8] sm:$0xff]
    %8852 = vset.pattern.permute.xlu0 0
    %8853 = vperm.xlu0 %8852, %v8850
    %v8854 = vpop.permute.xlu0 %8853
    %8856 = vmatprep.subr.mxu0 0.0
    %8857 = vmatpush1.xpose.msra.mxu0 %v8848
    %8858 = vmatprep.subr.mxu0 0.0
    %8859 = vmatpush1.xpose.msra.mxu0 %v8847
    %8860 = vmatprep.subr.mxu0 0.0
    %8861 = vmatpush1.xpose.msra.mxu0 %v8846
    %8862 = vmatprep.subr.mxu0 0.0
    %8863 = vmatpush1.xpose.msra.mxu0 %v8845
    %8864 = vmatprep.subr.mxu0 0.0
    %8865 = vmatpush1.xpose.msra.mxu0 %v8844
    %8866 = vmatprep.subr.mxu0 0.0
    %8867 = vmatpush1.xpose.msra.mxu0 %v8843
    %8868 = vmatprep.subr.mxu0 0.0
    %8869 = vmatpush1.xpose.msra.mxu0 %v8842
    %8870 = vmatprep.subr.mxu0 0.0
    %8871 = vmatpush1.xpose.msra.mxu0 %v8841
    %8872 = vmatprep.subr.mxu0 0.0
    %8873 = vmatpush1.xpose.msra.mxu0 %v8840
    %8874 = vmatprep.subr.mxu0 0.0
    %8875 = vmatpush1.xpose.msra.mxu0 %v8839
    %8876 = vmatprep.subr.mxu0 0.0
    %8877 = vmatpush1.xpose.msra.mxu0 %v8838
    %8878 = vmatprep.subr.mxu0 0.0
    %8879 = vmatpush1.xpose.msra.mxu0 %v8837
    %8880 = vmatprep.subr.mxu0 0.0
    %8881 = vmatpush1.xpose.msra.mxu0 %v8836
    %8882 = vmatprep.subr.mxu0 0.0
    %8883 = vmatpush1.xpose.msra.mxu0 %v8835
    %8884 = vmatprep.subr.mxu0 0.0
    %8885 = vmatpush1.xpose.msra.mxu0 %v8834
    %8886 = vmatprep.subr.mxu0 0.0
    %8887 = vmatpush1.xpose.msra.mxu0 %v8833
    %8888 = vmatprep.subr.mxu0 0.0
    %8889 = vmatpush2.xpose.msra.mxu0 0.0
    %8890 = vmatprep.subr.mxu0 0.0
    %8891 = vmatpush2.xpose.msra.mxu0 0.0
    %8892 = vmatprep.subr.mxu0 0.0
    %8893 = vmatpush2.xpose.msra.mxu0 0.0
    %8894 = vmatprep.subr.mxu0 0.0
    %8895 = vmatpush2.xpose.msra.mxu0 0.0
    %8896 = vmatprep.subr.mxu0 0.0
    %8897 = vmatpush2.xpose.msra.mxu0 0.0
    %8898 = vmatprep.subr.mxu0 0.0
    %8899 = vmatpush2.xpose.msra.mxu0 0.0
    %8900 = vmatprep.subr.mxu0 0.0
    %8901 = vmatpush2.xpose.msra.mxu0 0.0
    %8902 = vmatprep.subr.mxu0 0.0
    %8903 = vmatpush2.xpose.msra.mxu0 0.0
    %8904 = vmatprep.subr.mxu0 0.0
    %8905 = vmatpush2.xpose.msra.mxu0 0.0
    %8906 = vmatprep.subr.mxu0 0.0
    %8907 = vmatpush2.xpose.msra.mxu0 0.0
    %8908 = vmatprep.subr.mxu0 0.0
    %8909 = vmatpush2.xpose.msra.mxu0 0.0
    %8910 = vmatprep.subr.mxu0 0.0
    %8911 = vmatpush2.xpose.msra.mxu0 0.0
    %8912 = vmatprep.subr.mxu0 0.0
    %8913 = vmatpush2.xpose.msra.mxu0 0.0
    %8914 = vmatprep.subr.mxu0 0.0
    %8915 = vmatpush2.xpose.msra.mxu0 0.0
    %8916 = vmatprep.subr.mxu0 0.0
    %8917 = vmatpush2.xpose.msra.mxu0 0.0
    %8918 = vmatprep.subr.mxu0 0.0
    %8919 = vmatpush2.xpose.msra.mxu0 0.0
    %8920 = vmatprep.mubr.f32.mxu0 0.0
    %8921 = vmatmul.mubr.f32.gmra.mxu0 %v8849
    %v8922 = vpop.f32.mrf.mxu0
    %v8923 = vadd.f32 %v8854, %v8922
    %v8924 = vpop.f32.mrf.mxu0
    %8925 = vdwg.mxu0
    %8926 = vst [vmem:[#allocation2] sm:$0xff] %v8923
    // Predicated region
    $region38: #{tpu_custom_call.1} parent=1 // pred_check
      _
    $region39: #{tpu_custom_call.1} parent=1 // pred_check_branch
      %8928 = sbr.rel (0) target = $region41
    $region40: #{tpu_custom_call.1} parent=1 // pred_region
      %s8930 = ssub.s32 128, 128
      %8931 = vsyncadd [#allocation3], %s8930
      %s8933 = sshll.u32 [#allocation2], 4
      %s8934 = int_to_ptr.vmem [resolvable:$true] %s8933
      %8936 = dma.vmem_to_hbm [thread:$0]  %s8934, 128, %s9, [#allocation3]
    $region41: #{tpu_custom_call.1} parent=1 // pred_fallthru
      _
    // Predicated region
    $region42: #{tpu_custom_call.1} parent=1 // pred_check
      _
    $region43: #{tpu_custom_call.1} parent=1 // pred_check_branch
      %8938 = sbr.rel (0) target = $region45
    $region44: #{tpu_custom_call.1} parent=1 // pred_region
      %8939 = dma.done [#allocation3], 128
    $region45: #{tpu_custom_call.1} parent=1 // pred_fallthru
      _
    %8940 = vsyncpa [#allocation3], 1

</llo_original>
